<compile_context>
chip_gen: v6e
topology: v6e:2x2x1
jax: 0.10.0
libtpu: 0.0.40
codegen_flags: <defaults>
</compile_context>

<pallas_src>
import functools

import jax
import jax.numpy as jnp
from jax.experimental import pallas as pl
from jax.experimental.pallas import tpu as pltpu


# ----------------------------------------------------------------------------
# Config
# ----------------------------------------------------------------------------

class Config:
    input_dim = 4        # C
    patch_len = 16
    stride = 8
    d_model = 64
    num_layers = 3
    nhead = 4
    dim_feedforward = 2048   # PyTorch TransformerEncoderLayer default
    pred_len = 12            # small value (module default is 144)


LAYER_PARAM_ORDER = ("in_w", "in_b", "out_w", "out_b", "ln1_g", "ln1_b",
                     "ff1_w", "ff1_b", "ff2_w", "ff2_b", "ln2_g", "ln2_b")


# ----------------------------------------------------------------------------
# Fused Pallas kernel (one grid step = bb batch elements, full forward)
# ----------------------------------------------------------------------------

def _layernorm(x, g, b, eps=1e-5):
    mu = jnp.mean(x, axis=-1, keepdims=True)
    var = jnp.mean(jnp.square(x - mu), axis=-1, keepdims=True)
    return (x - mu) * jax.lax.rsqrt(var + eps) * g + b


def _fused_forward_kernel(*refs, num_layers, nhead, head_dim, bb, seq):
    o_ref = refs[-1]
    patches_ref, emb_w_ref, emb_b_ref, head_w_ref, head_b_ref = refs[:5]
    layer_refs = refs[5:-1]

    f32 = jnp.float32
    bf16 = jnp.bfloat16
    scale = 1.0 / (head_dim ** 0.5)
    M = bb * seq

    # ---- patch embedding (all bb items fused: M = bb*S rows) -------------
    patches = patches_ref[...].reshape(M, -1)                           # (M, P*C)
    h = (jnp.dot(patches.astype(bf16), emb_w_ref[...],
                 preferred_element_type=f32)
         + emb_b_ref[...])                                              # (M, E) f32
    E = h.shape[-1]

    # ---- transformer encoder layers (post-norm, relu FFN, eval mode) -----
    for li in range(num_layers):
        (in_w, in_b, out_w, out_b, ln1_g, ln1_b,
         ff1_w, ff1_b, ff2_w, ff2_b, ln2_g, ln2_b) = \
            layer_refs[li * 12:(li + 1) * 12]

        # packed QKV projection on the full (M, E) slab
        qkv = (jnp.dot(h.astype(bf16), in_w[...],
                       preferred_element_type=f32) + in_b[...])         # (M, 3E)
        qkv3 = qkv.reshape(bb, seq, 3 * E)

        # per-head attention, batched over the bb axis (no per-item dots)
        head_outs = []
        for hi in range(nhead):
            lo = hi * head_dim
            q = qkv3[:, :, lo:lo + head_dim]                            # (bb,S,hd)
            k = qkv3[:, :, E + lo:E + lo + head_dim]
            v = qkv3[:, :, 2 * E + lo:2 * E + lo + head_dim]
            s = jnp.einsum("bqd,bkd->bqk",
                           q.astype(bf16), k.astype(bf16),
                           preferred_element_type=f32) * scale          # (bb,S,S)
            s = s - jnp.max(s, axis=-1, keepdims=True)
            p = jnp.exp(s)
            p = p * pl.reciprocal(jnp.sum(p, axis=-1, keepdims=True),
                                  approx=True)
            oh = jnp.einsum("bqk,bkd->bqd",
                            p.astype(bf16), v.astype(bf16),
                            preferred_element_type=f32)                 # (bb,S,hd)
            head_outs.append(oh)

        # single K=64 output projection instead of per-head K=16 folds
        attn = jnp.concatenate(head_outs, axis=-1).reshape(M, E)        # (M, E)
        attn = (jnp.dot(attn.astype(bf16), out_w[...],
                        preferred_element_type=f32) + out_b[...])
        h = _layernorm(attn + h, ln1_g[...], ln1_b[...])

        # feed-forward (whole (E, F) weight as one block, lane-dense)
        ff = (jnp.dot(h.astype(bf16), ff1_w[...],
                      preferred_element_type=f32) + ff1_b[...])         # (M, F)
        ff = jnp.maximum(ff, 0.0)
        ff = (jnp.dot(ff.astype(bf16), ff2_w[...],
                      preferred_element_type=f32) + ff2_b[...])         # (M, E)
        h = _layernorm(ff + h, ln2_g[...], ln2_b[...])

    # ---- prediction head on last patch token per batch element -----------
    last = h.reshape(bb, seq, E)[:, seq - 1, :]                         # (bb, E)
    out = (jnp.dot(last.astype(bf16), head_w_ref[...],
                   preferred_element_type=f32) + head_b_ref[...])       # (bb, out)
    o_ref[...] = out.astype(o_ref.dtype)


# ----------------------------------------------------------------------------
# Wrapper
# ----------------------------------------------------------------------------

def _pick_block_batch(B, n_patches, target_rows=256):
    # Fill the MXU rows: bb*n_patches ~ 256 (v6e/v7x tile), capped by B.
    # (On v7x with small B this may leave one TC idle; MXU row fill dominates.)
    return max(1, min(B, max(1, target_rows // n_patches)))


def patchtst_forward(x, params, cfg):
    B, T, C = x.shape
    P, St, E = cfg.patch_len, cfg.stride, cfg.d_model
    n = (T - P) // St + 1
    PC = P * C
    out_dim = C * cfg.pred_len

    # x.unfold(1, P, St).permute(0,1,3,2).reshape(B, n, P*C) as ONE gather
    idx = jnp.arange(n)[:, None] * St + jnp.arange(P)[None, :]          # (n, P)
    patches = x[:, idx, :].reshape(B, n, PC)                            # (B, n, P*C)

    bb = _pick_block_batch(B, n)
    Bp = -(-B // bb) * bb                                               # pad to bb
    if Bp != B:
        patches = jnp.pad(patches, ((0, Bp - B), (0, 0), (0, 0)))

    def row(v):
        return v.reshape(1, -1)

    def wcast(v):                       # bf16 matmul operands, f32 accumulation
        return v.astype(jnp.bfloat16)

    inputs = [patches,
              wcast(params["emb_w"]), row(params["emb_b"]),
              wcast(params["head_w"]), row(params["head_b"])]
    in_specs = [
        pl.BlockSpec((bb, n, PC), lambda b: (b, 0, 0)),                 # per-block batch
        pl.BlockSpec((PC, E), lambda b: (0, 0)),
        pl.BlockSpec((1, E), lambda b: (0, 0)),
        pl.BlockSpec((E, out_dim), lambda b: (0, 0)),
        pl.BlockSpec((1, out_dim), lambda b: (0, 0)),
    ]
    for layer in params["layers"]:
        for name in LAYER_PARAM_ORDER:
            v = layer[name]
            if v.ndim == 1:
                v = row(v)
            elif name.endswith("_w"):
                v = wcast(v)
            inputs.append(v)
            in_specs.append(pl.BlockSpec(tuple(v.shape), lambda b: (0, 0)))

    kernel = functools.partial(
        _fused_forward_kernel,
        num_layers=cfg.num_layers,
        nhead=cfg.nhead,
        head_dim=E // cfg.nhead,
        bb=bb,
        seq=n,
    )

    out = pl.pallas_call(
        kernel,
        out_shape=jax.ShapeDtypeStruct((Bp, out_dim), x.dtype),
        grid=(Bp // bb,),
        in_specs=in_specs,
        out_specs=pl.BlockSpec((bb, out_dim), lambda b: (b, 0)),
        compiler_params=pltpu.CompilerParams(
            dimension_semantics=("parallel",),      # shard batch blocks over TCs
            vmem_limit_bytes=32 * 1024 * 1024,
        ),
    )(*inputs)

    return out[:B].reshape(B, cfg.pred_len, C)


# ----------------------------------------------------------------------------
# Pure-JAX reference (f32, for a sanity check against the kernel)
# ----------------------------------------------------------------------------

def patchtst_reference(x, params, cfg):
    B, T, C = x.shape
    P, St, E, H = cfg.patch_len, cfg.stride, cfg.d_model, cfg.nhead
    hd = E // H
    n = (T - P) // St + 1
    idx = jnp.arange(n)[:, None] * St + jnp.arange(P)[None, :]
    patches = x[:, idx, :].reshape(B, n, P * C)
    h = patches @ params["emb_w"] + params["emb_b"]
    for p in params["layers"]:
        qkv = h @ p["in_w"] + p["in_b"]
        q, k, v = jnp.split(qkv, 3, axis=-1)

        def split(t):
            return t.reshape(B, n, H, hd).transpose(0, 2, 1, 3)

        q, k, v = split(q), split(k), split(v)
        s = jnp.einsum("bhqd,bhkd->bhqk", q, k) / (hd ** 0.5)
        a = jax.nn.softmax(s, axis=-1)
        attn = jnp.einsum("bhqk,bhkd->bhqd", a, v)
        attn = attn.transpose(0, 2, 1, 3).reshape(B, n, E)
        attn = attn @ p["out_w"] + p["out_b"]
        h = _layernorm(attn + h, p["ln1_g"], p["ln1_b"])
        ff = jax.nn.relu(h @ p["ff1_w"] + p["ff1_b"]) @ p["ff2_w"] + p["ff2_b"]
        h = _layernorm(ff + h, p["ln2_g"], p["ln2_b"])
    out = h[:, -1] @ params["head_w"] + params["head_b"]
    return out.reshape(B, cfg.pred_len, C)


# ----------------------------------------------------------------------------
# Params
# ----------------------------------------------------------------------------

def init_params(key, cfg):
    E, F, C, P = cfg.d_model, cfg.dim_feedforward, cfg.input_dim, cfg.patch_len

    def dense(key, fan_in, fan_out):
        kw, kb = jax.random.split(key)
        w = jax.random.normal(kw, (fan_in, fan_out), jnp.float32) * 0.02
        b = jax.random.normal(kb, (fan_out,), jnp.float32) * 0.02
        return w, b

    keys = jax.random.split(key, 2 + cfg.num_layers)
    params = {}
    params["emb_w"], params["emb_b"] = dense(keys[0], P * C, E)
    params["head_w"], params["head_b"] = dense(keys[1], E, C * cfg.pred_len)

    layers = []
    for li in range(cfg.num_layers):
        lk = jax.random.split(keys[2 + li], 4)
        layer = {}
        layer["in_w"], layer["in_b"] = dense(lk[0], E, 3 * E)   # packed q,k,v
        layer["out_w"], layer["out_b"] = dense(lk[1], E, E)     # attn out proj
        layer["ff1_w"], layer["ff1_b"] = dense(lk[2], E, F)
        layer["ff2_w"], layer["ff2_b"] = dense(lk[3], F, E)
        layer["ln1_g"] = jnp.ones((E,), jnp.float32)
        layer["ln1_b"] = jnp.zeros((E,), jnp.float32)
        layer["ln2_g"] = jnp.ones((E,), jnp.float32)
        layer["ln2_b"] = jnp.zeros((E,), jnp.float32)
        layers.append(layer)
    params["layers"] = layers
    return params


# ----------------------------------------------------------------------------

if __name__ == "__main__":
    cfg = Config()
    key = jax.random.PRNGKey(0)
    kx, kp = jax.random.split(key)

    B, T, C = 2, 72, cfg.input_dim          # -> (72-16)/8+1 = 8 patches
    x = jax.random.normal(kx, (B, T, C), jnp.float32)
    params = init_params(kp, cfg)

    fwd = jax.jit(functools.partial(patchtst_forward, cfg=cfg))
    y = fwd(x, params)
    jax.block_until_ready(y)

    y_ref = patchtst_reference(x, params, cfg)
    assert y.shape == (B, cfg.pred_len, C), y.shape
    assert jnp.all(jnp.isfinite(y))
    # bf16 matmul operands (f32 accumulation) -> loosened tolerance vs f32 ref
    max_err = float(jnp.max(jnp.abs(y - y_ref)))
    assert max_err < 5e-2, max_err
    print("KERNEL_OK")
</pallas_src>

<mosaic_0001>
module attributes {stable_mosaic.version = 11 : i64} {
  func.func @_fused_forward_kernel(%arg0: i32, %arg1: memref<2x8x64xf32, #tpu.memory_space<vmem>>, %arg2: memref<64x64xbf16, #tpu.memory_space<vmem>>, %arg3: memref<1x64xf32, #tpu.memory_space<vmem>>, %arg4: memref<64x48xbf16, #tpu.memory_space<vmem>>, %arg5: memref<1x48xf32, #tpu.memory_space<vmem>>, %arg6: memref<64x192xbf16, #tpu.memory_space<vmem>>, %arg7: memref<1x192xf32, #tpu.memory_space<vmem>>, %arg8: memref<64x64xbf16, #tpu.memory_space<vmem>>, %arg9: memref<1x64xf32, #tpu.memory_space<vmem>>, %arg10: memref<1x64xf32, #tpu.memory_space<vmem>>, %arg11: memref<1x64xf32, #tpu.memory_space<vmem>>, %arg12: memref<64x2048xbf16, #tpu.memory_space<vmem>>, %arg13: memref<1x2048xf32, #tpu.memory_space<vmem>>, %arg14: memref<2048x64xbf16, #tpu.memory_space<vmem>>, %arg15: memref<1x64xf32, #tpu.memory_space<vmem>>, %arg16: memref<1x64xf32, #tpu.memory_space<vmem>>, %arg17: memref<1x64xf32, #tpu.memory_space<vmem>>, %arg18: memref<64x192xbf16, #tpu.memory_space<vmem>>, %arg19: memref<1x192xf32, #tpu.memory_space<vmem>>, %arg20: memref<64x64xbf16, #tpu.memory_space<vmem>>, %arg21: memref<1x64xf32, #tpu.memory_space<vmem>>, %arg22: memref<1x64xf32, #tpu.memory_space<vmem>>, %arg23: memref<1x64xf32, #tpu.memory_space<vmem>>, %arg24: memref<64x2048xbf16, #tpu.memory_space<vmem>>, %arg25: memref<1x2048xf32, #tpu.memory_space<vmem>>, %arg26: memref<2048x64xbf16, #tpu.memory_space<vmem>>, %arg27: memref<1x64xf32, #tpu.memory_space<vmem>>, %arg28: memref<1x64xf32, #tpu.memory_space<vmem>>, %arg29: memref<1x64xf32, #tpu.memory_space<vmem>>, %arg30: memref<64x192xbf16, #tpu.memory_space<vmem>>, %arg31: memref<1x192xf32, #tpu.memory_space<vmem>>, %arg32: memref<64x64xbf16, #tpu.memory_space<vmem>>, %arg33: memref<1x64xf32, #tpu.memory_space<vmem>>, %arg34: memref<1x64xf32, #tpu.memory_space<vmem>>, %arg35: memref<1x64xf32, #tpu.memory_space<vmem>>, %arg36: memref<64x2048xbf16, #tpu.memory_space<vmem>>, %arg37: memref<1x2048xf32, #tpu.memory_space<vmem>>, %arg38: memref<2048x64xbf16, #tpu.memory_space<vmem>>, %arg39: memref<1x64xf32, #tpu.memory_space<vmem>>, %arg40: memref<1x64xf32, #tpu.memory_space<vmem>>, %arg41: memref<1x64xf32, #tpu.memory_space<vmem>>, %arg42: memref<2x48xf32, #tpu.memory_space<vmem>>) attributes {dimension_semantics = [#tpu.dimension_semantics<parallel>], iteration_bounds = array<i64: 1>, scalar_prefetch = 0 : i64, scratch_operands = 0 : i64, tpu.core_type = #tpu.core_type<tc>, window_params = [{transform_indices = @transform_0, window_bounds = array<i64: 2, 8, 64>}, {pipeline_mode = #tpu.pipeline_mode<synchronous>, transform_indices = @transform_1, window_bounds = array<i64: 64, 64>}, {pipeline_mode = #tpu.pipeline_mode<synchronous>, transform_indices = @transform_2, window_bounds = array<i64: 1, 64>}, {pipeline_mode = #tpu.pipeline_mode<synchronous>, transform_indices = @transform_3, window_bounds = array<i64: 64, 48>}, {pipeline_mode = #tpu.pipeline_mode<synchronous>, transform_indices = @transform_4, window_bounds = array<i64: 1, 48>}, {pipeline_mode = #tpu.pipeline_mode<synchronous>, transform_indices = @transform_5, window_bounds = array<i64: 64, 192>}, {pipeline_mode = #tpu.pipeline_mode<synchronous>, transform_indices = @transform_6, window_bounds = array<i64: 1, 192>}, {pipeline_mode = #tpu.pipeline_mode<synchronous>, transform_indices = @transform_7, window_bounds = array<i64: 64, 64>}, {pipeline_mode = #tpu.pipeline_mode<synchronous>, transform_indices = @transform_8, window_bounds = array<i64: 1, 64>}, {pipeline_mode = #tpu.pipeline_mode<synchronous>, transform_indices = @transform_9, window_bounds = array<i64: 1, 64>}, {pipeline_mode = #tpu.pipeline_mode<synchronous>, transform_indices = @transform_10, window_bounds = array<i64: 1, 64>}, {pipeline_mode = #tpu.pipeline_mode<synchronous>, transform_indices = @transform_11, window_bounds = array<i64: 64, 2048>}, {pipeline_mode = #tpu.pipeline_mode<synchronous>, transform_indices = @transform_12, window_bounds = array<i64: 1, 2048>}, {pipeline_mode = #tpu.pipeline_mode<synchronous>, transform_indices = @transform_13, window_bounds = array<i64: 2048, 64>}, {pipeline_mode = #tpu.pipeline_mode<synchronous>, transform_indices = @transform_14, window_bounds = array<i64: 1, 64>}, {pipeline_mode = #tpu.pipeline_mode<synchronous>, transform_indices = @transform_15, window_bounds = array<i64: 1, 64>}, {pipeline_mode = #tpu.pipeline_mode<synchronous>, transform_indices = @transform_16, window_bounds = array<i64: 1, 64>}, {pipeline_mode = #tpu.pipeline_mode<synchronous>, transform_indices = @transform_17, window_bounds = array<i64: 64, 192>}, {pipeline_mode = #tpu.pipeline_mode<synchronous>, transform_indices = @transform_18, window_bounds = array<i64: 1, 192>}, {pipeline_mode = #tpu.pipeline_mode<synchronous>, transform_indices = @transform_19, window_bounds = array<i64: 64, 64>}, {pipeline_mode = #tpu.pipeline_mode<synchronous>, transform_indices = @transform_20, window_bounds = array<i64: 1, 64>}, {pipeline_mode = #tpu.pipeline_mode<synchronous>, transform_indices = @transform_21, window_bounds = array<i64: 1, 64>}, {pipeline_mode = #tpu.pipeline_mode<synchronous>, transform_indices = @transform_22, window_bounds = array<i64: 1, 64>}, {pipeline_mode = #tpu.pipeline_mode<synchronous>, transform_indices = @transform_23, window_bounds = array<i64: 64, 2048>}, {pipeline_mode = #tpu.pipeline_mode<synchronous>, transform_indices = @transform_24, window_bounds = array<i64: 1, 2048>}, {pipeline_mode = #tpu.pipeline_mode<synchronous>, transform_indices = @transform_25, window_bounds = array<i64: 2048, 64>}, {pipeline_mode = #tpu.pipeline_mode<synchronous>, transform_indices = @transform_26, window_bounds = array<i64: 1, 64>}, {pipeline_mode = #tpu.pipeline_mode<synchronous>, transform_indices = @transform_27, window_bounds = array<i64: 1, 64>}, {pipeline_mode = #tpu.pipeline_mode<synchronous>, transform_indices = @transform_28, window_bounds = array<i64: 1, 64>}, {pipeline_mode = #tpu.pipeline_mode<synchronous>, transform_indices = @transform_29, window_bounds = array<i64: 64, 192>}, {pipeline_mode = #tpu.pipeline_mode<synchronous>, transform_indices = @transform_30, window_bounds = array<i64: 1, 192>}, {pipeline_mode = #tpu.pipeline_mode<synchronous>, transform_indices = @transform_31, window_bounds = array<i64: 64, 64>}, {pipeline_mode = #tpu.pipeline_mode<synchronous>, transform_indices = @transform_32, window_bounds = array<i64: 1, 64>}, {pipeline_mode = #tpu.pipeline_mode<synchronous>, transform_indices = @transform_33, window_bounds = array<i64: 1, 64>}, {pipeline_mode = #tpu.pipeline_mode<synchronous>, transform_indices = @transform_34, window_bounds = array<i64: 1, 64>}, {pipeline_mode = #tpu.pipeline_mode<synchronous>, transform_indices = @transform_35, window_bounds = array<i64: 64, 2048>}, {pipeline_mode = #tpu.pipeline_mode<synchronous>, transform_indices = @transform_36, window_bounds = array<i64: 1, 2048>}, {pipeline_mode = #tpu.pipeline_mode<synchronous>, transform_indices = @transform_37, window_bounds = array<i64: 2048, 64>}, {pipeline_mode = #tpu.pipeline_mode<synchronous>, transform_indices = @transform_38, window_bounds = array<i64: 1, 64>}, {pipeline_mode = #tpu.pipeline_mode<synchronous>, transform_indices = @transform_39, window_bounds = array<i64: 1, 64>}, {pipeline_mode = #tpu.pipeline_mode<synchronous>, transform_indices = @transform_40, window_bounds = array<i64: 1, 64>}, {transform_indices = @transform_41, window_bounds = array<i64: 2, 48>}]} {
    %c0 = arith.constant 0 : index
    %c0_0 = arith.constant 0 : index
    %c0_1 = arith.constant 0 : index
    %0 = vector.load %arg1[%c0, %c0_0, %c0_1] : memref<2x8x64xf32, #tpu.memory_space<vmem>>, vector<2x8x64xf32>
    %1 = vector.shape_cast %0 : vector<2x8x64xf32> to vector<16x64xf32>
    %2 = arith.truncf %1 : vector<16x64xf32> to vector<16x64xbf16>
    %c0_2 = arith.constant 0 : index
    %c0_3 = arith.constant 0 : index
    %3 = vector.load %arg2[%c0_2, %c0_3] : memref<64x64xbf16, #tpu.memory_space<vmem>>, vector<64x64xbf16>
    %cst = arith.constant dense<0.000000e+00> : vector<16x64xf32>
    %4 = tpu.matmul %2, %3, %cst {dimension_numbers = #tpu.dot_dimension_numbers<[1], [0], [0], [1], [0, 0, 1, 1], [], []>} : vector<16x64xbf16>, vector<64x64xbf16>, vector<16x64xf32> -> vector<16x64xf32>
    %c0_4 = arith.constant 0 : index
    %c0_5 = arith.constant 0 : index
    %5 = vector.load %arg3[%c0_4, %c0_5] : memref<1x64xf32, #tpu.memory_space<vmem>>, vector<1x64xf32>
    %6 = vector.broadcast %5 : vector<1x64xf32> to vector<16x64xf32>
    %7 = arith.addf %4, %6 : vector<16x64xf32>
    %8 = arith.truncf %7 : vector<16x64xf32> to vector<16x64xbf16>
    %c0_6 = arith.constant 0 : index
    %c0_7 = arith.constant 0 : index
    %9 = vector.load %arg6[%c0_6, %c0_7] : memref<64x192xbf16, #tpu.memory_space<vmem>>, vector<64x192xbf16>
    %cst_8 = arith.constant dense<0.000000e+00> : vector<16x192xf32>
    %10 = tpu.matmul %8, %9, %cst_8 {dimension_numbers = #tpu.dot_dimension_numbers<[1], [0], [0], [1], [0, 0, 1, 1], [], []>} : vector<16x64xbf16>, vector<64x192xbf16>, vector<16x192xf32> -> vector<16x192xf32>
    %c0_9 = arith.constant 0 : index
    %c0_10 = arith.constant 0 : index
    %11 = vector.load %arg7[%c0_9, %c0_10] : memref<1x192xf32, #tpu.memory_space<vmem>>, vector<1x192xf32>
    %12 = vector.broadcast %11 : vector<1x192xf32> to vector<16x192xf32>
    %13 = arith.addf %10, %12 : vector<16x192xf32>
    %14 = vector.shape_cast %13 : vector<16x192xf32> to vector<2x8x192xf32>
    %15 = vector.extract_strided_slice %14 {offsets = [0, 0, 0], sizes = [2, 8, 16], strides = [1, 1, 1]} : vector<2x8x192xf32> to vector<2x8x16xf32>
    %16 = vector.extract_strided_slice %14 {offsets = [0, 0, 64], sizes = [2, 8, 16], strides = [1, 1, 1]} : vector<2x8x192xf32> to vector<2x8x16xf32>
    %17 = vector.extract_strided_slice %14 {offsets = [0, 0, 128], sizes = [2, 8, 16], strides = [1, 1, 1]} : vector<2x8x192xf32> to vector<2x8x16xf32>
    %18 = arith.truncf %15 : vector<2x8x16xf32> to vector<2x8x16xbf16>
    %19 = arith.truncf %16 : vector<2x8x16xf32> to vector<2x8x16xbf16>
    "tpu.trace_start"() <{level = 10 : i32, message = "bqd,bkd->bqk"}> : () -> ()
    %cst_11 = arith.constant dense<0.000000e+00> : vector<2x8x8xf32>
    %20 = tpu.matmul %18, %19, %cst_11 {dimension_numbers = #tpu.dot_dimension_numbers<[2], [2], [1], [1], [0, 0, 0, 1, 1, 1], [0], [0]>} : vector<2x8x16xbf16>, vector<2x8x16xbf16>, vector<2x8x8xf32> -> vector<2x8x8xf32>
    "tpu.trace_stop"() : () -> ()
    %cst_12 = arith.constant 2.500000e-01 : f32
    %21 = vector.broadcast %cst_12 : f32 to vector<2x8x8xf32>
    %22 = arith.mulf %20, %21 : vector<2x8x8xf32>
    %cst_13 = arith.constant dense<0xFF800000> : vector<2x8xf32>
    %23 = vector.multi_reduction <maximumf>, %22, %cst_13 [2] : vector<2x8x8xf32> to vector<2x8xf32>
    %24 = vector.shape_cast %23 : vector<2x8xf32> to vector<2x8x1xf32>
    %25 = vector.broadcast %24 : vector<2x8x1xf32> to vector<2x8x8xf32>
    %26 = arith.subf %22, %25 : vector<2x8x8xf32>
    %27 = math.exp %26 : vector<2x8x8xf32>
    %cst_14 = arith.constant dense<0.000000e+00> : vector<2x8xf32>
    %28 = vector.multi_reduction <add>, %27, %cst_14 [2] : vector<2x8x8xf32> to vector<2x8xf32>
    %29 = vector.shape_cast %28 : vector<2x8xf32> to vector<2x8x1xf32>
    %30 = tpu.reciprocal %29 {approx = true} : vector<2x8x1xf32> -> vector<2x8x1xf32>
    %31 = vector.broadcast %30 : vector<2x8x1xf32> to vector<2x8x8xf32>
    %32 = arith.mulf %27, %31 : vector<2x8x8xf32>
    %33 = arith.truncf %32 : vector<2x8x8xf32> to vector<2x8x8xbf16>
    %34 = arith.truncf %17 : vector<2x8x16xf32> to vector<2x8x16xbf16>
    "tpu.trace_start"() <{level = 10 : i32, message = "bqk,bkd->bqd"}> : () -> ()
    %cst_15 = arith.constant dense<0.000000e+00> : vector<2x8x16xf32>
    %35 = tpu.matmul %33, %34, %cst_15 {dimension_numbers = #tpu.dot_dimension_numbers<[2], [1], [1], [2], [0, 0, 0, 1, 1, 2], [0], [0]>} : vector<2x8x8xbf16>, vector<2x8x16xbf16>, vector<2x8x16xf32> -> vector<2x8x16xf32>
    "tpu.trace_stop"() : () -> ()
    %36 = vector.extract_strided_slice %14 {offsets = [0, 0, 16], sizes = [2, 8, 16], strides = [1, 1, 1]} : vector<2x8x192xf32> to vector<2x8x16xf32>
    %37 = vector.extract_strided_slice %14 {offsets = [0, 0, 80], sizes = [2, 8, 16], strides = [1, 1, 1]} : vector<2x8x192xf32> to vector<2x8x16xf32>
    %38 = vector.extract_strided_slice %14 {offsets = [0, 0, 144], sizes = [2, 8, 16], strides = [1, 1, 1]} : vector<2x8x192xf32> to vector<2x8x16xf32>
    %39 = arith.truncf %36 : vector<2x8x16xf32> to vector<2x8x16xbf16>
    %40 = arith.truncf %37 : vector<2x8x16xf32> to vector<2x8x16xbf16>
    "tpu.trace_start"() <{level = 10 : i32, message = "bqd,bkd->bqk"}> : () -> ()
    %cst_16 = arith.constant dense<0.000000e+00> : vector<2x8x8xf32>
    %41 = tpu.matmul %39, %40, %cst_16 {dimension_numbers = #tpu.dot_dimension_numbers<[2], [2], [1], [1], [0, 0, 0, 1, 1, 1], [0], [0]>} : vector<2x8x16xbf16>, vector<2x8x16xbf16>, vector<2x8x8xf32> -> vector<2x8x8xf32>
    "tpu.trace_stop"() : () -> ()
    %cst_17 = arith.constant 2.500000e-01 : f32
    %42 = vector.broadcast %cst_17 : f32 to vector<2x8x8xf32>
    %43 = arith.mulf %41, %42 : vector<2x8x8xf32>
    %cst_18 = arith.constant dense<0xFF800000> : vector<2x8xf32>
    %44 = vector.multi_reduction <maximumf>, %43, %cst_18 [2] : vector<2x8x8xf32> to vector<2x8xf32>
    %45 = vector.shape_cast %44 : vector<2x8xf32> to vector<2x8x1xf32>
    %46 = vector.broadcast %45 : vector<2x8x1xf32> to vector<2x8x8xf32>
    %47 = arith.subf %43, %46 : vector<2x8x8xf32>
    %48 = math.exp %47 : vector<2x8x8xf32>
    %cst_19 = arith.constant dense<0.000000e+00> : vector<2x8xf32>
    %49 = vector.multi_reduction <add>, %48, %cst_19 [2] : vector<2x8x8xf32> to vector<2x8xf32>
    %50 = vector.shape_cast %49 : vector<2x8xf32> to vector<2x8x1xf32>
    %51 = tpu.reciprocal %50 {approx = true} : vector<2x8x1xf32> -> vector<2x8x1xf32>
    %52 = vector.broadcast %51 : vector<2x8x1xf32> to vector<2x8x8xf32>
    %53 = arith.mulf %48, %52 : vector<2x8x8xf32>
    %54 = arith.truncf %53 : vector<2x8x8xf32> to vector<2x8x8xbf16>
    %55 = arith.truncf %38 : vector<2x8x16xf32> to vector<2x8x16xbf16>
    "tpu.trace_start"() <{level = 10 : i32, message = "bqk,bkd->bqd"}> : () -> ()
    %cst_20 = arith.constant dense<0.000000e+00> : vector<2x8x16xf32>
    %56 = tpu.matmul %54, %55, %cst_20 {dimension_numbers = #tpu.dot_dimension_numbers<[2], [1], [1], [2], [0, 0, 0, 1, 1, 2], [0], [0]>} : vector<2x8x8xbf16>, vector<2x8x16xbf16>, vector<2x8x16xf32> -> vector<2x8x16xf32>
    "tpu.trace_stop"() : () -> ()
    %57 = vector.extract_strided_slice %14 {offsets = [0, 0, 32], sizes = [2, 8, 16], strides = [1, 1, 1]} : vector<2x8x192xf32> to vector<2x8x16xf32>
    %58 = vector.extract_strided_slice %14 {offsets = [0, 0, 96], sizes = [2, 8, 16], strides = [1, 1, 1]} : vector<2x8x192xf32> to vector<2x8x16xf32>
    %59 = vector.extract_strided_slice %14 {offsets = [0, 0, 160], sizes = [2, 8, 16], strides = [1, 1, 1]} : vector<2x8x192xf32> to vector<2x8x16xf32>
    %60 = arith.truncf %57 : vector<2x8x16xf32> to vector<2x8x16xbf16>
    %61 = arith.truncf %58 : vector<2x8x16xf32> to vector<2x8x16xbf16>
    "tpu.trace_start"() <{level = 10 : i32, message = "bqd,bkd->bqk"}> : () -> ()
    %cst_21 = arith.constant dense<0.000000e+00> : vector<2x8x8xf32>
    %62 = tpu.matmul %60, %61, %cst_21 {dimension_numbers = #tpu.dot_dimension_numbers<[2], [2], [1], [1], [0, 0, 0, 1, 1, 1], [0], [0]>} : vector<2x8x16xbf16>, vector<2x8x16xbf16>, vector<2x8x8xf32> -> vector<2x8x8xf32>
    "tpu.trace_stop"() : () -> ()
    %cst_22 = arith.constant 2.500000e-01 : f32
    %63 = vector.broadcast %cst_22 : f32 to vector<2x8x8xf32>
    %64 = arith.mulf %62, %63 : vector<2x8x8xf32>
    %cst_23 = arith.constant dense<0xFF800000> : vector<2x8xf32>
    %65 = vector.multi_reduction <maximumf>, %64, %cst_23 [2] : vector<2x8x8xf32> to vector<2x8xf32>
    %66 = vector.shape_cast %65 : vector<2x8xf32> to vector<2x8x1xf32>
    %67 = vector.broadcast %66 : vector<2x8x1xf32> to vector<2x8x8xf32>
    %68 = arith.subf %64, %67 : vector<2x8x8xf32>
    %69 = math.exp %68 : vector<2x8x8xf32>
    %cst_24 = arith.constant dense<0.000000e+00> : vector<2x8xf32>
    %70 = vector.multi_reduction <add>, %69, %cst_24 [2] : vector<2x8x8xf32> to vector<2x8xf32>
    %71 = vector.shape_cast %70 : vector<2x8xf32> to vector<2x8x1xf32>
    %72 = tpu.reciprocal %71 {approx = true} : vector<2x8x1xf32> -> vector<2x8x1xf32>
    %73 = vector.broadcast %72 : vector<2x8x1xf32> to vector<2x8x8xf32>
    %74 = arith.mulf %69, %73 : vector<2x8x8xf32>
    %75 = arith.truncf %74 : vector<2x8x8xf32> to vector<2x8x8xbf16>
    %76 = arith.truncf %59 : vector<2x8x16xf32> to vector<2x8x16xbf16>
    "tpu.trace_start"() <{level = 10 : i32, message = "bqk,bkd->bqd"}> : () -> ()
    %cst_25 = arith.constant dense<0.000000e+00> : vector<2x8x16xf32>
    %77 = tpu.matmul %75, %76, %cst_25 {dimension_numbers = #tpu.dot_dimension_numbers<[2], [1], [1], [2], [0, 0, 0, 1, 1, 2], [0], [0]>} : vector<2x8x8xbf16>, vector<2x8x16xbf16>, vector<2x8x16xf32> -> vector<2x8x16xf32>
    "tpu.trace_stop"() : () -> ()
    %78 = vector.extract_strided_slice %14 {offsets = [0, 0, 48], sizes = [2, 8, 16], strides = [1, 1, 1]} : vector<2x8x192xf32> to vector<2x8x16xf32>
    %79 = vector.extract_strided_slice %14 {offsets = [0, 0, 112], sizes = [2, 8, 16], strides = [1, 1, 1]} : vector<2x8x192xf32> to vector<2x8x16xf32>
    %80 = vector.extract_strided_slice %14 {offsets = [0, 0, 176], sizes = [2, 8, 16], strides = [1, 1, 1]} : vector<2x8x192xf32> to vector<2x8x16xf32>
    %81 = arith.truncf %78 : vector<2x8x16xf32> to vector<2x8x16xbf16>
    %82 = arith.truncf %79 : vector<2x8x16xf32> to vector<2x8x16xbf16>
    "tpu.trace_start"() <{level = 10 : i32, message = "bqd,bkd->bqk"}> : () -> ()
    %cst_26 = arith.constant dense<0.000000e+00> : vector<2x8x8xf32>
    %83 = tpu.matmul %81, %82, %cst_26 {dimension_numbers = #tpu.dot_dimension_numbers<[2], [2], [1], [1], [0, 0, 0, 1, 1, 1], [0], [0]>} : vector<2x8x16xbf16>, vector<2x8x16xbf16>, vector<2x8x8xf32> -> vector<2x8x8xf32>
    "tpu.trace_stop"() : () -> ()
    %cst_27 = arith.constant 2.500000e-01 : f32
    %84 = vector.broadcast %cst_27 : f32 to vector<2x8x8xf32>
    %85 = arith.mulf %83, %84 : vector<2x8x8xf32>
    %cst_28 = arith.constant dense<0xFF800000> : vector<2x8xf32>
    %86 = vector.multi_reduction <maximumf>, %85, %cst_28 [2] : vector<2x8x8xf32> to vector<2x8xf32>
    %87 = vector.shape_cast %86 : vector<2x8xf32> to vector<2x8x1xf32>
    %88 = vector.broadcast %87 : vector<2x8x1xf32> to vector<2x8x8xf32>
    %89 = arith.subf %85, %88 : vector<2x8x8xf32>
    %90 = math.exp %89 : vector<2x8x8xf32>
    %cst_29 = arith.constant dense<0.000000e+00> : vector<2x8xf32>
    %91 = vector.multi_reduction <add>, %90, %cst_29 [2] : vector<2x8x8xf32> to vector<2x8xf32>
    %92 = vector.shape_cast %91 : vector<2x8xf32> to vector<2x8x1xf32>
    %93 = tpu.reciprocal %92 {approx = true} : vector<2x8x1xf32> -> vector<2x8x1xf32>
    %94 = vector.broadcast %93 : vector<2x8x1xf32> to vector<2x8x8xf32>
    %95 = arith.mulf %90, %94 : vector<2x8x8xf32>
    %96 = arith.truncf %95 : vector<2x8x8xf32> to vector<2x8x8xbf16>
    %97 = arith.truncf %80 : vector<2x8x16xf32> to vector<2x8x16xbf16>
    "tpu.trace_start"() <{level = 10 : i32, message = "bqk,bkd->bqd"}> : () -> ()
    %cst_30 = arith.constant dense<0.000000e+00> : vector<2x8x16xf32>
    %98 = tpu.matmul %96, %97, %cst_30 {dimension_numbers = #tpu.dot_dimension_numbers<[2], [1], [1], [2], [0, 0, 0, 1, 1, 2], [0], [0]>} : vector<2x8x8xbf16>, vector<2x8x16xbf16>, vector<2x8x16xf32> -> vector<2x8x16xf32>
    "tpu.trace_stop"() : () -> ()
    %99 = tpu.concatenate %35, %56, %77, %98 in 2 : vector<2x8x16xf32>, vector<2x8x16xf32>, vector<2x8x16xf32>, vector<2x8x16xf32> -> vector<2x8x64xf32>
    %100 = vector.shape_cast %99 : vector<2x8x64xf32> to vector<16x64xf32>
    %101 = arith.truncf %100 : vector<16x64xf32> to vector<16x64xbf16>
    %c0_31 = arith.constant 0 : index
    %c0_32 = arith.constant 0 : index
    %102 = vector.load %arg8[%c0_31, %c0_32] : memref<64x64xbf16, #tpu.memory_space<vmem>>, vector<64x64xbf16>
    %cst_33 = arith.constant dense<0.000000e+00> : vector<16x64xf32>
    %103 = tpu.matmul %101, %102, %cst_33 {dimension_numbers = #tpu.dot_dimension_numbers<[1], [0], [0], [1], [0, 0, 1, 1], [], []>} : vector<16x64xbf16>, vector<64x64xbf16>, vector<16x64xf32> -> vector<16x64xf32>
    %c0_34 = arith.constant 0 : index
    %c0_35 = arith.constant 0 : index
    %104 = vector.load %arg9[%c0_34, %c0_35] : memref<1x64xf32, #tpu.memory_space<vmem>>, vector<1x64xf32>
    %105 = vector.broadcast %104 : vector<1x64xf32> to vector<16x64xf32>
    %106 = arith.addf %103, %105 : vector<16x64xf32>
    %107 = arith.addf %106, %7 : vector<16x64xf32>
    %c0_36 = arith.constant 0 : index
    %c0_37 = arith.constant 0 : index
    %108 = vector.load %arg10[%c0_36, %c0_37] : memref<1x64xf32, #tpu.memory_space<vmem>>, vector<1x64xf32>
    %c0_38 = arith.constant 0 : index
    %c0_39 = arith.constant 0 : index
    %109 = vector.load %arg11[%c0_38, %c0_39] : memref<1x64xf32, #tpu.memory_space<vmem>>, vector<1x64xf32>
    %cst_40 = arith.constant dense<0.000000e+00> : vector<16xf32>
    %110 = vector.multi_reduction <add>, %107, %cst_40 [1] : vector<16x64xf32> to vector<16xf32>
    %111 = vector.shape_cast %110 : vector<16xf32> to vector<16x1xf32>
    %cst_41 = arith.constant 6.400000e+01 : f32
    %112 = vector.broadcast %cst_41 : f32 to vector<16x1xf32>
    %113 = arith.divf %111, %112 : vector<16x1xf32>
    %114 = vector.broadcast %113 : vector<16x1xf32> to vector<16x64xf32>
    %115 = arith.subf %107, %114 : vector<16x64xf32>
    %116 = arith.mulf %115, %115 : vector<16x64xf32>
    %cst_42 = arith.constant dense<0.000000e+00> : vector<16xf32>
    %117 = vector.multi_reduction <add>, %116, %cst_42 [1] : vector<16x64xf32> to vector<16xf32>
    %118 = vector.shape_cast %117 : vector<16xf32> to vector<16x1xf32>
    %cst_43 = arith.constant 6.400000e+01 : f32
    %119 = vector.broadcast %cst_43 : f32 to vector<16x1xf32>
    %120 = arith.divf %118, %119 : vector<16x1xf32>
    %121 = vector.broadcast %113 : vector<16x1xf32> to vector<16x64xf32>
    %122 = arith.subf %107, %121 : vector<16x64xf32>
    %cst_44 = arith.constant 9.99999974E-6 : f32
    %123 = vector.broadcast %cst_44 : f32 to vector<16x1xf32>
    %124 = arith.addf %120, %123 : vector<16x1xf32>
    %125 = math.rsqrt %124 : vector<16x1xf32>
    %126 = vector.broadcast %125 : vector<16x1xf32> to vector<16x64xf32>
    %127 = arith.mulf %122, %126 : vector<16x64xf32>
    %128 = vector.broadcast %108 : vector<1x64xf32> to vector<16x64xf32>
    %129 = arith.mulf %127, %128 : vector<16x64xf32>
    %130 = vector.broadcast %109 : vector<1x64xf32> to vector<16x64xf32>
    %131 = arith.addf %129, %130 : vector<16x64xf32>
    %132 = arith.truncf %131 : vector<16x64xf32> to vector<16x64xbf16>
    %c0_45 = arith.constant 0 : index
    %c0_46 = arith.constant 0 : index
    %133 = vector.load %arg12[%c0_45, %c0_46] : memref<64x2048xbf16, #tpu.memory_space<vmem>>, vector<64x2048xbf16>
    %cst_47 = arith.constant dense<0.000000e+00> : vector<16x2048xf32>
    %134 = tpu.matmul %132, %133, %cst_47 {dimension_numbers = #tpu.dot_dimension_numbers<[1], [0], [0], [1], [0, 0, 1, 1], [], []>} : vector<16x64xbf16>, vector<64x2048xbf16>, vector<16x2048xf32> -> vector<16x2048xf32>
    %c0_48 = arith.constant 0 : index
    %c0_49 = arith.constant 0 : index
    %135 = vector.load %arg13[%c0_48, %c0_49] : memref<1x2048xf32, #tpu.memory_space<vmem>>, vector<1x2048xf32>
    %136 = vector.broadcast %135 : vector<1x2048xf32> to vector<16x2048xf32>
    %137 = arith.addf %134, %136 : vector<16x2048xf32>
    %cst_50 = arith.constant 0.000000e+00 : f32
    %138 = vector.broadcast %cst_50 : f32 to vector<16x2048xf32>
    %139 = arith.maximumf %137, %138 : vector<16x2048xf32>
    %140 = arith.truncf %139 : vector<16x2048xf32> to vector<16x2048xbf16>
    %c0_51 = arith.constant 0 : index
    %c0_52 = arith.constant 0 : index
    %141 = vector.load %arg14[%c0_51, %c0_52] : memref<2048x64xbf16, #tpu.memory_space<vmem>>, vector<2048x64xbf16>
    %cst_53 = arith.constant dense<0.000000e+00> : vector<16x64xf32>
    %142 = tpu.matmul %140, %141, %cst_53 {dimension_numbers = #tpu.dot_dimension_numbers<[1], [0], [0], [1], [0, 0, 1, 1], [], []>} : vector<16x2048xbf16>, vector<2048x64xbf16>, vector<16x64xf32> -> vector<16x64xf32>
    %c0_54 = arith.constant 0 : index
    %c0_55 = arith.constant 0 : index
    %143 = vector.load %arg15[%c0_54, %c0_55] : memref<1x64xf32, #tpu.memory_space<vmem>>, vector<1x64xf32>
    %144 = vector.broadcast %143 : vector<1x64xf32> to vector<16x64xf32>
    %145 = arith.addf %142, %144 : vector<16x64xf32>
    %146 = arith.addf %145, %131 : vector<16x64xf32>
    %c0_56 = arith.constant 0 : index
    %c0_57 = arith.constant 0 : index
    %147 = vector.load %arg16[%c0_56, %c0_57] : memref<1x64xf32, #tpu.memory_space<vmem>>, vector<1x64xf32>
    %c0_58 = arith.constant 0 : index
    %c0_59 = arith.constant 0 : index
    %148 = vector.load %arg17[%c0_58, %c0_59] : memref<1x64xf32, #tpu.memory_space<vmem>>, vector<1x64xf32>
    %cst_60 = arith.constant dense<0.000000e+00> : vector<16xf32>
    %149 = vector.multi_reduction <add>, %146, %cst_60 [1] : vector<16x64xf32> to vector<16xf32>
    %150 = vector.shape_cast %149 : vector<16xf32> to vector<16x1xf32>
    %cst_61 = arith.constant 6.400000e+01 : f32
    %151 = vector.broadcast %cst_61 : f32 to vector<16x1xf32>
    %152 = arith.divf %150, %151 : vector<16x1xf32>
    %153 = vector.broadcast %152 : vector<16x1xf32> to vector<16x64xf32>
    %154 = arith.subf %146, %153 : vector<16x64xf32>
    %155 = arith.mulf %154, %154 : vector<16x64xf32>
    %cst_62 = arith.constant dense<0.000000e+00> : vector<16xf32>
    %156 = vector.multi_reduction <add>, %155, %cst_62 [1] : vector<16x64xf32> to vector<16xf32>
    %157 = vector.shape_cast %156 : vector<16xf32> to vector<16x1xf32>
    %cst_63 = arith.constant 6.400000e+01 : f32
    %158 = vector.broadcast %cst_63 : f32 to vector<16x1xf32>
    %159 = arith.divf %157, %158 : vector<16x1xf32>
    %160 = vector.broadcast %152 : vector<16x1xf32> to vector<16x64xf32>
    %161 = arith.subf %146, %160 : vector<16x64xf32>
    %cst_64 = arith.constant 9.99999974E-6 : f32
    %162 = vector.broadcast %cst_64 : f32 to vector<16x1xf32>
    %163 = arith.addf %159, %162 : vector<16x1xf32>
    %164 = math.rsqrt %163 : vector<16x1xf32>
    %165 = vector.broadcast %164 : vector<16x1xf32> to vector<16x64xf32>
    %166 = arith.mulf %161, %165 : vector<16x64xf32>
    %167 = vector.broadcast %147 : vector<1x64xf32> to vector<16x64xf32>
    %168 = arith.mulf %166, %167 : vector<16x64xf32>
    %169 = vector.broadcast %148 : vector<1x64xf32> to vector<16x64xf32>
    %170 = arith.addf %168, %169 : vector<16x64xf32>
    %171 = arith.truncf %170 : vector<16x64xf32> to vector<16x64xbf16>
    %c0_65 = arith.constant 0 : index
    %c0_66 = arith.constant 0 : index
    %172 = vector.load %arg18[%c0_65, %c0_66] : memref<64x192xbf16, #tpu.memory_space<vmem>>, vector<64x192xbf16>
    %cst_67 = arith.constant dense<0.000000e+00> : vector<16x192xf32>
    %173 = tpu.matmul %171, %172, %cst_67 {dimension_numbers = #tpu.dot_dimension_numbers<[1], [0], [0], [1], [0, 0, 1, 1], [], []>} : vector<16x64xbf16>, vector<64x192xbf16>, vector<16x192xf32> -> vector<16x192xf32>
    %c0_68 = arith.constant 0 : index
    %c0_69 = arith.constant 0 : index
    %174 = vector.load %arg19[%c0_68, %c0_69] : memref<1x192xf32, #tpu.memory_space<vmem>>, vector<1x192xf32>
    %175 = vector.broadcast %174 : vector<1x192xf32> to vector<16x192xf32>
    %176 = arith.addf %173, %175 : vector<16x192xf32>
    %177 = vector.shape_cast %176 : vector<16x192xf32> to vector<2x8x192xf32>
    %178 = vector.extract_strided_slice %177 {offsets = [0, 0, 0], sizes = [2, 8, 16], strides = [1, 1, 1]} : vector<2x8x192xf32> to vector<2x8x16xf32>
    %179 = vector.extract_strided_slice %177 {offsets = [0, 0, 64], sizes = [2, 8, 16], strides = [1, 1, 1]} : vector<2x8x192xf32> to vector<2x8x16xf32>
    %180 = vector.extract_strided_slice %177 {offsets = [0, 0, 128], sizes = [2, 8, 16], strides = [1, 1, 1]} : vector<2x8x192xf32> to vector<2x8x16xf32>
    %181 = arith.truncf %178 : vector<2x8x16xf32> to vector<2x8x16xbf16>
    %182 = arith.truncf %179 : vector<2x8x16xf32> to vector<2x8x16xbf16>
    "tpu.trace_start"() <{level = 10 : i32, message = "bqd,bkd->bqk"}> : () -> ()
    %cst_70 = arith.constant dense<0.000000e+00> : vector<2x8x8xf32>
    %183 = tpu.matmul %181, %182, %cst_70 {dimension_numbers = #tpu.dot_dimension_numbers<[2], [2], [1], [1], [0, 0, 0, 1, 1, 1], [0], [0]>} : vector<2x8x16xbf16>, vector<2x8x16xbf16>, vector<2x8x8xf32> -> vector<2x8x8xf32>
    "tpu.trace_stop"() : () -> ()
    %cst_71 = arith.constant 2.500000e-01 : f32
    %184 = vector.broadcast %cst_71 : f32 to vector<2x8x8xf32>
    %185 = arith.mulf %183, %184 : vector<2x8x8xf32>
    %cst_72 = arith.constant dense<0xFF800000> : vector<2x8xf32>
    %186 = vector.multi_reduction <maximumf>, %185, %cst_72 [2] : vector<2x8x8xf32> to vector<2x8xf32>
    %187 = vector.shape_cast %186 : vector<2x8xf32> to vector<2x8x1xf32>
    %188 = vector.broadcast %187 : vector<2x8x1xf32> to vector<2x8x8xf32>
    %189 = arith.subf %185, %188 : vector<2x8x8xf32>
    %190 = math.exp %189 : vector<2x8x8xf32>
    %cst_73 = arith.constant dense<0.000000e+00> : vector<2x8xf32>
    %191 = vector.multi_reduction <add>, %190, %cst_73 [2] : vector<2x8x8xf32> to vector<2x8xf32>
    %192 = vector.shape_cast %191 : vector<2x8xf32> to vector<2x8x1xf32>
    %193 = tpu.reciprocal %192 {approx = true} : vector<2x8x1xf32> -> vector<2x8x1xf32>
    %194 = vector.broadcast %193 : vector<2x8x1xf32> to vector<2x8x8xf32>
    %195 = arith.mulf %190, %194 : vector<2x8x8xf32>
    %196 = arith.truncf %195 : vector<2x8x8xf32> to vector<2x8x8xbf16>
    %197 = arith.truncf %180 : vector<2x8x16xf32> to vector<2x8x16xbf16>
    "tpu.trace_start"() <{level = 10 : i32, message = "bqk,bkd->bqd"}> : () -> ()
    %cst_74 = arith.constant dense<0.000000e+00> : vector<2x8x16xf32>
    %198 = tpu.matmul %196, %197, %cst_74 {dimension_numbers = #tpu.dot_dimension_numbers<[2], [1], [1], [2], [0, 0, 0, 1, 1, 2], [0], [0]>} : vector<2x8x8xbf16>, vector<2x8x16xbf16>, vector<2x8x16xf32> -> vector<2x8x16xf32>
    "tpu.trace_stop"() : () -> ()
    %199 = vector.extract_strided_slice %177 {offsets = [0, 0, 16], sizes = [2, 8, 16], strides = [1, 1, 1]} : vector<2x8x192xf32> to vector<2x8x16xf32>
    %200 = vector.extract_strided_slice %177 {offsets = [0, 0, 80], sizes = [2, 8, 16], strides = [1, 1, 1]} : vector<2x8x192xf32> to vector<2x8x16xf32>
    %201 = vector.extract_strided_slice %177 {offsets = [0, 0, 144], sizes = [2, 8, 16], strides = [1, 1, 1]} : vector<2x8x192xf32> to vector<2x8x16xf32>
    %202 = arith.truncf %199 : vector<2x8x16xf32> to vector<2x8x16xbf16>
    %203 = arith.truncf %200 : vector<2x8x16xf32> to vector<2x8x16xbf16>
    "tpu.trace_start"() <{level = 10 : i32, message = "bqd,bkd->bqk"}> : () -> ()
    %cst_75 = arith.constant dense<0.000000e+00> : vector<2x8x8xf32>
    %204 = tpu.matmul %202, %203, %cst_75 {dimension_numbers = #tpu.dot_dimension_numbers<[2], [2], [1], [1], [0, 0, 0, 1, 1, 1], [0], [0]>} : vector<2x8x16xbf16>, vector<2x8x16xbf16>, vector<2x8x8xf32> -> vector<2x8x8xf32>
    "tpu.trace_stop"() : () -> ()
    %cst_76 = arith.constant 2.500000e-01 : f32
    %205 = vector.broadcast %cst_76 : f32 to vector<2x8x8xf32>
    %206 = arith.mulf %204, %205 : vector<2x8x8xf32>
    %cst_77 = arith.constant dense<0xFF800000> : vector<2x8xf32>
    %207 = vector.multi_reduction <maximumf>, %206, %cst_77 [2] : vector<2x8x8xf32> to vector<2x8xf32>
    %208 = vector.shape_cast %207 : vector<2x8xf32> to vector<2x8x1xf32>
    %209 = vector.broadcast %208 : vector<2x8x1xf32> to vector<2x8x8xf32>
    %210 = arith.subf %206, %209 : vector<2x8x8xf32>
    %211 = math.exp %210 : vector<2x8x8xf32>
    %cst_78 = arith.constant dense<0.000000e+00> : vector<2x8xf32>
    %212 = vector.multi_reduction <add>, %211, %cst_78 [2] : vector<2x8x8xf32> to vector<2x8xf32>
    %213 = vector.shape_cast %212 : vector<2x8xf32> to vector<2x8x1xf32>
    %214 = tpu.reciprocal %213 {approx = true} : vector<2x8x1xf32> -> vector<2x8x1xf32>
    %215 = vector.broadcast %214 : vector<2x8x1xf32> to vector<2x8x8xf32>
    %216 = arith.mulf %211, %215 : vector<2x8x8xf32>
    %217 = arith.truncf %216 : vector<2x8x8xf32> to vector<2x8x8xbf16>
    %218 = arith.truncf %201 : vector<2x8x16xf32> to vector<2x8x16xbf16>
    "tpu.trace_start"() <{level = 10 : i32, message = "bqk,bkd->bqd"}> : () -> ()
    %cst_79 = arith.constant dense<0.000000e+00> : vector<2x8x16xf32>
    %219 = tpu.matmul %217, %218, %cst_79 {dimension_numbers = #tpu.dot_dimension_numbers<[2], [1], [1], [2], [0, 0, 0, 1, 1, 2], [0], [0]>} : vector<2x8x8xbf16>, vector<2x8x16xbf16>, vector<2x8x16xf32> -> vector<2x8x16xf32>
    "tpu.trace_stop"() : () -> ()
    %220 = vector.extract_strided_slice %177 {offsets = [0, 0, 32], sizes = [2, 8, 16], strides = [1, 1, 1]} : vector<2x8x192xf32> to vector<2x8x16xf32>
    %221 = vector.extract_strided_slice %177 {offsets = [0, 0, 96], sizes = [2, 8, 16], strides = [1, 1, 1]} : vector<2x8x192xf32> to vector<2x8x16xf32>
    %222 = vector.extract_strided_slice %177 {offsets = [0, 0, 160], sizes = [2, 8, 16], strides = [1, 1, 1]} : vector<2x8x192xf32> to vector<2x8x16xf32>
    %223 = arith.truncf %220 : vector<2x8x16xf32> to vector<2x8x16xbf16>
    %224 = arith.truncf %221 : vector<2x8x16xf32> to vector<2x8x16xbf16>
    "tpu.trace_start"() <{level = 10 : i32, message = "bqd,bkd->bqk"}> : () -> ()
    %cst_80 = arith.constant dense<0.000000e+00> : vector<2x8x8xf32>
    %225 = tpu.matmul %223, %224, %cst_80 {dimension_numbers = #tpu.dot_dimension_numbers<[2], [2], [1], [1], [0, 0, 0, 1, 1, 1], [0], [0]>} : vector<2x8x16xbf16>, vector<2x8x16xbf16>, vector<2x8x8xf32> -> vector<2x8x8xf32>
    "tpu.trace_stop"() : () -> ()
    %cst_81 = arith.constant 2.500000e-01 : f32
    %226 = vector.broadcast %cst_81 : f32 to vector<2x8x8xf32>
    %227 = arith.mulf %225, %226 : vector<2x8x8xf32>
    %cst_82 = arith.constant dense<0xFF800000> : vector<2x8xf32>
    %228 = vector.multi_reduction <maximumf>, %227, %cst_82 [2] : vector<2x8x8xf32> to vector<2x8xf32>
    %229 = vector.shape_cast %228 : vector<2x8xf32> to vector<2x8x1xf32>
    %230 = vector.broadcast %229 : vector<2x8x1xf32> to vector<2x8x8xf32>
    %231 = arith.subf %227, %230 : vector<2x8x8xf32>
    %232 = math.exp %231 : vector<2x8x8xf32>
    %cst_83 = arith.constant dense<0.000000e+00> : vector<2x8xf32>
    %233 = vector.multi_reduction <add>, %232, %cst_83 [2] : vector<2x8x8xf32> to vector<2x8xf32>
    %234 = vector.shape_cast %233 : vector<2x8xf32> to vector<2x8x1xf32>
    %235 = tpu.reciprocal %234 {approx = true} : vector<2x8x1xf32> -> vector<2x8x1xf32>
    %236 = vector.broadcast %235 : vector<2x8x1xf32> to vector<2x8x8xf32>
    %237 = arith.mulf %232, %236 : vector<2x8x8xf32>
    %238 = arith.truncf %237 : vector<2x8x8xf32> to vector<2x8x8xbf16>
    %239 = arith.truncf %222 : vector<2x8x16xf32> to vector<2x8x16xbf16>
    "tpu.trace_start"() <{level = 10 : i32, message = "bqk,bkd->bqd"}> : () -> ()
    %cst_84 = arith.constant dense<0.000000e+00> : vector<2x8x16xf32>
    %240 = tpu.matmul %238, %239, %cst_84 {dimension_numbers = #tpu.dot_dimension_numbers<[2], [1], [1], [2], [0, 0, 0, 1, 1, 2], [0], [0]>} : vector<2x8x8xbf16>, vector<2x8x16xbf16>, vector<2x8x16xf32> -> vector<2x8x16xf32>
    "tpu.trace_stop"() : () -> ()
    %241 = vector.extract_strided_slice %177 {offsets = [0, 0, 48], sizes = [2, 8, 16], strides = [1, 1, 1]} : vector<2x8x192xf32> to vector<2x8x16xf32>
    %242 = vector.extract_strided_slice %177 {offsets = [0, 0, 112], sizes = [2, 8, 16], strides = [1, 1, 1]} : vector<2x8x192xf32> to vector<2x8x16xf32>
    %243 = vector.extract_strided_slice %177 {offsets = [0, 0, 176], sizes = [2, 8, 16], strides = [1, 1, 1]} : vector<2x8x192xf32> to vector<2x8x16xf32>
    %244 = arith.truncf %241 : vector<2x8x16xf32> to vector<2x8x16xbf16>
    %245 = arith.truncf %242 : vector<2x8x16xf32> to vector<2x8x16xbf16>
    "tpu.trace_start"() <{level = 10 : i32, message = "bqd,bkd->bqk"}> : () -> ()
    %cst_85 = arith.constant dense<0.000000e+00> : vector<2x8x8xf32>
    %246 = tpu.matmul %244, %245, %cst_85 {dimension_numbers = #tpu.dot_dimension_numbers<[2], [2], [1], [1], [0, 0, 0, 1, 1, 1], [0], [0]>} : vector<2x8x16xbf16>, vector<2x8x16xbf16>, vector<2x8x8xf32> -> vector<2x8x8xf32>
    "tpu.trace_stop"() : () -> ()
    %cst_86 = arith.constant 2.500000e-01 : f32
    %247 = vector.broadcast %cst_86 : f32 to vector<2x8x8xf32>
    %248 = arith.mulf %246, %247 : vector<2x8x8xf32>
    %cst_87 = arith.constant dense<0xFF800000> : vector<2x8xf32>
    %249 = vector.multi_reduction <maximumf>, %248, %cst_87 [2] : vector<2x8x8xf32> to vector<2x8xf32>
    %250 = vector.shape_cast %249 : vector<2x8xf32> to vector<2x8x1xf32>
    %251 = vector.broadcast %250 : vector<2x8x1xf32> to vector<2x8x8xf32>
    %252 = arith.subf %248, %251 : vector<2x8x8xf32>
    %253 = math.exp %252 : vector<2x8x8xf32>
    %cst_88 = arith.constant dense<0.000000e+00> : vector<2x8xf32>
    %254 = vector.multi_reduction <add>, %253, %cst_88 [2] : vector<2x8x8xf32> to vector<2x8xf32>
    %255 = vector.shape_cast %254 : vector<2x8xf32> to vector<2x8x1xf32>
    %256 = tpu.reciprocal %255 {approx = true} : vector<2x8x1xf32> -> vector<2x8x1xf32>
    %257 = vector.broadcast %256 : vector<2x8x1xf32> to vector<2x8x8xf32>
    %258 = arith.mulf %253, %257 : vector<2x8x8xf32>
    %259 = arith.truncf %258 : vector<2x8x8xf32> to vector<2x8x8xbf16>
    %260 = arith.truncf %243 : vector<2x8x16xf32> to vector<2x8x16xbf16>
    "tpu.trace_start"() <{level = 10 : i32, message = "bqk,bkd->bqd"}> : () -> ()
    %cst_89 = arith.constant dense<0.000000e+00> : vector<2x8x16xf32>
    %261 = tpu.matmul %259, %260, %cst_89 {dimension_numbers = #tpu.dot_dimension_numbers<[2], [1], [1], [2], [0, 0, 0, 1, 1, 2], [0], [0]>} : vector<2x8x8xbf16>, vector<2x8x16xbf16>, vector<2x8x16xf32> -> vector<2x8x16xf32>
    "tpu.trace_stop"() : () -> ()
    %262 = tpu.concatenate %198, %219, %240, %261 in 2 : vector<2x8x16xf32>, vector<2x8x16xf32>, vector<2x8x16xf32>, vector<2x8x16xf32> -> vector<2x8x64xf32>
    %263 = vector.shape_cast %262 : vector<2x8x64xf32> to vector<16x64xf32>
    %264 = arith.truncf %263 : vector<16x64xf32> to vector<16x64xbf16>
    %c0_90 = arith.constant 0 : index
    %c0_91 = arith.constant 0 : index
    %265 = vector.load %arg20[%c0_90, %c0_91] : memref<64x64xbf16, #tpu.memory_space<vmem>>, vector<64x64xbf16>
    %cst_92 = arith.constant dense<0.000000e+00> : vector<16x64xf32>
    %266 = tpu.matmul %264, %265, %cst_92 {dimension_numbers = #tpu.dot_dimension_numbers<[1], [0], [0], [1], [0, 0, 1, 1], [], []>} : vector<16x64xbf16>, vector<64x64xbf16>, vector<16x64xf32> -> vector<16x64xf32>
    %c0_93 = arith.constant 0 : index
    %c0_94 = arith.constant 0 : index
    %267 = vector.load %arg21[%c0_93, %c0_94] : memref<1x64xf32, #tpu.memory_space<vmem>>, vector<1x64xf32>
    %268 = vector.broadcast %267 : vector<1x64xf32> to vector<16x64xf32>
    %269 = arith.addf %266, %268 : vector<16x64xf32>
    %270 = arith.addf %269, %170 : vector<16x64xf32>
    %c0_95 = arith.constant 0 : index
    %c0_96 = arith.constant 0 : index
    %271 = vector.load %arg22[%c0_95, %c0_96] : memref<1x64xf32, #tpu.memory_space<vmem>>, vector<1x64xf32>
    %c0_97 = arith.constant 0 : index
    %c0_98 = arith.constant 0 : index
    %272 = vector.load %arg23[%c0_97, %c0_98] : memref<1x64xf32, #tpu.memory_space<vmem>>, vector<1x64xf32>
    %cst_99 = arith.constant dense<0.000000e+00> : vector<16xf32>
    %273 = vector.multi_reduction <add>, %270, %cst_99 [1] : vector<16x64xf32> to vector<16xf32>
    %274 = vector.shape_cast %273 : vector<16xf32> to vector<16x1xf32>
    %cst_100 = arith.constant 6.400000e+01 : f32
    %275 = vector.broadcast %cst_100 : f32 to vector<16x1xf32>
    %276 = arith.divf %274, %275 : vector<16x1xf32>
    %277 = vector.broadcast %276 : vector<16x1xf32> to vector<16x64xf32>
    %278 = arith.subf %270, %277 : vector<16x64xf32>
    %279 = arith.mulf %278, %278 : vector<16x64xf32>
    %cst_101 = arith.constant dense<0.000000e+00> : vector<16xf32>
    %280 = vector.multi_reduction <add>, %279, %cst_101 [1] : vector<16x64xf32> to vector<16xf32>
    %281 = vector.shape_cast %280 : vector<16xf32> to vector<16x1xf32>
    %cst_102 = arith.constant 6.400000e+01 : f32
    %282 = vector.broadcast %cst_102 : f32 to vector<16x1xf32>
    %283 = arith.divf %281, %282 : vector<16x1xf32>
    %284 = vector.broadcast %276 : vector<16x1xf32> to vector<16x64xf32>
    %285 = arith.subf %270, %284 : vector<16x64xf32>
    %cst_103 = arith.constant 9.99999974E-6 : f32
    %286 = vector.broadcast %cst_103 : f32 to vector<16x1xf32>
    %287 = arith.addf %283, %286 : vector<16x1xf32>
    %288 = math.rsqrt %287 : vector<16x1xf32>
    %289 = vector.broadcast %288 : vector<16x1xf32> to vector<16x64xf32>
    %290 = arith.mulf %285, %289 : vector<16x64xf32>
    %291 = vector.broadcast %271 : vector<1x64xf32> to vector<16x64xf32>
    %292 = arith.mulf %290, %291 : vector<16x64xf32>
    %293 = vector.broadcast %272 : vector<1x64xf32> to vector<16x64xf32>
    %294 = arith.addf %292, %293 : vector<16x64xf32>
    %295 = arith.truncf %294 : vector<16x64xf32> to vector<16x64xbf16>
    %c0_104 = arith.constant 0 : index
    %c0_105 = arith.constant 0 : index
    %296 = vector.load %arg24[%c0_104, %c0_105] : memref<64x2048xbf16, #tpu.memory_space<vmem>>, vector<64x2048xbf16>
    %cst_106 = arith.constant dense<0.000000e+00> : vector<16x2048xf32>
    %297 = tpu.matmul %295, %296, %cst_106 {dimension_numbers = #tpu.dot_dimension_numbers<[1], [0], [0], [1], [0, 0, 1, 1], [], []>} : vector<16x64xbf16>, vector<64x2048xbf16>, vector<16x2048xf32> -> vector<16x2048xf32>
    %c0_107 = arith.constant 0 : index
    %c0_108 = arith.constant 0 : index
    %298 = vector.load %arg25[%c0_107, %c0_108] : memref<1x2048xf32, #tpu.memory_space<vmem>>, vector<1x2048xf32>
    %299 = vector.broadcast %298 : vector<1x2048xf32> to vector<16x2048xf32>
    %300 = arith.addf %297, %299 : vector<16x2048xf32>
    %cst_109 = arith.constant 0.000000e+00 : f32
    %301 = vector.broadcast %cst_109 : f32 to vector<16x2048xf32>
    %302 = arith.maximumf %300, %301 : vector<16x2048xf32>
    %303 = arith.truncf %302 : vector<16x2048xf32> to vector<16x2048xbf16>
    %c0_110 = arith.constant 0 : index
    %c0_111 = arith.constant 0 : index
    %304 = vector.load %arg26[%c0_110, %c0_111] : memref<2048x64xbf16, #tpu.memory_space<vmem>>, vector<2048x64xbf16>
    %cst_112 = arith.constant dense<0.000000e+00> : vector<16x64xf32>
    %305 = tpu.matmul %303, %304, %cst_112 {dimension_numbers = #tpu.dot_dimension_numbers<[1], [0], [0], [1], [0, 0, 1, 1], [], []>} : vector<16x2048xbf16>, vector<2048x64xbf16>, vector<16x64xf32> -> vector<16x64xf32>
    %c0_113 = arith.constant 0 : index
    %c0_114 = arith.constant 0 : index
    %306 = vector.load %arg27[%c0_113, %c0_114] : memref<1x64xf32, #tpu.memory_space<vmem>>, vector<1x64xf32>
    %307 = vector.broadcast %306 : vector<1x64xf32> to vector<16x64xf32>
    %308 = arith.addf %305, %307 : vector<16x64xf32>
    %309 = arith.addf %308, %294 : vector<16x64xf32>
    %c0_115 = arith.constant 0 : index
    %c0_116 = arith.constant 0 : index
    %310 = vector.load %arg28[%c0_115, %c0_116] : memref<1x64xf32, #tpu.memory_space<vmem>>, vector<1x64xf32>
    %c0_117 = arith.constant 0 : index
    %c0_118 = arith.constant 0 : index
    %311 = vector.load %arg29[%c0_117, %c0_118] : memref<1x64xf32, #tpu.memory_space<vmem>>, vector<1x64xf32>
    %cst_119 = arith.constant dense<0.000000e+00> : vector<16xf32>
    %312 = vector.multi_reduction <add>, %309, %cst_119 [1] : vector<16x64xf32> to vector<16xf32>
    %313 = vector.shape_cast %312 : vector<16xf32> to vector<16x1xf32>
    %cst_120 = arith.constant 6.400000e+01 : f32
    %314 = vector.broadcast %cst_120 : f32 to vector<16x1xf32>
    %315 = arith.divf %313, %314 : vector<16x1xf32>
    %316 = vector.broadcast %315 : vector<16x1xf32> to vector<16x64xf32>
    %317 = arith.subf %309, %316 : vector<16x64xf32>
    %318 = arith.mulf %317, %317 : vector<16x64xf32>
    %cst_121 = arith.constant dense<0.000000e+00> : vector<16xf32>
    %319 = vector.multi_reduction <add>, %318, %cst_121 [1] : vector<16x64xf32> to vector<16xf32>
    %320 = vector.shape_cast %319 : vector<16xf32> to vector<16x1xf32>
    %cst_122 = arith.constant 6.400000e+01 : f32
    %321 = vector.broadcast %cst_122 : f32 to vector<16x1xf32>
    %322 = arith.divf %320, %321 : vector<16x1xf32>
    %323 = vector.broadcast %315 : vector<16x1xf32> to vector<16x64xf32>
    %324 = arith.subf %309, %323 : vector<16x64xf32>
    %cst_123 = arith.constant 9.99999974E-6 : f32
    %325 = vector.broadcast %cst_123 : f32 to vector<16x1xf32>
    %326 = arith.addf %322, %325 : vector<16x1xf32>
    %327 = math.rsqrt %326 : vector<16x1xf32>
    %328 = vector.broadcast %327 : vector<16x1xf32> to vector<16x64xf32>
    %329 = arith.mulf %324, %328 : vector<16x64xf32>
    %330 = vector.broadcast %310 : vector<1x64xf32> to vector<16x64xf32>
    %331 = arith.mulf %329, %330 : vector<16x64xf32>
    %332 = vector.broadcast %311 : vector<1x64xf32> to vector<16x64xf32>
    %333 = arith.addf %331, %332 : vector<16x64xf32>
    %334 = arith.truncf %333 : vector<16x64xf32> to vector<16x64xbf16>
    %c0_124 = arith.constant 0 : index
    %c0_125 = arith.constant 0 : index
    %335 = vector.load %arg30[%c0_124, %c0_125] : memref<64x192xbf16, #tpu.memory_space<vmem>>, vector<64x192xbf16>
    %cst_126 = arith.constant dense<0.000000e+00> : vector<16x192xf32>
    %336 = tpu.matmul %334, %335, %cst_126 {dimension_numbers = #tpu.dot_dimension_numbers<[1], [0], [0], [1], [0, 0, 1, 1], [], []>} : vector<16x64xbf16>, vector<64x192xbf16>, vector<16x192xf32> -> vector<16x192xf32>
    %c0_127 = arith.constant 0 : index
    %c0_128 = arith.constant 0 : index
    %337 = vector.load %arg31[%c0_127, %c0_128] : memref<1x192xf32, #tpu.memory_space<vmem>>, vector<1x192xf32>
    %338 = vector.broadcast %337 : vector<1x192xf32> to vector<16x192xf32>
    %339 = arith.addf %336, %338 : vector<16x192xf32>
    %340 = vector.shape_cast %339 : vector<16x192xf32> to vector<2x8x192xf32>
    %341 = vector.extract_strided_slice %340 {offsets = [0, 0, 0], sizes = [2, 8, 16], strides = [1, 1, 1]} : vector<2x8x192xf32> to vector<2x8x16xf32>
    %342 = vector.extract_strided_slice %340 {offsets = [0, 0, 64], sizes = [2, 8, 16], strides = [1, 1, 1]} : vector<2x8x192xf32> to vector<2x8x16xf32>
    %343 = vector.extract_strided_slice %340 {offsets = [0, 0, 128], sizes = [2, 8, 16], strides = [1, 1, 1]} : vector<2x8x192xf32> to vector<2x8x16xf32>
    %344 = arith.truncf %341 : vector<2x8x16xf32> to vector<2x8x16xbf16>
    %345 = arith.truncf %342 : vector<2x8x16xf32> to vector<2x8x16xbf16>
    "tpu.trace_start"() <{level = 10 : i32, message = "bqd,bkd->bqk"}> : () -> ()
    %cst_129 = arith.constant dense<0.000000e+00> : vector<2x8x8xf32>
    %346 = tpu.matmul %344, %345, %cst_129 {dimension_numbers = #tpu.dot_dimension_numbers<[2], [2], [1], [1], [0, 0, 0, 1, 1, 1], [0], [0]>} : vector<2x8x16xbf16>, vector<2x8x16xbf16>, vector<2x8x8xf32> -> vector<2x8x8xf32>
    "tpu.trace_stop"() : () -> ()
    %cst_130 = arith.constant 2.500000e-01 : f32
    %347 = vector.broadcast %cst_130 : f32 to vector<2x8x8xf32>
    %348 = arith.mulf %346, %347 : vector<2x8x8xf32>
    %cst_131 = arith.constant dense<0xFF800000> : vector<2x8xf32>
    %349 = vector.multi_reduction <maximumf>, %348, %cst_131 [2] : vector<2x8x8xf32> to vector<2x8xf32>
    %350 = vector.shape_cast %349 : vector<2x8xf32> to vector<2x8x1xf32>
    %351 = vector.broadcast %350 : vector<2x8x1xf32> to vector<2x8x8xf32>
    %352 = arith.subf %348, %351 : vector<2x8x8xf32>
    %353 = math.exp %352 : vector<2x8x8xf32>
    %cst_132 = arith.constant dense<0.000000e+00> : vector<2x8xf32>
    %354 = vector.multi_reduction <add>, %353, %cst_132 [2] : vector<2x8x8xf32> to vector<2x8xf32>
    %355 = vector.shape_cast %354 : vector<2x8xf32> to vector<2x8x1xf32>
    %356 = tpu.reciprocal %355 {approx = true} : vector<2x8x1xf32> -> vector<2x8x1xf32>
    %357 = vector.broadcast %356 : vector<2x8x1xf32> to vector<2x8x8xf32>
    %358 = arith.mulf %353, %357 : vector<2x8x8xf32>
    %359 = arith.truncf %358 : vector<2x8x8xf32> to vector<2x8x8xbf16>
    %360 = arith.truncf %343 : vector<2x8x16xf32> to vector<2x8x16xbf16>
    "tpu.trace_start"() <{level = 10 : i32, message = "bqk,bkd->bqd"}> : () -> ()
    %cst_133 = arith.constant dense<0.000000e+00> : vector<2x8x16xf32>
    %361 = tpu.matmul %359, %360, %cst_133 {dimension_numbers = #tpu.dot_dimension_numbers<[2], [1], [1], [2], [0, 0, 0, 1, 1, 2], [0], [0]>} : vector<2x8x8xbf16>, vector<2x8x16xbf16>, vector<2x8x16xf32> -> vector<2x8x16xf32>
    "tpu.trace_stop"() : () -> ()
    %362 = vector.extract_strided_slice %340 {offsets = [0, 0, 16], sizes = [2, 8, 16], strides = [1, 1, 1]} : vector<2x8x192xf32> to vector<2x8x16xf32>
    %363 = vector.extract_strided_slice %340 {offsets = [0, 0, 80], sizes = [2, 8, 16], strides = [1, 1, 1]} : vector<2x8x192xf32> to vector<2x8x16xf32>
    %364 = vector.extract_strided_slice %340 {offsets = [0, 0, 144], sizes = [2, 8, 16], strides = [1, 1, 1]} : vector<2x8x192xf32> to vector<2x8x16xf32>
    %365 = arith.truncf %362 : vector<2x8x16xf32> to vector<2x8x16xbf16>
    %366 = arith.truncf %363 : vector<2x8x16xf32> to vector<2x8x16xbf16>
    "tpu.trace_start"() <{level = 10 : i32, message = "bqd,bkd->bqk"}> : () -> ()
    %cst_134 = arith.constant dense<0.000000e+00> : vector<2x8x8xf32>
    %367 = tpu.matmul %365, %366, %cst_134 {dimension_numbers = #tpu.dot_dimension_numbers<[2], [2], [1], [1], [0, 0, 0, 1, 1, 1], [0], [0]>} : vector<2x8x16xbf16>, vector<2x8x16xbf16>, vector<2x8x8xf32> -> vector<2x8x8xf32>
    "tpu.trace_stop"() : () -> ()
    %cst_135 = arith.constant 2.500000e-01 : f32
    %368 = vector.broadcast %cst_135 : f32 to vector<2x8x8xf32>
    %369 = arith.mulf %367, %368 : vector<2x8x8xf32>
    %cst_136 = arith.constant dense<0xFF800000> : vector<2x8xf32>
    %370 = vector.multi_reduction <maximumf>, %369, %cst_136 [2] : vector<2x8x8xf32> to vector<2x8xf32>
    %371 = vector.shape_cast %370 : vector<2x8xf32> to vector<2x8x1xf32>
    %372 = vector.broadcast %371 : vector<2x8x1xf32> to vector<2x8x8xf32>
    %373 = arith.subf %369, %372 : vector<2x8x8xf32>
    %374 = math.exp %373 : vector<2x8x8xf32>
    %cst_137 = arith.constant dense<0.000000e+00> : vector<2x8xf32>
    %375 = vector.multi_reduction <add>, %374, %cst_137 [2] : vector<2x8x8xf32> to vector<2x8xf32>
    %376 = vector.shape_cast %375 : vector<2x8xf32> to vector<2x8x1xf32>
    %377 = tpu.reciprocal %376 {approx = true} : vector<2x8x1xf32> -> vector<2x8x1xf32>
    %378 = vector.broadcast %377 : vector<2x8x1xf32> to vector<2x8x8xf32>
    %379 = arith.mulf %374, %378 : vector<2x8x8xf32>
    %380 = arith.truncf %379 : vector<2x8x8xf32> to vector<2x8x8xbf16>
    %381 = arith.truncf %364 : vector<2x8x16xf32> to vector<2x8x16xbf16>
    "tpu.trace_start"() <{level = 10 : i32, message = "bqk,bkd->bqd"}> : () -> ()
    %cst_138 = arith.constant dense<0.000000e+00> : vector<2x8x16xf32>
    %382 = tpu.matmul %380, %381, %cst_138 {dimension_numbers = #tpu.dot_dimension_numbers<[2], [1], [1], [2], [0, 0, 0, 1, 1, 2], [0], [0]>} : vector<2x8x8xbf16>, vector<2x8x16xbf16>, vector<2x8x16xf32> -> vector<2x8x16xf32>
    "tpu.trace_stop"() : () -> ()
    %383 = vector.extract_strided_slice %340 {offsets = [0, 0, 32], sizes = [2, 8, 16], strides = [1, 1, 1]} : vector<2x8x192xf32> to vector<2x8x16xf32>
    %384 = vector.extract_strided_slice %340 {offsets = [0, 0, 96], sizes = [2, 8, 16], strides = [1, 1, 1]} : vector<2x8x192xf32> to vector<2x8x16xf32>
    %385 = vector.extract_strided_slice %340 {offsets = [0, 0, 160], sizes = [2, 8, 16], strides = [1, 1, 1]} : vector<2x8x192xf32> to vector<2x8x16xf32>
    %386 = arith.truncf %383 : vector<2x8x16xf32> to vector<2x8x16xbf16>
    %387 = arith.truncf %384 : vector<2x8x16xf32> to vector<2x8x16xbf16>
    "tpu.trace_start"() <{level = 10 : i32, message = "bqd,bkd->bqk"}> : () -> ()
    %cst_139 = arith.constant dense<0.000000e+00> : vector<2x8x8xf32>
    %388 = tpu.matmul %386, %387, %cst_139 {dimension_numbers = #tpu.dot_dimension_numbers<[2], [2], [1], [1], [0, 0, 0, 1, 1, 1], [0], [0]>} : vector<2x8x16xbf16>, vector<2x8x16xbf16>, vector<2x8x8xf32> -> vector<2x8x8xf32>
    "tpu.trace_stop"() : () -> ()
    %cst_140 = arith.constant 2.500000e-01 : f32
    %389 = vector.broadcast %cst_140 : f32 to vector<2x8x8xf32>
    %390 = arith.mulf %388, %389 : vector<2x8x8xf32>
    %cst_141 = arith.constant dense<0xFF800000> : vector<2x8xf32>
    %391 = vector.multi_reduction <maximumf>, %390, %cst_141 [2] : vector<2x8x8xf32> to vector<2x8xf32>
    %392 = vector.shape_cast %391 : vector<2x8xf32> to vector<2x8x1xf32>
    %393 = vector.broadcast %392 : vector<2x8x1xf32> to vector<2x8x8xf32>
    %394 = arith.subf %390, %393 : vector<2x8x8xf32>
    %395 = math.exp %394 : vector<2x8x8xf32>
    %cst_142 = arith.constant dense<0.000000e+00> : vector<2x8xf32>
    %396 = vector.multi_reduction <add>, %395, %cst_142 [2] : vector<2x8x8xf32> to vector<2x8xf32>
    %397 = vector.shape_cast %396 : vector<2x8xf32> to vector<2x8x1xf32>
    %398 = tpu.reciprocal %397 {approx = true} : vector<2x8x1xf32> -> vector<2x8x1xf32>
    %399 = vector.broadcast %398 : vector<2x8x1xf32> to vector<2x8x8xf32>
    %400 = arith.mulf %395, %399 : vector<2x8x8xf32>
    %401 = arith.truncf %400 : vector<2x8x8xf32> to vector<2x8x8xbf16>
    %402 = arith.truncf %385 : vector<2x8x16xf32> to vector<2x8x16xbf16>
    "tpu.trace_start"() <{level = 10 : i32, message = "bqk,bkd->bqd"}> : () -> ()
    %cst_143 = arith.constant dense<0.000000e+00> : vector<2x8x16xf32>
    %403 = tpu.matmul %401, %402, %cst_143 {dimension_numbers = #tpu.dot_dimension_numbers<[2], [1], [1], [2], [0, 0, 0, 1, 1, 2], [0], [0]>} : vector<2x8x8xbf16>, vector<2x8x16xbf16>, vector<2x8x16xf32> -> vector<2x8x16xf32>
    "tpu.trace_stop"() : () -> ()
    %404 = vector.extract_strided_slice %340 {offsets = [0, 0, 48], sizes = [2, 8, 16], strides = [1, 1, 1]} : vector<2x8x192xf32> to vector<2x8x16xf32>
    %405 = vector.extract_strided_slice %340 {offsets = [0, 0, 112], sizes = [2, 8, 16], strides = [1, 1, 1]} : vector<2x8x192xf32> to vector<2x8x16xf32>
    %406 = vector.extract_strided_slice %340 {offsets = [0, 0, 176], sizes = [2, 8, 16], strides = [1, 1, 1]} : vector<2x8x192xf32> to vector<2x8x16xf32>
    %407 = arith.truncf %404 : vector<2x8x16xf32> to vector<2x8x16xbf16>
    %408 = arith.truncf %405 : vector<2x8x16xf32> to vector<2x8x16xbf16>
    "tpu.trace_start"() <{level = 10 : i32, message = "bqd,bkd->bqk"}> : () -> ()
    %cst_144 = arith.constant dense<0.000000e+00> : vector<2x8x8xf32>
    %409 = tpu.matmul %407, %408, %cst_144 {dimension_numbers = #tpu.dot_dimension_numbers<[2], [2], [1], [1], [0, 0, 0, 1, 1, 1], [0], [0]>} : vector<2x8x16xbf16>, vector<2x8x16xbf16>, vector<2x8x8xf32> -> vector<2x8x8xf32>
    "tpu.trace_stop"() : () -> ()
    %cst_145 = arith.constant 2.500000e-01 : f32
    %410 = vector.broadcast %cst_145 : f32 to vector<2x8x8xf32>
    %411 = arith.mulf %409, %410 : vector<2x8x8xf32>
    %cst_146 = arith.constant dense<0xFF800000> : vector<2x8xf32>
    %412 = vector.multi_reduction <maximumf>, %411, %cst_146 [2] : vector<2x8x8xf32> to vector<2x8xf32>
    %413 = vector.shape_cast %412 : vector<2x8xf32> to vector<2x8x1xf32>
    %414 = vector.broadcast %413 : vector<2x8x1xf32> to vector<2x8x8xf32>
    %415 = arith.subf %411, %414 : vector<2x8x8xf32>
    %416 = math.exp %415 : vector<2x8x8xf32>
    %cst_147 = arith.constant dense<0.000000e+00> : vector<2x8xf32>
    %417 = vector.multi_reduction <add>, %416, %cst_147 [2] : vector<2x8x8xf32> to vector<2x8xf32>
    %418 = vector.shape_cast %417 : vector<2x8xf32> to vector<2x8x1xf32>
    %419 = tpu.reciprocal %418 {approx = true} : vector<2x8x1xf32> -> vector<2x8x1xf32>
    %420 = vector.broadcast %419 : vector<2x8x1xf32> to vector<2x8x8xf32>
    %421 = arith.mulf %416, %420 : vector<2x8x8xf32>
    %422 = arith.truncf %421 : vector<2x8x8xf32> to vector<2x8x8xbf16>
    %423 = arith.truncf %406 : vector<2x8x16xf32> to vector<2x8x16xbf16>
    "tpu.trace_start"() <{level = 10 : i32, message = "bqk,bkd->bqd"}> : () -> ()
    %cst_148 = arith.constant dense<0.000000e+00> : vector<2x8x16xf32>
    %424 = tpu.matmul %422, %423, %cst_148 {dimension_numbers = #tpu.dot_dimension_numbers<[2], [1], [1], [2], [0, 0, 0, 1, 1, 2], [0], [0]>} : vector<2x8x8xbf16>, vector<2x8x16xbf16>, vector<2x8x16xf32> -> vector<2x8x16xf32>
    "tpu.trace_stop"() : () -> ()
    %425 = tpu.concatenate %361, %382, %403, %424 in 2 : vector<2x8x16xf32>, vector<2x8x16xf32>, vector<2x8x16xf32>, vector<2x8x16xf32> -> vector<2x8x64xf32>
    %426 = vector.shape_cast %425 : vector<2x8x64xf32> to vector<16x64xf32>
    %427 = arith.truncf %426 : vector<16x64xf32> to vector<16x64xbf16>
    %c0_149 = arith.constant 0 : index
    %c0_150 = arith.constant 0 : index
    %428 = vector.load %arg32[%c0_149, %c0_150] : memref<64x64xbf16, #tpu.memory_space<vmem>>, vector<64x64xbf16>
    %cst_151 = arith.constant dense<0.000000e+00> : vector<16x64xf32>
    %429 = tpu.matmul %427, %428, %cst_151 {dimension_numbers = #tpu.dot_dimension_numbers<[1], [0], [0], [1], [0, 0, 1, 1], [], []>} : vector<16x64xbf16>, vector<64x64xbf16>, vector<16x64xf32> -> vector<16x64xf32>
    %c0_152 = arith.constant 0 : index
    %c0_153 = arith.constant 0 : index
    %430 = vector.load %arg33[%c0_152, %c0_153] : memref<1x64xf32, #tpu.memory_space<vmem>>, vector<1x64xf32>
    %431 = vector.broadcast %430 : vector<1x64xf32> to vector<16x64xf32>
    %432 = arith.addf %429, %431 : vector<16x64xf32>
    %433 = arith.addf %432, %333 : vector<16x64xf32>
    %c0_154 = arith.constant 0 : index
    %c0_155 = arith.constant 0 : index
    %434 = vector.load %arg34[%c0_154, %c0_155] : memref<1x64xf32, #tpu.memory_space<vmem>>, vector<1x64xf32>
    %c0_156 = arith.constant 0 : index
    %c0_157 = arith.constant 0 : index
    %435 = vector.load %arg35[%c0_156, %c0_157] : memref<1x64xf32, #tpu.memory_space<vmem>>, vector<1x64xf32>
    %cst_158 = arith.constant dense<0.000000e+00> : vector<16xf32>
    %436 = vector.multi_reduction <add>, %433, %cst_158 [1] : vector<16x64xf32> to vector<16xf32>
    %437 = vector.shape_cast %436 : vector<16xf32> to vector<16x1xf32>
    %cst_159 = arith.constant 6.400000e+01 : f32
    %438 = vector.broadcast %cst_159 : f32 to vector<16x1xf32>
    %439 = arith.divf %437, %438 : vector<16x1xf32>
    %440 = vector.broadcast %439 : vector<16x1xf32> to vector<16x64xf32>
    %441 = arith.subf %433, %440 : vector<16x64xf32>
    %442 = arith.mulf %441, %441 : vector<16x64xf32>
    %cst_160 = arith.constant dense<0.000000e+00> : vector<16xf32>
    %443 = vector.multi_reduction <add>, %442, %cst_160 [1] : vector<16x64xf32> to vector<16xf32>
    %444 = vector.shape_cast %443 : vector<16xf32> to vector<16x1xf32>
    %cst_161 = arith.constant 6.400000e+01 : f32
    %445 = vector.broadcast %cst_161 : f32 to vector<16x1xf32>
    %446 = arith.divf %444, %445 : vector<16x1xf32>
    %447 = vector.broadcast %439 : vector<16x1xf32> to vector<16x64xf32>
    %448 = arith.subf %433, %447 : vector<16x64xf32>
    %cst_162 = arith.constant 9.99999974E-6 : f32
    %449 = vector.broadcast %cst_162 : f32 to vector<16x1xf32>
    %450 = arith.addf %446, %449 : vector<16x1xf32>
    %451 = math.rsqrt %450 : vector<16x1xf32>
    %452 = vector.broadcast %451 : vector<16x1xf32> to vector<16x64xf32>
    %453 = arith.mulf %448, %452 : vector<16x64xf32>
    %454 = vector.broadcast %434 : vector<1x64xf32> to vector<16x64xf32>
    %455 = arith.mulf %453, %454 : vector<16x64xf32>
    %456 = vector.broadcast %435 : vector<1x64xf32> to vector<16x64xf32>
    %457 = arith.addf %455, %456 : vector<16x64xf32>
    %458 = arith.truncf %457 : vector<16x64xf32> to vector<16x64xbf16>
    %c0_163 = arith.constant 0 : index
    %c0_164 = arith.constant 0 : index
    %459 = vector.load %arg36[%c0_163, %c0_164] : memref<64x2048xbf16, #tpu.memory_space<vmem>>, vector<64x2048xbf16>
    %cst_165 = arith.constant dense<0.000000e+00> : vector<16x2048xf32>
    %460 = tpu.matmul %458, %459, %cst_165 {dimension_numbers = #tpu.dot_dimension_numbers<[1], [0], [0], [1], [0, 0, 1, 1], [], []>} : vector<16x64xbf16>, vector<64x2048xbf16>, vector<16x2048xf32> -> vector<16x2048xf32>
    %c0_166 = arith.constant 0 : index
    %c0_167 = arith.constant 0 : index
    %461 = vector.load %arg37[%c0_166, %c0_167] : memref<1x2048xf32, #tpu.memory_space<vmem>>, vector<1x2048xf32>
    %462 = vector.broadcast %461 : vector<1x2048xf32> to vector<16x2048xf32>
    %463 = arith.addf %460, %462 : vector<16x2048xf32>
    %cst_168 = arith.constant 0.000000e+00 : f32
    %464 = vector.broadcast %cst_168 : f32 to vector<16x2048xf32>
    %465 = arith.maximumf %463, %464 : vector<16x2048xf32>
    %466 = arith.truncf %465 : vector<16x2048xf32> to vector<16x2048xbf16>
    %c0_169 = arith.constant 0 : index
    %c0_170 = arith.constant 0 : index
    %467 = vector.load %arg38[%c0_169, %c0_170] : memref<2048x64xbf16, #tpu.memory_space<vmem>>, vector<2048x64xbf16>
    %cst_171 = arith.constant dense<0.000000e+00> : vector<16x64xf32>
    %468 = tpu.matmul %466, %467, %cst_171 {dimension_numbers = #tpu.dot_dimension_numbers<[1], [0], [0], [1], [0, 0, 1, 1], [], []>} : vector<16x2048xbf16>, vector<2048x64xbf16>, vector<16x64xf32> -> vector<16x64xf32>
    %c0_172 = arith.constant 0 : index
    %c0_173 = arith.constant 0 : index
    %469 = vector.load %arg39[%c0_172, %c0_173] : memref<1x64xf32, #tpu.memory_space<vmem>>, vector<1x64xf32>
    %470 = vector.broadcast %469 : vector<1x64xf32> to vector<16x64xf32>
    %471 = arith.addf %468, %470 : vector<16x64xf32>
    %472 = arith.addf %471, %457 : vector<16x64xf32>
    %c0_174 = arith.constant 0 : index
    %c0_175 = arith.constant 0 : index
    %473 = vector.load %arg40[%c0_174, %c0_175] : memref<1x64xf32, #tpu.memory_space<vmem>>, vector<1x64xf32>
    %c0_176 = arith.constant 0 : index
    %c0_177 = arith.constant 0 : index
    %474 = vector.load %arg41[%c0_176, %c0_177] : memref<1x64xf32, #tpu.memory_space<vmem>>, vector<1x64xf32>
    %cst_178 = arith.constant dense<0.000000e+00> : vector<16xf32>
    %475 = vector.multi_reduction <add>, %472, %cst_178 [1] : vector<16x64xf32> to vector<16xf32>
    %476 = vector.shape_cast %475 : vector<16xf32> to vector<16x1xf32>
    %cst_179 = arith.constant 6.400000e+01 : f32
    %477 = vector.broadcast %cst_179 : f32 to vector<16x1xf32>
    %478 = arith.divf %476, %477 : vector<16x1xf32>
    %479 = vector.broadcast %478 : vector<16x1xf32> to vector<16x64xf32>
    %480 = arith.subf %472, %479 : vector<16x64xf32>
    %481 = arith.mulf %480, %480 : vector<16x64xf32>
    %cst_180 = arith.constant dense<0.000000e+00> : vector<16xf32>
    %482 = vector.multi_reduction <add>, %481, %cst_180 [1] : vector<16x64xf32> to vector<16xf32>
    %483 = vector.shape_cast %482 : vector<16xf32> to vector<16x1xf32>
    %cst_181 = arith.constant 6.400000e+01 : f32
    %484 = vector.broadcast %cst_181 : f32 to vector<16x1xf32>
    %485 = arith.divf %483, %484 : vector<16x1xf32>
    %486 = vector.broadcast %478 : vector<16x1xf32> to vector<16x64xf32>
    %487 = arith.subf %472, %486 : vector<16x64xf32>
    %cst_182 = arith.constant 9.99999974E-6 : f32
    %488 = vector.broadcast %cst_182 : f32 to vector<16x1xf32>
    %489 = arith.addf %485, %488 : vector<16x1xf32>
    %490 = math.rsqrt %489 : vector<16x1xf32>
    %491 = vector.broadcast %490 : vector<16x1xf32> to vector<16x64xf32>
    %492 = arith.mulf %487, %491 : vector<16x64xf32>
    %493 = vector.broadcast %473 : vector<1x64xf32> to vector<16x64xf32>
    %494 = arith.mulf %492, %493 : vector<16x64xf32>
    %495 = vector.broadcast %474 : vector<1x64xf32> to vector<16x64xf32>
    %496 = arith.addf %494, %495 : vector<16x64xf32>
    %497 = vector.shape_cast %496 : vector<16x64xf32> to vector<2x8x64xf32>
    %498 = vector.extract_strided_slice %497 {offsets = [0, 7, 0], sizes = [2, 1, 64], strides = [1, 1, 1]} : vector<2x8x64xf32> to vector<2x1x64xf32>
    %499 = vector.shape_cast %498 : vector<2x1x64xf32> to vector<2x64xf32>
    %500 = arith.truncf %499 : vector<2x64xf32> to vector<2x64xbf16>
    %c0_183 = arith.constant 0 : index
    %c0_184 = arith.constant 0 : index
    %501 = vector.load %arg4[%c0_183, %c0_184] : memref<64x48xbf16, #tpu.memory_space<vmem>>, vector<64x48xbf16>
    %cst_185 = arith.constant dense<0.000000e+00> : vector<2x48xf32>
    %502 = tpu.matmul %500, %501, %cst_185 {dimension_numbers = #tpu.dot_dimension_numbers<[1], [0], [0], [1], [0, 0, 1, 1], [], []>} : vector<2x64xbf16>, vector<64x48xbf16>, vector<2x48xf32> -> vector<2x48xf32>
    %c0_186 = arith.constant 0 : index
    %c0_187 = arith.constant 0 : index
    %503 = vector.load %arg5[%c0_186, %c0_187] : memref<1x48xf32, #tpu.memory_space<vmem>>, vector<1x48xf32>
    %504 = vector.broadcast %503 : vector<1x48xf32> to vector<2x48xf32>
    %505 = arith.addf %502, %504 : vector<2x48xf32>
    %c0_188 = arith.constant 0 : index
    %c0_189 = arith.constant 0 : index
    %506 = vector.load %arg42[%c0_188, %c0_189] : memref<2x48xf32, #tpu.memory_space<vmem>>, vector<2x48xf32>
    tpu.vector_store %arg42[%c0_188, %c0_189], %505 {strides = array<i32>} : memref<2x48xf32, #tpu.memory_space<vmem>>, vector<2x48xf32>,
    return
  }
  func.func @transform_0(%arg0: i32) -> (i32, i32, i32) {
    %c0_i32 = arith.constant 0 : i32
    %c0_i32_0 = arith.constant 0 : i32
    %c0_i32_1 = arith.constant 0 : i32
    return %arg0, %c0_i32, %c0_i32_0 : i32, i32, i32
  }
  func.func @transform_1(%arg0: i32) -> (i32, i32) {
    %c0_i32 = arith.constant 0 : i32
    %c0_i32_0 = arith.constant 0 : i32
    %c0_i32_1 = arith.constant 0 : i32
    return %c0_i32, %c0_i32_0 : i32, i32
  }
  func.func @transform_2(%arg0: i32) -> (i32, i32) {
    %c0_i32 = arith.constant 0 : i32
    %c0_i32_0 = arith.constant 0 : i32
    %c0_i32_1 = arith.constant 0 : i32
    return %c0_i32, %c0_i32_0 : i32, i32
  }
  func.func @transform_3(%arg0: i32) -> (i32, i32) {
    %c0_i32 = arith.constant 0 : i32
    %c0_i32_0 = arith.constant 0 : i32
    %c0_i32_1 = arith.constant 0 : i32
    return %c0_i32, %c0_i32_0 : i32, i32
  }
  func.func @transform_4(%arg0: i32) -> (i32, i32) {
    %c0_i32 = arith.constant 0 : i32
    %c0_i32_0 = arith.constant 0 : i32
    %c0_i32_1 = arith.constant 0 : i32
    return %c0_i32, %c0_i32_0 : i32, i32
  }
  func.func @transform_5(%arg0: i32) -> (i32, i32) {
    %c0_i32 = arith.constant 0 : i32
    %c0_i32_0 = arith.constant 0 : i32
    %c0_i32_1 = arith.constant 0 : i32
    return %c0_i32, %c0_i32_0 : i32, i32
  }
  func.func @transform_6(%arg0: i32) -> (i32, i32) {
    %c0_i32 = arith.constant 0 : i32
    %c0_i32_0 = arith.constant 0 : i32
    %c0_i32_1 = arith.constant 0 : i32
    return %c0_i32, %c0_i32_0 : i32, i32
  }
  func.func @transform_7(%arg0: i32) -> (i32, i32) {
    %c0_i32 = arith.constant 0 : i32
    %c0_i32_0 = arith.constant 0 : i32
    %c0_i32_1 = arith.constant 0 : i32
    return %c0_i32, %c0_i32_0 : i32, i32
  }
  func.func @transform_8(%arg0: i32) -> (i32, i32) {
    %c0_i32 = arith.constant 0 : i32
    %c0_i32_0 = arith.constant 0 : i32
    %c0_i32_1 = arith.constant 0 : i32
    return %c0_i32, %c0_i32_0 : i32, i32
  }
  func.func @transform_9(%arg0: i32) -> (i32, i32) {
    %c0_i32 = arith.constant 0 : i32
    %c0_i32_0 = arith.constant 0 : i32
    %c0_i32_1 = arith.constant 0 : i32
    return %c0_i32, %c0_i32_0 : i32, i32
  }
  func.func @transform_10(%arg0: i32) -> (i32, i32) {
    %c0_i32 = arith.constant 0 : i32
    %c0_i32_0 = arith.constant 0 : i32
    %c0_i32_1 = arith.constant 0 : i32
    return %c0_i32, %c0_i32_0 : i32, i32
  }
  func.func @transform_11(%arg0: i32) -> (i32, i32) {
    %c0_i32 = arith.constant 0 : i32
    %c0_i32_0 = arith.constant 0 : i32
    %c0_i32_1 = arith.constant 0 : i32
    return %c0_i32, %c0_i32_0 : i32, i32
  }
  func.func @transform_12(%arg0: i32) -> (i32, i32) {
    %c0_i32 = arith.constant 0 : i32
    %c0_i32_0 = arith.constant 0 : i32
    %c0_i32_1 = arith.constant 0 : i32
    return %c0_i32, %c0_i32_0 : i32, i32
  }
  func.func @transform_13(%arg0: i32) -> (i32, i32) {
    %c0_i32 = arith.constant 0 : i32
    %c0_i32_0 = arith.constant 0 : i32
    %c0_i32_1 = arith.constant 0 : i32
    return %c0_i32, %c0_i32_0 : i32, i32
  }
  func.func @transform_14(%arg0: i32) -> (i32, i32) {
    %c0_i32 = arith.constant 0 : i32
    %c0_i32_0 = arith.constant 0 : i32
    %c0_i32_1 = arith.constant 0 : i32
    return %c0_i32, %c0_i32_0 : i32, i32
  }
  func.func @transform_15(%arg0: i32) -> (i32, i32) {
    %c0_i32 = arith.constant 0 : i32
    %c0_i32_0 = arith.constant 0 : i32
    %c0_i32_1 = arith.constant 0 : i32
    return %c0_i32, %c0_i32_0 : i32, i32
  }
  func.func @transform_16(%arg0: i32) -> (i32, i32) {
    %c0_i32 = arith.constant 0 : i32
    %c0_i32_0 = arith.constant 0 : i32
    %c0_i32_1 = arith.constant 0 : i32
    return %c0_i32, %c0_i32_0 : i32, i32
  }
  func.func @transform_17(%arg0: i32) -> (i32, i32) {
    %c0_i32 = arith.constant 0 : i32
    %c0_i32_0 = arith.constant 0 : i32
    %c0_i32_1 = arith.constant 0 : i32
    return %c0_i32, %c0_i32_0 : i32, i32
  }
  func.func @transform_18(%arg0: i32) -> (i32, i32) {
    %c0_i32 = arith.constant 0 : i32
    %c0_i32_0 = arith.constant 0 : i32
    %c0_i32_1 = arith.constant 0 : i32
    return %c0_i32, %c0_i32_0 : i32, i32
  }
  func.func @transform_19(%arg0: i32) -> (i32, i32) {
    %c0_i32 = arith.constant 0 : i32
    %c0_i32_0 = arith.constant 0 : i32
    %c0_i32_1 = arith.constant 0 : i32
    return %c0_i32, %c0_i32_0 : i32, i32
  }
  func.func @transform_20(%arg0: i32) -> (i32, i32) {
    %c0_i32 = arith.constant 0 : i32
    %c0_i32_0 = arith.constant 0 : i32
    %c0_i32_1 = arith.constant 0 : i32
    return %c0_i32, %c0_i32_0 : i32, i32
  }
  func.func @transform_21(%arg0: i32) -> (i32, i32) {
    %c0_i32 = arith.constant 0 : i32
    %c0_i32_0 = arith.constant 0 : i32
    %c0_i32_1 = arith.constant 0 : i32
    return %c0_i32, %c0_i32_0 : i32, i32
  }
  func.func @transform_22(%arg0: i32) -> (i32, i32) {
    %c0_i32 = arith.constant 0 : i32
    %c0_i32_0 = arith.constant 0 : i32
    %c0_i32_1 = arith.constant 0 : i32
    return %c0_i32, %c0_i32_0 : i32, i32
  }
  func.func @transform_23(%arg0: i32) -> (i32, i32) {
    %c0_i32 = arith.constant 0 : i32
    %c0_i32_0 = arith.constant 0 : i32
    %c0_i32_1 = arith.constant 0 : i32
    return %c0_i32, %c0_i32_0 : i32, i32
  }
  func.func @transform_24(%arg0: i32) -> (i32, i32) {
    %c0_i32 = arith.constant 0 : i32
    %c0_i32_0 = arith.constant 0 : i32
    %c0_i32_1 = arith.constant 0 : i32
    return %c0_i32, %c0_i32_0 : i32, i32
  }
  func.func @transform_25(%arg0: i32) -> (i32, i32) {
    %c0_i32 = arith.constant 0 : i32
    %c0_i32_0 = arith.constant 0 : i32
    %c0_i32_1 = arith.constant 0 : i32
    return %c0_i32, %c0_i32_0 : i32, i32
  }
  func.func @transform_26(%arg0: i32) -> (i32, i32) {
    %c0_i32 = arith.constant 0 : i32
    %c0_i32_0 = arith.constant 0 : i32
    %c0_i32_1 = arith.constant 0 : i32
    return %c0_i32, %c0_i32_0 : i32, i32
  }
  func.func @transform_27(%arg0: i32) -> (i32, i32) {
    %c0_i32 = arith.constant 0 : i32
    %c0_i32_0 = arith.constant 0 : i32
    %c0_i32_1 = arith.constant 0 : i32
    return %c0_i32, %c0_i32_0 : i32, i32
  }
  func.func @transform_28(%arg0: i32) -> (i32, i32) {
    %c0_i32 = arith.constant 0 : i32
    %c0_i32_0 = arith.constant 0 : i32
    %c0_i32_1 = arith.constant 0 : i32
    return %c0_i32, %c0_i32_0 : i32, i32
  }
  func.func @transform_29(%arg0: i32) -> (i32, i32) {
    %c0_i32 = arith.constant 0 : i32
    %c0_i32_0 = arith.constant 0 : i32
    %c0_i32_1 = arith.constant 0 : i32
    return %c0_i32, %c0_i32_0 : i32, i32
  }
  func.func @transform_30(%arg0: i32) -> (i32, i32) {
    %c0_i32 = arith.constant 0 : i32
    %c0_i32_0 = arith.constant 0 : i32
    %c0_i32_1 = arith.constant 0 : i32
    return %c0_i32, %c0_i32_0 : i32, i32
  }
  func.func @transform_31(%arg0: i32) -> (i32, i32) {
    %c0_i32 = arith.constant 0 : i32
    %c0_i32_0 = arith.constant 0 : i32
    %c0_i32_1 = arith.constant 0 : i32
    return %c0_i32, %c0_i32_0 : i32, i32
  }
  func.func @transform_32(%arg0: i32) -> (i32, i32) {
    %c0_i32 = arith.constant 0 : i32
    %c0_i32_0 = arith.constant 0 : i32
    %c0_i32_1 = arith.constant 0 : i32
    return %c0_i32, %c0_i32_0 : i32, i32
  }
  func.func @transform_33(%arg0: i32) -> (i32, i32) {
    %c0_i32 = arith.constant 0 : i32
    %c0_i32_0 = arith.constant 0 : i32
    %c0_i32_1 = arith.constant 0 : i32
    return %c0_i32, %c0_i32_0 : i32, i32
  }
  func.func @transform_34(%arg0: i32) -> (i32, i32) {
    %c0_i32 = arith.constant 0 : i32
    %c0_i32_0 = arith.constant 0 : i32
    %c0_i32_1 = arith.constant 0 : i32
    return %c0_i32, %c0_i32_0 : i32, i32
  }
  func.func @transform_35(%arg0: i32) -> (i32, i32) {
    %c0_i32 = arith.constant 0 : i32
    %c0_i32_0 = arith.constant 0 : i32
    %c0_i32_1 = arith.constant 0 : i32
    return %c0_i32, %c0_i32_0 : i32, i32
  }
  func.func @transform_36(%arg0: i32) -> (i32, i32) {
    %c0_i32 = arith.constant 0 : i32
    %c0_i32_0 = arith.constant 0 : i32
    %c0_i32_1 = arith.constant 0 : i32
    return %c0_i32, %c0_i32_0 : i32, i32
  }
  func.func @transform_37(%arg0: i32) -> (i32, i32) {
    %c0_i32 = arith.constant 0 : i32
    %c0_i32_0 = arith.constant 0 : i32
    %c0_i32_1 = arith.constant 0 : i32
    return %c0_i32, %c0_i32_0 : i32, i32
  }
  func.func @transform_38(%arg0: i32) -> (i32, i32) {
    %c0_i32 = arith.constant 0 : i32
    %c0_i32_0 = arith.constant 0 : i32
    %c0_i32_1 = arith.constant 0 : i32
    return %c0_i32, %c0_i32_0 : i32, i32
  }
  func.func @transform_39(%arg0: i32) -> (i32, i32) {
    %c0_i32 = arith.constant 0 : i32
    %c0_i32_0 = arith.constant 0 : i32
    %c0_i32_1 = arith.constant 0 : i32
    return %c0_i32, %c0_i32_0 : i32, i32
  }
  func.func @transform_40(%arg0: i32) -> (i32, i32) {
    %c0_i32 = arith.constant 0 : i32
    %c0_i32_0 = arith.constant 0 : i32
    %c0_i32_1 = arith.constant 0 : i32
    return %c0_i32, %c0_i32_0 : i32, i32
  }
  func.func @transform_41(%arg0: i32) -> (i32, i32) {
    %c0_i32 = arith.constant 0 : i32
    %c0_i32_0 = arith.constant 0 : i32
    return %arg0, %c0_i32 : i32, i32
  }
}

</mosaic_0001>

<llo_original>
// kernel: patchtst_forward.1
$region0: #{patchtst_forward.1}
  #allocation0 [shape = 'u32[]', space=smem, size = 0x4, offset = 0x4, fixed_abs, tag = 'smem constant byte address 0x4 - core index']
  #allocation1 [shape = 'u32[144,128]{1,0:T(1,128)}', space=vmem, size = 0x12000, scoped, tag = 'internal scratch']
  %s0 = inlined_call_operand.smem [shape: u32[42], index: -1, kind: input, shape index: {}]
  %s1 = sld [smem:[%s0]]
  %s2 = scalar_lea.smem %s0, 1
  %s3 = sld [smem:[%s2]]
  %s4 = scalar_lea.smem %s0, 2
  %s5 = sld [smem:[%s4]]
  %s6 = scalar_lea.smem %s0, 3
  %s7 = sld [smem:[%s6]]
  %s8 = scalar_lea.smem %s0, 4
  %s9 = sld [smem:[%s8]]
  %s10 = scalar_lea.smem %s0, 5
  %s11 = sld [smem:[%s10]]
  %s12 = scalar_lea.smem %s0, 6
  %s13 = sld [smem:[%s12]]
  %s14 = scalar_lea.smem %s0, 7
  %s15 = sld [smem:[%s14]]
  %s16 = scalar_lea.smem %s0, 8
  %s17 = sld [smem:[%s16]]
  %s18 = scalar_lea.smem %s0, 9
  %s19 = sld [smem:[%s18]]
  %s20 = scalar_lea.smem %s0, 10
  %s21 = sld [smem:[%s20]]
  %s22 = scalar_lea.smem %s0, 11
  %s23 = sld [smem:[%s22]]
  %s24 = scalar_lea.smem %s0, 12
  %s25 = sld [smem:[%s24]]
  %s26 = scalar_lea.smem %s0, 13
  %s27 = sld [smem:[%s26]]
  %s28 = scalar_lea.smem %s0, 14
  %s29 = sld [smem:[%s28]]
  %s30 = scalar_lea.smem %s0, 15
  %s31 = sld [smem:[%s30]]
  %s32 = scalar_lea.smem %s0, 16
  %s33 = sld [smem:[%s32]]
  %s34 = scalar_lea.smem %s0, 17
  %s35 = sld [smem:[%s34]]
  %s36 = scalar_lea.smem %s0, 18
  %s37 = sld [smem:[%s36]]
  %s38 = scalar_lea.smem %s0, 19
  %s39 = sld [smem:[%s38]]
  %s40 = scalar_lea.smem %s0, 20
  %s41 = sld [smem:[%s40]]
  %s42 = scalar_lea.smem %s0, 21
  %s43 = sld [smem:[%s42]]
  %s44 = scalar_lea.smem %s0, 22
  %s45 = sld [smem:[%s44]]
  %s46 = scalar_lea.smem %s0, 23
  %s47 = sld [smem:[%s46]]
  %s48 = scalar_lea.smem %s0, 24
  %s49 = sld [smem:[%s48]]
  %s50 = scalar_lea.smem %s0, 25
  %s51 = sld [smem:[%s50]]
  %s52 = scalar_lea.smem %s0, 26
  %s53 = sld [smem:[%s52]]
  %s54 = scalar_lea.smem %s0, 27
  %s55 = sld [smem:[%s54]]
  %s56 = scalar_lea.smem %s0, 28
  %s57 = sld [smem:[%s56]]
  %s58 = scalar_lea.smem %s0, 29
  %s59 = sld [smem:[%s58]]
  %s60 = scalar_lea.smem %s0, 30
  %s61 = sld [smem:[%s60]]
  %s62 = scalar_lea.smem %s0, 31
  %s63 = sld [smem:[%s62]]
  %s64 = scalar_lea.smem %s0, 32
  %s65 = sld [smem:[%s64]]
  %s66 = scalar_lea.smem %s0, 33
  %s67 = sld [smem:[%s66]]
  %s68 = scalar_lea.smem %s0, 34
  %s69 = sld [smem:[%s68]]
  %s70 = scalar_lea.smem %s0, 35
  %s71 = sld [smem:[%s70]]
  %s72 = scalar_lea.smem %s0, 36
  %s73 = sld [smem:[%s72]]
  %s74 = scalar_lea.smem %s0, 37
  %s75 = sld [smem:[%s74]]
  %s76 = scalar_lea.smem %s0, 38
  %s77 = sld [smem:[%s76]]
  %s78 = scalar_lea.smem %s0, 39
  %s79 = sld [smem:[%s78]]
  %s80 = scalar_lea.smem %s0, 40
  %s81 = sld [smem:[%s80]]
  %s82 = scalar_lea.smem %s0, 41
  %s83 = sld [smem:[%s82]]
  %s84 = sld [smem:[#allocation0]]
  $region174: #{patchtst_forward.1} parent=0
    _
  %s86 = ssub.s32 1, %s84
  %s87 = scalar_select 0, %s86, %s84
  // Predicated region
  $region2: #{patchtst_forward.1} parent=0 // pred_check
    _
  $region3: #{patchtst_forward.1} parent=0 // pred_check_branch
    %89 = sbr.rel (0) target = $region5
  $region4: #{patchtst_forward.1} parent=0 // pred_region
    _
  $region5: #{patchtst_forward.1} parent=0 // pred_fallthru
    _
  // Predicated region
  $region6: #{patchtst_forward.1} parent=0 // pred_check
    _
  $region7: #{patchtst_forward.1} parent=0 // pred_check_branch
    %91 = sbr.rel (0) target = $region9
  $region8: #{patchtst_forward.1} parent=0 // pred_region
    _
  $region9: #{patchtst_forward.1} parent=0 // pred_fallthru
    _
  // Predicated region
  $region10: #{patchtst_forward.1} parent=0 // pred_check
    _
  $region11: #{patchtst_forward.1} parent=0 // pred_check_branch
    %93 = sbr.rel (0) target = $region13
  $region12: #{patchtst_forward.1} parent=0 // pred_region
    _
  $region13: #{patchtst_forward.1} parent=0 // pred_fallthru
    _
  // Predicated region
  $region14: #{patchtst_forward.1} parent=0 // pred_check
    _
  $region15: #{patchtst_forward.1} parent=0 // pred_check_branch
    %95 = sbr.rel (0) target = $region17
  $region16: #{patchtst_forward.1} parent=0 // pred_region
    _
  $region17: #{patchtst_forward.1} parent=0 // pred_fallthru
    _
  // Predicated region
  $region18: #{patchtst_forward.1} parent=0 // pred_check
    _
  $region19: #{patchtst_forward.1} parent=0 // pred_check_branch
    %97 = sbr.rel (0) target = $region21
  $region20: #{patchtst_forward.1} parent=0 // pred_region
    _
  $region21: #{patchtst_forward.1} parent=0 // pred_fallthru
    _
  // Predicated region
  $region22: #{patchtst_forward.1} parent=0 // pred_check
    _
  $region23: #{patchtst_forward.1} parent=0 // pred_check_branch
    %99 = sbr.rel (0) target = $region25
  $region24: #{patchtst_forward.1} parent=0 // pred_region
    _
  $region25: #{patchtst_forward.1} parent=0 // pred_fallthru
    _
  // Predicated region
  $region26: #{patchtst_forward.1} parent=0 // pred_check
    _
  $region27: #{patchtst_forward.1} parent=0 // pred_check_branch
    %101 = sbr.rel (0) target = $region29
  $region28: #{patchtst_forward.1} parent=0 // pred_region
    _
  $region29: #{patchtst_forward.1} parent=0 // pred_fallthru
    _
  // Predicated region
  $region30: #{patchtst_forward.1} parent=0 // pred_check
    _
  $region31: #{patchtst_forward.1} parent=0 // pred_check_branch
    %103 = sbr.rel (0) target = $region33
  $region32: #{patchtst_forward.1} parent=0 // pred_region
    _
  $region33: #{patchtst_forward.1} parent=0 // pred_fallthru
    _
  // Predicated region
  $region34: #{patchtst_forward.1} parent=0 // pred_check
    _
  $region35: #{patchtst_forward.1} parent=0 // pred_check_branch
    %105 = sbr.rel (0) target = $region37
  $region36: #{patchtst_forward.1} parent=0 // pred_region
    _
  $region37: #{patchtst_forward.1} parent=0 // pred_fallthru
    _
  // Predicated region
  $region38: #{patchtst_forward.1} parent=0 // pred_check
    _
  $region39: #{patchtst_forward.1} parent=0 // pred_check_branch
    %107 = sbr.rel (0) target = $region41
  $region40: #{patchtst_forward.1} parent=0 // pred_region
    _
  $region41: #{patchtst_forward.1} parent=0 // pred_fallthru
    _
  // Predicated region
  $region42: #{patchtst_forward.1} parent=0 // pred_check
    _
  $region43: #{patchtst_forward.1} parent=0 // pred_check_branch
    %109 = sbr.rel (0) target = $region45
  $region44: #{patchtst_forward.1} parent=0 // pred_region
    _
  $region45: #{patchtst_forward.1} parent=0 // pred_fallthru
    _
  // Predicated region
  $region46: #{patchtst_forward.1} parent=0 // pred_check
    _
  $region47: #{patchtst_forward.1} parent=0 // pred_check_branch
    %111 = sbr.rel (0) target = $region49
  $region48: #{patchtst_forward.1} parent=0 // pred_region
    _
  $region49: #{patchtst_forward.1} parent=0 // pred_fallthru
    _
  // Predicated region
  $region50: #{patchtst_forward.1} parent=0 // pred_check
    _
  $region51: #{patchtst_forward.1} parent=0 // pred_check_branch
    %113 = sbr.rel (0) target = $region53
  $region52: #{patchtst_forward.1} parent=0 // pred_region
    _
  $region53: #{patchtst_forward.1} parent=0 // pred_fallthru
    _
  // Predicated region
  $region54: #{patchtst_forward.1} parent=0 // pred_check
    _
  $region55: #{patchtst_forward.1} parent=0 // pred_check_branch
    %115 = sbr.rel (0) target = $region57
  $region56: #{patchtst_forward.1} parent=0 // pred_region
    _
  $region57: #{patchtst_forward.1} parent=0 // pred_fallthru
    _
  // Predicated region
  $region58: #{patchtst_forward.1} parent=0 // pred_check
    _
  $region59: #{patchtst_forward.1} parent=0 // pred_check_branch
    %117 = sbr.rel (0) target = $region61
  $region60: #{patchtst_forward.1} parent=0 // pred_region
    _
  $region61: #{patchtst_forward.1} parent=0 // pred_fallthru
    _
  // Predicated region
  $region62: #{patchtst_forward.1} parent=0 // pred_check
    _
  $region63: #{patchtst_forward.1} parent=0 // pred_check_branch
    %119 = sbr.rel (0) target = $region65
  $region64: #{patchtst_forward.1} parent=0 // pred_region
    _
  $region65: #{patchtst_forward.1} parent=0 // pred_fallthru
    _
  // Predicated region
  $region66: #{patchtst_forward.1} parent=0 // pred_check
    _
  $region67: #{patchtst_forward.1} parent=0 // pred_check_branch
    %121 = sbr.rel (0) target = $region69
  $region68: #{patchtst_forward.1} parent=0 // pred_region
    _
  $region69: #{patchtst_forward.1} parent=0 // pred_fallthru
    _
  // Predicated region
  $region70: #{patchtst_forward.1} parent=0 // pred_check
    _
  $region71: #{patchtst_forward.1} parent=0 // pred_check_branch
    %123 = sbr.rel (0) target = $region73
  $region72: #{patchtst_forward.1} parent=0 // pred_region
    _
  $region73: #{patchtst_forward.1} parent=0 // pred_fallthru
    _
  // Predicated region
  $region74: #{patchtst_forward.1} parent=0 // pred_check
    _
  $region75: #{patchtst_forward.1} parent=0 // pred_check_branch
    %125 = sbr.rel (0) target = $region77
  $region76: #{patchtst_forward.1} parent=0 // pred_region
    _
  $region77: #{patchtst_forward.1} parent=0 // pred_fallthru
    _
  // Predicated region
  $region78: #{patchtst_forward.1} parent=0 // pred_check
    _
  $region79: #{patchtst_forward.1} parent=0 // pred_check_branch
    %127 = sbr.rel (0) target = $region81
  $region80: #{patchtst_forward.1} parent=0 // pred_region
    _
  $region81: #{patchtst_forward.1} parent=0 // pred_fallthru
    _
  // Predicated region
  $region82: #{patchtst_forward.1} parent=0 // pred_check
    _
  $region83: #{patchtst_forward.1} parent=0 // pred_check_branch
    %129 = sbr.rel (0) target = $region85
  $region84: #{patchtst_forward.1} parent=0 // pred_region
    _
  $region85: #{patchtst_forward.1} parent=0 // pred_fallthru
    _
  // Predicated region
  $region86: #{patchtst_forward.1} parent=0 // pred_check
    _
  $region87: #{patchtst_forward.1} parent=0 // pred_check_branch
    %131 = sbr.rel (0) target = $region89
  $region88: #{patchtst_forward.1} parent=0 // pred_region
    _
  $region89: #{patchtst_forward.1} parent=0 // pred_fallthru
    _
  // Predicated region
  $region90: #{patchtst_forward.1} parent=0 // pred_check
    _
  $region91: #{patchtst_forward.1} parent=0 // pred_check_branch
    %133 = sbr.rel (0) target = $region93
  $region92: #{patchtst_forward.1} parent=0 // pred_region
    _
  $region93: #{patchtst_forward.1} parent=0 // pred_fallthru
    _
  // Predicated region
  $region94: #{patchtst_forward.1} parent=0 // pred_check
    _
  $region95: #{patchtst_forward.1} parent=0 // pred_check_branch
    %135 = sbr.rel (0) target = $region97
  $region96: #{patchtst_forward.1} parent=0 // pred_region
    _
  $region97: #{patchtst_forward.1} parent=0 // pred_fallthru
    _
  // Predicated region
  $region98: #{patchtst_forward.1} parent=0 // pred_check
    _
  $region99: #{patchtst_forward.1} parent=0 // pred_check_branch
    %137 = sbr.rel (0) target = $region101
  $region100: #{patchtst_forward.1} parent=0 // pred_region
    _
  $region101: #{patchtst_forward.1} parent=0 // pred_fallthru
    _
  // Predicated region
  $region102: #{patchtst_forward.1} parent=0 // pred_check
    _
  $region103: #{patchtst_forward.1} parent=0 // pred_check_branch
    %139 = sbr.rel (0) target = $region105
  $region104: #{patchtst_forward.1} parent=0 // pred_region
    _
  $region105: #{patchtst_forward.1} parent=0 // pred_fallthru
    _
  // Predicated region
  $region106: #{patchtst_forward.1} parent=0 // pred_check
    _
  $region107: #{patchtst_forward.1} parent=0 // pred_check_branch
    %141 = sbr.rel (0) target = $region109
  $region108: #{patchtst_forward.1} parent=0 // pred_region
    _
  $region109: #{patchtst_forward.1} parent=0 // pred_fallthru
    _
  // Predicated region
  $region110: #{patchtst_forward.1} parent=0 // pred_check
    _
  $region111: #{patchtst_forward.1} parent=0 // pred_check_branch
    %143 = sbr.rel (0) target = $region113
  $region112: #{patchtst_forward.1} parent=0 // pred_region
    _
  $region113: #{patchtst_forward.1} parent=0 // pred_fallthru
    _
  // Predicated region
  $region114: #{patchtst_forward.1} parent=0 // pred_check
    _
  $region115: #{patchtst_forward.1} parent=0 // pred_check_branch
    %145 = sbr.rel (0) target = $region117
  $region116: #{patchtst_forward.1} parent=0 // pred_region
    _
  $region117: #{patchtst_forward.1} parent=0 // pred_fallthru
    _
  // Predicated region
  $region118: #{patchtst_forward.1} parent=0 // pred_check
    _
  $region119: #{patchtst_forward.1} parent=0 // pred_check_branch
    %147 = sbr.rel (0) target = $region121
  $region120: #{patchtst_forward.1} parent=0 // pred_region
    _
  $region121: #{patchtst_forward.1} parent=0 // pred_fallthru
    _
  // Predicated region
  $region122: #{patchtst_forward.1} parent=0 // pred_check
    _
  $region123: #{patchtst_forward.1} parent=0 // pred_check_branch
    %149 = sbr.rel (0) target = $region125
  $region124: #{patchtst_forward.1} parent=0 // pred_region
    _
  $region125: #{patchtst_forward.1} parent=0 // pred_fallthru
    _
  // Predicated region
  $region126: #{patchtst_forward.1} parent=0 // pred_check
    _
  $region127: #{patchtst_forward.1} parent=0 // pred_check_branch
    %151 = sbr.rel (0) target = $region129
  $region128: #{patchtst_forward.1} parent=0 // pred_region
    _
  $region129: #{patchtst_forward.1} parent=0 // pred_fallthru
    _
  // Predicated region
  $region130: #{patchtst_forward.1} parent=0 // pred_check
    _
  $region131: #{patchtst_forward.1} parent=0 // pred_check_branch
    %153 = sbr.rel (0) target = $region133
  $region132: #{patchtst_forward.1} parent=0 // pred_region
    _
  $region133: #{patchtst_forward.1} parent=0 // pred_fallthru
    _
  // Predicated region
  $region134: #{patchtst_forward.1} parent=0 // pred_check
    _
  $region135: #{patchtst_forward.1} parent=0 // pred_check_branch
    %155 = sbr.rel (0) target = $region137
  $region136: #{patchtst_forward.1} parent=0 // pred_region
    _
  $region137: #{patchtst_forward.1} parent=0 // pred_fallthru
    _
  // Predicated region
  $region138: #{patchtst_forward.1} parent=0 // pred_check
    _
  $region139: #{patchtst_forward.1} parent=0 // pred_check_branch
    %157 = sbr.rel (0) target = $region141
  $region140: #{patchtst_forward.1} parent=0 // pred_region
    _
  $region141: #{patchtst_forward.1} parent=0 // pred_fallthru
    _
  // Predicated region
  $region142: #{patchtst_forward.1} parent=0 // pred_check
    _
  $region143: #{patchtst_forward.1} parent=0 // pred_check_branch
    %159 = sbr.rel (0) target = $region145
  $region144: #{patchtst_forward.1} parent=0 // pred_region
    _
  $region145: #{patchtst_forward.1} parent=0 // pred_fallthru
    _
  // Predicated region
  $region146: #{patchtst_forward.1} parent=0 // pred_check
    _
  $region147: #{patchtst_forward.1} parent=0 // pred_check_branch
    %161 = sbr.rel (0) target = $region149
  $region148: #{patchtst_forward.1} parent=0 // pred_region
    _
  $region149: #{patchtst_forward.1} parent=0 // pred_fallthru
    _
  // Predicated region
  $region150: #{patchtst_forward.1} parent=0 // pred_check
    _
  $region151: #{patchtst_forward.1} parent=0 // pred_check_branch
    %163 = sbr.rel (0) target = $region153
  $region152: #{patchtst_forward.1} parent=0 // pred_region
    _
  $region153: #{patchtst_forward.1} parent=0 // pred_fallthru
    _
  // Predicated region
  $region154: #{patchtst_forward.1} parent=0 // pred_check
    _
  $region155: #{patchtst_forward.1} parent=0 // pred_check_branch
    %165 = sbr.rel (0) target = $region157
  $region156: #{patchtst_forward.1} parent=0 // pred_region
    _
  $region157: #{patchtst_forward.1} parent=0 // pred_fallthru
    _
  // Predicated region
  $region158: #{patchtst_forward.1} parent=0 // pred_check
    _
  $region159: #{patchtst_forward.1} parent=0 // pred_check_branch
    %167 = sbr.rel (0) target = $region161
  $region160: #{patchtst_forward.1} parent=0 // pred_region
    _
  $region161: #{patchtst_forward.1} parent=0 // pred_fallthru
    _
  // Predicated region
  $region162: #{patchtst_forward.1} parent=0 // pred_check
    _
  $region163: #{patchtst_forward.1} parent=0 // pred_check_branch
    %169 = sbr.rel (0) target = $region165
  $region164: #{patchtst_forward.1} parent=0 // pred_region
    _
  $region165: #{patchtst_forward.1} parent=0 // pred_fallthru
    _
  %v171 = vld [vmem:[%s1] sm:$0xff]
  %v172 = vld [vmem:[%s1 + $0x8] sm:$0xff]
  %v173 = vpack.c.bf16 %v172, %v171
  %v174 = vld [vmem:[%s3] sm:$0xf]
  %v175 = vld [vmem:[%s3 + $0x4] sm:$0xf]
  %v176 = vld [vmem:[%s3 + $0x8] sm:$0xf]
  %v177 = vld [vmem:[%s3 + $0xc] sm:$0xf]
  %v178 = vld [vmem:[%s3 + $0x10] sm:$0xf]
  %v179 = vld [vmem:[%s3 + $0x14] sm:$0xf]
  %v180 = vld [vmem:[%s3 + $0x18] sm:$0xf]
  %v181 = vld [vmem:[%s3 + $0x1c] sm:$0xf]
  %v182 = vld [vmem:[%s5] sm:$0x1]
  %v184 = vlaneseq
  %v185 = vshrl.u32 %v184, 7
  %v186 = vsub.s32 0, %v185
  %v187 = vrot.slane %v182, %v186
  %v197 = vunpack.c.l.b16 %v174
  %v198 = vunpack.c.l.b16 %v175
  %v199 = vunpack.c.l.b16 %v176
  %v200 = vunpack.c.l.b16 %v177
  %v201 = vunpack.c.l.b16 %v178
  %v202 = vunpack.c.l.b16 %v179
  %v203 = vunpack.c.l.b16 %v180
  %v204 = vunpack.c.l.b16 %v181
  %v205 = vpack.c.b16 %v198, %v197
  %v206 = vpack.c.b16 %v200, %v199
  %v207 = vpack.c.b16 %v202, %v201
  %v208 = vpack.c.b16 %v204, %v203
  %vm213 = vcmask 523264
  %v215 = vsel %vm213, %v173, 0
  %217 = vmatprep.subr.bf16.mxu0 0
  %218 = vmatpush1.bf16.msra.mxu0 0
  %219 = vmatprep.subr.bf16.mxu0 0
  %220 = vmatpush1.bf16.msra.mxu0 0
  %221 = vmatprep.subr.bf16.mxu0 0
  %222 = vmatpush1.bf16.msra.mxu0 0
  %223 = vmatprep.subr.bf16.mxu0 0
  %224 = vmatpush1.bf16.msra.mxu0 0
  %225 = vmatprep.subr.bf16.mxu0 0
  %226 = vmatpush1.bf16.msra.mxu0 %v208
  %227 = vmatprep.subr.bf16.mxu0 0
  %228 = vmatpush1.bf16.msra.mxu0 %v207
  %229 = vmatprep.subr.bf16.mxu0 0
  %230 = vmatpush1.bf16.msra.mxu0 %v206
  %231 = vmatprep.subr.bf16.mxu0 0
  %232 = vmatpush1.bf16.msra.mxu0 %v205
  %233 = vmatprep.subr.bf16.mxu0 0
  %234 = vmatpush2.bf16.msra.mxu0 0
  %235 = vmatprep.subr.bf16.mxu0 0
  %236 = vmatpush2.bf16.msra.mxu0 0
  %237 = vmatprep.subr.bf16.mxu0 0
  %238 = vmatpush2.bf16.msra.mxu0 0
  %239 = vmatprep.subr.bf16.mxu0 0
  %240 = vmatpush2.bf16.msra.mxu0 0
  %241 = vmatprep.subr.bf16.mxu0 0
  %242 = vmatpush2.bf16.msra.mxu0 0
  %243 = vmatprep.subr.bf16.mxu0 0
  %244 = vmatpush2.bf16.msra.mxu0 0
  %245 = vmatprep.subr.bf16.mxu0 0
  %246 = vmatpush2.bf16.msra.mxu0 0
  %247 = vmatprep.subr.bf16.mxu0 0
  %248 = vmatpush2.bf16.msra.mxu0 0
  %249 = vmatprep.mubr.bf16.mxu0 0
  %250 = vmatmul.mubr.bf16.gmra.mxu0 %v215
  %v251 = vpop.f32.mrf.mxu0
  %v252 = vadd.f32 %v187, %v251
  %v253 = vpop.f32.mrf.mxu0
  %v254 = vpop.f32.mrf.mxu0
  %v255 = vadd.f32 %v187, %v254
  %v256 = vpop.f32.mrf.mxu0
  %257 = vdwg.mxu0
  %v258 = vpack.c.bf16 %v255, %v252
  %v259 = vld [vmem:[%s11] sm:$0xff]
  %v260 = vld [vmem:[%s11 + $0x8] sm:$0xff]
  %v261 = vld [vmem:[%s11 + $0x10] sm:$0xff]
  %v262 = vld [vmem:[%s11 + $0x18] sm:$0xff]
  %v263 = vld [vmem:[%s11 + $0x20] sm:$0xff]
  %v264 = vld [vmem:[%s11 + $0x28] sm:$0xff]
  %v265 = vld [vmem:[%s11 + $0x30] sm:$0xff]
  %v266 = vld [vmem:[%s11 + $0x38] sm:$0xff]
  %v267 = vld [vmem:[%s13] sm:$0x3]
  %v269 = vlaneseq
  %v270 = vshrl.u32 %v269, 7
  %v271 = vsub.s32 0, %v270
  %v272 = vrot.slane %v267, %v271
  %v273 = vlaneseq
  %v274 = vshrl.u32 %v273, 7
  %v275 = vsub.s32 1, %v274
  %v276 = vrot.slane %v267, %v275
  %v287 = vunpack.c.l.b16 %v259
  %v288 = vunpack.c.h.b16 %v259
  %v289 = vunpack.c.l.b16 %v260
  %v290 = vunpack.c.h.b16 %v260
  %v291 = vunpack.c.l.b16 %v261
  %v292 = vunpack.c.h.b16 %v261
  %v293 = vunpack.c.l.b16 %v262
  %v294 = vunpack.c.h.b16 %v262
  %v295 = vunpack.c.l.b16 %v263
  %v296 = vunpack.c.h.b16 %v263
  %v297 = vunpack.c.l.b16 %v264
  %v298 = vunpack.c.h.b16 %v264
  %v299 = vunpack.c.l.b16 %v265
  %v300 = vunpack.c.h.b16 %v265
  %v301 = vunpack.c.l.b16 %v266
  %v302 = vunpack.c.h.b16 %v266
  %v303 = vpack.c.b16 %v289, %v287
  %v304 = vpack.c.b16 %v290, %v288
  %v305 = vpack.c.b16 %v293, %v291
  %v306 = vpack.c.b16 %v294, %v292
  %v307 = vpack.c.b16 %v297, %v295
  %v308 = vpack.c.b16 %v298, %v296
  %v309 = vpack.c.b16 %v301, %v299
  %v310 = vpack.c.b16 %v302, %v300
  %v320 = vsel %vm213, %v258, 0
  %322 = vmatprep.subr.bf16.mxu0 0
  %323 = vmatpush1.bf16.msra.mxu0 0
  %324 = vmatprep.subr.bf16.mxu0 0
  %325 = vmatpush1.bf16.msra.mxu0 0
  %326 = vmatprep.subr.bf16.mxu0 0
  %327 = vmatpush1.bf16.msra.mxu0 0
  %328 = vmatprep.subr.bf16.mxu0 0
  %329 = vmatpush1.bf16.msra.mxu0 0
  %330 = vmatprep.subr.bf16.mxu0 %v310
  %331 = vmatpush1.bf16.msra.mxu0 %v309
  %332 = vmatprep.subr.bf16.mxu0 %v308
  %333 = vmatpush1.bf16.msra.mxu0 %v307
  %334 = vmatprep.subr.bf16.mxu0 %v306
  %335 = vmatpush1.bf16.msra.mxu0 %v305
  %336 = vmatprep.subr.bf16.mxu0 %v304
  %337 = vmatpush1.bf16.msra.mxu0 %v303
  %338 = vmatprep.subr.bf16.mxu0 0
  %339 = vmatpush2.bf16.msra.mxu0 0
  %340 = vmatprep.subr.bf16.mxu0 0
  %341 = vmatpush2.bf16.msra.mxu0 0
  %342 = vmatprep.subr.bf16.mxu0 0
  %343 = vmatpush2.bf16.msra.mxu0 0
  %344 = vmatprep.subr.bf16.mxu0 0
  %345 = vmatpush2.bf16.msra.mxu0 0
  %346 = vmatprep.subr.bf16.mxu0 0
  %347 = vmatpush2.bf16.msra.mxu0 0
  %348 = vmatprep.subr.bf16.mxu0 0
  %349 = vmatpush2.bf16.msra.mxu0 0
  %350 = vmatprep.subr.bf16.mxu0 0
  %351 = vmatpush2.bf16.msra.mxu0 0
  %352 = vmatprep.subr.bf16.mxu0 0
  %353 = vmatpush2.bf16.msra.mxu0 0
  %354 = vmatprep.mubr.bf16.mxu0 0
  %355 = vmatmul.mubr.bf16.gmra.mxu0 %v320
  %v356 = vpop.f32.mrf.mxu0
  %v357 = vadd.f32 %v272, %v356
  %v358 = vpop.f32.mrf.mxu0
  %v359 = vadd.f32 %v276, %v358
  %v360 = vpop.f32.mrf.mxu0
  %v361 = vadd.f32 %v272, %v360
  %v362 = vpop.f32.mrf.mxu0
  %v363 = vadd.f32 %v276, %v362
  %364 = vdwg.mxu0
  %v365 = vpack.c.bf16 %v357, %v357
  %v366 = vpack.c.bf16 %v361, %v361
  %368 = vrot.lane.b32.xlu0 %v365, 64
  %v369 = vpop.permute.xlu0 %368
  %vm370 = vcmask 130048
  %v372 = vsel %vm370, %v365, 0
  %v375 = vsel %vm370, %v369, 0
  %377 = vmatprep.subr.bf16.mxu0 0
  %378 = vmatpush1.bf16.xpose.msra.mxu0 0
  %379 = vmatprep.subr.bf16.mxu0 0
  %380 = vmatpush1.bf16.xpose.msra.mxu0 0
  %381 = vmatprep.subr.bf16.mxu0 0
  %382 = vmatpush1.bf16.xpose.msra.mxu0 0
  %383 = vmatprep.subr.bf16.mxu0 0
  %384 = vmatpush1.bf16.xpose.msra.mxu0 0
  %385 = vmatprep.subr.bf16.mxu0 0
  %386 = vmatpush1.bf16.xpose.msra.mxu0 0
  %387 = vmatprep.subr.bf16.mxu0 0
  %388 = vmatpush1.bf16.xpose.msra.mxu0 0
  %389 = vmatprep.subr.bf16.mxu0 0
  %390 = vmatpush1.bf16.xpose.msra.mxu0 0
  %391 = vmatprep.subr.bf16.mxu0 0
  %392 = vmatpush1.bf16.xpose.msra.mxu0 %v375
  %393 = vmatprep.subr.bf16.mxu0 0
  %394 = vmatpush2.bf16.xpose.msra.mxu0 0
  %395 = vmatprep.subr.bf16.mxu0 0
  %396 = vmatpush2.bf16.xpose.msra.mxu0 0
  %397 = vmatprep.subr.bf16.mxu0 0
  %398 = vmatpush2.bf16.xpose.msra.mxu0 0
  %399 = vmatprep.subr.bf16.mxu0 0
  %400 = vmatpush2.bf16.xpose.msra.mxu0 0
  %401 = vmatprep.subr.bf16.mxu0 0
  %402 = vmatpush2.bf16.xpose.msra.mxu0 0
  %403 = vmatprep.subr.bf16.mxu0 0
  %404 = vmatpush2.bf16.xpose.msra.mxu0 0
  %405 = vmatprep.subr.bf16.mxu0 0
  %406 = vmatpush2.bf16.xpose.msra.mxu0 0
  %407 = vmatprep.subr.bf16.mxu0 0
  %408 = vmatpush2.bf16.xpose.msra.mxu0 0
  %409 = vmatprep.mubr.bf16.mxu0 0
  %410 = vmatmul.mubr.bf16.gmra.mxu0 %v372
  %v411 = vpop.f32.mrf.mxu0
  %v412 = vadd.f32 0.0, %v411
  %v413 = vpop.f32.mrf.mxu0
  %v414 = vpop.f32.mrf.mxu0
  %v415 = vpop.f32.mrf.mxu0
  %416 = vdwg.mxu0
  %418 = vrot.lane.b32.xlu0 %v366, 64
  %v419 = vpop.permute.xlu0 %418
  %v421 = vsel %vm370, %v366, 0
  %v424 = vsel %vm370, %v419, 0
  %426 = vmatprep.subr.bf16.mxu0 0
  %427 = vmatpush1.bf16.xpose.msra.mxu0 0
  %428 = vmatprep.subr.bf16.mxu0 0
  %429 = vmatpush1.bf16.xpose.msra.mxu0 0
  %430 = vmatprep.subr.bf16.mxu0 0
  %431 = vmatpush1.bf16.xpose.msra.mxu0 0
  %432 = vmatprep.subr.bf16.mxu0 0
  %433 = vmatpush1.bf16.xpose.msra.mxu0 0
  %434 = vmatprep.subr.bf16.mxu0 0
  %435 = vmatpush1.bf16.xpose.msra.mxu0 0
  %436 = vmatprep.subr.bf16.mxu0 0
  %437 = vmatpush1.bf16.xpose.msra.mxu0 0
  %438 = vmatprep.subr.bf16.mxu0 0
  %439 = vmatpush1.bf16.xpose.msra.mxu0 0
  %440 = vmatprep.subr.bf16.mxu0 0
  %441 = vmatpush1.bf16.xpose.msra.mxu0 %v424
  %442 = vmatprep.subr.bf16.mxu0 0
  %443 = vmatpush2.bf16.xpose.msra.mxu0 0
  %444 = vmatprep.subr.bf16.mxu0 0
  %445 = vmatpush2.bf16.xpose.msra.mxu0 0
  %446 = vmatprep.subr.bf16.mxu0 0
  %447 = vmatpush2.bf16.xpose.msra.mxu0 0
  %448 = vmatprep.subr.bf16.mxu0 0
  %449 = vmatpush2.bf16.xpose.msra.mxu0 0
  %450 = vmatprep.subr.bf16.mxu0 0
  %451 = vmatpush2.bf16.xpose.msra.mxu0 0
  %452 = vmatprep.subr.bf16.mxu0 0
  %453 = vmatpush2.bf16.xpose.msra.mxu0 0
  %454 = vmatprep.subr.bf16.mxu0 0
  %455 = vmatpush2.bf16.xpose.msra.mxu0 0
  %456 = vmatprep.subr.bf16.mxu0 0
  %457 = vmatpush2.bf16.xpose.msra.mxu0 0
  %458 = vmatprep.mubr.bf16.mxu0 0
  %459 = vmatmul.mubr.bf16.gmra.mxu0 %v421
  %v460 = vpop.f32.mrf.mxu0
  %v461 = vadd.f32 0.0, %v460
  %v462 = vpop.f32.mrf.mxu0
  %v463 = vpop.f32.mrf.mxu0
  %v464 = vpop.f32.mrf.mxu0
  %465 = vdwg.mxu0
  %v466 = vmul.f32 %v412, 0.25
  %v467 = vmul.f32 %v461, 0.25
  %vm468 = vcmask 64512
  %v469 = vsel %vm468, %v466, -inf
  %470 = vmax.xlane.f32.xlu0 %v469
  %v471 = vpop.xlane.xlu0 %470
  %v472 = vsel %vm468, %v467, -inf
  %473 = vmax.xlane.f32.xlu0 %v472
  %v474 = vpop.xlane.xlu0 %473
  %v475 = vsub.f32 %v466, %v471
  %v476 = vsub.f32 %v467, %v474
  %v477 = vmul.f32 %v475, 1.442695
  %v478 = vpow.pop %v477
  %v479 = vmul.f32 %v476, 1.442695
  %v480 = vpow.pop %v479
  %v481 = vsel %vm468, %v478, 0.0
  %482 = vadd.xlane.f32.xlu0 %v481
  %v483 = vpop.xlane.xlu0 %482
  %v484 = vsel %vm468, %v480, 0.0
  %485 = vadd.xlane.f32.xlu0 %v484
  %v486 = vpop.xlane.xlu0 %485
  %v487 = vrcp.pop %v483
  %v488 = vrcp.pop %v486
  %v489 = vmul.f32 %v478, %v487
  %v490 = vmul.f32 %v480, %v488
  %v491 = vpack.c.bf16 %v489, %v489
  %v492 = vpack.c.bf16 %v490, %v490
  %v493 = vpack.c.bf16 %v359, %v359
  %v494 = vpack.c.bf16 %v363, %v363
  %v496 = vsel %vm468, %v491, 0
  %vm498 = vcmask 1043456
  %v500 = vsel %vm498, %v493, 0
  %502 = vmatprep.subr.bf16.mxu0 0
  %503 = vmatpush1.bf16.msra.mxu0 0
  %504 = vmatprep.subr.bf16.mxu0 0
  %505 = vmatpush1.bf16.msra.mxu0 0
  %506 = vmatprep.subr.bf16.mxu0 0
  %507 = vmatpush1.bf16.msra.mxu0 0
  %508 = vmatprep.subr.bf16.mxu0 0
  %509 = vmatpush1.bf16.msra.mxu0 0
  %510 = vmatprep.subr.bf16.mxu0 0
  %511 = vmatpush1.bf16.msra.mxu0 0
  %512 = vmatprep.subr.bf16.mxu0 0
  %513 = vmatpush1.bf16.msra.mxu0 0
  %514 = vmatprep.subr.bf16.mxu0 0
  %515 = vmatpush1.bf16.msra.mxu0 0
  %516 = vmatprep.subr.bf16.mxu0 0
  %517 = vmatpush1.bf16.msra.mxu0 %v500
  %518 = vmatprep.subr.bf16.mxu0 0
  %519 = vmatpush2.bf16.msra.mxu0 0
  %520 = vmatprep.subr.bf16.mxu0 0
  %521 = vmatpush2.bf16.msra.mxu0 0
  %522 = vmatprep.subr.bf16.mxu0 0
  %523 = vmatpush2.bf16.msra.mxu0 0
  %524 = vmatprep.subr.bf16.mxu0 0
  %525 = vmatpush2.bf16.msra.mxu0 0
  %526 = vmatprep.subr.bf16.mxu0 0
  %527 = vmatpush2.bf16.msra.mxu0 0
  %528 = vmatprep.subr.bf16.mxu0 0
  %529 = vmatpush2.bf16.msra.mxu0 0
  %530 = vmatprep.subr.bf16.mxu0 0
  %531 = vmatpush2.bf16.msra.mxu0 0
  %532 = vmatprep.subr.bf16.mxu0 0
  %533 = vmatpush2.bf16.msra.mxu0 0
  %534 = vmatprep.mubr.bf16.mxu0 0
  %535 = vmatmul.mubr.bf16.gmra.mxu0 %v496
  %v536 = vpop.f32.mrf.mxu0
  %v537 = vadd.f32 0.0, %v536
  %v538 = vpop.f32.mrf.mxu0
  %v539 = vpop.f32.mrf.mxu0
  %v540 = vpop.f32.mrf.mxu0
  %541 = vdwg.mxu0
  %v543 = vsel %vm468, %v492, 0
  %v546 = vsel %vm498, %v494, 0
  %548 = vmatprep.subr.bf16.mxu0 0
  %549 = vmatpush1.bf16.msra.mxu0 0
  %550 = vmatprep.subr.bf16.mxu0 0
  %551 = vmatpush1.bf16.msra.mxu0 0
  %552 = vmatprep.subr.bf16.mxu0 0
  %553 = vmatpush1.bf16.msra.mxu0 0
  %554 = vmatprep.subr.bf16.mxu0 0
  %555 = vmatpush1.bf16.msra.mxu0 0
  %556 = vmatprep.subr.bf16.mxu0 0
  %557 = vmatpush1.bf16.msra.mxu0 0
  %558 = vmatprep.subr.bf16.mxu0 0
  %559 = vmatpush1.bf16.msra.mxu0 0
  %560 = vmatprep.subr.bf16.mxu0 0
  %561 = vmatpush1.bf16.msra.mxu0 0
  %562 = vmatprep.subr.bf16.mxu0 0
  %563 = vmatpush1.bf16.msra.mxu0 %v546
  %564 = vmatprep.subr.bf16.mxu0 0
  %565 = vmatpush2.bf16.msra.mxu0 0
  %566 = vmatprep.subr.bf16.mxu0 0
  %567 = vmatpush2.bf16.msra.mxu0 0
  %568 = vmatprep.subr.bf16.mxu0 0
  %569 = vmatpush2.bf16.msra.mxu0 0
  %570 = vmatprep.subr.bf16.mxu0 0
  %571 = vmatpush2.bf16.msra.mxu0 0
  %572 = vmatprep.subr.bf16.mxu0 0
  %573 = vmatpush2.bf16.msra.mxu0 0
  %574 = vmatprep.subr.bf16.mxu0 0
  %575 = vmatpush2.bf16.msra.mxu0 0
  %576 = vmatprep.subr.bf16.mxu0 0
  %577 = vmatpush2.bf16.msra.mxu0 0
  %578 = vmatprep.subr.bf16.mxu0 0
  %579 = vmatpush2.bf16.msra.mxu0 0
  %580 = vmatprep.mubr.bf16.mxu0 0
  %581 = vmatmul.mubr.bf16.gmra.mxu0 %v543
  %v582 = vpop.f32.mrf.mxu0
  %v583 = vadd.f32 0.0, %v582
  %v584 = vpop.f32.mrf.mxu0
  %v585 = vpop.f32.mrf.mxu0
  %v586 = vpop.f32.mrf.mxu0
  %587 = vdwg.mxu0
  %588 = vrot.lane.b32.xlu0 %v365, 112
  %v589 = vpop.permute.xlu0 %588
  %590 = vrot.lane.b32.xlu0 %v365, 48
  %v591 = vpop.permute.xlu0 %590
  %v593 = vsel %vm370, %v589, 0
  %v596 = vsel %vm370, %v591, 0
  %598 = vmatprep.subr.bf16.mxu0 0
  %599 = vmatpush1.bf16.xpose.msra.mxu0 0
  %600 = vmatprep.subr.bf16.mxu0 0
  %601 = vmatpush1.bf16.xpose.msra.mxu0 0
  %602 = vmatprep.subr.bf16.mxu0 0
  %603 = vmatpush1.bf16.xpose.msra.mxu0 0
  %604 = vmatprep.subr.bf16.mxu0 0
  %605 = vmatpush1.bf16.xpose.msra.mxu0 0
  %606 = vmatprep.subr.bf16.mxu0 0
  %607 = vmatpush1.bf16.xpose.msra.mxu0 0
  %608 = vmatprep.subr.bf16.mxu0 0
  %609 = vmatpush1.bf16.xpose.msra.mxu0 0
  %610 = vmatprep.subr.bf16.mxu0 0
  %611 = vmatpush1.bf16.xpose.msra.mxu0 0
  %612 = vmatprep.subr.bf16.mxu0 0
  %613 = vmatpush1.bf16.xpose.msra.mxu0 %v596
  %614 = vmatprep.subr.bf16.mxu0 0
  %615 = vmatpush2.bf16.xpose.msra.mxu0 0
  %616 = vmatprep.subr.bf16.mxu0 0
  %617 = vmatpush2.bf16.xpose.msra.mxu0 0
  %618 = vmatprep.subr.bf16.mxu0 0
  %619 = vmatpush2.bf16.xpose.msra.mxu0 0
  %620 = vmatprep.subr.bf16.mxu0 0
  %621 = vmatpush2.bf16.xpose.msra.mxu0 0
  %622 = vmatprep.subr.bf16.mxu0 0
  %623 = vmatpush2.bf16.xpose.msra.mxu0 0
  %624 = vmatprep.subr.bf16.mxu0 0
  %625 = vmatpush2.bf16.xpose.msra.mxu0 0
  %626 = vmatprep.subr.bf16.mxu0 0
  %627 = vmatpush2.bf16.xpose.msra.mxu0 0
  %628 = vmatprep.subr.bf16.mxu0 0
  %629 = vmatpush2.bf16.xpose.msra.mxu0 0
  %630 = vmatprep.mubr.bf16.mxu0 0
  %631 = vmatmul.mubr.bf16.gmra.mxu0 %v593
  %v632 = vpop.f32.mrf.mxu0
  %v633 = vadd.f32 0.0, %v632
  %v634 = vpop.f32.mrf.mxu0
  %v635 = vpop.f32.mrf.mxu0
  %v636 = vpop.f32.mrf.mxu0
  %637 = vdwg.mxu0
  %638 = vrot.lane.b32.xlu0 %v366, 112
  %v639 = vpop.permute.xlu0 %638
  %640 = vrot.lane.b32.xlu0 %v366, 48
  %v641 = vpop.permute.xlu0 %640
  %v643 = vsel %vm370, %v639, 0
  %v646 = vsel %vm370, %v641, 0
  %648 = vmatprep.subr.bf16.mxu0 0
  %649 = vmatpush1.bf16.xpose.msra.mxu0 0
  %650 = vmatprep.subr.bf16.mxu0 0
  %651 = vmatpush1.bf16.xpose.msra.mxu0 0
  %652 = vmatprep.subr.bf16.mxu0 0
  %653 = vmatpush1.bf16.xpose.msra.mxu0 0
  %654 = vmatprep.subr.bf16.mxu0 0
  %655 = vmatpush1.bf16.xpose.msra.mxu0 0
  %656 = vmatprep.subr.bf16.mxu0 0
  %657 = vmatpush1.bf16.xpose.msra.mxu0 0
  %658 = vmatprep.subr.bf16.mxu0 0
  %659 = vmatpush1.bf16.xpose.msra.mxu0 0
  %660 = vmatprep.subr.bf16.mxu0 0
  %661 = vmatpush1.bf16.xpose.msra.mxu0 0
  %662 = vmatprep.subr.bf16.mxu0 0
  %663 = vmatpush1.bf16.xpose.msra.mxu0 %v646
  %664 = vmatprep.subr.bf16.mxu0 0
  %665 = vmatpush2.bf16.xpose.msra.mxu0 0
  %666 = vmatprep.subr.bf16.mxu0 0
  %667 = vmatpush2.bf16.xpose.msra.mxu0 0
  %668 = vmatprep.subr.bf16.mxu0 0
  %669 = vmatpush2.bf16.xpose.msra.mxu0 0
  %670 = vmatprep.subr.bf16.mxu0 0
  %671 = vmatpush2.bf16.xpose.msra.mxu0 0
  %672 = vmatprep.subr.bf16.mxu0 0
  %673 = vmatpush2.bf16.xpose.msra.mxu0 0
  %674 = vmatprep.subr.bf16.mxu0 0
  %675 = vmatpush2.bf16.xpose.msra.mxu0 0
  %676 = vmatprep.subr.bf16.mxu0 0
  %677 = vmatpush2.bf16.xpose.msra.mxu0 0
  %678 = vmatprep.subr.bf16.mxu0 0
  %679 = vmatpush2.bf16.xpose.msra.mxu0 0
  %680 = vmatprep.mubr.bf16.mxu0 0
  %681 = vmatmul.mubr.bf16.gmra.mxu0 %v643
  %v682 = vpop.f32.mrf.mxu0
  %v683 = vadd.f32 0.0, %v682
  %v684 = vpop.f32.mrf.mxu0
  %v685 = vpop.f32.mrf.mxu0
  %v686 = vpop.f32.mrf.mxu0
  %687 = vdwg.mxu0
  %v688 = vmul.f32 %v633, 0.25
  %v689 = vmul.f32 %v683, 0.25
  %v690 = vsel %vm468, %v688, -inf
  %691 = vmax.xlane.f32.xlu0 %v690
  %v692 = vpop.xlane.xlu0 %691
  %v693 = vsel %vm468, %v689, -inf
  %694 = vmax.xlane.f32.xlu0 %v693
  %v695 = vpop.xlane.xlu0 %694
  %v696 = vsub.f32 %v688, %v692
  %v697 = vsub.f32 %v689, %v695
  %v698 = vmul.f32 %v696, 1.442695
  %v699 = vpow.pop %v698
  %v700 = vmul.f32 %v697, 1.442695
  %v701 = vpow.pop %v700
  %v702 = vsel %vm468, %v699, 0.0
  %703 = vadd.xlane.f32.xlu0 %v702
  %v704 = vpop.xlane.xlu0 %703
  %v705 = vsel %vm468, %v701, 0.0
  %706 = vadd.xlane.f32.xlu0 %v705
  %v707 = vpop.xlane.xlu0 %706
  %v708 = vrcp.pop %v704
  %v709 = vrcp.pop %v707
  %v710 = vmul.f32 %v699, %v708
  %v711 = vmul.f32 %v701, %v709
  %v712 = vpack.c.bf16 %v710, %v710
  %v713 = vpack.c.bf16 %v711, %v711
  %715 = vrot.lane.b32.xlu0 %v493, 112
  %v716 = vpop.permute.xlu0 %715
  %v718 = vsel %vm468, %v712, 0
  %v721 = vsel %vm498, %v716, 0
  %723 = vmatprep.subr.bf16.mxu0 0
  %724 = vmatpush1.bf16.msra.mxu0 0
  %725 = vmatprep.subr.bf16.mxu0 0
  %726 = vmatpush1.bf16.msra.mxu0 0
  %727 = vmatprep.subr.bf16.mxu0 0
  %728 = vmatpush1.bf16.msra.mxu0 0
  %729 = vmatprep.subr.bf16.mxu0 0
  %730 = vmatpush1.bf16.msra.mxu0 0
  %731 = vmatprep.subr.bf16.mxu0 0
  %732 = vmatpush1.bf16.msra.mxu0 0
  %733 = vmatprep.subr.bf16.mxu0 0
  %734 = vmatpush1.bf16.msra.mxu0 0
  %735 = vmatprep.subr.bf16.mxu0 0
  %736 = vmatpush1.bf16.msra.mxu0 0
  %737 = vmatprep.subr.bf16.mxu0 0
  %738 = vmatpush1.bf16.msra.mxu0 %v721
  %739 = vmatprep.subr.bf16.mxu0 0
  %740 = vmatpush2.bf16.msra.mxu0 0
  %741 = vmatprep.subr.bf16.mxu0 0
  %742 = vmatpush2.bf16.msra.mxu0 0
  %743 = vmatprep.subr.bf16.mxu0 0
  %744 = vmatpush2.bf16.msra.mxu0 0
  %745 = vmatprep.subr.bf16.mxu0 0
  %746 = vmatpush2.bf16.msra.mxu0 0
  %747 = vmatprep.subr.bf16.mxu0 0
  %748 = vmatpush2.bf16.msra.mxu0 0
  %749 = vmatprep.subr.bf16.mxu0 0
  %750 = vmatpush2.bf16.msra.mxu0 0
  %751 = vmatprep.subr.bf16.mxu0 0
  %752 = vmatpush2.bf16.msra.mxu0 0
  %753 = vmatprep.subr.bf16.mxu0 0
  %754 = vmatpush2.bf16.msra.mxu0 0
  %755 = vmatprep.mubr.bf16.mxu0 0
  %756 = vmatmul.mubr.bf16.gmra.mxu0 %v718
  %v757 = vpop.f32.mrf.mxu0
  %v758 = vadd.f32 0.0, %v757
  %v759 = vpop.f32.mrf.mxu0
  %v760 = vpop.f32.mrf.mxu0
  %v761 = vpop.f32.mrf.mxu0
  %762 = vdwg.mxu0
  %764 = vrot.lane.b32.xlu0 %v494, 112
  %v765 = vpop.permute.xlu0 %764
  %v767 = vsel %vm468, %v713, 0
  %v770 = vsel %vm498, %v765, 0
  %772 = vmatprep.subr.bf16.mxu0 0
  %773 = vmatpush1.bf16.msra.mxu0 0
  %774 = vmatprep.subr.bf16.mxu0 0
  %775 = vmatpush1.bf16.msra.mxu0 0
  %776 = vmatprep.subr.bf16.mxu0 0
  %777 = vmatpush1.bf16.msra.mxu0 0
  %778 = vmatprep.subr.bf16.mxu0 0
  %779 = vmatpush1.bf16.msra.mxu0 0
  %780 = vmatprep.subr.bf16.mxu0 0
  %781 = vmatpush1.bf16.msra.mxu0 0
  %782 = vmatprep.subr.bf16.mxu0 0
  %783 = vmatpush1.bf16.msra.mxu0 0
  %784 = vmatprep.subr.bf16.mxu0 0
  %785 = vmatpush1.bf16.msra.mxu0 0
  %786 = vmatprep.subr.bf16.mxu0 0
  %787 = vmatpush1.bf16.msra.mxu0 %v770
  %788 = vmatprep.subr.bf16.mxu0 0
  %789 = vmatpush2.bf16.msra.mxu0 0
  %790 = vmatprep.subr.bf16.mxu0 0
  %791 = vmatpush2.bf16.msra.mxu0 0
  %792 = vmatprep.subr.bf16.mxu0 0
  %793 = vmatpush2.bf16.msra.mxu0 0
  %794 = vmatprep.subr.bf16.mxu0 0
  %795 = vmatpush2.bf16.msra.mxu0 0
  %796 = vmatprep.subr.bf16.mxu0 0
  %797 = vmatpush2.bf16.msra.mxu0 0
  %798 = vmatprep.subr.bf16.mxu0 0
  %799 = vmatpush2.bf16.msra.mxu0 0
  %800 = vmatprep.subr.bf16.mxu0 0
  %801 = vmatpush2.bf16.msra.mxu0 0
  %802 = vmatprep.subr.bf16.mxu0 0
  %803 = vmatpush2.bf16.msra.mxu0 0
  %804 = vmatprep.mubr.bf16.mxu0 0
  %805 = vmatmul.mubr.bf16.gmra.mxu0 %v767
  %v806 = vpop.f32.mrf.mxu0
  %v807 = vadd.f32 0.0, %v806
  %v808 = vpop.f32.mrf.mxu0
  %v809 = vpop.f32.mrf.mxu0
  %v810 = vpop.f32.mrf.mxu0
  %811 = vdwg.mxu0
  %812 = vrot.lane.b32.xlu0 %v365, 96
  %v813 = vpop.permute.xlu0 %812
  %814 = vrot.lane.b32.xlu0 %v365, 32
  %v815 = vpop.permute.xlu0 %814
  %v817 = vsel %vm370, %v813, 0
  %v820 = vsel %vm370, %v815, 0
  %822 = vmatprep.subr.bf16.mxu0 0
  %823 = vmatpush1.bf16.xpose.msra.mxu0 0
  %824 = vmatprep.subr.bf16.mxu0 0
  %825 = vmatpush1.bf16.xpose.msra.mxu0 0
  %826 = vmatprep.subr.bf16.mxu0 0
  %827 = vmatpush1.bf16.xpose.msra.mxu0 0
  %828 = vmatprep.subr.bf16.mxu0 0
  %829 = vmatpush1.bf16.xpose.msra.mxu0 0
  %830 = vmatprep.subr.bf16.mxu0 0
  %831 = vmatpush1.bf16.xpose.msra.mxu0 0
  %832 = vmatprep.subr.bf16.mxu0 0
  %833 = vmatpush1.bf16.xpose.msra.mxu0 0
  %834 = vmatprep.subr.bf16.mxu0 0
  %835 = vmatpush1.bf16.xpose.msra.mxu0 0
  %836 = vmatprep.subr.bf16.mxu0 0
  %837 = vmatpush1.bf16.xpose.msra.mxu0 %v820
  %838 = vmatprep.subr.bf16.mxu0 0
  %839 = vmatpush2.bf16.xpose.msra.mxu0 0
  %840 = vmatprep.subr.bf16.mxu0 0
  %841 = vmatpush2.bf16.xpose.msra.mxu0 0
  %842 = vmatprep.subr.bf16.mxu0 0
  %843 = vmatpush2.bf16.xpose.msra.mxu0 0
  %844 = vmatprep.subr.bf16.mxu0 0
  %845 = vmatpush2.bf16.xpose.msra.mxu0 0
  %846 = vmatprep.subr.bf16.mxu0 0
  %847 = vmatpush2.bf16.xpose.msra.mxu0 0
  %848 = vmatprep.subr.bf16.mxu0 0
  %849 = vmatpush2.bf16.xpose.msra.mxu0 0
  %850 = vmatprep.subr.bf16.mxu0 0
  %851 = vmatpush2.bf16.xpose.msra.mxu0 0
  %852 = vmatprep.subr.bf16.mxu0 0
  %853 = vmatpush2.bf16.xpose.msra.mxu0 0
  %854 = vmatprep.mubr.bf16.mxu0 0
  %855 = vmatmul.mubr.bf16.gmra.mxu0 %v817
  %v856 = vpop.f32.mrf.mxu0
  %v857 = vadd.f32 0.0, %v856
  %v858 = vpop.f32.mrf.mxu0
  %v859 = vpop.f32.mrf.mxu0
  %v860 = vpop.f32.mrf.mxu0
  %861 = vdwg.mxu0
  %862 = vrot.lane.b32.xlu0 %v366, 96
  %v863 = vpop.permute.xlu0 %862
  %864 = vrot.lane.b32.xlu0 %v366, 32
  %v865 = vpop.permute.xlu0 %864
  %v867 = vsel %vm370, %v863, 0
  %v870 = vsel %vm370, %v865, 0
  %872 = vmatprep.subr.bf16.mxu0 0
  %873 = vmatpush1.bf16.xpose.msra.mxu0 0
  %874 = vmatprep.subr.bf16.mxu0 0
  %875 = vmatpush1.bf16.xpose.msra.mxu0 0
  %876 = vmatprep.subr.bf16.mxu0 0
  %877 = vmatpush1.bf16.xpose.msra.mxu0 0
  %878 = vmatprep.subr.bf16.mxu0 0
  %879 = vmatpush1.bf16.xpose.msra.mxu0 0
  %880 = vmatprep.subr.bf16.mxu0 0
  %881 = vmatpush1.bf16.xpose.msra.mxu0 0
  %882 = vmatprep.subr.bf16.mxu0 0
  %883 = vmatpush1.bf16.xpose.msra.mxu0 0
  %884 = vmatprep.subr.bf16.mxu0 0
  %885 = vmatpush1.bf16.xpose.msra.mxu0 0
  %886 = vmatprep.subr.bf16.mxu0 0
  %887 = vmatpush1.bf16.xpose.msra.mxu0 %v870
  %888 = vmatprep.subr.bf16.mxu0 0
  %889 = vmatpush2.bf16.xpose.msra.mxu0 0
  %890 = vmatprep.subr.bf16.mxu0 0
  %891 = vmatpush2.bf16.xpose.msra.mxu0 0
  %892 = vmatprep.subr.bf16.mxu0 0
  %893 = vmatpush2.bf16.xpose.msra.mxu0 0
  %894 = vmatprep.subr.bf16.mxu0 0
  %895 = vmatpush2.bf16.xpose.msra.mxu0 0
  %896 = vmatprep.subr.bf16.mxu0 0
  %897 = vmatpush2.bf16.xpose.msra.mxu0 0
  %898 = vmatprep.subr.bf16.mxu0 0
  %899 = vmatpush2.bf16.xpose.msra.mxu0 0
  %900 = vmatprep.subr.bf16.mxu0 0
  %901 = vmatpush2.bf16.xpose.msra.mxu0 0
  %902 = vmatprep.subr.bf16.mxu0 0
  %903 = vmatpush2.bf16.xpose.msra.mxu0 0
  %904 = vmatprep.mubr.bf16.mxu0 0
  %905 = vmatmul.mubr.bf16.gmra.mxu0 %v867
  %v906 = vpop.f32.mrf.mxu0
  %v907 = vadd.f32 0.0, %v906
  %v908 = vpop.f32.mrf.mxu0
  %v909 = vpop.f32.mrf.mxu0
  %v910 = vpop.f32.mrf.mxu0
  %911 = vdwg.mxu0
  %v912 = vmul.f32 %v857, 0.25
  %v913 = vmul.f32 %v907, 0.25
  %v914 = vsel %vm468, %v912, -inf
  %915 = vmax.xlane.f32.xlu0 %v914
  %v916 = vpop.xlane.xlu0 %915
  %v917 = vsel %vm468, %v913, -inf
  %918 = vmax.xlane.f32.xlu0 %v917
  %v919 = vpop.xlane.xlu0 %918
  %v920 = vsub.f32 %v912, %v916
  %v921 = vsub.f32 %v913, %v919
  %v922 = vmul.f32 %v920, 1.442695
  %v923 = vpow.pop %v922
  %v924 = vmul.f32 %v921, 1.442695
  %v925 = vpow.pop %v924
  %v926 = vsel %vm468, %v923, 0.0
  %927 = vadd.xlane.f32.xlu0 %v926
  %v928 = vpop.xlane.xlu0 %927
  %v929 = vsel %vm468, %v925, 0.0
  %930 = vadd.xlane.f32.xlu0 %v929
  %v931 = vpop.xlane.xlu0 %930
  %v932 = vrcp.pop %v928
  %v933 = vrcp.pop %v931
  %v934 = vmul.f32 %v923, %v932
  %v935 = vmul.f32 %v925, %v933
  %v936 = vpack.c.bf16 %v934, %v934
  %v937 = vpack.c.bf16 %v935, %v935
  %938 = vrot.lane.b32.xlu0 %v493, 96
  %v939 = vpop.permute.xlu0 %938
  %v941 = vsel %vm468, %v936, 0
  %v944 = vsel %vm498, %v939, 0
  %946 = vmatprep.subr.bf16.mxu0 0
  %947 = vmatpush1.bf16.msra.mxu0 0
  %948 = vmatprep.subr.bf16.mxu0 0
  %949 = vmatpush1.bf16.msra.mxu0 0
  %950 = vmatprep.subr.bf16.mxu0 0
  %951 = vmatpush1.bf16.msra.mxu0 0
  %952 = vmatprep.subr.bf16.mxu0 0
  %953 = vmatpush1.bf16.msra.mxu0 0
  %954 = vmatprep.subr.bf16.mxu0 0
  %955 = vmatpush1.bf16.msra.mxu0 0
  %956 = vmatprep.subr.bf16.mxu0 0
  %957 = vmatpush1.bf16.msra.mxu0 0
  %958 = vmatprep.subr.bf16.mxu0 0
  %959 = vmatpush1.bf16.msra.mxu0 0
  %960 = vmatprep.subr.bf16.mxu0 0
  %961 = vmatpush1.bf16.msra.mxu0 %v944
  %962 = vmatprep.subr.bf16.mxu0 0
  %963 = vmatpush2.bf16.msra.mxu0 0
  %964 = vmatprep.subr.bf16.mxu0 0
  %965 = vmatpush2.bf16.msra.mxu0 0
  %966 = vmatprep.subr.bf16.mxu0 0
  %967 = vmatpush2.bf16.msra.mxu0 0
  %968 = vmatprep.subr.bf16.mxu0 0
  %969 = vmatpush2.bf16.msra.mxu0 0
  %970 = vmatprep.subr.bf16.mxu0 0
  %971 = vmatpush2.bf16.msra.mxu0 0
  %972 = vmatprep.subr.bf16.mxu0 0
  %973 = vmatpush2.bf16.msra.mxu0 0
  %974 = vmatprep.subr.bf16.mxu0 0
  %975 = vmatpush2.bf16.msra.mxu0 0
  %976 = vmatprep.subr.bf16.mxu0 0
  %977 = vmatpush2.bf16.msra.mxu0 0
  %978 = vmatprep.mubr.bf16.mxu0 0
  %979 = vmatmul.mubr.bf16.gmra.mxu0 %v941
  %v980 = vpop.f32.mrf.mxu0
  %v981 = vadd.f32 0.0, %v980
  %v982 = vpop.f32.mrf.mxu0
  %v983 = vpop.f32.mrf.mxu0
  %v984 = vpop.f32.mrf.mxu0
  %985 = vdwg.mxu0
  %986 = vrot.lane.b32.xlu0 %v494, 96
  %v987 = vpop.permute.xlu0 %986
  %v989 = vsel %vm468, %v937, 0
  %v992 = vsel %vm498, %v987, 0
  %994 = vmatprep.subr.bf16.mxu0 0
  %995 = vmatpush1.bf16.msra.mxu0 0
  %996 = vmatprep.subr.bf16.mxu0 0
  %997 = vmatpush1.bf16.msra.mxu0 0
  %998 = vmatprep.subr.bf16.mxu0 0
  %999 = vmatpush1.bf16.msra.mxu0 0
  %1000 = vmatprep.subr.bf16.mxu0 0
  %1001 = vmatpush1.bf16.msra.mxu0 0
  %1002 = vmatprep.subr.bf16.mxu0 0
  %1003 = vmatpush1.bf16.msra.mxu0 0
  %1004 = vmatprep.subr.bf16.mxu0 0
  %1005 = vmatpush1.bf16.msra.mxu0 0
  %1006 = vmatprep.subr.bf16.mxu0 0
  %1007 = vmatpush1.bf16.msra.mxu0 0
  %1008 = vmatprep.subr.bf16.mxu0 0
  %1009 = vmatpush1.bf16.msra.mxu0 %v992
  %1010 = vmatprep.subr.bf16.mxu0 0
  %1011 = vmatpush2.bf16.msra.mxu0 0
  %1012 = vmatprep.subr.bf16.mxu0 0
  %1013 = vmatpush2.bf16.msra.mxu0 0
  %1014 = vmatprep.subr.bf16.mxu0 0
  %1015 = vmatpush2.bf16.msra.mxu0 0
  %1016 = vmatprep.subr.bf16.mxu0 0
  %1017 = vmatpush2.bf16.msra.mxu0 0
  %1018 = vmatprep.subr.bf16.mxu0 0
  %1019 = vmatpush2.bf16.msra.mxu0 0
  %1020 = vmatprep.subr.bf16.mxu0 0
  %1021 = vmatpush2.bf16.msra.mxu0 0
  %1022 = vmatprep.subr.bf16.mxu0 0
  %1023 = vmatpush2.bf16.msra.mxu0 0
  %1024 = vmatprep.subr.bf16.mxu0 0
  %1025 = vmatpush2.bf16.msra.mxu0 0
  %1026 = vmatprep.mubr.bf16.mxu0 0
  %1027 = vmatmul.mubr.bf16.gmra.mxu0 %v989
  %v1028 = vpop.f32.mrf.mxu0
  %v1029 = vadd.f32 0.0, %v1028
  %v1030 = vpop.f32.mrf.mxu0
  %v1031 = vpop.f32.mrf.mxu0
  %v1032 = vpop.f32.mrf.mxu0
  %1033 = vdwg.mxu0
  %1034 = vrot.lane.b32.xlu0 %v365, 80
  %v1035 = vpop.permute.xlu0 %1034
  %1036 = vrot.lane.b32.xlu0 %v365, 16
  %v1037 = vpop.permute.xlu0 %1036
  %v1039 = vsel %vm370, %v1035, 0
  %v1042 = vsel %vm370, %v1037, 0
  %1044 = vmatprep.subr.bf16.mxu0 0
  %1045 = vmatpush1.bf16.xpose.msra.mxu0 0
  %1046 = vmatprep.subr.bf16.mxu0 0
  %1047 = vmatpush1.bf16.xpose.msra.mxu0 0
  %1048 = vmatprep.subr.bf16.mxu0 0
  %1049 = vmatpush1.bf16.xpose.msra.mxu0 0
  %1050 = vmatprep.subr.bf16.mxu0 0
  %1051 = vmatpush1.bf16.xpose.msra.mxu0 0
  %1052 = vmatprep.subr.bf16.mxu0 0
  %1053 = vmatpush1.bf16.xpose.msra.mxu0 0
  %1054 = vmatprep.subr.bf16.mxu0 0
  %1055 = vmatpush1.bf16.xpose.msra.mxu0 0
  %1056 = vmatprep.subr.bf16.mxu0 0
  %1057 = vmatpush1.bf16.xpose.msra.mxu0 0
  %1058 = vmatprep.subr.bf16.mxu0 0
  %1059 = vmatpush1.bf16.xpose.msra.mxu0 %v1042
  %1060 = vmatprep.subr.bf16.mxu0 0
  %1061 = vmatpush2.bf16.xpose.msra.mxu0 0
  %1062 = vmatprep.subr.bf16.mxu0 0
  %1063 = vmatpush2.bf16.xpose.msra.mxu0 0
  %1064 = vmatprep.subr.bf16.mxu0 0
  %1065 = vmatpush2.bf16.xpose.msra.mxu0 0
  %1066 = vmatprep.subr.bf16.mxu0 0
  %1067 = vmatpush2.bf16.xpose.msra.mxu0 0
  %1068 = vmatprep.subr.bf16.mxu0 0
  %1069 = vmatpush2.bf16.xpose.msra.mxu0 0
  %1070 = vmatprep.subr.bf16.mxu0 0
  %1071 = vmatpush2.bf16.xpose.msra.mxu0 0
  %1072 = vmatprep.subr.bf16.mxu0 0
  %1073 = vmatpush2.bf16.xpose.msra.mxu0 0
  %1074 = vmatprep.subr.bf16.mxu0 0
  %1075 = vmatpush2.bf16.xpose.msra.mxu0 0
  %1076 = vmatprep.mubr.bf16.mxu0 0
  %1077 = vmatmul.mubr.bf16.gmra.mxu0 %v1039
  %v1078 = vpop.f32.mrf.mxu0
  %v1079 = vadd.f32 0.0, %v1078
  %v1080 = vpop.f32.mrf.mxu0
  %v1081 = vpop.f32.mrf.mxu0
  %v1082 = vpop.f32.mrf.mxu0
  %1083 = vdwg.mxu0
  %1084 = vrot.lane.b32.xlu0 %v366, 80
  %v1085 = vpop.permute.xlu0 %1084
  %1086 = vrot.lane.b32.xlu0 %v366, 16
  %v1087 = vpop.permute.xlu0 %1086
  %v1089 = vsel %vm370, %v1085, 0
  %v1092 = vsel %vm370, %v1087, 0
  %1094 = vmatprep.subr.bf16.mxu0 0
  %1095 = vmatpush1.bf16.xpose.msra.mxu0 0
  %1096 = vmatprep.subr.bf16.mxu0 0
  %1097 = vmatpush1.bf16.xpose.msra.mxu0 0
  %1098 = vmatprep.subr.bf16.mxu0 0
  %1099 = vmatpush1.bf16.xpose.msra.mxu0 0
  %1100 = vmatprep.subr.bf16.mxu0 0
  %1101 = vmatpush1.bf16.xpose.msra.mxu0 0
  %1102 = vmatprep.subr.bf16.mxu0 0
  %1103 = vmatpush1.bf16.xpose.msra.mxu0 0
  %1104 = vmatprep.subr.bf16.mxu0 0
  %1105 = vmatpush1.bf16.xpose.msra.mxu0 0
  %1106 = vmatprep.subr.bf16.mxu0 0
  %1107 = vmatpush1.bf16.xpose.msra.mxu0 0
  %1108 = vmatprep.subr.bf16.mxu0 0
  %1109 = vmatpush1.bf16.xpose.msra.mxu0 %v1092
  %1110 = vmatprep.subr.bf16.mxu0 0
  %1111 = vmatpush2.bf16.xpose.msra.mxu0 0
  %1112 = vmatprep.subr.bf16.mxu0 0
  %1113 = vmatpush2.bf16.xpose.msra.mxu0 0
  %1114 = vmatprep.subr.bf16.mxu0 0
  %1115 = vmatpush2.bf16.xpose.msra.mxu0 0
  %1116 = vmatprep.subr.bf16.mxu0 0
  %1117 = vmatpush2.bf16.xpose.msra.mxu0 0
  %1118 = vmatprep.subr.bf16.mxu0 0
  %1119 = vmatpush2.bf16.xpose.msra.mxu0 0
  %1120 = vmatprep.subr.bf16.mxu0 0
  %1121 = vmatpush2.bf16.xpose.msra.mxu0 0
  %1122 = vmatprep.subr.bf16.mxu0 0
  %1123 = vmatpush2.bf16.xpose.msra.mxu0 0
  %1124 = vmatprep.subr.bf16.mxu0 0
  %1125 = vmatpush2.bf16.xpose.msra.mxu0 0
  %1126 = vmatprep.mubr.bf16.mxu0 0
  %1127 = vmatmul.mubr.bf16.gmra.mxu0 %v1089
  %v1128 = vpop.f32.mrf.mxu0
  %v1129 = vadd.f32 0.0, %v1128
  %v1130 = vpop.f32.mrf.mxu0
  %v1131 = vpop.f32.mrf.mxu0
  %v1132 = vpop.f32.mrf.mxu0
  %1133 = vdwg.mxu0
  %v1134 = vmul.f32 %v1079, 0.25
  %v1135 = vmul.f32 %v1129, 0.25
  %v1136 = vsel %vm468, %v1134, -inf
  %1137 = vmax.xlane.f32.xlu0 %v1136
  %v1138 = vpop.xlane.xlu0 %1137
  %v1139 = vsel %vm468, %v1135, -inf
  %1140 = vmax.xlane.f32.xlu0 %v1139
  %v1141 = vpop.xlane.xlu0 %1140
  %v1142 = vsub.f32 %v1134, %v1138
  %v1143 = vsub.f32 %v1135, %v1141
  %v1144 = vmul.f32 %v1142, 1.442695
  %v1145 = vpow.pop %v1144
  %v1146 = vmul.f32 %v1143, 1.442695
  %v1147 = vpow.pop %v1146
  %v1148 = vsel %vm468, %v1145, 0.0
  %1149 = vadd.xlane.f32.xlu0 %v1148
  %v1150 = vpop.xlane.xlu0 %1149
  %v1151 = vsel %vm468, %v1147, 0.0
  %1152 = vadd.xlane.f32.xlu0 %v1151
  %v1153 = vpop.xlane.xlu0 %1152
  %v1154 = vrcp.pop %v1150
  %v1155 = vrcp.pop %v1153
  %v1156 = vmul.f32 %v1145, %v1154
  %v1157 = vmul.f32 %v1147, %v1155
  %v1158 = vpack.c.bf16 %v1156, %v1156
  %v1159 = vpack.c.bf16 %v1157, %v1157
  %1160 = vrot.lane.b32.xlu0 %v493, 80
  %v1161 = vpop.permute.xlu0 %1160
  %v1163 = vsel %vm468, %v1158, 0
  %v1166 = vsel %vm498, %v1161, 0
  %1168 = vmatprep.subr.bf16.mxu0 0
  %1169 = vmatpush1.bf16.msra.mxu0 0
  %1170 = vmatprep.subr.bf16.mxu0 0
  %1171 = vmatpush1.bf16.msra.mxu0 0
  %1172 = vmatprep.subr.bf16.mxu0 0
  %1173 = vmatpush1.bf16.msra.mxu0 0
  %1174 = vmatprep.subr.bf16.mxu0 0
  %1175 = vmatpush1.bf16.msra.mxu0 0
  %1176 = vmatprep.subr.bf16.mxu0 0
  %1177 = vmatpush1.bf16.msra.mxu0 0
  %1178 = vmatprep.subr.bf16.mxu0 0
  %1179 = vmatpush1.bf16.msra.mxu0 0
  %1180 = vmatprep.subr.bf16.mxu0 0
  %1181 = vmatpush1.bf16.msra.mxu0 0
  %1182 = vmatprep.subr.bf16.mxu0 0
  %1183 = vmatpush1.bf16.msra.mxu0 %v1166
  %1184 = vmatprep.subr.bf16.mxu0 0
  %1185 = vmatpush2.bf16.msra.mxu0 0
  %1186 = vmatprep.subr.bf16.mxu0 0
  %1187 = vmatpush2.bf16.msra.mxu0 0
  %1188 = vmatprep.subr.bf16.mxu0 0
  %1189 = vmatpush2.bf16.msra.mxu0 0
  %1190 = vmatprep.subr.bf16.mxu0 0
  %1191 = vmatpush2.bf16.msra.mxu0 0
  %1192 = vmatprep.subr.bf16.mxu0 0
  %1193 = vmatpush2.bf16.msra.mxu0 0
  %1194 = vmatprep.subr.bf16.mxu0 0
  %1195 = vmatpush2.bf16.msra.mxu0 0
  %1196 = vmatprep.subr.bf16.mxu0 0
  %1197 = vmatpush2.bf16.msra.mxu0 0
  %1198 = vmatprep.subr.bf16.mxu0 0
  %1199 = vmatpush2.bf16.msra.mxu0 0
  %1200 = vmatprep.mubr.bf16.mxu0 0
  %1201 = vmatmul.mubr.bf16.gmra.mxu0 %v1163
  %v1202 = vpop.f32.mrf.mxu0
  %v1203 = vadd.f32 0.0, %v1202
  %v1204 = vpop.f32.mrf.mxu0
  %v1205 = vpop.f32.mrf.mxu0
  %v1206 = vpop.f32.mrf.mxu0
  %1207 = vdwg.mxu0
  %1208 = vrot.lane.b32.xlu0 %v494, 80
  %v1209 = vpop.permute.xlu0 %1208
  %v1211 = vsel %vm468, %v1159, 0
  %v1214 = vsel %vm498, %v1209, 0
  %1216 = vmatprep.subr.bf16.mxu0 0
  %1217 = vmatpush1.bf16.msra.mxu0 0
  %1218 = vmatprep.subr.bf16.mxu0 0
  %1219 = vmatpush1.bf16.msra.mxu0 0
  %1220 = vmatprep.subr.bf16.mxu0 0
  %1221 = vmatpush1.bf16.msra.mxu0 0
  %1222 = vmatprep.subr.bf16.mxu0 0
  %1223 = vmatpush1.bf16.msra.mxu0 0
  %1224 = vmatprep.subr.bf16.mxu0 0
  %1225 = vmatpush1.bf16.msra.mxu0 0
  %1226 = vmatprep.subr.bf16.mxu0 0
  %1227 = vmatpush1.bf16.msra.mxu0 0
  %1228 = vmatprep.subr.bf16.mxu0 0
  %1229 = vmatpush1.bf16.msra.mxu0 0
  %1230 = vmatprep.subr.bf16.mxu0 0
  %1231 = vmatpush1.bf16.msra.mxu0 %v1214
  %1232 = vmatprep.subr.bf16.mxu0 0
  %1233 = vmatpush2.bf16.msra.mxu0 0
  %1234 = vmatprep.subr.bf16.mxu0 0
  %1235 = vmatpush2.bf16.msra.mxu0 0
  %1236 = vmatprep.subr.bf16.mxu0 0
  %1237 = vmatpush2.bf16.msra.mxu0 0
  %1238 = vmatprep.subr.bf16.mxu0 0
  %1239 = vmatpush2.bf16.msra.mxu0 0
  %1240 = vmatprep.subr.bf16.mxu0 0
  %1241 = vmatpush2.bf16.msra.mxu0 0
  %1242 = vmatprep.subr.bf16.mxu0 0
  %1243 = vmatpush2.bf16.msra.mxu0 0
  %1244 = vmatprep.subr.bf16.mxu0 0
  %1245 = vmatpush2.bf16.msra.mxu0 0
  %1246 = vmatprep.subr.bf16.mxu0 0
  %1247 = vmatpush2.bf16.msra.mxu0 0
  %1248 = vmatprep.mubr.bf16.mxu0 0
  %1249 = vmatmul.mubr.bf16.gmra.mxu0 %v1211
  %v1250 = vpop.f32.mrf.mxu0
  %v1251 = vadd.f32 0.0, %v1250
  %v1252 = vpop.f32.mrf.mxu0
  %v1253 = vpop.f32.mrf.mxu0
  %v1254 = vpop.f32.mrf.mxu0
  %1255 = vdwg.mxu0
  %1258 = vrot.lane.b32.xlu0 %v758, 16
  %v1259 = vpop.permute.xlu0 %1258
  %1260 = vrot.lane.b32.xlu0 %v807, 16
  %v1261 = vpop.permute.xlu0 %1260
  %1266 = vrot.lane.b32.xlu0 %v981, 32
  %v1267 = vpop.permute.xlu0 %1266
  %1268 = vrot.lane.b32.xlu0 %v1029, 32
  %v1269 = vpop.permute.xlu0 %1268
  %1274 = vrot.lane.b32.xlu0 %v1203, 48
  %v1275 = vpop.permute.xlu0 %1274
  %1276 = vrot.lane.b32.xlu0 %v1251, 48
  %v1277 = vpop.permute.xlu0 %1276
  %v1280 = vsel %vm370, %v537, %v1259
  %v1281 = vsel %vm370, %v583, %v1261
  %vm1282 = vcmask 261120
  %v1283 = vsel %vm1282, %v1280, %v1267
  %v1284 = vsel %vm1282, %v1281, %v1269
  %vm1285 = vcmask 392192
  %v1286 = vsel %vm1285, %v1283, %v1275
  %v1287 = vsel %vm1285, %v1284, %v1277
  %v1288 = vpack.c.bf16 %v1287, %v1286
  %v1289 = vld [vmem:[%s15] sm:$0xf]
  %v1290 = vld [vmem:[%s15 + $0x4] sm:$0xf]
  %v1291 = vld [vmem:[%s15 + $0x8] sm:$0xf]
  %v1292 = vld [vmem:[%s15 + $0xc] sm:$0xf]
  %v1293 = vld [vmem:[%s15 + $0x10] sm:$0xf]
  %v1294 = vld [vmem:[%s15 + $0x14] sm:$0xf]
  %v1295 = vld [vmem:[%s15 + $0x18] sm:$0xf]
  %v1296 = vld [vmem:[%s15 + $0x1c] sm:$0xf]
  %v1297 = vld [vmem:[%s17] sm:$0x1]
  %v1299 = vlaneseq
  %v1300 = vshrl.u32 %v1299, 7
  %v1301 = vsub.s32 0, %v1300
  %v1302 = vrot.slane %v1297, %v1301
  %v1312 = vunpack.c.l.b16 %v1289
  %v1313 = vunpack.c.l.b16 %v1290
  %v1314 = vunpack.c.l.b16 %v1291
  %v1315 = vunpack.c.l.b16 %v1292
  %v1316 = vunpack.c.l.b16 %v1293
  %v1317 = vunpack.c.l.b16 %v1294
  %v1318 = vunpack.c.l.b16 %v1295
  %v1319 = vunpack.c.l.b16 %v1296
  %v1320 = vpack.c.b16 %v1313, %v1312
  %v1321 = vpack.c.b16 %v1315, %v1314
  %v1322 = vpack.c.b16 %v1317, %v1316
  %v1323 = vpack.c.b16 %v1319, %v1318
  %v1329 = vsel %vm213, %v1288, 0
  %1331 = vmatprep.subr.bf16.mxu0 0
  %1332 = vmatpush1.bf16.msra.mxu0 0
  %1333 = vmatprep.subr.bf16.mxu0 0
  %1334 = vmatpush1.bf16.msra.mxu0 0
  %1335 = vmatprep.subr.bf16.mxu0 0
  %1336 = vmatpush1.bf16.msra.mxu0 0
  %1337 = vmatprep.subr.bf16.mxu0 0
  %1338 = vmatpush1.bf16.msra.mxu0 0
  %1339 = vmatprep.subr.bf16.mxu0 0
  %1340 = vmatpush1.bf16.msra.mxu0 %v1323
  %1341 = vmatprep.subr.bf16.mxu0 0
  %1342 = vmatpush1.bf16.msra.mxu0 %v1322
  %1343 = vmatprep.subr.bf16.mxu0 0
  %1344 = vmatpush1.bf16.msra.mxu0 %v1321
  %1345 = vmatprep.subr.bf16.mxu0 0
  %1346 = vmatpush1.bf16.msra.mxu0 %v1320
  %1347 = vmatprep.subr.bf16.mxu0 0
  %1348 = vmatpush2.bf16.msra.mxu0 0
  %1349 = vmatprep.subr.bf16.mxu0 0
  %1350 = vmatpush2.bf16.msra.mxu0 0
  %1351 = vmatprep.subr.bf16.mxu0 0
  %1352 = vmatpush2.bf16.msra.mxu0 0
  %1353 = vmatprep.subr.bf16.mxu0 0
  %1354 = vmatpush2.bf16.msra.mxu0 0
  %1355 = vmatprep.subr.bf16.mxu0 0
  %1356 = vmatpush2.bf16.msra.mxu0 0
  %1357 = vmatprep.subr.bf16.mxu0 0
  %1358 = vmatpush2.bf16.msra.mxu0 0
  %1359 = vmatprep.subr.bf16.mxu0 0
  %1360 = vmatpush2.bf16.msra.mxu0 0
  %1361 = vmatprep.subr.bf16.mxu0 0
  %1362 = vmatpush2.bf16.msra.mxu0 0
  %1363 = vmatprep.mubr.bf16.mxu0 0
  %1364 = vmatmul.mubr.bf16.gmra.mxu0 %v1329
  %v1365 = vpop.f32.mrf.mxu0
  %v1366 = vadd.f32 %v1302, %v1365
  %v1367 = vpop.f32.mrf.mxu0
  %v1368 = vpop.f32.mrf.mxu0
  %v1369 = vadd.f32 %v1302, %v1368
  %v1370 = vpop.f32.mrf.mxu0
  %1371 = vdwg.mxu0
  %v1372 = vadd.f32 %v1366, %v252
  %v1373 = vadd.f32 %v1369, %v255
  %v1374 = vld [vmem:[%s19] sm:$0x1]
  %v1375 = vld [vmem:[%s21] sm:$0x1]
  %v1376 = vsel %vm213, %v1372, 0.0
  %1377 = vadd.xlane.f32.xlu0 %v1376
  %v1378 = vpop.xlane.xlu0 %1377
  %v1379 = vsel %vm213, %v1373, 0.0
  %1380 = vadd.xlane.f32.xlu0 %v1379
  %v1381 = vpop.xlane.xlu0 %1380
  %v1382 = vrcp.pop 64.0
  %v1383 = vmul.f32 %v1378, %v1382
  %v1384 = vmul.f32 %v1381, %v1382
  %v1385 = vsub.f32 %v1372, %v1383
  %v1386 = vsub.f32 %v1373, %v1384
  %v1387 = vmul.f32 %v1385, %v1385
  %v1388 = vmul.f32 %v1386, %v1386
  %v1389 = vsel %vm213, %v1387, 0.0
  %1390 = vadd.xlane.f32.xlu0 %v1389
  %v1391 = vpop.xlane.xlu0 %1390
  %v1392 = vsel %vm213, %v1388, 0.0
  %1393 = vadd.xlane.f32.xlu0 %v1392
  %v1394 = vpop.xlane.xlu0 %1393
  %v1395 = vmul.f32 %v1391, %v1382
  %v1396 = vmul.f32 %v1394, %v1382
  %v1397 = vadd.f32 %v1395, 1e-05
  %v1398 = vadd.f32 %v1396, 1e-05
  %v1399 = vrsqrt.pop %v1397
  %v1400 = vrsqrt.pop %v1398
  %v1401 = vmul.f32 %v1385, %v1399
  %v1402 = vmul.f32 %v1386, %v1400
  %v1404 = vlaneseq
  %v1405 = vshrl.u32 %v1404, 7
  %v1406 = vsub.s32 0, %v1405
  %v1407 = vrot.slane %v1374, %v1406
  %v1409 = vmul.f32 %v1401, %v1407
  %v1410 = vmul.f32 %v1402, %v1407
  %v1412 = vlaneseq
  %v1413 = vshrl.u32 %v1412, 7
  %v1414 = vsub.s32 0, %v1413
  %v1415 = vrot.slane %v1375, %v1414
  %v1417 = vadd.f32 %v1409, %v1415
  %v1418 = vadd.f32 %v1410, %v1415
  %v1419 = vpack.c.bf16 %v1418, %v1417
  %v1420 = vld [vmem:[%s23] sm:$0xff]
  %v1421 = vld [vmem:[%s23 + $0x8] sm:$0xff]
  %v1422 = vld [vmem:[%s23 + $0x10] sm:$0xff]
  %v1423 = vld [vmem:[%s23 + $0x18] sm:$0xff]
  %v1424 = vld [vmem:[%s23 + $0x20] sm:$0xff]
  %v1425 = vld [vmem:[%s23 + $0x28] sm:$0xff]
  %v1426 = vld [vmem:[%s23 + $0x30] sm:$0xff]
  %v1427 = vld [vmem:[%s23 + $0x38] sm:$0xff]
  %v1428 = vld [vmem:[%s23 + $0x40] sm:$0xff]
  %v1429 = vld [vmem:[%s23 + $0x48] sm:$0xff]
  %v1430 = vld [vmem:[%s23 + $0x50] sm:$0xff]
  %v1431 = vld [vmem:[%s23 + $0x58] sm:$0xff]
  %v1432 = vld [vmem:[%s23 + $0x60] sm:$0xff]
  %v1433 = vld [vmem:[%s23 + $0x68] sm:$0xff]
  %v1434 = vld [vmem:[%s23 + $0x70] sm:$0xff]
  %v1435 = vld [vmem:[%s23 + $0x78] sm:$0xff]
  %v1436 = vld [vmem:[%s23 + $0x80] sm:$0xff]
  %v1437 = vld [vmem:[%s23 + $0x88] sm:$0xff]
  %v1438 = vld [vmem:[%s23 + $0x90] sm:$0xff]
  %v1439 = vld [vmem:[%s23 + $0x98] sm:$0xff]
  %v1440 = vld [vmem:[%s23 + $0xa0] sm:$0xff]
  %v1441 = vld [vmem:[%s23 + $0xa8] sm:$0xff]
  %v1442 = vld [vmem:[%s23 + $0xb0] sm:$0xff]
  %v1443 = vld [vmem:[%s23 + $0xb8] sm:$0xff]
  %v1444 = vld [vmem:[%s23 + $0xc0] sm:$0xff]
  %v1445 = vld [vmem:[%s23 + $0xc8] sm:$0xff]
  %v1446 = vld [vmem:[%s23 + $0xd0] sm:$0xff]
  %v1447 = vld [vmem:[%s23 + $0xd8] sm:$0xff]
  %v1448 = vld [vmem:[%s23 + $0xe0] sm:$0xff]
  %v1449 = vld [vmem:[%s23 + $0xe8] sm:$0xff]
  %v1450 = vld [vmem:[%s23 + $0xf0] sm:$0xff]
  %v1451 = vld [vmem:[%s23 + $0xf8] sm:$0xff]
  %v1452 = vld [vmem:[%s23 + $0x100] sm:$0xff]
  %v1453 = vld [vmem:[%s23 + $0x108] sm:$0xff]
  %v1454 = vld [vmem:[%s23 + $0x110] sm:$0xff]
  %v1455 = vld [vmem:[%s23 + $0x118] sm:$0xff]
  %v1456 = vld [vmem:[%s23 + $0x120] sm:$0xff]
  %v1457 = vld [vmem:[%s23 + $0x128] sm:$0xff]
  %v1458 = vld [vmem:[%s23 + $0x130] sm:$0xff]
  %v1459 = vld [vmem:[%s23 + $0x138] sm:$0xff]
  %v1460 = vld [vmem:[%s23 + $0x140] sm:$0xff]
  %v1461 = vld [vmem:[%s23 + $0x148] sm:$0xff]
  %v1462 = vld [vmem:[%s23 + $0x150] sm:$0xff]
  %v1463 = vld [vmem:[%s23 + $0x158] sm:$0xff]
  %v1464 = vld [vmem:[%s23 + $0x160] sm:$0xff]
  %v1465 = vld [vmem:[%s23 + $0x168] sm:$0xff]
  %v1466 = vld [vmem:[%s23 + $0x170] sm:$0xff]
  %v1467 = vld [vmem:[%s23 + $0x178] sm:$0xff]
  %v1468 = vld [vmem:[%s23 + $0x180] sm:$0xff]
  %v1469 = vld [vmem:[%s23 + $0x188] sm:$0xff]
  %v1470 = vld [vmem:[%s23 + $0x190] sm:$0xff]
  %v1471 = vld [vmem:[%s23 + $0x198] sm:$0xff]
  %v1472 = vld [vmem:[%s23 + $0x1a0] sm:$0xff]
  %v1473 = vld [vmem:[%s23 + $0x1a8] sm:$0xff]
  %v1474 = vld [vmem:[%s23 + $0x1b0] sm:$0xff]
  %v1475 = vld [vmem:[%s23 + $0x1b8] sm:$0xff]
  %v1476 = vld [vmem:[%s23 + $0x1c0] sm:$0xff]
  %v1477 = vld [vmem:[%s23 + $0x1c8] sm:$0xff]
  %v1478 = vld [vmem:[%s23 + $0x1d0] sm:$0xff]
  %v1479 = vld [vmem:[%s23 + $0x1d8] sm:$0xff]
  %v1480 = vld [vmem:[%s23 + $0x1e0] sm:$0xff]
  %v1481 = vld [vmem:[%s23 + $0x1e8] sm:$0xff]
  %v1482 = vld [vmem:[%s23 + $0x1f0] sm:$0xff]
  %v1483 = vld [vmem:[%s23 + $0x1f8] sm:$0xff]
  %v1484 = vld [vmem:[%s25] sm:$0xff]
  %v1485 = vld [vmem:[%s25 + $0x8] sm:$0xff]
  %v1488 = vlaneseq
  %v1489 = vshrl.u32 %v1488, 7
  %v1490 = vsub.s32 0, %v1489
  %v1491 = vrot.slane %v1484, %v1490
  %v1492 = vlaneseq
  %v1493 = vshrl.u32 %v1492, 7
  %v1494 = vsub.s32 1, %v1493
  %v1495 = vrot.slane %v1484, %v1494
  %v1496 = vlaneseq
  %v1497 = vshrl.u32 %v1496, 7
  %v1498 = vsub.s32 2, %v1497
  %v1499 = vrot.slane %v1484, %v1498
  %v1500 = vlaneseq
  %v1501 = vshrl.u32 %v1500, 7
  %v1502 = vsub.s32 3, %v1501
  %v1503 = vrot.slane %v1484, %v1502
  %v1504 = vlaneseq
  %v1505 = vshrl.u32 %v1504, 7
  %v1506 = vsub.s32 4, %v1505
  %v1507 = vrot.slane %v1484, %v1506
  %v1508 = vlaneseq
  %v1509 = vshrl.u32 %v1508, 7
  %v1510 = vsub.s32 5, %v1509
  %v1511 = vrot.slane %v1484, %v1510
  %v1512 = vlaneseq
  %v1513 = vshrl.u32 %v1512, 7
  %v1514 = vsub.s32 6, %v1513
  %v1515 = vrot.slane %v1484, %v1514
  %v1516 = vlaneseq
  %v1517 = vshrl.u32 %v1516, 7
  %v1518 = vsub.s32 7, %v1517
  %v1519 = vrot.slane %v1484, %v1518
  %v1520 = vlaneseq
  %v1521 = vshrl.u32 %v1520, 7
  %v1522 = vsub.s32 0, %v1521
  %v1523 = vrot.slane %v1485, %v1522
  %v1524 = vlaneseq
  %v1525 = vshrl.u32 %v1524, 7
  %v1526 = vsub.s32 1, %v1525
  %v1527 = vrot.slane %v1485, %v1526
  %v1528 = vlaneseq
  %v1529 = vshrl.u32 %v1528, 7
  %v1530 = vsub.s32 2, %v1529
  %v1531 = vrot.slane %v1485, %v1530
  %v1532 = vlaneseq
  %v1533 = vshrl.u32 %v1532, 7
  %v1534 = vsub.s32 3, %v1533
  %v1535 = vrot.slane %v1485, %v1534
  %v1536 = vlaneseq
  %v1537 = vshrl.u32 %v1536, 7
  %v1538 = vsub.s32 4, %v1537
  %v1539 = vrot.slane %v1485, %v1538
  %v1540 = vlaneseq
  %v1541 = vshrl.u32 %v1540, 7
  %v1542 = vsub.s32 5, %v1541
  %v1543 = vrot.slane %v1485, %v1542
  %v1544 = vlaneseq
  %v1545 = vshrl.u32 %v1544, 7
  %v1546 = vsub.s32 6, %v1545
  %v1547 = vrot.slane %v1485, %v1546
  %v1548 = vlaneseq
  %v1549 = vshrl.u32 %v1548, 7
  %v1550 = vsub.s32 7, %v1549
  %v1551 = vrot.slane %v1485, %v1550
  %v1632 = vunpack.c.l.b16 %v1420
  %v1633 = vunpack.c.h.b16 %v1420
  %v1634 = vunpack.c.l.b16 %v1421
  %v1635 = vunpack.c.h.b16 %v1421
  %v1636 = vunpack.c.l.b16 %v1422
  %v1637 = vunpack.c.h.b16 %v1422
  %v1638 = vunpack.c.l.b16 %v1423
  %v1639 = vunpack.c.h.b16 %v1423
  %v1640 = vunpack.c.l.b16 %v1424
  %v1641 = vunpack.c.h.b16 %v1424
  %v1642 = vunpack.c.l.b16 %v1425
  %v1643 = vunpack.c.h.b16 %v1425
  %v1644 = vunpack.c.l.b16 %v1426
  %v1645 = vunpack.c.h.b16 %v1426
  %v1646 = vunpack.c.l.b16 %v1427
  %v1647 = vunpack.c.h.b16 %v1427
  %v1648 = vunpack.c.l.b16 %v1428
  %v1649 = vunpack.c.h.b16 %v1428
  %v1650 = vunpack.c.l.b16 %v1429
  %v1651 = vunpack.c.h.b16 %v1429
  %v1652 = vunpack.c.l.b16 %v1430
  %v1653 = vunpack.c.h.b16 %v1430
  %v1654 = vunpack.c.l.b16 %v1431
  %v1655 = vunpack.c.h.b16 %v1431
  %v1656 = vunpack.c.l.b16 %v1432
  %v1657 = vunpack.c.h.b16 %v1432
  %v1658 = vunpack.c.l.b16 %v1433
  %v1659 = vunpack.c.h.b16 %v1433
  %v1660 = vunpack.c.l.b16 %v1434
  %v1661 = vunpack.c.h.b16 %v1434
  %v1662 = vunpack.c.l.b16 %v1435
  %v1663 = vunpack.c.h.b16 %v1435
  %v1664 = vunpack.c.l.b16 %v1436
  %v1665 = vunpack.c.h.b16 %v1436
  %v1666 = vunpack.c.l.b16 %v1437
  %v1667 = vunpack.c.h.b16 %v1437
  %v1668 = vunpack.c.l.b16 %v1438
  %v1669 = vunpack.c.h.b16 %v1438
  %v1670 = vunpack.c.l.b16 %v1439
  %v1671 = vunpack.c.h.b16 %v1439
  %v1672 = vunpack.c.l.b16 %v1440
  %v1673 = vunpack.c.h.b16 %v1440
  %v1674 = vunpack.c.l.b16 %v1441
  %v1675 = vunpack.c.h.b16 %v1441
  %v1676 = vunpack.c.l.b16 %v1442
  %v1677 = vunpack.c.h.b16 %v1442
  %v1678 = vunpack.c.l.b16 %v1443
  %v1679 = vunpack.c.h.b16 %v1443
  %v1680 = vunpack.c.l.b16 %v1444
  %v1681 = vunpack.c.h.b16 %v1444
  %v1682 = vunpack.c.l.b16 %v1445
  %v1683 = vunpack.c.h.b16 %v1445
  %v1684 = vunpack.c.l.b16 %v1446
  %v1685 = vunpack.c.h.b16 %v1446
  %v1686 = vunpack.c.l.b16 %v1447
  %v1687 = vunpack.c.h.b16 %v1447
  %v1688 = vunpack.c.l.b16 %v1448
  %v1689 = vunpack.c.h.b16 %v1448
  %v1690 = vunpack.c.l.b16 %v1449
  %v1691 = vunpack.c.h.b16 %v1449
  %v1692 = vunpack.c.l.b16 %v1450
  %v1693 = vunpack.c.h.b16 %v1450
  %v1694 = vunpack.c.l.b16 %v1451
  %v1695 = vunpack.c.h.b16 %v1451
  %v1696 = vunpack.c.l.b16 %v1452
  %v1697 = vunpack.c.h.b16 %v1452
  %v1698 = vunpack.c.l.b16 %v1453
  %v1699 = vunpack.c.h.b16 %v1453
  %v1700 = vunpack.c.l.b16 %v1454
  %v1701 = vunpack.c.h.b16 %v1454
  %v1702 = vunpack.c.l.b16 %v1455
  %v1703 = vunpack.c.h.b16 %v1455
  %v1704 = vunpack.c.l.b16 %v1456
  %v1705 = vunpack.c.h.b16 %v1456
  %v1706 = vunpack.c.l.b16 %v1457
  %v1707 = vunpack.c.h.b16 %v1457
  %v1708 = vunpack.c.l.b16 %v1458
  %v1709 = vunpack.c.h.b16 %v1458
  %v1710 = vunpack.c.l.b16 %v1459
  %v1711 = vunpack.c.h.b16 %v1459
  %v1712 = vunpack.c.l.b16 %v1460
  %v1713 = vunpack.c.h.b16 %v1460
  %v1714 = vunpack.c.l.b16 %v1461
  %v1715 = vunpack.c.h.b16 %v1461
  %v1716 = vunpack.c.l.b16 %v1462
  %v1717 = vunpack.c.h.b16 %v1462
  %v1718 = vunpack.c.l.b16 %v1463
  %v1719 = vunpack.c.h.b16 %v1463
  %v1720 = vunpack.c.l.b16 %v1464
  %v1721 = vunpack.c.h.b16 %v1464
  %v1722 = vunpack.c.l.b16 %v1465
  %v1723 = vunpack.c.h.b16 %v1465
  %v1724 = vunpack.c.l.b16 %v1466
  %v1725 = vunpack.c.h.b16 %v1466
  %v1726 = vunpack.c.l.b16 %v1467
  %v1727 = vunpack.c.h.b16 %v1467
  %v1728 = vunpack.c.l.b16 %v1468
  %v1729 = vunpack.c.h.b16 %v1468
  %v1730 = vunpack.c.l.b16 %v1469
  %v1731 = vunpack.c.h.b16 %v1469
  %v1732 = vunpack.c.l.b16 %v1470
  %v1733 = vunpack.c.h.b16 %v1470
  %v1734 = vunpack.c.l.b16 %v1471
  %v1735 = vunpack.c.h.b16 %v1471
  %v1736 = vunpack.c.l.b16 %v1472
  %v1737 = vunpack.c.h.b16 %v1472
  %v1738 = vunpack.c.l.b16 %v1473
  %v1739 = vunpack.c.h.b16 %v1473
  %v1740 = vunpack.c.l.b16 %v1474
  %v1741 = vunpack.c.h.b16 %v1474
  %v1742 = vunpack.c.l.b16 %v1475
  %v1743 = vunpack.c.h.b16 %v1475
  %v1744 = vunpack.c.l.b16 %v1476
  %v1745 = vunpack.c.h.b16 %v1476
  %v1746 = vunpack.c.l.b16 %v1477
  %v1747 = vunpack.c.h.b16 %v1477
  %v1748 = vunpack.c.l.b16 %v1478
  %v1749 = vunpack.c.h.b16 %v1478
  %v1750 = vunpack.c.l.b16 %v1479
  %v1751 = vunpack.c.h.b16 %v1479
  %v1752 = vunpack.c.l.b16 %v1480
  %v1753 = vunpack.c.h.b16 %v1480
  %v1754 = vunpack.c.l.b16 %v1481
  %v1755 = vunpack.c.h.b16 %v1481
  %v1756 = vunpack.c.l.b16 %v1482
  %v1757 = vunpack.c.h.b16 %v1482
  %v1758 = vunpack.c.l.b16 %v1483
  %v1759 = vunpack.c.h.b16 %v1483
  %v1760 = vpack.c.b16 %v1648, %v1632
  %v1761 = vpack.c.b16 %v1649, %v1633
  %v1762 = vpack.c.b16 %v1650, %v1634
  %v1763 = vpack.c.b16 %v1651, %v1635
  %v1764 = vpack.c.b16 %v1652, %v1636
  %v1765 = vpack.c.b16 %v1653, %v1637
  %v1766 = vpack.c.b16 %v1654, %v1638
  %v1767 = vpack.c.b16 %v1655, %v1639
  %v1768 = vpack.c.b16 %v1656, %v1640
  %v1769 = vpack.c.b16 %v1657, %v1641
  %v1770 = vpack.c.b16 %v1658, %v1642
  %v1771 = vpack.c.b16 %v1659, %v1643
  %v1772 = vpack.c.b16 %v1660, %v1644
  %v1773 = vpack.c.b16 %v1661, %v1645
  %v1774 = vpack.c.b16 %v1662, %v1646
  %v1775 = vpack.c.b16 %v1663, %v1647
  %v1776 = vpack.c.b16 %v1680, %v1664
  %v1777 = vpack.c.b16 %v1681, %v1665
  %v1778 = vpack.c.b16 %v1682, %v1666
  %v1779 = vpack.c.b16 %v1683, %v1667
  %v1780 = vpack.c.b16 %v1684, %v1668
  %v1781 = vpack.c.b16 %v1685, %v1669
  %v1782 = vpack.c.b16 %v1686, %v1670
  %v1783 = vpack.c.b16 %v1687, %v1671
  %v1784 = vpack.c.b16 %v1688, %v1672
  %v1785 = vpack.c.b16 %v1689, %v1673
  %v1786 = vpack.c.b16 %v1690, %v1674
  %v1787 = vpack.c.b16 %v1691, %v1675
  %v1788 = vpack.c.b16 %v1692, %v1676
  %v1789 = vpack.c.b16 %v1693, %v1677
  %v1790 = vpack.c.b16 %v1694, %v1678
  %v1791 = vpack.c.b16 %v1695, %v1679
  %v1792 = vpack.c.b16 %v1712, %v1696
  %v1793 = vpack.c.b16 %v1713, %v1697
  %v1794 = vpack.c.b16 %v1714, %v1698
  %v1795 = vpack.c.b16 %v1715, %v1699
  %v1796 = vpack.c.b16 %v1716, %v1700
  %v1797 = vpack.c.b16 %v1717, %v1701
  %v1798 = vpack.c.b16 %v1718, %v1702
  %v1799 = vpack.c.b16 %v1719, %v1703
  %v1800 = vpack.c.b16 %v1720, %v1704
  %v1801 = vpack.c.b16 %v1721, %v1705
  %v1802 = vpack.c.b16 %v1722, %v1706
  %v1803 = vpack.c.b16 %v1723, %v1707
  %v1804 = vpack.c.b16 %v1724, %v1708
  %v1805 = vpack.c.b16 %v1725, %v1709
  %v1806 = vpack.c.b16 %v1726, %v1710
  %v1807 = vpack.c.b16 %v1727, %v1711
  %v1808 = vpack.c.b16 %v1744, %v1728
  %v1809 = vpack.c.b16 %v1745, %v1729
  %v1810 = vpack.c.b16 %v1746, %v1730
  %v1811 = vpack.c.b16 %v1747, %v1731
  %v1812 = vpack.c.b16 %v1748, %v1732
  %v1813 = vpack.c.b16 %v1749, %v1733
  %v1814 = vpack.c.b16 %v1750, %v1734
  %v1815 = vpack.c.b16 %v1751, %v1735
  %v1816 = vpack.c.b16 %v1752, %v1736
  %v1817 = vpack.c.b16 %v1753, %v1737
  %v1818 = vpack.c.b16 %v1754, %v1738
  %v1819 = vpack.c.b16 %v1755, %v1739
  %v1820 = vpack.c.b16 %v1756, %v1740
  %v1821 = vpack.c.b16 %v1757, %v1741
  %v1822 = vpack.c.b16 %v1758, %v1742
  %v1823 = vpack.c.b16 %v1759, %v1743
  %v1889 = vsel %vm213, %v1419, 0
  %1891 = vmatprep.subr.bf16.mxu0 0
  %1892 = vmatpush1.bf16.msra.mxu0 0
  %1893 = vmatprep.subr.bf16.mxu0 0
  %1894 = vmatpush1.bf16.msra.mxu0 0
  %1895 = vmatprep.subr.bf16.mxu0 0
  %1896 = vmatpush1.bf16.msra.mxu0 0
  %1897 = vmatprep.subr.bf16.mxu0 0
  %1898 = vmatpush1.bf16.msra.mxu0 0
  %1899 = vmatprep.subr.bf16.mxu0 %v1809
  %1900 = vmatpush1.bf16.msra.mxu0 %v1808
  %1901 = vmatprep.subr.bf16.mxu0 %v1793
  %1902 = vmatpush1.bf16.msra.mxu0 %v1792
  %1903 = vmatprep.subr.bf16.mxu0 %v1777
  %1904 = vmatpush1.bf16.msra.mxu0 %v1776
  %1905 = vmatprep.subr.bf16.mxu0 %v1761
  %1906 = vmatpush1.bf16.msra.mxu0 %v1760
  %1907 = vmatprep.subr.bf16.mxu0 0
  %1908 = vmatpush2.bf16.msra.mxu0 0
  %1909 = vmatprep.subr.bf16.mxu0 0
  %1910 = vmatpush2.bf16.msra.mxu0 0
  %1911 = vmatprep.subr.bf16.mxu0 0
  %1912 = vmatpush2.bf16.msra.mxu0 0
  %1913 = vmatprep.subr.bf16.mxu0 0
  %1914 = vmatpush2.bf16.msra.mxu0 0
  %1915 = vmatprep.subr.bf16.mxu0 0
  %1916 = vmatpush2.bf16.msra.mxu0 0
  %1917 = vmatprep.subr.bf16.mxu0 0
  %1918 = vmatpush2.bf16.msra.mxu0 0
  %1919 = vmatprep.subr.bf16.mxu0 0
  %1920 = vmatpush2.bf16.msra.mxu0 0
  %1921 = vmatprep.subr.bf16.mxu0 0
  %1922 = vmatpush2.bf16.msra.mxu0 0
  %1923 = vmatprep.mubr.bf16.mxu0 0
  %1924 = vmatmul.mubr.bf16.gmra.mxu0 %v1889
  %v1925 = vpop.f32.mrf.mxu0
  %v1926 = vadd.f32 %v1491, %v1925
  %v1927 = vpop.f32.mrf.mxu0
  %v1928 = vadd.f32 %v1495, %v1927
  %v1929 = vpop.f32.mrf.mxu0
  %v1930 = vadd.f32 %v1491, %v1929
  %v1931 = vpop.f32.mrf.mxu0
  %v1932 = vadd.f32 %v1495, %v1931
  %1933 = vdwg.mxu0
  %1934 = vmatprep.subr.bf16.mxu0 0
  %1935 = vmatpush1.bf16.msra.mxu0 0
  %1936 = vmatprep.subr.bf16.mxu0 0
  %1937 = vmatpush1.bf16.msra.mxu0 0
  %1938 = vmatprep.subr.bf16.mxu0 0
  %1939 = vmatpush1.bf16.msra.mxu0 0
  %1940 = vmatprep.subr.bf16.mxu0 0
  %1941 = vmatpush1.bf16.msra.mxu0 0
  %1942 = vmatprep.subr.bf16.mxu0 %v1811
  %1943 = vmatpush1.bf16.msra.mxu0 %v1810
  %1944 = vmatprep.subr.bf16.mxu0 %v1795
  %1945 = vmatpush1.bf16.msra.mxu0 %v1794
  %1946 = vmatprep.subr.bf16.mxu0 %v1779
  %1947 = vmatpush1.bf16.msra.mxu0 %v1778
  %1948 = vmatprep.subr.bf16.mxu0 %v1763
  %1949 = vmatpush1.bf16.msra.mxu0 %v1762
  %1950 = vmatprep.subr.bf16.mxu0 0
  %1951 = vmatpush2.bf16.msra.mxu0 0
  %1952 = vmatprep.subr.bf16.mxu0 0
  %1953 = vmatpush2.bf16.msra.mxu0 0
  %1954 = vmatprep.subr.bf16.mxu0 0
  %1955 = vmatpush2.bf16.msra.mxu0 0
  %1956 = vmatprep.subr.bf16.mxu0 0
  %1957 = vmatpush2.bf16.msra.mxu0 0
  %1958 = vmatprep.subr.bf16.mxu0 0
  %1959 = vmatpush2.bf16.msra.mxu0 0
  %1960 = vmatprep.subr.bf16.mxu0 0
  %1961 = vmatpush2.bf16.msra.mxu0 0
  %1962 = vmatprep.subr.bf16.mxu0 0
  %1963 = vmatpush2.bf16.msra.mxu0 0
  %1964 = vmatprep.subr.bf16.mxu0 0
  %1965 = vmatpush2.bf16.msra.mxu0 0
  %1966 = vmatprep.mubr.bf16.mxu0 0
  %1967 = vmatmul.mubr.bf16.gmra.mxu0 %v1889
  %v1968 = vpop.f32.mrf.mxu0
  %v1969 = vadd.f32 %v1499, %v1968
  %v1970 = vpop.f32.mrf.mxu0
  %v1971 = vadd.f32 %v1503, %v1970
  %v1972 = vpop.f32.mrf.mxu0
  %v1973 = vadd.f32 %v1499, %v1972
  %v1974 = vpop.f32.mrf.mxu0
  %v1975 = vadd.f32 %v1503, %v1974
  %1976 = vdwg.mxu0
  %1977 = vmatprep.subr.bf16.mxu0 0
  %1978 = vmatpush1.bf16.msra.mxu0 0
  %1979 = vmatprep.subr.bf16.mxu0 0
  %1980 = vmatpush1.bf16.msra.mxu0 0
  %1981 = vmatprep.subr.bf16.mxu0 0
  %1982 = vmatpush1.bf16.msra.mxu0 0
  %1983 = vmatprep.subr.bf16.mxu0 0
  %1984 = vmatpush1.bf16.msra.mxu0 0
  %1985 = vmatprep.subr.bf16.mxu0 %v1813
  %1986 = vmatpush1.bf16.msra.mxu0 %v1812
  %1987 = vmatprep.subr.bf16.mxu0 %v1797
  %1988 = vmatpush1.bf16.msra.mxu0 %v1796
  %1989 = vmatprep.subr.bf16.mxu0 %v1781
  %1990 = vmatpush1.bf16.msra.mxu0 %v1780
  %1991 = vmatprep.subr.bf16.mxu0 %v1765
  %1992 = vmatpush1.bf16.msra.mxu0 %v1764
  %1993 = vmatprep.subr.bf16.mxu0 0
  %1994 = vmatpush2.bf16.msra.mxu0 0
  %1995 = vmatprep.subr.bf16.mxu0 0
  %1996 = vmatpush2.bf16.msra.mxu0 0
  %1997 = vmatprep.subr.bf16.mxu0 0
  %1998 = vmatpush2.bf16.msra.mxu0 0
  %1999 = vmatprep.subr.bf16.mxu0 0
  %2000 = vmatpush2.bf16.msra.mxu0 0
  %2001 = vmatprep.subr.bf16.mxu0 0
  %2002 = vmatpush2.bf16.msra.mxu0 0
  %2003 = vmatprep.subr.bf16.mxu0 0
  %2004 = vmatpush2.bf16.msra.mxu0 0
  %2005 = vmatprep.subr.bf16.mxu0 0
  %2006 = vmatpush2.bf16.msra.mxu0 0
  %2007 = vmatprep.subr.bf16.mxu0 0
  %2008 = vmatpush2.bf16.msra.mxu0 0
  %2009 = vmatprep.mubr.bf16.mxu0 0
  %2010 = vmatmul.mubr.bf16.gmra.mxu0 %v1889
  %v2011 = vpop.f32.mrf.mxu0
  %v2012 = vadd.f32 %v1507, %v2011
  %v2013 = vpop.f32.mrf.mxu0
  %v2014 = vadd.f32 %v1511, %v2013
  %v2015 = vpop.f32.mrf.mxu0
  %v2016 = vadd.f32 %v1507, %v2015
  %v2017 = vpop.f32.mrf.mxu0
  %v2018 = vadd.f32 %v1511, %v2017
  %2019 = vdwg.mxu0
  %2020 = vmatprep.subr.bf16.mxu0 0
  %2021 = vmatpush1.bf16.msra.mxu0 0
  %2022 = vmatprep.subr.bf16.mxu0 0
  %2023 = vmatpush1.bf16.msra.mxu0 0
  %2024 = vmatprep.subr.bf16.mxu0 0
  %2025 = vmatpush1.bf16.msra.mxu0 0
  %2026 = vmatprep.subr.bf16.mxu0 0
  %2027 = vmatpush1.bf16.msra.mxu0 0
  %2028 = vmatprep.subr.bf16.mxu0 %v1815
  %2029 = vmatpush1.bf16.msra.mxu0 %v1814
  %2030 = vmatprep.subr.bf16.mxu0 %v1799
  %2031 = vmatpush1.bf16.msra.mxu0 %v1798
  %2032 = vmatprep.subr.bf16.mxu0 %v1783
  %2033 = vmatpush1.bf16.msra.mxu0 %v1782
  %2034 = vmatprep.subr.bf16.mxu0 %v1767
  %2035 = vmatpush1.bf16.msra.mxu0 %v1766
  %2036 = vmatprep.subr.bf16.mxu0 0
  %2037 = vmatpush2.bf16.msra.mxu0 0
  %2038 = vmatprep.subr.bf16.mxu0 0
  %2039 = vmatpush2.bf16.msra.mxu0 0
  %2040 = vmatprep.subr.bf16.mxu0 0
  %2041 = vmatpush2.bf16.msra.mxu0 0
  %2042 = vmatprep.subr.bf16.mxu0 0
  %2043 = vmatpush2.bf16.msra.mxu0 0
  %2044 = vmatprep.subr.bf16.mxu0 0
  %2045 = vmatpush2.bf16.msra.mxu0 0
  %2046 = vmatprep.subr.bf16.mxu0 0
  %2047 = vmatpush2.bf16.msra.mxu0 0
  %2048 = vmatprep.subr.bf16.mxu0 0
  %2049 = vmatpush2.bf16.msra.mxu0 0
  %2050 = vmatprep.subr.bf16.mxu0 0
  %2051 = vmatpush2.bf16.msra.mxu0 0
  %2052 = vmatprep.mubr.bf16.mxu0 0
  %2053 = vmatmul.mubr.bf16.gmra.mxu0 %v1889
  %v2054 = vpop.f32.mrf.mxu0
  %v2055 = vadd.f32 %v1515, %v2054
  %v2056 = vpop.f32.mrf.mxu0
  %v2057 = vadd.f32 %v1519, %v2056
  %v2058 = vpop.f32.mrf.mxu0
  %v2059 = vadd.f32 %v1515, %v2058
  %v2060 = vpop.f32.mrf.mxu0
  %v2061 = vadd.f32 %v1519, %v2060
  %2062 = vdwg.mxu0
  %2063 = vmatprep.subr.bf16.mxu0 0
  %2064 = vmatpush1.bf16.msra.mxu0 0
  %2065 = vmatprep.subr.bf16.mxu0 0
  %2066 = vmatpush1.bf16.msra.mxu0 0
  %2067 = vmatprep.subr.bf16.mxu0 0
  %2068 = vmatpush1.bf16.msra.mxu0 0
  %2069 = vmatprep.subr.bf16.mxu0 0
  %2070 = vmatpush1.bf16.msra.mxu0 0
  %2071 = vmatprep.subr.bf16.mxu0 %v1817
  %2072 = vmatpush1.bf16.msra.mxu0 %v1816
  %2073 = vmatprep.subr.bf16.mxu0 %v1801
  %2074 = vmatpush1.bf16.msra.mxu0 %v1800
  %2075 = vmatprep.subr.bf16.mxu0 %v1785
  %2076 = vmatpush1.bf16.msra.mxu0 %v1784
  %2077 = vmatprep.subr.bf16.mxu0 %v1769
  %2078 = vmatpush1.bf16.msra.mxu0 %v1768
  %2079 = vmatprep.subr.bf16.mxu0 0
  %2080 = vmatpush2.bf16.msra.mxu0 0
  %2081 = vmatprep.subr.bf16.mxu0 0
  %2082 = vmatpush2.bf16.msra.mxu0 0
  %2083 = vmatprep.subr.bf16.mxu0 0
  %2084 = vmatpush2.bf16.msra.mxu0 0
  %2085 = vmatprep.subr.bf16.mxu0 0
  %2086 = vmatpush2.bf16.msra.mxu0 0
  %2087 = vmatprep.subr.bf16.mxu0 0
  %2088 = vmatpush2.bf16.msra.mxu0 0
  %2089 = vmatprep.subr.bf16.mxu0 0
  %2090 = vmatpush2.bf16.msra.mxu0 0
  %2091 = vmatprep.subr.bf16.mxu0 0
  %2092 = vmatpush2.bf16.msra.mxu0 0
  %2093 = vmatprep.subr.bf16.mxu0 0
  %2094 = vmatpush2.bf16.msra.mxu0 0
  %2095 = vmatprep.mubr.bf16.mxu0 0
  %2096 = vmatmul.mubr.bf16.gmra.mxu0 %v1889
  %v2097 = vpop.f32.mrf.mxu0
  %v2098 = vadd.f32 %v1523, %v2097
  %v2099 = vpop.f32.mrf.mxu0
  %v2100 = vadd.f32 %v1527, %v2099
  %v2101 = vpop.f32.mrf.mxu0
  %v2102 = vadd.f32 %v1523, %v2101
  %v2103 = vpop.f32.mrf.mxu0
  %v2104 = vadd.f32 %v1527, %v2103
  %2105 = vdwg.mxu0
  %2106 = vmatprep.subr.bf16.mxu0 0
  %2107 = vmatpush1.bf16.msra.mxu0 0
  %2108 = vmatprep.subr.bf16.mxu0 0
  %2109 = vmatpush1.bf16.msra.mxu0 0
  %2110 = vmatprep.subr.bf16.mxu0 0
  %2111 = vmatpush1.bf16.msra.mxu0 0
  %2112 = vmatprep.subr.bf16.mxu0 0
  %2113 = vmatpush1.bf16.msra.mxu0 0
  %2114 = vmatprep.subr.bf16.mxu0 %v1819
  %2115 = vmatpush1.bf16.msra.mxu0 %v1818
  %2116 = vmatprep.subr.bf16.mxu0 %v1803
  %2117 = vmatpush1.bf16.msra.mxu0 %v1802
  %2118 = vmatprep.subr.bf16.mxu0 %v1787
  %2119 = vmatpush1.bf16.msra.mxu0 %v1786
  %2120 = vmatprep.subr.bf16.mxu0 %v1771
  %2121 = vmatpush1.bf16.msra.mxu0 %v1770
  %2122 = vmatprep.subr.bf16.mxu0 0
  %2123 = vmatpush2.bf16.msra.mxu0 0
  %2124 = vmatprep.subr.bf16.mxu0 0
  %2125 = vmatpush2.bf16.msra.mxu0 0
  %2126 = vmatprep.subr.bf16.mxu0 0
  %2127 = vmatpush2.bf16.msra.mxu0 0
  %2128 = vmatprep.subr.bf16.mxu0 0
  %2129 = vmatpush2.bf16.msra.mxu0 0
  %2130 = vmatprep.subr.bf16.mxu0 0
  %2131 = vmatpush2.bf16.msra.mxu0 0
  %2132 = vmatprep.subr.bf16.mxu0 0
  %2133 = vmatpush2.bf16.msra.mxu0 0
  %2134 = vmatprep.subr.bf16.mxu0 0
  %2135 = vmatpush2.bf16.msra.mxu0 0
  %2136 = vmatprep.subr.bf16.mxu0 0
  %2137 = vmatpush2.bf16.msra.mxu0 0
  %2138 = vmatprep.mubr.bf16.mxu0 0
  %2139 = vmatmul.mubr.bf16.gmra.mxu0 %v1889
  %v2140 = vpop.f32.mrf.mxu0
  %v2141 = vadd.f32 %v1531, %v2140
  %v2142 = vpop.f32.mrf.mxu0
  %v2143 = vadd.f32 %v1535, %v2142
  %v2144 = vpop.f32.mrf.mxu0
  %v2145 = vadd.f32 %v1531, %v2144
  %v2146 = vpop.f32.mrf.mxu0
  %v2147 = vadd.f32 %v1535, %v2146
  %2148 = vdwg.mxu0
  %2149 = vmatprep.subr.bf16.mxu0 0
  %2150 = vmatpush1.bf16.msra.mxu0 0
  %2151 = vmatprep.subr.bf16.mxu0 0
  %2152 = vmatpush1.bf16.msra.mxu0 0
  %2153 = vmatprep.subr.bf16.mxu0 0
  %2154 = vmatpush1.bf16.msra.mxu0 0
  %2155 = vmatprep.subr.bf16.mxu0 0
  %2156 = vmatpush1.bf16.msra.mxu0 0
  %2157 = vmatprep.subr.bf16.mxu0 %v1821
  %2158 = vmatpush1.bf16.msra.mxu0 %v1820
  %2159 = vmatprep.subr.bf16.mxu0 %v1805
  %2160 = vmatpush1.bf16.msra.mxu0 %v1804
  %2161 = vmatprep.subr.bf16.mxu0 %v1789
  %2162 = vmatpush1.bf16.msra.mxu0 %v1788
  %2163 = vmatprep.subr.bf16.mxu0 %v1773
  %2164 = vmatpush1.bf16.msra.mxu0 %v1772
  %2165 = vmatprep.subr.bf16.mxu0 0
  %2166 = vmatpush2.bf16.msra.mxu0 0
  %2167 = vmatprep.subr.bf16.mxu0 0
  %2168 = vmatpush2.bf16.msra.mxu0 0
  %2169 = vmatprep.subr.bf16.mxu0 0
  %2170 = vmatpush2.bf16.msra.mxu0 0
  %2171 = vmatprep.subr.bf16.mxu0 0
  %2172 = vmatpush2.bf16.msra.mxu0 0
  %2173 = vmatprep.subr.bf16.mxu0 0
  %2174 = vmatpush2.bf16.msra.mxu0 0
  %2175 = vmatprep.subr.bf16.mxu0 0
  %2176 = vmatpush2.bf16.msra.mxu0 0
  %2177 = vmatprep.subr.bf16.mxu0 0
  %2178 = vmatpush2.bf16.msra.mxu0 0
  %2179 = vmatprep.subr.bf16.mxu0 0
  %2180 = vmatpush2.bf16.msra.mxu0 0
  %2181 = vmatprep.mubr.bf16.mxu0 0
  %2182 = vmatmul.mubr.bf16.gmra.mxu0 %v1889
  %v2183 = vpop.f32.mrf.mxu0
  %v2184 = vadd.f32 %v1539, %v2183
  %v2185 = vpop.f32.mrf.mxu0
  %v2186 = vadd.f32 %v1543, %v2185
  %v2187 = vpop.f32.mrf.mxu0
  %v2188 = vadd.f32 %v1539, %v2187
  %v2189 = vpop.f32.mrf.mxu0
  %v2190 = vadd.f32 %v1543, %v2189
  %2191 = vdwg.mxu0
  %2192 = vmatprep.subr.bf16.mxu0 0
  %2193 = vmatpush1.bf16.msra.mxu0 0
  %2194 = vmatprep.subr.bf16.mxu0 0
  %2195 = vmatpush1.bf16.msra.mxu0 0
  %2196 = vmatprep.subr.bf16.mxu0 0
  %2197 = vmatpush1.bf16.msra.mxu0 0
  %2198 = vmatprep.subr.bf16.mxu0 0
  %2199 = vmatpush1.bf16.msra.mxu0 0
  %2200 = vmatprep.subr.bf16.mxu0 %v1823
  %2201 = vmatpush1.bf16.msra.mxu0 %v1822
  %2202 = vmatprep.subr.bf16.mxu0 %v1807
  %2203 = vmatpush1.bf16.msra.mxu0 %v1806
  %2204 = vmatprep.subr.bf16.mxu0 %v1791
  %2205 = vmatpush1.bf16.msra.mxu0 %v1790
  %2206 = vmatprep.subr.bf16.mxu0 %v1775
  %2207 = vmatpush1.bf16.msra.mxu0 %v1774
  %2208 = vmatprep.subr.bf16.mxu0 0
  %2209 = vmatpush2.bf16.msra.mxu0 0
  %2210 = vmatprep.subr.bf16.mxu0 0
  %2211 = vmatpush2.bf16.msra.mxu0 0
  %2212 = vmatprep.subr.bf16.mxu0 0
  %2213 = vmatpush2.bf16.msra.mxu0 0
  %2214 = vmatprep.subr.bf16.mxu0 0
  %2215 = vmatpush2.bf16.msra.mxu0 0
  %2216 = vmatprep.subr.bf16.mxu0 0
  %2217 = vmatpush2.bf16.msra.mxu0 0
  %2218 = vmatprep.subr.bf16.mxu0 0
  %2219 = vmatpush2.bf16.msra.mxu0 0
  %2220 = vmatprep.subr.bf16.mxu0 0
  %2221 = vmatpush2.bf16.msra.mxu0 0
  %2222 = vmatprep.subr.bf16.mxu0 0
  %2223 = vmatpush2.bf16.msra.mxu0 0
  %2224 = vmatprep.mubr.bf16.mxu0 0
  %2225 = vmatmul.mubr.bf16.gmra.mxu0 %v1889
  %v2226 = vpop.f32.mrf.mxu0
  %v2227 = vadd.f32 %v1547, %v2226
  %v2228 = vpop.f32.mrf.mxu0
  %v2229 = vadd.f32 %v1551, %v2228
  %v2230 = vpop.f32.mrf.mxu0
  %v2231 = vadd.f32 %v1547, %v2230
  %v2232 = vpop.f32.mrf.mxu0
  %v2233 = vadd.f32 %v1551, %v2232
  %2234 = vdwg.mxu0
  %v2235 = vmax.f32 %v1926, 0.0
  %v2236 = vmax.f32 %v1928, 0.0
  %v2237 = vmax.f32 %v1969, 0.0
  %v2238 = vmax.f32 %v1971, 0.0
  %v2239 = vmax.f32 %v2012, 0.0
  %v2240 = vmax.f32 %v2014, 0.0
  %v2241 = vmax.f32 %v2055, 0.0
  %v2242 = vmax.f32 %v2057, 0.0
  %v2243 = vmax.f32 %v2098, 0.0
  %v2244 = vmax.f32 %v2100, 0.0
  %v2245 = vmax.f32 %v2141, 0.0
  %v2246 = vmax.f32 %v2143, 0.0
  %v2247 = vmax.f32 %v2184, 0.0
  %v2248 = vmax.f32 %v2186, 0.0
  %v2249 = vmax.f32 %v2227, 0.0
  %v2250 = vmax.f32 %v2229, 0.0
  %v2251 = vmax.f32 %v1930, 0.0
  %v2252 = vmax.f32 %v1932, 0.0
  %v2253 = vmax.f32 %v1973, 0.0
  %v2254 = vmax.f32 %v1975, 0.0
  %v2255 = vmax.f32 %v2016, 0.0
  %v2256 = vmax.f32 %v2018, 0.0
  %v2257 = vmax.f32 %v2059, 0.0
  %v2258 = vmax.f32 %v2061, 0.0
  %v2259 = vmax.f32 %v2102, 0.0
  %v2260 = vmax.f32 %v2104, 0.0
  %v2261 = vmax.f32 %v2145, 0.0
  %v2262 = vmax.f32 %v2147, 0.0
  %v2263 = vmax.f32 %v2188, 0.0
  %v2264 = vmax.f32 %v2190, 0.0
  %v2265 = vmax.f32 %v2231, 0.0
  %v2266 = vmax.f32 %v2233, 0.0
  %v2267 = vpack.c.bf16 %v2251, %v2235
  %v2268 = vpack.c.bf16 %v2252, %v2236
  %v2269 = vpack.c.bf16 %v2253, %v2237
  %v2270 = vpack.c.bf16 %v2254, %v2238
  %v2271 = vpack.c.bf16 %v2255, %v2239
  %v2272 = vpack.c.bf16 %v2256, %v2240
  %v2273 = vpack.c.bf16 %v2257, %v2241
  %v2274 = vpack.c.bf16 %v2258, %v2242
  %v2275 = vpack.c.bf16 %v2259, %v2243
  %v2276 = vpack.c.bf16 %v2260, %v2244
  %v2277 = vpack.c.bf16 %v2261, %v2245
  %v2278 = vpack.c.bf16 %v2262, %v2246
  %v2279 = vpack.c.bf16 %v2263, %v2247
  %v2280 = vpack.c.bf16 %v2264, %v2248
  %v2281 = vpack.c.bf16 %v2265, %v2249
  %v2282 = vpack.c.bf16 %v2266, %v2250
  %v2283 = vld [vmem:[%s27] sm:$0xf]
  %v2284 = vld [vmem:[%s27 + $0x4] sm:$0xf]
  %v2285 = vld [vmem:[%s27 + $0x8] sm:$0xf]
  %v2286 = vld [vmem:[%s27 + $0xc] sm:$0xf]
  %v2287 = vld [vmem:[%s27 + $0x10] sm:$0xf]
  %v2288 = vld [vmem:[%s27 + $0x14] sm:$0xf]
  %v2289 = vld [vmem:[%s27 + $0x18] sm:$0xf]
  %v2290 = vld [vmem:[%s27 + $0x1c] sm:$0xf]
  %v2291 = vld [vmem:[%s27 + $0x20] sm:$0xf]
  %v2292 = vld [vmem:[%s27 + $0x24] sm:$0xf]
  %v2293 = vld [vmem:[%s27 + $0x28] sm:$0xf]
  %v2294 = vld [vmem:[%s27 + $0x2c] sm:$0xf]
  %v2295 = vld [vmem:[%s27 + $0x30] sm:$0xf]
  %v2296 = vld [vmem:[%s27 + $0x34] sm:$0xf]
  %v2297 = vld [vmem:[%s27 + $0x38] sm:$0xf]
  %v2298 = vld [vmem:[%s27 + $0x3c] sm:$0xf]
  %v2299 = vld [vmem:[%s27 + $0x40] sm:$0xf]
  %v2300 = vld [vmem:[%s27 + $0x44] sm:$0xf]
  %v2301 = vld [vmem:[%s27 + $0x48] sm:$0xf]
  %v2302 = vld [vmem:[%s27 + $0x4c] sm:$0xf]
  %v2303 = vld [vmem:[%s27 + $0x50] sm:$0xf]
  %v2304 = vld [vmem:[%s27 + $0x54] sm:$0xf]
  %v2305 = vld [vmem:[%s27 + $0x58] sm:$0xf]
  %v2306 = vld [vmem:[%s27 + $0x5c] sm:$0xf]
  %v2307 = vld [vmem:[%s27 + $0x60] sm:$0xf]
  %v2308 = vld [vmem:[%s27 + $0x64] sm:$0xf]
  %v2309 = vld [vmem:[%s27 + $0x68] sm:$0xf]
  %v2310 = vld [vmem:[%s27 + $0x6c] sm:$0xf]
  %v2311 = vld [vmem:[%s27 + $0x70] sm:$0xf]
  %v2312 = vld [vmem:[%s27 + $0x74] sm:$0xf]
  %v2313 = vld [vmem:[%s27 + $0x78] sm:$0xf]
  %v2314 = vld [vmem:[%s27 + $0x7c] sm:$0xf]
  %v2315 = vld [vmem:[%s27 + $0x80] sm:$0xf]
  %v2316 = vld [vmem:[%s27 + $0x84] sm:$0xf]
  %v2317 = vld [vmem:[%s27 + $0x88] sm:$0xf]
  %v2318 = vld [vmem:[%s27 + $0x8c] sm:$0xf]
  %v2319 = vld [vmem:[%s27 + $0x90] sm:$0xf]
  %v2320 = vld [vmem:[%s27 + $0x94] sm:$0xf]
  %v2321 = vld [vmem:[%s27 + $0x98] sm:$0xf]
  %v2322 = vld [vmem:[%s27 + $0x9c] sm:$0xf]
  %v2323 = vld [vmem:[%s27 + $0xa0] sm:$0xf]
  %v2324 = vld [vmem:[%s27 + $0xa4] sm:$0xf]
  %v2325 = vld [vmem:[%s27 + $0xa8] sm:$0xf]
  %v2326 = vld [vmem:[%s27 + $0xac] sm:$0xf]
  %v2327 = vld [vmem:[%s27 + $0xb0] sm:$0xf]
  %v2328 = vld [vmem:[%s27 + $0xb4] sm:$0xf]
  %v2329 = vld [vmem:[%s27 + $0xb8] sm:$0xf]
  %v2330 = vld [vmem:[%s27 + $0xbc] sm:$0xf]
  %v2331 = vld [vmem:[%s27 + $0xc0] sm:$0xf]
  %v2332 = vld [vmem:[%s27 + $0xc4] sm:$0xf]
  %v2333 = vld [vmem:[%s27 + $0xc8] sm:$0xf]
  %v2334 = vld [vmem:[%s27 + $0xcc] sm:$0xf]
  %v2335 = vld [vmem:[%s27 + $0xd0] sm:$0xf]
  %v2336 = vld [vmem:[%s27 + $0xd4] sm:$0xf]
  %v2337 = vld [vmem:[%s27 + $0xd8] sm:$0xf]
  %v2338 = vld [vmem:[%s27 + $0xdc] sm:$0xf]
  %v2339 = vld [vmem:[%s27 + $0xe0] sm:$0xf]
  %v2340 = vld [vmem:[%s27 + $0xe4] sm:$0xf]
  %v2341 = vld [vmem:[%s27 + $0xe8] sm:$0xf]
  %v2342 = vld [vmem:[%s27 + $0xec] sm:$0xf]
  %v2343 = vld [vmem:[%s27 + $0xf0] sm:$0xf]
  %v2344 = vld [vmem:[%s27 + $0xf4] sm:$0xf]
  %v2345 = vld [vmem:[%s27 + $0xf8] sm:$0xf]
  %v2346 = vld [vmem:[%s27 + $0xfc] sm:$0xf]
  %v2347 = vld [vmem:[%s27 + $0x100] sm:$0xf]
  %v2348 = vld [vmem:[%s27 + $0x104] sm:$0xf]
  %v2349 = vld [vmem:[%s27 + $0x108] sm:$0xf]
  %v2350 = vld [vmem:[%s27 + $0x10c] sm:$0xf]
  %v2351 = vld [vmem:[%s27 + $0x110] sm:$0xf]
  %v2352 = vld [vmem:[%s27 + $0x114] sm:$0xf]
  %v2353 = vld [vmem:[%s27 + $0x118] sm:$0xf]
  %v2354 = vld [vmem:[%s27 + $0x11c] sm:$0xf]
  %v2355 = vld [vmem:[%s27 + $0x120] sm:$0xf]
  %v2356 = vld [vmem:[%s27 + $0x124] sm:$0xf]
  %v2357 = vld [vmem:[%s27 + $0x128] sm:$0xf]
  %v2358 = vld [vmem:[%s27 + $0x12c] sm:$0xf]
  %v2359 = vld [vmem:[%s27 + $0x130] sm:$0xf]
  %v2360 = vld [vmem:[%s27 + $0x134] sm:$0xf]
  %v2361 = vld [vmem:[%s27 + $0x138] sm:$0xf]
  %v2362 = vld [vmem:[%s27 + $0x13c] sm:$0xf]
  %v2363 = vld [vmem:[%s27 + $0x140] sm:$0xf]
  %v2364 = vld [vmem:[%s27 + $0x144] sm:$0xf]
  %v2365 = vld [vmem:[%s27 + $0x148] sm:$0xf]
  %v2366 = vld [vmem:[%s27 + $0x14c] sm:$0xf]
  %v2367 = vld [vmem:[%s27 + $0x150] sm:$0xf]
  %v2368 = vld [vmem:[%s27 + $0x154] sm:$0xf]
  %v2369 = vld [vmem:[%s27 + $0x158] sm:$0xf]
  %v2370 = vld [vmem:[%s27 + $0x15c] sm:$0xf]
  %v2371 = vld [vmem:[%s27 + $0x160] sm:$0xf]
  %v2372 = vld [vmem:[%s27 + $0x164] sm:$0xf]
  %v2373 = vld [vmem:[%s27 + $0x168] sm:$0xf]
  %v2374 = vld [vmem:[%s27 + $0x16c] sm:$0xf]
  %v2375 = vld [vmem:[%s27 + $0x170] sm:$0xf]
  %v2376 = vld [vmem:[%s27 + $0x174] sm:$0xf]
  %v2377 = vld [vmem:[%s27 + $0x178] sm:$0xf]
  %v2378 = vld [vmem:[%s27 + $0x17c] sm:$0xf]
  %v2379 = vld [vmem:[%s27 + $0x180] sm:$0xf]
  %v2380 = vld [vmem:[%s27 + $0x184] sm:$0xf]
  %v2381 = vld [vmem:[%s27 + $0x188] sm:$0xf]
  %v2382 = vld [vmem:[%s27 + $0x18c] sm:$0xf]
  %v2383 = vld [vmem:[%s27 + $0x190] sm:$0xf]
  %v2384 = vld [vmem:[%s27 + $0x194] sm:$0xf]
  %v2385 = vld [vmem:[%s27 + $0x198] sm:$0xf]
  %v2386 = vld [vmem:[%s27 + $0x19c] sm:$0xf]
  %v2387 = vld [vmem:[%s27 + $0x1a0] sm:$0xf]
  %v2388 = vld [vmem:[%s27 + $0x1a4] sm:$0xf]
  %v2389 = vld [vmem:[%s27 + $0x1a8] sm:$0xf]
  %v2390 = vld [vmem:[%s27 + $0x1ac] sm:$0xf]
  %v2391 = vld [vmem:[%s27 + $0x1b0] sm:$0xf]
  %v2392 = vld [vmem:[%s27 + $0x1b4] sm:$0xf]
  %v2393 = vld [vmem:[%s27 + $0x1b8] sm:$0xf]
  %v2394 = vld [vmem:[%s27 + $0x1bc] sm:$0xf]
  %v2395 = vld [vmem:[%s27 + $0x1c0] sm:$0xf]
  %v2396 = vld [vmem:[%s27 + $0x1c4] sm:$0xf]
  %v2397 = vld [vmem:[%s27 + $0x1c8] sm:$0xf]
  %v2398 = vld [vmem:[%s27 + $0x1cc] sm:$0xf]
  %v2399 = vld [vmem:[%s27 + $0x1d0] sm:$0xf]
  %v2400 = vld [vmem:[%s27 + $0x1d4] sm:$0xf]
  %v2401 = vld [vmem:[%s27 + $0x1d8] sm:$0xf]
  %v2402 = vld [vmem:[%s27 + $0x1dc] sm:$0xf]
  %v2403 = vld [vmem:[%s27 + $0x1e0] sm:$0xf]
  %v2404 = vld [vmem:[%s27 + $0x1e4] sm:$0xf]
  %v2405 = vld [vmem:[%s27 + $0x1e8] sm:$0xf]
  %v2406 = vld [vmem:[%s27 + $0x1ec] sm:$0xf]
  %v2407 = vld [vmem:[%s27 + $0x1f0] sm:$0xf]
  %v2408 = vld [vmem:[%s27 + $0x1f4] sm:$0xf]
  %v2409 = vld [vmem:[%s27 + $0x1f8] sm:$0xf]
  %v2410 = vld [vmem:[%s27 + $0x1fc] sm:$0xf]
  %v2411 = vld [vmem:[%s27 + $0x200] sm:$0xf]
  %v2412 = vld [vmem:[%s27 + $0x204] sm:$0xf]
  %v2413 = vld [vmem:[%s27 + $0x208] sm:$0xf]
  %v2414 = vld [vmem:[%s27 + $0x20c] sm:$0xf]
  %v2415 = vld [vmem:[%s27 + $0x210] sm:$0xf]
  %v2416 = vld [vmem:[%s27 + $0x214] sm:$0xf]
  %v2417 = vld [vmem:[%s27 + $0x218] sm:$0xf]
  %v2418 = vld [vmem:[%s27 + $0x21c] sm:$0xf]
  %v2419 = vld [vmem:[%s27 + $0x220] sm:$0xf]
  %v2420 = vld [vmem:[%s27 + $0x224] sm:$0xf]
  %v2421 = vld [vmem:[%s27 + $0x228] sm:$0xf]
  %v2422 = vld [vmem:[%s27 + $0x22c] sm:$0xf]
  %v2423 = vld [vmem:[%s27 + $0x230] sm:$0xf]
  %v2424 = vld [vmem:[%s27 + $0x234] sm:$0xf]
  %v2425 = vld [vmem:[%s27 + $0x238] sm:$0xf]
  %v2426 = vld [vmem:[%s27 + $0x23c] sm:$0xf]
  %v2427 = vld [vmem:[%s27 + $0x240] sm:$0xf]
  %v2428 = vld [vmem:[%s27 + $0x244] sm:$0xf]
  %v2429 = vld [vmem:[%s27 + $0x248] sm:$0xf]
  %v2430 = vld [vmem:[%s27 + $0x24c] sm:$0xf]
  %v2431 = vld [vmem:[%s27 + $0x250] sm:$0xf]
  %v2432 = vld [vmem:[%s27 + $0x254] sm:$0xf]
  %v2433 = vld [vmem:[%s27 + $0x258] sm:$0xf]
  %v2434 = vld [vmem:[%s27 + $0x25c] sm:$0xf]
  %v2435 = vld [vmem:[%s27 + $0x260] sm:$0xf]
  %v2436 = vld [vmem:[%s27 + $0x264] sm:$0xf]
  %v2437 = vld [vmem:[%s27 + $0x268] sm:$0xf]
  %v2438 = vld [vmem:[%s27 + $0x26c] sm:$0xf]
  %v2439 = vld [vmem:[%s27 + $0x270] sm:$0xf]
  %v2440 = vld [vmem:[%s27 + $0x274] sm:$0xf]
  %v2441 = vld [vmem:[%s27 + $0x278] sm:$0xf]
  %v2442 = vld [vmem:[%s27 + $0x27c] sm:$0xf]
  %v2443 = vld [vmem:[%s27 + $0x280] sm:$0xf]
  %v2444 = vld [vmem:[%s27 + $0x284] sm:$0xf]
  %v2445 = vld [vmem:[%s27 + $0x288] sm:$0xf]
  %v2446 = vld [vmem:[%s27 + $0x28c] sm:$0xf]
  %v2447 = vld [vmem:[%s27 + $0x290] sm:$0xf]
  %v2448 = vld [vmem:[%s27 + $0x294] sm:$0xf]
  %v2449 = vld [vmem:[%s27 + $0x298] sm:$0xf]
  %v2450 = vld [vmem:[%s27 + $0x29c] sm:$0xf]
  %v2451 = vld [vmem:[%s27 + $0x2a0] sm:$0xf]
  %v2452 = vld [vmem:[%s27 + $0x2a4] sm:$0xf]
  %v2453 = vld [vmem:[%s27 + $0x2a8] sm:$0xf]
  %v2454 = vld [vmem:[%s27 + $0x2ac] sm:$0xf]
  %v2455 = vld [vmem:[%s27 + $0x2b0] sm:$0xf]
  %v2456 = vld [vmem:[%s27 + $0x2b4] sm:$0xf]
  %v2457 = vld [vmem:[%s27 + $0x2b8] sm:$0xf]
  %v2458 = vld [vmem:[%s27 + $0x2bc] sm:$0xf]
  %v2459 = vld [vmem:[%s27 + $0x2c0] sm:$0xf]
  %v2460 = vld [vmem:[%s27 + $0x2c4] sm:$0xf]
  %v2461 = vld [vmem:[%s27 + $0x2c8] sm:$0xf]
  %v2462 = vld [vmem:[%s27 + $0x2cc] sm:$0xf]
  %v2463 = vld [vmem:[%s27 + $0x2d0] sm:$0xf]
  %v2464 = vld [vmem:[%s27 + $0x2d4] sm:$0xf]
  %v2465 = vld [vmem:[%s27 + $0x2d8] sm:$0xf]
  %v2466 = vld [vmem:[%s27 + $0x2dc] sm:$0xf]
  %v2467 = vld [vmem:[%s27 + $0x2e0] sm:$0xf]
  %v2468 = vld [vmem:[%s27 + $0x2e4] sm:$0xf]
  %v2469 = vld [vmem:[%s27 + $0x2e8] sm:$0xf]
  %v2470 = vld [vmem:[%s27 + $0x2ec] sm:$0xf]
  %v2471 = vld [vmem:[%s27 + $0x2f0] sm:$0xf]
  %v2472 = vld [vmem:[%s27 + $0x2f4] sm:$0xf]
  %v2473 = vld [vmem:[%s27 + $0x2f8] sm:$0xf]
  %v2474 = vld [vmem:[%s27 + $0x2fc] sm:$0xf]
  %v2475 = vld [vmem:[%s27 + $0x300] sm:$0xf]
  %v2476 = vld [vmem:[%s27 + $0x304] sm:$0xf]
  %v2477 = vld [vmem:[%s27 + $0x308] sm:$0xf]
  %v2478 = vld [vmem:[%s27 + $0x30c] sm:$0xf]
  %v2479 = vld [vmem:[%s27 + $0x310] sm:$0xf]
  %v2480 = vld [vmem:[%s27 + $0x314] sm:$0xf]
  %v2481 = vld [vmem:[%s27 + $0x318] sm:$0xf]
  %v2482 = vld [vmem:[%s27 + $0x31c] sm:$0xf]
  %v2483 = vld [vmem:[%s27 + $0x320] sm:$0xf]
  %v2484 = vld [vmem:[%s27 + $0x324] sm:$0xf]
  %v2485 = vld [vmem:[%s27 + $0x328] sm:$0xf]
  %v2486 = vld [vmem:[%s27 + $0x32c] sm:$0xf]
  %v2487 = vld [vmem:[%s27 + $0x330] sm:$0xf]
  %v2488 = vld [vmem:[%s27 + $0x334] sm:$0xf]
  %v2489 = vld [vmem:[%s27 + $0x338] sm:$0xf]
  %v2490 = vld [vmem:[%s27 + $0x33c] sm:$0xf]
  %v2491 = vld [vmem:[%s27 + $0x340] sm:$0xf]
  %v2492 = vld [vmem:[%s27 + $0x344] sm:$0xf]
  %v2493 = vld [vmem:[%s27 + $0x348] sm:$0xf]
  %v2494 = vld [vmem:[%s27 + $0x34c] sm:$0xf]
  %v2495 = vld [vmem:[%s27 + $0x350] sm:$0xf]
  %v2496 = vld [vmem:[%s27 + $0x354] sm:$0xf]
  %v2497 = vld [vmem:[%s27 + $0x358] sm:$0xf]
  %v2498 = vld [vmem:[%s27 + $0x35c] sm:$0xf]
  %v2499 = vld [vmem:[%s27 + $0x360] sm:$0xf]
  %v2500 = vld [vmem:[%s27 + $0x364] sm:$0xf]
  %v2501 = vld [vmem:[%s27 + $0x368] sm:$0xf]
  %v2502 = vld [vmem:[%s27 + $0x36c] sm:$0xf]
  %v2503 = vld [vmem:[%s27 + $0x370] sm:$0xf]
  %v2504 = vld [vmem:[%s27 + $0x374] sm:$0xf]
  %v2505 = vld [vmem:[%s27 + $0x378] sm:$0xf]
  %v2506 = vld [vmem:[%s27 + $0x37c] sm:$0xf]
  %v2507 = vld [vmem:[%s27 + $0x380] sm:$0xf]
  %v2508 = vld [vmem:[%s27 + $0x384] sm:$0xf]
  %v2509 = vld [vmem:[%s27 + $0x388] sm:$0xf]
  %v2510 = vld [vmem:[%s27 + $0x38c] sm:$0xf]
  %v2511 = vld [vmem:[%s27 + $0x390] sm:$0xf]
  %v2512 = vld [vmem:[%s27 + $0x394] sm:$0xf]
  %v2513 = vld [vmem:[%s27 + $0x398] sm:$0xf]
  %v2514 = vld [vmem:[%s27 + $0x39c] sm:$0xf]
  %v2515 = vld [vmem:[%s27 + $0x3a0] sm:$0xf]
  %v2516 = vld [vmem:[%s27 + $0x3a4] sm:$0xf]
  %v2517 = vld [vmem:[%s27 + $0x3a8] sm:$0xf]
  %v2518 = vld [vmem:[%s27 + $0x3ac] sm:$0xf]
  %v2519 = vld [vmem:[%s27 + $0x3b0] sm:$0xf]
  %v2520 = vld [vmem:[%s27 + $0x3b4] sm:$0xf]
  %v2521 = vld [vmem:[%s27 + $0x3b8] sm:$0xf]
  %v2522 = vld [vmem:[%s27 + $0x3bc] sm:$0xf]
  %v2523 = vld [vmem:[%s27 + $0x3c0] sm:$0xf]
  %v2524 = vld [vmem:[%s27 + $0x3c4] sm:$0xf]
  %v2525 = vld [vmem:[%s27 + $0x3c8] sm:$0xf]
  %v2526 = vld [vmem:[%s27 + $0x3cc] sm:$0xf]
  %v2527 = vld [vmem:[%s27 + $0x3d0] sm:$0xf]
  %v2528 = vld [vmem:[%s27 + $0x3d4] sm:$0xf]
  %v2529 = vld [vmem:[%s27 + $0x3d8] sm:$0xf]
  %v2530 = vld [vmem:[%s27 + $0x3dc] sm:$0xf]
  %v2531 = vld [vmem:[%s27 + $0x3e0] sm:$0xf]
  %v2532 = vld [vmem:[%s27 + $0x3e4] sm:$0xf]
  %v2533 = vld [vmem:[%s27 + $0x3e8] sm:$0xf]
  %v2534 = vld [vmem:[%s27 + $0x3ec] sm:$0xf]
  %v2535 = vld [vmem:[%s27 + $0x3f0] sm:$0xf]
  %v2536 = vld [vmem:[%s27 + $0x3f4] sm:$0xf]
  %v2537 = vld [vmem:[%s27 + $0x3f8] sm:$0xf]
  %v2538 = vld [vmem:[%s27 + $0x3fc] sm:$0xf]
  %v2539 = vld [vmem:[%s29] sm:$0x1]
  %v2541 = vlaneseq
  %v2542 = vshrl.u32 %v2541, 7
  %v2543 = vsub.s32 0, %v2542
  %v2544 = vrot.slane %v2539, %v2543
  %v2802 = vunpack.c.l.b16 %v2283
  %v2803 = vunpack.c.l.b16 %v2284
  %v2804 = vunpack.c.l.b16 %v2285
  %v2805 = vunpack.c.l.b16 %v2286
  %v2806 = vunpack.c.l.b16 %v2287
  %v2807 = vunpack.c.l.b16 %v2288
  %v2808 = vunpack.c.l.b16 %v2289
  %v2809 = vunpack.c.l.b16 %v2290
  %v2810 = vunpack.c.l.b16 %v2291
  %v2811 = vunpack.c.l.b16 %v2292
  %v2812 = vunpack.c.l.b16 %v2293
  %v2813 = vunpack.c.l.b16 %v2294
  %v2814 = vunpack.c.l.b16 %v2295
  %v2815 = vunpack.c.l.b16 %v2296
  %v2816 = vunpack.c.l.b16 %v2297
  %v2817 = vunpack.c.l.b16 %v2298
  %v2818 = vunpack.c.l.b16 %v2299
  %v2819 = vunpack.c.l.b16 %v2300
  %v2820 = vunpack.c.l.b16 %v2301
  %v2821 = vunpack.c.l.b16 %v2302
  %v2822 = vunpack.c.l.b16 %v2303
  %v2823 = vunpack.c.l.b16 %v2304
  %v2824 = vunpack.c.l.b16 %v2305
  %v2825 = vunpack.c.l.b16 %v2306
  %v2826 = vunpack.c.l.b16 %v2307
  %v2827 = vunpack.c.l.b16 %v2308
  %v2828 = vunpack.c.l.b16 %v2309
  %v2829 = vunpack.c.l.b16 %v2310
  %v2830 = vunpack.c.l.b16 %v2311
  %v2831 = vunpack.c.l.b16 %v2312
  %v2832 = vunpack.c.l.b16 %v2313
  %v2833 = vunpack.c.l.b16 %v2314
  %v2834 = vunpack.c.l.b16 %v2315
  %v2835 = vunpack.c.l.b16 %v2316
  %v2836 = vunpack.c.l.b16 %v2317
  %v2837 = vunpack.c.l.b16 %v2318
  %v2838 = vunpack.c.l.b16 %v2319
  %v2839 = vunpack.c.l.b16 %v2320
  %v2840 = vunpack.c.l.b16 %v2321
  %v2841 = vunpack.c.l.b16 %v2322
  %v2842 = vunpack.c.l.b16 %v2323
  %v2843 = vunpack.c.l.b16 %v2324
  %v2844 = vunpack.c.l.b16 %v2325
  %v2845 = vunpack.c.l.b16 %v2326
  %v2846 = vunpack.c.l.b16 %v2327
  %v2847 = vunpack.c.l.b16 %v2328
  %v2848 = vunpack.c.l.b16 %v2329
  %v2849 = vunpack.c.l.b16 %v2330
  %v2850 = vunpack.c.l.b16 %v2331
  %v2851 = vunpack.c.l.b16 %v2332
  %v2852 = vunpack.c.l.b16 %v2333
  %v2853 = vunpack.c.l.b16 %v2334
  %v2854 = vunpack.c.l.b16 %v2335
  %v2855 = vunpack.c.l.b16 %v2336
  %v2856 = vunpack.c.l.b16 %v2337
  %v2857 = vunpack.c.l.b16 %v2338
  %v2858 = vunpack.c.l.b16 %v2339
  %v2859 = vunpack.c.l.b16 %v2340
  %v2860 = vunpack.c.l.b16 %v2341
  %v2861 = vunpack.c.l.b16 %v2342
  %v2862 = vunpack.c.l.b16 %v2343
  %v2863 = vunpack.c.l.b16 %v2344
  %v2864 = vunpack.c.l.b16 %v2345
  %v2865 = vunpack.c.l.b16 %v2346
  %v2866 = vunpack.c.l.b16 %v2347
  %v2867 = vunpack.c.l.b16 %v2348
  %v2868 = vunpack.c.l.b16 %v2349
  %v2869 = vunpack.c.l.b16 %v2350
  %v2870 = vunpack.c.l.b16 %v2351
  %v2871 = vunpack.c.l.b16 %v2352
  %v2872 = vunpack.c.l.b16 %v2353
  %v2873 = vunpack.c.l.b16 %v2354
  %v2874 = vunpack.c.l.b16 %v2355
  %v2875 = vunpack.c.l.b16 %v2356
  %v2876 = vunpack.c.l.b16 %v2357
  %v2877 = vunpack.c.l.b16 %v2358
  %v2878 = vunpack.c.l.b16 %v2359
  %v2879 = vunpack.c.l.b16 %v2360
  %v2880 = vunpack.c.l.b16 %v2361
  %v2881 = vunpack.c.l.b16 %v2362
  %v2882 = vunpack.c.l.b16 %v2363
  %v2883 = vunpack.c.l.b16 %v2364
  %v2884 = vunpack.c.l.b16 %v2365
  %v2885 = vunpack.c.l.b16 %v2366
  %v2886 = vunpack.c.l.b16 %v2367
  %v2887 = vunpack.c.l.b16 %v2368
  %v2888 = vunpack.c.l.b16 %v2369
  %v2889 = vunpack.c.l.b16 %v2370
  %v2890 = vunpack.c.l.b16 %v2371
  %v2891 = vunpack.c.l.b16 %v2372
  %v2892 = vunpack.c.l.b16 %v2373
  %v2893 = vunpack.c.l.b16 %v2374
  %v2894 = vunpack.c.l.b16 %v2375
  %v2895 = vunpack.c.l.b16 %v2376
  %v2896 = vunpack.c.l.b16 %v2377
  %v2897 = vunpack.c.l.b16 %v2378
  %v2898 = vunpack.c.l.b16 %v2379
  %v2899 = vunpack.c.l.b16 %v2380
  %v2900 = vunpack.c.l.b16 %v2381
  %v2901 = vunpack.c.l.b16 %v2382
  %v2902 = vunpack.c.l.b16 %v2383
  %v2903 = vunpack.c.l.b16 %v2384
  %v2904 = vunpack.c.l.b16 %v2385
  %v2905 = vunpack.c.l.b16 %v2386
  %v2906 = vunpack.c.l.b16 %v2387
  %v2907 = vunpack.c.l.b16 %v2388
  %v2908 = vunpack.c.l.b16 %v2389
  %v2909 = vunpack.c.l.b16 %v2390
  %v2910 = vunpack.c.l.b16 %v2391
  %v2911 = vunpack.c.l.b16 %v2392
  %v2912 = vunpack.c.l.b16 %v2393
  %v2913 = vunpack.c.l.b16 %v2394
  %v2914 = vunpack.c.l.b16 %v2395
  %v2915 = vunpack.c.l.b16 %v2396
  %v2916 = vunpack.c.l.b16 %v2397
  %v2917 = vunpack.c.l.b16 %v2398
  %v2918 = vunpack.c.l.b16 %v2399
  %v2919 = vunpack.c.l.b16 %v2400
  %v2920 = vunpack.c.l.b16 %v2401
  %v2921 = vunpack.c.l.b16 %v2402
  %v2922 = vunpack.c.l.b16 %v2403
  %v2923 = vunpack.c.l.b16 %v2404
  %v2924 = vunpack.c.l.b16 %v2405
  %v2925 = vunpack.c.l.b16 %v2406
  %v2926 = vunpack.c.l.b16 %v2407
  %v2927 = vunpack.c.l.b16 %v2408
  %v2928 = vunpack.c.l.b16 %v2409
  %v2929 = vunpack.c.l.b16 %v2410
  %v2930 = vunpack.c.l.b16 %v2411
  %v2931 = vunpack.c.l.b16 %v2412
  %v2932 = vunpack.c.l.b16 %v2413
  %v2933 = vunpack.c.l.b16 %v2414
  %v2934 = vunpack.c.l.b16 %v2415
  %v2935 = vunpack.c.l.b16 %v2416
  %v2936 = vunpack.c.l.b16 %v2417
  %v2937 = vunpack.c.l.b16 %v2418
  %v2938 = vunpack.c.l.b16 %v2419
  %v2939 = vunpack.c.l.b16 %v2420
  %v2940 = vunpack.c.l.b16 %v2421
  %v2941 = vunpack.c.l.b16 %v2422
  %v2942 = vunpack.c.l.b16 %v2423
  %v2943 = vunpack.c.l.b16 %v2424
  %v2944 = vunpack.c.l.b16 %v2425
  %v2945 = vunpack.c.l.b16 %v2426
  %v2946 = vunpack.c.l.b16 %v2427
  %v2947 = vunpack.c.l.b16 %v2428
  %v2948 = vunpack.c.l.b16 %v2429
  %v2949 = vunpack.c.l.b16 %v2430
  %v2950 = vunpack.c.l.b16 %v2431
  %v2951 = vunpack.c.l.b16 %v2432
  %v2952 = vunpack.c.l.b16 %v2433
  %v2953 = vunpack.c.l.b16 %v2434
  %v2954 = vunpack.c.l.b16 %v2435
  %v2955 = vunpack.c.l.b16 %v2436
  %v2956 = vunpack.c.l.b16 %v2437
  %v2957 = vunpack.c.l.b16 %v2438
  %v2958 = vunpack.c.l.b16 %v2439
  %v2959 = vunpack.c.l.b16 %v2440
  %v2960 = vunpack.c.l.b16 %v2441
  %v2961 = vunpack.c.l.b16 %v2442
  %v2962 = vunpack.c.l.b16 %v2443
  %v2963 = vunpack.c.l.b16 %v2444
  %v2964 = vunpack.c.l.b16 %v2445
  %v2965 = vunpack.c.l.b16 %v2446
  %v2966 = vunpack.c.l.b16 %v2447
  %v2967 = vunpack.c.l.b16 %v2448
  %v2968 = vunpack.c.l.b16 %v2449
  %v2969 = vunpack.c.l.b16 %v2450
  %v2970 = vunpack.c.l.b16 %v2451
  %v2971 = vunpack.c.l.b16 %v2452
  %v2972 = vunpack.c.l.b16 %v2453
  %v2973 = vunpack.c.l.b16 %v2454
  %v2974 = vunpack.c.l.b16 %v2455
  %v2975 = vunpack.c.l.b16 %v2456
  %v2976 = vunpack.c.l.b16 %v2457
  %v2977 = vunpack.c.l.b16 %v2458
  %v2978 = vunpack.c.l.b16 %v2459
  %v2979 = vunpack.c.l.b16 %v2460
  %v2980 = vunpack.c.l.b16 %v2461
  %v2981 = vunpack.c.l.b16 %v2462
  %v2982 = vunpack.c.l.b16 %v2463
  %v2983 = vunpack.c.l.b16 %v2464
  %v2984 = vunpack.c.l.b16 %v2465
  %v2985 = vunpack.c.l.b16 %v2466
  %v2986 = vunpack.c.l.b16 %v2467
  %v2987 = vunpack.c.l.b16 %v2468
  %v2988 = vunpack.c.l.b16 %v2469
  %v2989 = vunpack.c.l.b16 %v2470
  %v2990 = vunpack.c.l.b16 %v2471
  %v2991 = vunpack.c.l.b16 %v2472
  %v2992 = vunpack.c.l.b16 %v2473
  %v2993 = vunpack.c.l.b16 %v2474
  %v2994 = vunpack.c.l.b16 %v2475
  %v2995 = vunpack.c.l.b16 %v2476
  %v2996 = vunpack.c.l.b16 %v2477
  %v2997 = vunpack.c.l.b16 %v2478
  %v2998 = vunpack.c.l.b16 %v2479
  %v2999 = vunpack.c.l.b16 %v2480
  %v3000 = vunpack.c.l.b16 %v2481
  %v3001 = vunpack.c.l.b16 %v2482
  %v3002 = vunpack.c.l.b16 %v2483
  %v3003 = vunpack.c.l.b16 %v2484
  %v3004 = vunpack.c.l.b16 %v2485
  %v3005 = vunpack.c.l.b16 %v2486
  %v3006 = vunpack.c.l.b16 %v2487
  %v3007 = vunpack.c.l.b16 %v2488
  %v3008 = vunpack.c.l.b16 %v2489
  %v3009 = vunpack.c.l.b16 %v2490
  %v3010 = vunpack.c.l.b16 %v2491
  %v3011 = vunpack.c.l.b16 %v2492
  %v3012 = vunpack.c.l.b16 %v2493
  %v3013 = vunpack.c.l.b16 %v2494
  %v3014 = vunpack.c.l.b16 %v2495
  %v3015 = vunpack.c.l.b16 %v2496
  %v3016 = vunpack.c.l.b16 %v2497
  %v3017 = vunpack.c.l.b16 %v2498
  %v3018 = vunpack.c.l.b16 %v2499
  %v3019 = vunpack.c.l.b16 %v2500
  %v3020 = vunpack.c.l.b16 %v2501
  %v3021 = vunpack.c.l.b16 %v2502
  %v3022 = vunpack.c.l.b16 %v2503
  %v3023 = vunpack.c.l.b16 %v2504
  %v3024 = vunpack.c.l.b16 %v2505
  %v3025 = vunpack.c.l.b16 %v2506
  %v3026 = vunpack.c.l.b16 %v2507
  %v3027 = vunpack.c.l.b16 %v2508
  %v3028 = vunpack.c.l.b16 %v2509
  %v3029 = vunpack.c.l.b16 %v2510
  %v3030 = vunpack.c.l.b16 %v2511
  %v3031 = vunpack.c.l.b16 %v2512
  %v3032 = vunpack.c.l.b16 %v2513
  %v3033 = vunpack.c.l.b16 %v2514
  %v3034 = vunpack.c.l.b16 %v2515
  %v3035 = vunpack.c.l.b16 %v2516
  %v3036 = vunpack.c.l.b16 %v2517
  %v3037 = vunpack.c.l.b16 %v2518
  %v3038 = vunpack.c.l.b16 %v2519
  %v3039 = vunpack.c.l.b16 %v2520
  %v3040 = vunpack.c.l.b16 %v2521
  %v3041 = vunpack.c.l.b16 %v2522
  %v3042 = vunpack.c.l.b16 %v2523
  %v3043 = vunpack.c.l.b16 %v2524
  %v3044 = vunpack.c.l.b16 %v2525
  %v3045 = vunpack.c.l.b16 %v2526
  %v3046 = vunpack.c.l.b16 %v2527
  %v3047 = vunpack.c.l.b16 %v2528
  %v3048 = vunpack.c.l.b16 %v2529
  %v3049 = vunpack.c.l.b16 %v2530
  %v3050 = vunpack.c.l.b16 %v2531
  %v3051 = vunpack.c.l.b16 %v2532
  %v3052 = vunpack.c.l.b16 %v2533
  %v3053 = vunpack.c.l.b16 %v2534
  %v3054 = vunpack.c.l.b16 %v2535
  %v3055 = vunpack.c.l.b16 %v2536
  %v3056 = vunpack.c.l.b16 %v2537
  %v3057 = vunpack.c.l.b16 %v2538
  %v3058 = vpack.c.b16 %v2803, %v2802
  %v3059 = vpack.c.b16 %v2805, %v2804
  %v3060 = vpack.c.b16 %v2807, %v2806
  %v3061 = vpack.c.b16 %v2809, %v2808
  %v3062 = vpack.c.b16 %v2811, %v2810
  %v3063 = vpack.c.b16 %v2813, %v2812
  %v3064 = vpack.c.b16 %v2815, %v2814
  %v3065 = vpack.c.b16 %v2817, %v2816
  %v3066 = vpack.c.b16 %v2819, %v2818
  %v3067 = vpack.c.b16 %v2821, %v2820
  %v3068 = vpack.c.b16 %v2823, %v2822
  %v3069 = vpack.c.b16 %v2825, %v2824
  %v3070 = vpack.c.b16 %v2827, %v2826
  %v3071 = vpack.c.b16 %v2829, %v2828
  %v3072 = vpack.c.b16 %v2831, %v2830
  %v3073 = vpack.c.b16 %v2833, %v2832
  %v3074 = vpack.c.b16 %v2835, %v2834
  %v3075 = vpack.c.b16 %v2837, %v2836
  %v3076 = vpack.c.b16 %v2839, %v2838
  %v3077 = vpack.c.b16 %v2841, %v2840
  %v3078 = vpack.c.b16 %v2843, %v2842
  %v3079 = vpack.c.b16 %v2845, %v2844
  %v3080 = vpack.c.b16 %v2847, %v2846
  %v3081 = vpack.c.b16 %v2849, %v2848
  %v3082 = vpack.c.b16 %v2851, %v2850
  %v3083 = vpack.c.b16 %v2853, %v2852
  %v3084 = vpack.c.b16 %v2855, %v2854
  %v3085 = vpack.c.b16 %v2857, %v2856
  %v3086 = vpack.c.b16 %v2859, %v2858
  %v3087 = vpack.c.b16 %v2861, %v2860
  %v3088 = vpack.c.b16 %v2863, %v2862
  %v3089 = vpack.c.b16 %v2865, %v2864
  %v3090 = vpack.c.b16 %v2867, %v2866
  %v3091 = vpack.c.b16 %v2869, %v2868
  %v3092 = vpack.c.b16 %v2871, %v2870
  %v3093 = vpack.c.b16 %v2873, %v2872
  %v3094 = vpack.c.b16 %v2875, %v2874
  %v3095 = vpack.c.b16 %v2877, %v2876
  %v3096 = vpack.c.b16 %v2879, %v2878
  %v3097 = vpack.c.b16 %v2881, %v2880
  %v3098 = vpack.c.b16 %v2883, %v2882
  %v3099 = vpack.c.b16 %v2885, %v2884
  %v3100 = vpack.c.b16 %v2887, %v2886
  %v3101 = vpack.c.b16 %v2889, %v2888
  %v3102 = vpack.c.b16 %v2891, %v2890
  %v3103 = vpack.c.b16 %v2893, %v2892
  %v3104 = vpack.c.b16 %v2895, %v2894
  %v3105 = vpack.c.b16 %v2897, %v2896
  %v3106 = vpack.c.b16 %v2899, %v2898
  %v3107 = vpack.c.b16 %v2901, %v2900
  %v3108 = vpack.c.b16 %v2903, %v2902
  %v3109 = vpack.c.b16 %v2905, %v2904
  %v3110 = vpack.c.b16 %v2907, %v2906
  %v3111 = vpack.c.b16 %v2909, %v2908
  %v3112 = vpack.c.b16 %v2911, %v2910
  %v3113 = vpack.c.b16 %v2913, %v2912
  %v3114 = vpack.c.b16 %v2915, %v2914
  %v3115 = vpack.c.b16 %v2917, %v2916
  %v3116 = vpack.c.b16 %v2919, %v2918
  %v3117 = vpack.c.b16 %v2921, %v2920
  %v3118 = vpack.c.b16 %v2923, %v2922
  %v3119 = vpack.c.b16 %v2925, %v2924
  %v3120 = vpack.c.b16 %v2927, %v2926
  %v3121 = vpack.c.b16 %v2929, %v2928
  %v3122 = vpack.c.b16 %v2931, %v2930
  %v3123 = vpack.c.b16 %v2933, %v2932
  %v3124 = vpack.c.b16 %v2935, %v2934
  %v3125 = vpack.c.b16 %v2937, %v2936
  %v3126 = vpack.c.b16 %v2939, %v2938
  %v3127 = vpack.c.b16 %v2941, %v2940
  %v3128 = vpack.c.b16 %v2943, %v2942
  %v3129 = vpack.c.b16 %v2945, %v2944
  %v3130 = vpack.c.b16 %v2947, %v2946
  %v3131 = vpack.c.b16 %v2949, %v2948
  %v3132 = vpack.c.b16 %v2951, %v2950
  %v3133 = vpack.c.b16 %v2953, %v2952
  %v3134 = vpack.c.b16 %v2955, %v2954
  %v3135 = vpack.c.b16 %v2957, %v2956
  %v3136 = vpack.c.b16 %v2959, %v2958
  %v3137 = vpack.c.b16 %v2961, %v2960
  %v3138 = vpack.c.b16 %v2963, %v2962
  %v3139 = vpack.c.b16 %v2965, %v2964
  %v3140 = vpack.c.b16 %v2967, %v2966
  %v3141 = vpack.c.b16 %v2969, %v2968
  %v3142 = vpack.c.b16 %v2971, %v2970
  %v3143 = vpack.c.b16 %v2973, %v2972
  %v3144 = vpack.c.b16 %v2975, %v2974
  %v3145 = vpack.c.b16 %v2977, %v2976
  %v3146 = vpack.c.b16 %v2979, %v2978
  %v3147 = vpack.c.b16 %v2981, %v2980
  %v3148 = vpack.c.b16 %v2983, %v2982
  %v3149 = vpack.c.b16 %v2985, %v2984
  %v3150 = vpack.c.b16 %v2987, %v2986
  %v3151 = vpack.c.b16 %v2989, %v2988
  %v3152 = vpack.c.b16 %v2991, %v2990
  %v3153 = vpack.c.b16 %v2993, %v2992
  %v3154 = vpack.c.b16 %v2995, %v2994
  %v3155 = vpack.c.b16 %v2997, %v2996
  %v3156 = vpack.c.b16 %v2999, %v2998
  %v3157 = vpack.c.b16 %v3001, %v3000
  %v3158 = vpack.c.b16 %v3003, %v3002
  %v3159 = vpack.c.b16 %v3005, %v3004
  %v3160 = vpack.c.b16 %v3007, %v3006
  %v3161 = vpack.c.b16 %v3009, %v3008
  %v3162 = vpack.c.b16 %v3011, %v3010
  %v3163 = vpack.c.b16 %v3013, %v3012
  %v3164 = vpack.c.b16 %v3015, %v3014
  %v3165 = vpack.c.b16 %v3017, %v3016
  %v3166 = vpack.c.b16 %v3019, %v3018
  %v3167 = vpack.c.b16 %v3021, %v3020
  %v3168 = vpack.c.b16 %v3023, %v3022
  %v3169 = vpack.c.b16 %v3025, %v3024
  %v3170 = vpack.c.b16 %v3027, %v3026
  %v3171 = vpack.c.b16 %v3029, %v3028
  %v3172 = vpack.c.b16 %v3031, %v3030
  %v3173 = vpack.c.b16 %v3033, %v3032
  %v3174 = vpack.c.b16 %v3035, %v3034
  %v3175 = vpack.c.b16 %v3037, %v3036
  %v3176 = vpack.c.b16 %v3039, %v3038
  %v3177 = vpack.c.b16 %v3041, %v3040
  %v3178 = vpack.c.b16 %v3043, %v3042
  %v3179 = vpack.c.b16 %v3045, %v3044
  %v3180 = vpack.c.b16 %v3047, %v3046
  %v3181 = vpack.c.b16 %v3049, %v3048
  %v3182 = vpack.c.b16 %v3051, %v3050
  %v3183 = vpack.c.b16 %v3053, %v3052
  %v3184 = vpack.c.b16 %v3055, %v3054
  %v3185 = vpack.c.b16 %v3057, %v3056
  %3314 = vmatprep.subr.bf16.mxu0 0
  %3315 = vmatpush1.bf16.msra.mxu0 %v3065
  %3316 = vmatprep.subr.bf16.mxu0 0
  %3317 = vmatpush1.bf16.msra.mxu0 %v3064
  %3318 = vmatprep.subr.bf16.mxu0 0
  %3319 = vmatpush1.bf16.msra.mxu0 %v3063
  %3320 = vmatprep.subr.bf16.mxu0 0
  %3321 = vmatpush1.bf16.msra.mxu0 %v3062
  %3322 = vmatprep.subr.bf16.mxu0 0
  %3323 = vmatpush1.bf16.msra.mxu0 %v3061
  %3324 = vmatprep.subr.bf16.mxu0 0
  %3325 = vmatpush1.bf16.msra.mxu0 %v3060
  %3326 = vmatprep.subr.bf16.mxu0 0
  %3327 = vmatpush1.bf16.msra.mxu0 %v3059
  %3328 = vmatprep.subr.bf16.mxu0 0
  %3329 = vmatpush1.bf16.msra.mxu0 %v3058
  %3330 = vmatprep.subr.bf16.mxu0 0
  %3331 = vmatpush2.bf16.msra.mxu0 %v3073
  %3332 = vmatprep.subr.bf16.mxu0 0
  %3333 = vmatpush2.bf16.msra.mxu0 %v3072
  %3334 = vmatprep.subr.bf16.mxu0 0
  %3335 = vmatpush2.bf16.msra.mxu0 %v3071
  %3336 = vmatprep.subr.bf16.mxu0 0
  %3337 = vmatpush2.bf16.msra.mxu0 %v3070
  %3338 = vmatprep.subr.bf16.mxu0 0
  %3339 = vmatpush2.bf16.msra.mxu0 %v3069
  %3340 = vmatprep.subr.bf16.mxu0 0
  %3341 = vmatpush2.bf16.msra.mxu0 %v3068
  %3342 = vmatprep.subr.bf16.mxu0 0
  %3343 = vmatpush2.bf16.msra.mxu0 %v3067
  %3344 = vmatprep.subr.bf16.mxu0 0
  %3345 = vmatpush2.bf16.msra.mxu0 %v3066
  %3346 = vmatprep.mubr.bf16.mxu0 %v2268
  %3347 = vmatmul.mubr.bf16.gmra.mxu0 %v2267
  %v3348 = vpop.f32.mrf.mxu0
  %v3349 = vadd.f32 %v2544, %v3348
  %v3350 = vpop.f32.mrf.mxu0
  %v3351 = vpop.f32.mrf.mxu0
  %v3352 = vadd.f32 %v2544, %v3351
  %v3353 = vpop.f32.mrf.mxu0
  %3354 = vdwg.mxu0
  %3355 = vmatprep.subr.bf16.mxu0 0
  %3356 = vmatpush1.bf16.msra.mxu0 %v3081
  %3357 = vmatprep.subr.bf16.mxu0 0
  %3358 = vmatpush1.bf16.msra.mxu0 %v3080
  %3359 = vmatprep.subr.bf16.mxu0 0
  %3360 = vmatpush1.bf16.msra.mxu0 %v3079
  %3361 = vmatprep.subr.bf16.mxu0 0
  %3362 = vmatpush1.bf16.msra.mxu0 %v3078
  %3363 = vmatprep.subr.bf16.mxu0 0
  %3364 = vmatpush1.bf16.msra.mxu0 %v3077
  %3365 = vmatprep.subr.bf16.mxu0 0
  %3366 = vmatpush1.bf16.msra.mxu0 %v3076
  %3367 = vmatprep.subr.bf16.mxu0 0
  %3368 = vmatpush1.bf16.msra.mxu0 %v3075
  %3369 = vmatprep.subr.bf16.mxu0 0
  %3370 = vmatpush1.bf16.msra.mxu0 %v3074
  %3371 = vmatprep.subr.bf16.mxu0 0
  %3372 = vmatpush2.bf16.msra.mxu0 %v3089
  %3373 = vmatprep.subr.bf16.mxu0 0
  %3374 = vmatpush2.bf16.msra.mxu0 %v3088
  %3375 = vmatprep.subr.bf16.mxu0 0
  %3376 = vmatpush2.bf16.msra.mxu0 %v3087
  %3377 = vmatprep.subr.bf16.mxu0 0
  %3378 = vmatpush2.bf16.msra.mxu0 %v3086
  %3379 = vmatprep.subr.bf16.mxu0 0
  %3380 = vmatpush2.bf16.msra.mxu0 %v3085
  %3381 = vmatprep.subr.bf16.mxu0 0
  %3382 = vmatpush2.bf16.msra.mxu0 %v3084
  %3383 = vmatprep.subr.bf16.mxu0 0
  %3384 = vmatpush2.bf16.msra.mxu0 %v3083
  %3385 = vmatprep.subr.bf16.mxu0 0
  %3386 = vmatpush2.bf16.msra.mxu0 %v3082
  %3387 = vmatprep.mubr.bf16.mxu0 %v2270
  %3388 = vmatmul.mubr.bf16.gmra.mxu0 %v2269
  %v3389 = vpop.f32.mrf.mxu0
  %v3390 = vadd.f32 %v3349, %v3389
  %v3391 = vpop.f32.mrf.mxu0
  %v3392 = vpop.f32.mrf.mxu0
  %v3393 = vadd.f32 %v3352, %v3392
  %v3394 = vpop.f32.mrf.mxu0
  %3395 = vdwg.mxu0
  %3396 = vmatprep.subr.bf16.mxu0 0
  %3397 = vmatpush1.bf16.msra.mxu0 %v3097
  %3398 = vmatprep.subr.bf16.mxu0 0
  %3399 = vmatpush1.bf16.msra.mxu0 %v3096
  %3400 = vmatprep.subr.bf16.mxu0 0
  %3401 = vmatpush1.bf16.msra.mxu0 %v3095
  %3402 = vmatprep.subr.bf16.mxu0 0
  %3403 = vmatpush1.bf16.msra.mxu0 %v3094
  %3404 = vmatprep.subr.bf16.mxu0 0
  %3405 = vmatpush1.bf16.msra.mxu0 %v3093
  %3406 = vmatprep.subr.bf16.mxu0 0
  %3407 = vmatpush1.bf16.msra.mxu0 %v3092
  %3408 = vmatprep.subr.bf16.mxu0 0
  %3409 = vmatpush1.bf16.msra.mxu0 %v3091
  %3410 = vmatprep.subr.bf16.mxu0 0
  %3411 = vmatpush1.bf16.msra.mxu0 %v3090
  %3412 = vmatprep.subr.bf16.mxu0 0
  %3413 = vmatpush2.bf16.msra.mxu0 %v3105
  %3414 = vmatprep.subr.bf16.mxu0 0
  %3415 = vmatpush2.bf16.msra.mxu0 %v3104
  %3416 = vmatprep.subr.bf16.mxu0 0
  %3417 = vmatpush2.bf16.msra.mxu0 %v3103
  %3418 = vmatprep.subr.bf16.mxu0 0
  %3419 = vmatpush2.bf16.msra.mxu0 %v3102
  %3420 = vmatprep.subr.bf16.mxu0 0
  %3421 = vmatpush2.bf16.msra.mxu0 %v3101
  %3422 = vmatprep.subr.bf16.mxu0 0
  %3423 = vmatpush2.bf16.msra.mxu0 %v3100
  %3424 = vmatprep.subr.bf16.mxu0 0
  %3425 = vmatpush2.bf16.msra.mxu0 %v3099
  %3426 = vmatprep.subr.bf16.mxu0 0
  %3427 = vmatpush2.bf16.msra.mxu0 %v3098
  %3428 = vmatprep.mubr.bf16.mxu0 %v2272
  %3429 = vmatmul.mubr.bf16.gmra.mxu0 %v2271
  %v3430 = vpop.f32.mrf.mxu0
  %v3431 = vadd.f32 %v3390, %v3430
  %v3432 = vpop.f32.mrf.mxu0
  %v3433 = vpop.f32.mrf.mxu0
  %v3434 = vadd.f32 %v3393, %v3433
  %v3435 = vpop.f32.mrf.mxu0
  %3436 = vdwg.mxu0
  %3437 = vmatprep.subr.bf16.mxu0 0
  %3438 = vmatpush1.bf16.msra.mxu0 %v3113
  %3439 = vmatprep.subr.bf16.mxu0 0
  %3440 = vmatpush1.bf16.msra.mxu0 %v3112
  %3441 = vmatprep.subr.bf16.mxu0 0
  %3442 = vmatpush1.bf16.msra.mxu0 %v3111
  %3443 = vmatprep.subr.bf16.mxu0 0
  %3444 = vmatpush1.bf16.msra.mxu0 %v3110
  %3445 = vmatprep.subr.bf16.mxu0 0
  %3446 = vmatpush1.bf16.msra.mxu0 %v3109
  %3447 = vmatprep.subr.bf16.mxu0 0
  %3448 = vmatpush1.bf16.msra.mxu0 %v3108
  %3449 = vmatprep.subr.bf16.mxu0 0
  %3450 = vmatpush1.bf16.msra.mxu0 %v3107
  %3451 = vmatprep.subr.bf16.mxu0 0
  %3452 = vmatpush1.bf16.msra.mxu0 %v3106
  %3453 = vmatprep.subr.bf16.mxu0 0
  %3454 = vmatpush2.bf16.msra.mxu0 %v3121
  %3455 = vmatprep.subr.bf16.mxu0 0
  %3456 = vmatpush2.bf16.msra.mxu0 %v3120
  %3457 = vmatprep.subr.bf16.mxu0 0
  %3458 = vmatpush2.bf16.msra.mxu0 %v3119
  %3459 = vmatprep.subr.bf16.mxu0 0
  %3460 = vmatpush2.bf16.msra.mxu0 %v3118
  %3461 = vmatprep.subr.bf16.mxu0 0
  %3462 = vmatpush2.bf16.msra.mxu0 %v3117
  %3463 = vmatprep.subr.bf16.mxu0 0
  %3464 = vmatpush2.bf16.msra.mxu0 %v3116
  %3465 = vmatprep.subr.bf16.mxu0 0
  %3466 = vmatpush2.bf16.msra.mxu0 %v3115
  %3467 = vmatprep.subr.bf16.mxu0 0
  %3468 = vmatpush2.bf16.msra.mxu0 %v3114
  %3469 = vmatprep.mubr.bf16.mxu0 %v2274
  %3470 = vmatmul.mubr.bf16.gmra.mxu0 %v2273
  %v3471 = vpop.f32.mrf.mxu0
  %v3472 = vadd.f32 %v3431, %v3471
  %v3473 = vpop.f32.mrf.mxu0
  %v3474 = vpop.f32.mrf.mxu0
  %v3475 = vadd.f32 %v3434, %v3474
  %v3476 = vpop.f32.mrf.mxu0
  %3477 = vdwg.mxu0
  %3478 = vmatprep.subr.bf16.mxu0 0
  %3479 = vmatpush1.bf16.msra.mxu0 %v3129
  %3480 = vmatprep.subr.bf16.mxu0 0
  %3481 = vmatpush1.bf16.msra.mxu0 %v3128
  %3482 = vmatprep.subr.bf16.mxu0 0
  %3483 = vmatpush1.bf16.msra.mxu0 %v3127
  %3484 = vmatprep.subr.bf16.mxu0 0
  %3485 = vmatpush1.bf16.msra.mxu0 %v3126
  %3486 = vmatprep.subr.bf16.mxu0 0
  %3487 = vmatpush1.bf16.msra.mxu0 %v3125
  %3488 = vmatprep.subr.bf16.mxu0 0
  %3489 = vmatpush1.bf16.msra.mxu0 %v3124
  %3490 = vmatprep.subr.bf16.mxu0 0
  %3491 = vmatpush1.bf16.msra.mxu0 %v3123
  %3492 = vmatprep.subr.bf16.mxu0 0
  %3493 = vmatpush1.bf16.msra.mxu0 %v3122
  %3494 = vmatprep.subr.bf16.mxu0 0
  %3495 = vmatpush2.bf16.msra.mxu0 %v3137
  %3496 = vmatprep.subr.bf16.mxu0 0
  %3497 = vmatpush2.bf16.msra.mxu0 %v3136
  %3498 = vmatprep.subr.bf16.mxu0 0
  %3499 = vmatpush2.bf16.msra.mxu0 %v3135
  %3500 = vmatprep.subr.bf16.mxu0 0
  %3501 = vmatpush2.bf16.msra.mxu0 %v3134
  %3502 = vmatprep.subr.bf16.mxu0 0
  %3503 = vmatpush2.bf16.msra.mxu0 %v3133
  %3504 = vmatprep.subr.bf16.mxu0 0
  %3505 = vmatpush2.bf16.msra.mxu0 %v3132
  %3506 = vmatprep.subr.bf16.mxu0 0
  %3507 = vmatpush2.bf16.msra.mxu0 %v3131
  %3508 = vmatprep.subr.bf16.mxu0 0
  %3509 = vmatpush2.bf16.msra.mxu0 %v3130
  %3510 = vmatprep.mubr.bf16.mxu0 %v2276
  %3511 = vmatmul.mubr.bf16.gmra.mxu0 %v2275
  %v3512 = vpop.f32.mrf.mxu0
  %v3513 = vadd.f32 %v3472, %v3512
  %v3514 = vpop.f32.mrf.mxu0
  %v3515 = vpop.f32.mrf.mxu0
  %v3516 = vadd.f32 %v3475, %v3515
  %v3517 = vpop.f32.mrf.mxu0
  %3518 = vdwg.mxu0
  %3519 = vmatprep.subr.bf16.mxu0 0
  %3520 = vmatpush1.bf16.msra.mxu0 %v3145
  %3521 = vmatprep.subr.bf16.mxu0 0
  %3522 = vmatpush1.bf16.msra.mxu0 %v3144
  %3523 = vmatprep.subr.bf16.mxu0 0
  %3524 = vmatpush1.bf16.msra.mxu0 %v3143
  %3525 = vmatprep.subr.bf16.mxu0 0
  %3526 = vmatpush1.bf16.msra.mxu0 %v3142
  %3527 = vmatprep.subr.bf16.mxu0 0
  %3528 = vmatpush1.bf16.msra.mxu0 %v3141
  %3529 = vmatprep.subr.bf16.mxu0 0
  %3530 = vmatpush1.bf16.msra.mxu0 %v3140
  %3531 = vmatprep.subr.bf16.mxu0 0
  %3532 = vmatpush1.bf16.msra.mxu0 %v3139
  %3533 = vmatprep.subr.bf16.mxu0 0
  %3534 = vmatpush1.bf16.msra.mxu0 %v3138
  %3535 = vmatprep.subr.bf16.mxu0 0
  %3536 = vmatpush2.bf16.msra.mxu0 %v3153
  %3537 = vmatprep.subr.bf16.mxu0 0
  %3538 = vmatpush2.bf16.msra.mxu0 %v3152
  %3539 = vmatprep.subr.bf16.mxu0 0
  %3540 = vmatpush2.bf16.msra.mxu0 %v3151
  %3541 = vmatprep.subr.bf16.mxu0 0
  %3542 = vmatpush2.bf16.msra.mxu0 %v3150
  %3543 = vmatprep.subr.bf16.mxu0 0
  %3544 = vmatpush2.bf16.msra.mxu0 %v3149
  %3545 = vmatprep.subr.bf16.mxu0 0
  %3546 = vmatpush2.bf16.msra.mxu0 %v3148
  %3547 = vmatprep.subr.bf16.mxu0 0
  %3548 = vmatpush2.bf16.msra.mxu0 %v3147
  %3549 = vmatprep.subr.bf16.mxu0 0
  %3550 = vmatpush2.bf16.msra.mxu0 %v3146
  %3551 = vmatprep.mubr.bf16.mxu0 %v2278
  %3552 = vmatmul.mubr.bf16.gmra.mxu0 %v2277
  %v3553 = vpop.f32.mrf.mxu0
  %v3554 = vadd.f32 %v3513, %v3553
  %v3555 = vpop.f32.mrf.mxu0
  %v3556 = vpop.f32.mrf.mxu0
  %v3557 = vadd.f32 %v3516, %v3556
  %v3558 = vpop.f32.mrf.mxu0
  %3559 = vdwg.mxu0
  %3560 = vmatprep.subr.bf16.mxu0 0
  %3561 = vmatpush1.bf16.msra.mxu0 %v3161
  %3562 = vmatprep.subr.bf16.mxu0 0
  %3563 = vmatpush1.bf16.msra.mxu0 %v3160
  %3564 = vmatprep.subr.bf16.mxu0 0
  %3565 = vmatpush1.bf16.msra.mxu0 %v3159
  %3566 = vmatprep.subr.bf16.mxu0 0
  %3567 = vmatpush1.bf16.msra.mxu0 %v3158
  %3568 = vmatprep.subr.bf16.mxu0 0
  %3569 = vmatpush1.bf16.msra.mxu0 %v3157
  %3570 = vmatprep.subr.bf16.mxu0 0
  %3571 = vmatpush1.bf16.msra.mxu0 %v3156
  %3572 = vmatprep.subr.bf16.mxu0 0
  %3573 = vmatpush1.bf16.msra.mxu0 %v3155
  %3574 = vmatprep.subr.bf16.mxu0 0
  %3575 = vmatpush1.bf16.msra.mxu0 %v3154
  %3576 = vmatprep.subr.bf16.mxu0 0
  %3577 = vmatpush2.bf16.msra.mxu0 %v3169
  %3578 = vmatprep.subr.bf16.mxu0 0
  %3579 = vmatpush2.bf16.msra.mxu0 %v3168
  %3580 = vmatprep.subr.bf16.mxu0 0
  %3581 = vmatpush2.bf16.msra.mxu0 %v3167
  %3582 = vmatprep.subr.bf16.mxu0 0
  %3583 = vmatpush2.bf16.msra.mxu0 %v3166
  %3584 = vmatprep.subr.bf16.mxu0 0
  %3585 = vmatpush2.bf16.msra.mxu0 %v3165
  %3586 = vmatprep.subr.bf16.mxu0 0
  %3587 = vmatpush2.bf16.msra.mxu0 %v3164
  %3588 = vmatprep.subr.bf16.mxu0 0
  %3589 = vmatpush2.bf16.msra.mxu0 %v3163
  %3590 = vmatprep.subr.bf16.mxu0 0
  %3591 = vmatpush2.bf16.msra.mxu0 %v3162
  %3592 = vmatprep.mubr.bf16.mxu0 %v2280
  %3593 = vmatmul.mubr.bf16.gmra.mxu0 %v2279
  %v3594 = vpop.f32.mrf.mxu0
  %v3595 = vadd.f32 %v3554, %v3594
  %v3596 = vpop.f32.mrf.mxu0
  %v3597 = vpop.f32.mrf.mxu0
  %v3598 = vadd.f32 %v3557, %v3597
  %v3599 = vpop.f32.mrf.mxu0
  %3600 = vdwg.mxu0
  %3601 = vmatprep.subr.bf16.mxu0 0
  %3602 = vmatpush1.bf16.msra.mxu0 %v3177
  %3603 = vmatprep.subr.bf16.mxu0 0
  %3604 = vmatpush1.bf16.msra.mxu0 %v3176
  %3605 = vmatprep.subr.bf16.mxu0 0
  %3606 = vmatpush1.bf16.msra.mxu0 %v3175
  %3607 = vmatprep.subr.bf16.mxu0 0
  %3608 = vmatpush1.bf16.msra.mxu0 %v3174
  %3609 = vmatprep.subr.bf16.mxu0 0
  %3610 = vmatpush1.bf16.msra.mxu0 %v3173
  %3611 = vmatprep.subr.bf16.mxu0 0
  %3612 = vmatpush1.bf16.msra.mxu0 %v3172
  %3613 = vmatprep.subr.bf16.mxu0 0
  %3614 = vmatpush1.bf16.msra.mxu0 %v3171
  %3615 = vmatprep.subr.bf16.mxu0 0
  %3616 = vmatpush1.bf16.msra.mxu0 %v3170
  %3617 = vmatprep.subr.bf16.mxu0 0
  %3618 = vmatpush2.bf16.msra.mxu0 %v3185
  %3619 = vmatprep.subr.bf16.mxu0 0
  %3620 = vmatpush2.bf16.msra.mxu0 %v3184
  %3621 = vmatprep.subr.bf16.mxu0 0
  %3622 = vmatpush2.bf16.msra.mxu0 %v3183
  %3623 = vmatprep.subr.bf16.mxu0 0
  %3624 = vmatpush2.bf16.msra.mxu0 %v3182
  %3625 = vmatprep.subr.bf16.mxu0 0
  %3626 = vmatpush2.bf16.msra.mxu0 %v3181
  %3627 = vmatprep.subr.bf16.mxu0 0
  %3628 = vmatpush2.bf16.msra.mxu0 %v3180
  %3629 = vmatprep.subr.bf16.mxu0 0
  %3630 = vmatpush2.bf16.msra.mxu0 %v3179
  %3631 = vmatprep.subr.bf16.mxu0 0
  %3632 = vmatpush2.bf16.msra.mxu0 %v3178
  %3633 = vmatprep.mubr.bf16.mxu0 %v2282
  %3634 = vmatmul.mubr.bf16.gmra.mxu0 %v2281
  %v3635 = vpop.f32.mrf.mxu0
  %v3636 = vadd.f32 %v3595, %v3635
  %v3637 = vpop.f32.mrf.mxu0
  %v3638 = vpop.f32.mrf.mxu0
  %v3639 = vadd.f32 %v3598, %v3638
  %v3640 = vpop.f32.mrf.mxu0
  %3641 = vdwg.mxu0
  %v3642 = vadd.f32 %v3636, %v1417
  %v3643 = vadd.f32 %v3639, %v1418
  %v3644 = vld [vmem:[%s31] sm:$0x1]
  %v3645 = vld [vmem:[%s33] sm:$0x1]
  %v3646 = vsel %vm213, %v3642, 0.0
  %3647 = vadd.xlane.f32.xlu0 %v3646
  %v3648 = vpop.xlane.xlu0 %3647
  %v3649 = vsel %vm213, %v3643, 0.0
  %3650 = vadd.xlane.f32.xlu0 %v3649
  %v3651 = vpop.xlane.xlu0 %3650
  %v3652 = vmul.f32 %v3648, %v1382
  %v3653 = vmul.f32 %v3651, %v1382
  %v3654 = vsub.f32 %v3642, %v3652
  %v3655 = vsub.f32 %v3643, %v3653
  %v3656 = vmul.f32 %v3654, %v3654
  %v3657 = vmul.f32 %v3655, %v3655
  %v3658 = vsel %vm213, %v3656, 0.0
  %3659 = vadd.xlane.f32.xlu0 %v3658
  %v3660 = vpop.xlane.xlu0 %3659
  %v3661 = vsel %vm213, %v3657, 0.0
  %3662 = vadd.xlane.f32.xlu0 %v3661
  %v3663 = vpop.xlane.xlu0 %3662
  %v3664 = vmul.f32 %v3660, %v1382
  %v3665 = vmul.f32 %v3663, %v1382
  %v3666 = vadd.f32 %v3664, 1e-05
  %v3667 = vadd.f32 %v3665, 1e-05
  %v3668 = vrsqrt.pop %v3666
  %v3669 = vrsqrt.pop %v3667
  %v3670 = vmul.f32 %v3654, %v3668
  %v3671 = vmul.f32 %v3655, %v3669
  %v3673 = vlaneseq
  %v3674 = vshrl.u32 %v3673, 7
  %v3675 = vsub.s32 0, %v3674
  %v3676 = vrot.slane %v3644, %v3675
  %v3678 = vmul.f32 %v3670, %v3676
  %v3679 = vmul.f32 %v3671, %v3676
  %v3681 = vlaneseq
  %v3682 = vshrl.u32 %v3681, 7
  %v3683 = vsub.s32 0, %v3682
  %v3684 = vrot.slane %v3645, %v3683
  %v3686 = vadd.f32 %v3678, %v3684
  %v3687 = vadd.f32 %v3679, %v3684
  %v3688 = vpack.c.bf16 %v3687, %v3686
  %v3689 = vld [vmem:[%s35] sm:$0xff]
  %v3690 = vld [vmem:[%s35 + $0x8] sm:$0xff]
  %v3691 = vld [vmem:[%s35 + $0x10] sm:$0xff]
  %v3692 = vld [vmem:[%s35 + $0x18] sm:$0xff]
  %v3693 = vld [vmem:[%s35 + $0x20] sm:$0xff]
  %v3694 = vld [vmem:[%s35 + $0x28] sm:$0xff]
  %v3695 = vld [vmem:[%s35 + $0x30] sm:$0xff]
  %v3696 = vld [vmem:[%s35 + $0x38] sm:$0xff]
  %v3697 = vld [vmem:[%s37] sm:$0x3]
  %v3699 = vlaneseq
  %v3700 = vshrl.u32 %v3699, 7
  %v3701 = vsub.s32 0, %v3700
  %v3702 = vrot.slane %v3697, %v3701
  %v3703 = vlaneseq
  %v3704 = vshrl.u32 %v3703, 7
  %v3705 = vsub.s32 1, %v3704
  %v3706 = vrot.slane %v3697, %v3705
  %v3717 = vunpack.c.l.b16 %v3689
  %v3718 = vunpack.c.h.b16 %v3689
  %v3719 = vunpack.c.l.b16 %v3690
  %v3720 = vunpack.c.h.b16 %v3690
  %v3721 = vunpack.c.l.b16 %v3691
  %v3722 = vunpack.c.h.b16 %v3691
  %v3723 = vunpack.c.l.b16 %v3692
  %v3724 = vunpack.c.h.b16 %v3692
  %v3725 = vunpack.c.l.b16 %v3693
  %v3726 = vunpack.c.h.b16 %v3693
  %v3727 = vunpack.c.l.b16 %v3694
  %v3728 = vunpack.c.h.b16 %v3694
  %v3729 = vunpack.c.l.b16 %v3695
  %v3730 = vunpack.c.h.b16 %v3695
  %v3731 = vunpack.c.l.b16 %v3696
  %v3732 = vunpack.c.h.b16 %v3696
  %v3733 = vpack.c.b16 %v3719, %v3717
  %v3734 = vpack.c.b16 %v3720, %v3718
  %v3735 = vpack.c.b16 %v3723, %v3721
  %v3736 = vpack.c.b16 %v3724, %v3722
  %v3737 = vpack.c.b16 %v3727, %v3725
  %v3738 = vpack.c.b16 %v3728, %v3726
  %v3739 = vpack.c.b16 %v3731, %v3729
  %v3740 = vpack.c.b16 %v3732, %v3730
  %v3750 = vsel %vm213, %v3688, 0
  %3752 = vmatprep.subr.bf16.mxu0 0
  %3753 = vmatpush1.bf16.msra.mxu0 0
  %3754 = vmatprep.subr.bf16.mxu0 0
  %3755 = vmatpush1.bf16.msra.mxu0 0
  %3756 = vmatprep.subr.bf16.mxu0 0
  %3757 = vmatpush1.bf16.msra.mxu0 0
  %3758 = vmatprep.subr.bf16.mxu0 0
  %3759 = vmatpush1.bf16.msra.mxu0 0
  %3760 = vmatprep.subr.bf16.mxu0 %v3740
  %3761 = vmatpush1.bf16.msra.mxu0 %v3739
  %3762 = vmatprep.subr.bf16.mxu0 %v3738
  %3763 = vmatpush1.bf16.msra.mxu0 %v3737
  %3764 = vmatprep.subr.bf16.mxu0 %v3736
  %3765 = vmatpush1.bf16.msra.mxu0 %v3735
  %3766 = vmatprep.subr.bf16.mxu0 %v3734
  %3767 = vmatpush1.bf16.msra.mxu0 %v3733
  %3768 = vmatprep.subr.bf16.mxu0 0
  %3769 = vmatpush2.bf16.msra.mxu0 0
  %3770 = vmatprep.subr.bf16.mxu0 0
  %3771 = vmatpush2.bf16.msra.mxu0 0
  %3772 = vmatprep.subr.bf16.mxu0 0
  %3773 = vmatpush2.bf16.msra.mxu0 0
  %3774 = vmatprep.subr.bf16.mxu0 0
  %3775 = vmatpush2.bf16.msra.mxu0 0
  %3776 = vmatprep.subr.bf16.mxu0 0
  %3777 = vmatpush2.bf16.msra.mxu0 0
  %3778 = vmatprep.subr.bf16.mxu0 0
  %3779 = vmatpush2.bf16.msra.mxu0 0
  %3780 = vmatprep.subr.bf16.mxu0 0
  %3781 = vmatpush2.bf16.msra.mxu0 0
  %3782 = vmatprep.subr.bf16.mxu0 0
  %3783 = vmatpush2.bf16.msra.mxu0 0
  %3784 = vmatprep.mubr.bf16.mxu0 0
  %3785 = vmatmul.mubr.bf16.gmra.mxu0 %v3750
  %v3786 = vpop.f32.mrf.mxu0
  %v3787 = vadd.f32 %v3702, %v3786
  %v3788 = vpop.f32.mrf.mxu0
  %v3789 = vadd.f32 %v3706, %v3788
  %v3790 = vpop.f32.mrf.mxu0
  %v3791 = vadd.f32 %v3702, %v3790
  %v3792 = vpop.f32.mrf.mxu0
  %v3793 = vadd.f32 %v3706, %v3792
  %3794 = vdwg.mxu0
  %v3795 = vpack.c.bf16 %v3787, %v3787
  %v3796 = vpack.c.bf16 %v3791, %v3791
  %3798 = vrot.lane.b32.xlu0 %v3795, 64
  %v3799 = vpop.permute.xlu0 %3798
  %v3801 = vsel %vm370, %v3795, 0
  %v3804 = vsel %vm370, %v3799, 0
  %3806 = vmatprep.subr.bf16.mxu0 0
  %3807 = vmatpush1.bf16.xpose.msra.mxu0 0
  %3808 = vmatprep.subr.bf16.mxu0 0
  %3809 = vmatpush1.bf16.xpose.msra.mxu0 0
  %3810 = vmatprep.subr.bf16.mxu0 0
  %3811 = vmatpush1.bf16.xpose.msra.mxu0 0
  %3812 = vmatprep.subr.bf16.mxu0 0
  %3813 = vmatpush1.bf16.xpose.msra.mxu0 0
  %3814 = vmatprep.subr.bf16.mxu0 0
  %3815 = vmatpush1.bf16.xpose.msra.mxu0 0
  %3816 = vmatprep.subr.bf16.mxu0 0
  %3817 = vmatpush1.bf16.xpose.msra.mxu0 0
  %3818 = vmatprep.subr.bf16.mxu0 0
  %3819 = vmatpush1.bf16.xpose.msra.mxu0 0
  %3820 = vmatprep.subr.bf16.mxu0 0
  %3821 = vmatpush1.bf16.xpose.msra.mxu0 %v3804
  %3822 = vmatprep.subr.bf16.mxu0 0
  %3823 = vmatpush2.bf16.xpose.msra.mxu0 0
  %3824 = vmatprep.subr.bf16.mxu0 0
  %3825 = vmatpush2.bf16.xpose.msra.mxu0 0
  %3826 = vmatprep.subr.bf16.mxu0 0
  %3827 = vmatpush2.bf16.xpose.msra.mxu0 0
  %3828 = vmatprep.subr.bf16.mxu0 0
  %3829 = vmatpush2.bf16.xpose.msra.mxu0 0
  %3830 = vmatprep.subr.bf16.mxu0 0
  %3831 = vmatpush2.bf16.xpose.msra.mxu0 0
  %3832 = vmatprep.subr.bf16.mxu0 0
  %3833 = vmatpush2.bf16.xpose.msra.mxu0 0
  %3834 = vmatprep.subr.bf16.mxu0 0
  %3835 = vmatpush2.bf16.xpose.msra.mxu0 0
  %3836 = vmatprep.subr.bf16.mxu0 0
  %3837 = vmatpush2.bf16.xpose.msra.mxu0 0
  %3838 = vmatprep.mubr.bf16.mxu0 0
  %3839 = vmatmul.mubr.bf16.gmra.mxu0 %v3801
  %v3840 = vpop.f32.mrf.mxu0
  %v3841 = vadd.f32 0.0, %v3840
  %v3842 = vpop.f32.mrf.mxu0
  %v3843 = vpop.f32.mrf.mxu0
  %v3844 = vpop.f32.mrf.mxu0
  %3845 = vdwg.mxu0
  %3847 = vrot.lane.b32.xlu0 %v3796, 64
  %v3848 = vpop.permute.xlu0 %3847
  %v3850 = vsel %vm370, %v3796, 0
  %v3853 = vsel %vm370, %v3848, 0
  %3855 = vmatprep.subr.bf16.mxu0 0
  %3856 = vmatpush1.bf16.xpose.msra.mxu0 0
  %3857 = vmatprep.subr.bf16.mxu0 0
  %3858 = vmatpush1.bf16.xpose.msra.mxu0 0
  %3859 = vmatprep.subr.bf16.mxu0 0
  %3860 = vmatpush1.bf16.xpose.msra.mxu0 0
  %3861 = vmatprep.subr.bf16.mxu0 0
  %3862 = vmatpush1.bf16.xpose.msra.mxu0 0
  %3863 = vmatprep.subr.bf16.mxu0 0
  %3864 = vmatpush1.bf16.xpose.msra.mxu0 0
  %3865 = vmatprep.subr.bf16.mxu0 0
  %3866 = vmatpush1.bf16.xpose.msra.mxu0 0
  %3867 = vmatprep.subr.bf16.mxu0 0
  %3868 = vmatpush1.bf16.xpose.msra.mxu0 0
  %3869 = vmatprep.subr.bf16.mxu0 0
  %3870 = vmatpush1.bf16.xpose.msra.mxu0 %v3853
  %3871 = vmatprep.subr.bf16.mxu0 0
  %3872 = vmatpush2.bf16.xpose.msra.mxu0 0
  %3873 = vmatprep.subr.bf16.mxu0 0
  %3874 = vmatpush2.bf16.xpose.msra.mxu0 0
  %3875 = vmatprep.subr.bf16.mxu0 0
  %3876 = vmatpush2.bf16.xpose.msra.mxu0 0
  %3877 = vmatprep.subr.bf16.mxu0 0
  %3878 = vmatpush2.bf16.xpose.msra.mxu0 0
  %3879 = vmatprep.subr.bf16.mxu0 0
  %3880 = vmatpush2.bf16.xpose.msra.mxu0 0
  %3881 = vmatprep.subr.bf16.mxu0 0
  %3882 = vmatpush2.bf16.xpose.msra.mxu0 0
  %3883 = vmatprep.subr.bf16.mxu0 0
  %3884 = vmatpush2.bf16.xpose.msra.mxu0 0
  %3885 = vmatprep.subr.bf16.mxu0 0
  %3886 = vmatpush2.bf16.xpose.msra.mxu0 0
  %3887 = vmatprep.mubr.bf16.mxu0 0
  %3888 = vmatmul.mubr.bf16.gmra.mxu0 %v3850
  %v3889 = vpop.f32.mrf.mxu0
  %v3890 = vadd.f32 0.0, %v3889
  %v3891 = vpop.f32.mrf.mxu0
  %v3892 = vpop.f32.mrf.mxu0
  %v3893 = vpop.f32.mrf.mxu0
  %3894 = vdwg.mxu0
  %v3895 = vmul.f32 %v3841, 0.25
  %v3896 = vmul.f32 %v3890, 0.25
  %v3897 = vsel %vm468, %v3895, -inf
  %3898 = vmax.xlane.f32.xlu0 %v3897
  %v3899 = vpop.xlane.xlu0 %3898
  %v3900 = vsel %vm468, %v3896, -inf
  %3901 = vmax.xlane.f32.xlu0 %v3900
  %v3902 = vpop.xlane.xlu0 %3901
  %v3903 = vsub.f32 %v3895, %v3899
  %v3904 = vsub.f32 %v3896, %v3902
  %v3905 = vmul.f32 %v3903, 1.442695
  %v3906 = vpow.pop %v3905
  %v3907 = vmul.f32 %v3904, 1.442695
  %v3908 = vpow.pop %v3907
  %v3909 = vsel %vm468, %v3906, 0.0
  %3910 = vadd.xlane.f32.xlu0 %v3909
  %v3911 = vpop.xlane.xlu0 %3910
  %v3912 = vsel %vm468, %v3908, 0.0
  %3913 = vadd.xlane.f32.xlu0 %v3912
  %v3914 = vpop.xlane.xlu0 %3913
  %v3915 = vrcp.pop %v3911
  %v3916 = vrcp.pop %v3914
  %v3917 = vmul.f32 %v3906, %v3915
  %v3918 = vmul.f32 %v3908, %v3916
  %v3919 = vpack.c.bf16 %v3917, %v3917
  %v3920 = vpack.c.bf16 %v3918, %v3918
  %v3921 = vpack.c.bf16 %v3789, %v3789
  %v3922 = vpack.c.bf16 %v3793, %v3793
  %v3924 = vsel %vm468, %v3919, 0
  %v3927 = vsel %vm498, %v3921, 0
  %3929 = vmatprep.subr.bf16.mxu0 0
  %3930 = vmatpush1.bf16.msra.mxu0 0
  %3931 = vmatprep.subr.bf16.mxu0 0
  %3932 = vmatpush1.bf16.msra.mxu0 0
  %3933 = vmatprep.subr.bf16.mxu0 0
  %3934 = vmatpush1.bf16.msra.mxu0 0
  %3935 = vmatprep.subr.bf16.mxu0 0
  %3936 = vmatpush1.bf16.msra.mxu0 0
  %3937 = vmatprep.subr.bf16.mxu0 0
  %3938 = vmatpush1.bf16.msra.mxu0 0
  %3939 = vmatprep.subr.bf16.mxu0 0
  %3940 = vmatpush1.bf16.msra.mxu0 0
  %3941 = vmatprep.subr.bf16.mxu0 0
  %3942 = vmatpush1.bf16.msra.mxu0 0
  %3943 = vmatprep.subr.bf16.mxu0 0
  %3944 = vmatpush1.bf16.msra.mxu0 %v3927
  %3945 = vmatprep.subr.bf16.mxu0 0
  %3946 = vmatpush2.bf16.msra.mxu0 0
  %3947 = vmatprep.subr.bf16.mxu0 0
  %3948 = vmatpush2.bf16.msra.mxu0 0
  %3949 = vmatprep.subr.bf16.mxu0 0
  %3950 = vmatpush2.bf16.msra.mxu0 0
  %3951 = vmatprep.subr.bf16.mxu0 0
  %3952 = vmatpush2.bf16.msra.mxu0 0
  %3953 = vmatprep.subr.bf16.mxu0 0
  %3954 = vmatpush2.bf16.msra.mxu0 0
  %3955 = vmatprep.subr.bf16.mxu0 0
  %3956 = vmatpush2.bf16.msra.mxu0 0
  %3957 = vmatprep.subr.bf16.mxu0 0
  %3958 = vmatpush2.bf16.msra.mxu0 0
  %3959 = vmatprep.subr.bf16.mxu0 0
  %3960 = vmatpush2.bf16.msra.mxu0 0
  %3961 = vmatprep.mubr.bf16.mxu0 0
  %3962 = vmatmul.mubr.bf16.gmra.mxu0 %v3924
  %v3963 = vpop.f32.mrf.mxu0
  %v3964 = vadd.f32 0.0, %v3963
  %v3965 = vpop.f32.mrf.mxu0
  %v3966 = vpop.f32.mrf.mxu0
  %v3967 = vpop.f32.mrf.mxu0
  %3968 = vdwg.mxu0
  %v3970 = vsel %vm468, %v3920, 0
  %v3973 = vsel %vm498, %v3922, 0
  %3975 = vmatprep.subr.bf16.mxu0 0
  %3976 = vmatpush1.bf16.msra.mxu0 0
  %3977 = vmatprep.subr.bf16.mxu0 0
  %3978 = vmatpush1.bf16.msra.mxu0 0
  %3979 = vmatprep.subr.bf16.mxu0 0
  %3980 = vmatpush1.bf16.msra.mxu0 0
  %3981 = vmatprep.subr.bf16.mxu0 0
  %3982 = vmatpush1.bf16.msra.mxu0 0
  %3983 = vmatprep.subr.bf16.mxu0 0
  %3984 = vmatpush1.bf16.msra.mxu0 0
  %3985 = vmatprep.subr.bf16.mxu0 0
  %3986 = vmatpush1.bf16.msra.mxu0 0
  %3987 = vmatprep.subr.bf16.mxu0 0
  %3988 = vmatpush1.bf16.msra.mxu0 0
  %3989 = vmatprep.subr.bf16.mxu0 0
  %3990 = vmatpush1.bf16.msra.mxu0 %v3973
  %3991 = vmatprep.subr.bf16.mxu0 0
  %3992 = vmatpush2.bf16.msra.mxu0 0
  %3993 = vmatprep.subr.bf16.mxu0 0
  %3994 = vmatpush2.bf16.msra.mxu0 0
  %3995 = vmatprep.subr.bf16.mxu0 0
  %3996 = vmatpush2.bf16.msra.mxu0 0
  %3997 = vmatprep.subr.bf16.mxu0 0
  %3998 = vmatpush2.bf16.msra.mxu0 0
  %3999 = vmatprep.subr.bf16.mxu0 0
  %4000 = vmatpush2.bf16.msra.mxu0 0
  %4001 = vmatprep.subr.bf16.mxu0 0
  %4002 = vmatpush2.bf16.msra.mxu0 0
  %4003 = vmatprep.subr.bf16.mxu0 0
  %4004 = vmatpush2.bf16.msra.mxu0 0
  %4005 = vmatprep.subr.bf16.mxu0 0
  %4006 = vmatpush2.bf16.msra.mxu0 0
  %4007 = vmatprep.mubr.bf16.mxu0 0
  %4008 = vmatmul.mubr.bf16.gmra.mxu0 %v3970
  %v4009 = vpop.f32.mrf.mxu0
  %v4010 = vadd.f32 0.0, %v4009
  %v4011 = vpop.f32.mrf.mxu0
  %v4012 = vpop.f32.mrf.mxu0
  %v4013 = vpop.f32.mrf.mxu0
  %4014 = vdwg.mxu0
  %4015 = vrot.lane.b32.xlu0 %v3795, 112
  %v4016 = vpop.permute.xlu0 %4015
  %4017 = vrot.lane.b32.xlu0 %v3795, 48
  %v4018 = vpop.permute.xlu0 %4017
  %v4020 = vsel %vm370, %v4016, 0
  %v4023 = vsel %vm370, %v4018, 0
  %4025 = vmatprep.subr.bf16.mxu0 0
  %4026 = vmatpush1.bf16.xpose.msra.mxu0 0
  %4027 = vmatprep.subr.bf16.mxu0 0
  %4028 = vmatpush1.bf16.xpose.msra.mxu0 0
  %4029 = vmatprep.subr.bf16.mxu0 0
  %4030 = vmatpush1.bf16.xpose.msra.mxu0 0
  %4031 = vmatprep.subr.bf16.mxu0 0
  %4032 = vmatpush1.bf16.xpose.msra.mxu0 0
  %4033 = vmatprep.subr.bf16.mxu0 0
  %4034 = vmatpush1.bf16.xpose.msra.mxu0 0
  %4035 = vmatprep.subr.bf16.mxu0 0
  %4036 = vmatpush1.bf16.xpose.msra.mxu0 0
  %4037 = vmatprep.subr.bf16.mxu0 0
  %4038 = vmatpush1.bf16.xpose.msra.mxu0 0
  %4039 = vmatprep.subr.bf16.mxu0 0
  %4040 = vmatpush1.bf16.xpose.msra.mxu0 %v4023
  %4041 = vmatprep.subr.bf16.mxu0 0
  %4042 = vmatpush2.bf16.xpose.msra.mxu0 0
  %4043 = vmatprep.subr.bf16.mxu0 0
  %4044 = vmatpush2.bf16.xpose.msra.mxu0 0
  %4045 = vmatprep.subr.bf16.mxu0 0
  %4046 = vmatpush2.bf16.xpose.msra.mxu0 0
  %4047 = vmatprep.subr.bf16.mxu0 0
  %4048 = vmatpush2.bf16.xpose.msra.mxu0 0
  %4049 = vmatprep.subr.bf16.mxu0 0
  %4050 = vmatpush2.bf16.xpose.msra.mxu0 0
  %4051 = vmatprep.subr.bf16.mxu0 0
  %4052 = vmatpush2.bf16.xpose.msra.mxu0 0
  %4053 = vmatprep.subr.bf16.mxu0 0
  %4054 = vmatpush2.bf16.xpose.msra.mxu0 0
  %4055 = vmatprep.subr.bf16.mxu0 0
  %4056 = vmatpush2.bf16.xpose.msra.mxu0 0
  %4057 = vmatprep.mubr.bf16.mxu0 0
  %4058 = vmatmul.mubr.bf16.gmra.mxu0 %v4020
  %v4059 = vpop.f32.mrf.mxu0
  %v4060 = vadd.f32 0.0, %v4059
  %v4061 = vpop.f32.mrf.mxu0
  %v4062 = vpop.f32.mrf.mxu0
  %v4063 = vpop.f32.mrf.mxu0
  %4064 = vdwg.mxu0
  %4065 = vrot.lane.b32.xlu0 %v3796, 112
  %v4066 = vpop.permute.xlu0 %4065
  %4067 = vrot.lane.b32.xlu0 %v3796, 48
  %v4068 = vpop.permute.xlu0 %4067
  %v4070 = vsel %vm370, %v4066, 0
  %v4073 = vsel %vm370, %v4068, 0
  %4075 = vmatprep.subr.bf16.mxu0 0
  %4076 = vmatpush1.bf16.xpose.msra.mxu0 0
  %4077 = vmatprep.subr.bf16.mxu0 0
  %4078 = vmatpush1.bf16.xpose.msra.mxu0 0
  %4079 = vmatprep.subr.bf16.mxu0 0
  %4080 = vmatpush1.bf16.xpose.msra.mxu0 0
  %4081 = vmatprep.subr.bf16.mxu0 0
  %4082 = vmatpush1.bf16.xpose.msra.mxu0 0
  %4083 = vmatprep.subr.bf16.mxu0 0
  %4084 = vmatpush1.bf16.xpose.msra.mxu0 0
  %4085 = vmatprep.subr.bf16.mxu0 0
  %4086 = vmatpush1.bf16.xpose.msra.mxu0 0
  %4087 = vmatprep.subr.bf16.mxu0 0
  %4088 = vmatpush1.bf16.xpose.msra.mxu0 0
  %4089 = vmatprep.subr.bf16.mxu0 0
  %4090 = vmatpush1.bf16.xpose.msra.mxu0 %v4073
  %4091 = vmatprep.subr.bf16.mxu0 0
  %4092 = vmatpush2.bf16.xpose.msra.mxu0 0
  %4093 = vmatprep.subr.bf16.mxu0 0
  %4094 = vmatpush2.bf16.xpose.msra.mxu0 0
  %4095 = vmatprep.subr.bf16.mxu0 0
  %4096 = vmatpush2.bf16.xpose.msra.mxu0 0
  %4097 = vmatprep.subr.bf16.mxu0 0
  %4098 = vmatpush2.bf16.xpose.msra.mxu0 0
  %4099 = vmatprep.subr.bf16.mxu0 0
  %4100 = vmatpush2.bf16.xpose.msra.mxu0 0
  %4101 = vmatprep.subr.bf16.mxu0 0
  %4102 = vmatpush2.bf16.xpose.msra.mxu0 0
  %4103 = vmatprep.subr.bf16.mxu0 0
  %4104 = vmatpush2.bf16.xpose.msra.mxu0 0
  %4105 = vmatprep.subr.bf16.mxu0 0
  %4106 = vmatpush2.bf16.xpose.msra.mxu0 0
  %4107 = vmatprep.mubr.bf16.mxu0 0
  %4108 = vmatmul.mubr.bf16.gmra.mxu0 %v4070
  %v4109 = vpop.f32.mrf.mxu0
  %v4110 = vadd.f32 0.0, %v4109
  %v4111 = vpop.f32.mrf.mxu0
  %v4112 = vpop.f32.mrf.mxu0
  %v4113 = vpop.f32.mrf.mxu0
  %4114 = vdwg.mxu0
  %v4115 = vmul.f32 %v4060, 0.25
  %v4116 = vmul.f32 %v4110, 0.25
  %v4117 = vsel %vm468, %v4115, -inf
  %4118 = vmax.xlane.f32.xlu0 %v4117
  %v4119 = vpop.xlane.xlu0 %4118
  %v4120 = vsel %vm468, %v4116, -inf
  %4121 = vmax.xlane.f32.xlu0 %v4120
  %v4122 = vpop.xlane.xlu0 %4121
  %v4123 = vsub.f32 %v4115, %v4119
  %v4124 = vsub.f32 %v4116, %v4122
  %v4125 = vmul.f32 %v4123, 1.442695
  %v4126 = vpow.pop %v4125
  %v4127 = vmul.f32 %v4124, 1.442695
  %v4128 = vpow.pop %v4127
  %v4129 = vsel %vm468, %v4126, 0.0
  %4130 = vadd.xlane.f32.xlu0 %v4129
  %v4131 = vpop.xlane.xlu0 %4130
  %v4132 = vsel %vm468, %v4128, 0.0
  %4133 = vadd.xlane.f32.xlu0 %v4132
  %v4134 = vpop.xlane.xlu0 %4133
  %v4135 = vrcp.pop %v4131
  %v4136 = vrcp.pop %v4134
  %v4137 = vmul.f32 %v4126, %v4135
  %v4138 = vmul.f32 %v4128, %v4136
  %v4139 = vpack.c.bf16 %v4137, %v4137
  %v4140 = vpack.c.bf16 %v4138, %v4138
  %4142 = vrot.lane.b32.xlu0 %v3921, 112
  %v4143 = vpop.permute.xlu0 %4142
  %v4145 = vsel %vm468, %v4139, 0
  %v4148 = vsel %vm498, %v4143, 0
  %4150 = vmatprep.subr.bf16.mxu0 0
  %4151 = vmatpush1.bf16.msra.mxu0 0
  %4152 = vmatprep.subr.bf16.mxu0 0
  %4153 = vmatpush1.bf16.msra.mxu0 0
  %4154 = vmatprep.subr.bf16.mxu0 0
  %4155 = vmatpush1.bf16.msra.mxu0 0
  %4156 = vmatprep.subr.bf16.mxu0 0
  %4157 = vmatpush1.bf16.msra.mxu0 0
  %4158 = vmatprep.subr.bf16.mxu0 0
  %4159 = vmatpush1.bf16.msra.mxu0 0
  %4160 = vmatprep.subr.bf16.mxu0 0
  %4161 = vmatpush1.bf16.msra.mxu0 0
  %4162 = vmatprep.subr.bf16.mxu0 0
  %4163 = vmatpush1.bf16.msra.mxu0 0
  %4164 = vmatprep.subr.bf16.mxu0 0
  %4165 = vmatpush1.bf16.msra.mxu0 %v4148
  %4166 = vmatprep.subr.bf16.mxu0 0
  %4167 = vmatpush2.bf16.msra.mxu0 0
  %4168 = vmatprep.subr.bf16.mxu0 0
  %4169 = vmatpush2.bf16.msra.mxu0 0
  %4170 = vmatprep.subr.bf16.mxu0 0
  %4171 = vmatpush2.bf16.msra.mxu0 0
  %4172 = vmatprep.subr.bf16.mxu0 0
  %4173 = vmatpush2.bf16.msra.mxu0 0
  %4174 = vmatprep.subr.bf16.mxu0 0
  %4175 = vmatpush2.bf16.msra.mxu0 0
  %4176 = vmatprep.subr.bf16.mxu0 0
  %4177 = vmatpush2.bf16.msra.mxu0 0
  %4178 = vmatprep.subr.bf16.mxu0 0
  %4179 = vmatpush2.bf16.msra.mxu0 0
  %4180 = vmatprep.subr.bf16.mxu0 0
  %4181 = vmatpush2.bf16.msra.mxu0 0
  %4182 = vmatprep.mubr.bf16.mxu0 0
  %4183 = vmatmul.mubr.bf16.gmra.mxu0 %v4145
  %v4184 = vpop.f32.mrf.mxu0
  %v4185 = vadd.f32 0.0, %v4184
  %v4186 = vpop.f32.mrf.mxu0
  %v4187 = vpop.f32.mrf.mxu0
  %v4188 = vpop.f32.mrf.mxu0
  %4189 = vdwg.mxu0
  %4191 = vrot.lane.b32.xlu0 %v3922, 112
  %v4192 = vpop.permute.xlu0 %4191
  %v4194 = vsel %vm468, %v4140, 0
  %v4197 = vsel %vm498, %v4192, 0
  %4199 = vmatprep.subr.bf16.mxu0 0
  %4200 = vmatpush1.bf16.msra.mxu0 0
  %4201 = vmatprep.subr.bf16.mxu0 0
  %4202 = vmatpush1.bf16.msra.mxu0 0
  %4203 = vmatprep.subr.bf16.mxu0 0
  %4204 = vmatpush1.bf16.msra.mxu0 0
  %4205 = vmatprep.subr.bf16.mxu0 0
  %4206 = vmatpush1.bf16.msra.mxu0 0
  %4207 = vmatprep.subr.bf16.mxu0 0
  %4208 = vmatpush1.bf16.msra.mxu0 0
  %4209 = vmatprep.subr.bf16.mxu0 0
  %4210 = vmatpush1.bf16.msra.mxu0 0
  %4211 = vmatprep.subr.bf16.mxu0 0
  %4212 = vmatpush1.bf16.msra.mxu0 0
  %4213 = vmatprep.subr.bf16.mxu0 0
  %4214 = vmatpush1.bf16.msra.mxu0 %v4197
  %4215 = vmatprep.subr.bf16.mxu0 0
  %4216 = vmatpush2.bf16.msra.mxu0 0
  %4217 = vmatprep.subr.bf16.mxu0 0
  %4218 = vmatpush2.bf16.msra.mxu0 0
  %4219 = vmatprep.subr.bf16.mxu0 0
  %4220 = vmatpush2.bf16.msra.mxu0 0
  %4221 = vmatprep.subr.bf16.mxu0 0
  %4222 = vmatpush2.bf16.msra.mxu0 0
  %4223 = vmatprep.subr.bf16.mxu0 0
  %4224 = vmatpush2.bf16.msra.mxu0 0
  %4225 = vmatprep.subr.bf16.mxu0 0
  %4226 = vmatpush2.bf16.msra.mxu0 0
  %4227 = vmatprep.subr.bf16.mxu0 0
  %4228 = vmatpush2.bf16.msra.mxu0 0
  %4229 = vmatprep.subr.bf16.mxu0 0
  %4230 = vmatpush2.bf16.msra.mxu0 0
  %4231 = vmatprep.mubr.bf16.mxu0 0
  %4232 = vmatmul.mubr.bf16.gmra.mxu0 %v4194
  %v4233 = vpop.f32.mrf.mxu0
  %v4234 = vadd.f32 0.0, %v4233
  %v4235 = vpop.f32.mrf.mxu0
  %v4236 = vpop.f32.mrf.mxu0
  %v4237 = vpop.f32.mrf.mxu0
  %4238 = vdwg.mxu0
  %4239 = vrot.lane.b32.xlu0 %v3795, 96
  %v4240 = vpop.permute.xlu0 %4239
  %4241 = vrot.lane.b32.xlu0 %v3795, 32
  %v4242 = vpop.permute.xlu0 %4241
  %v4244 = vsel %vm370, %v4240, 0
  %v4247 = vsel %vm370, %v4242, 0
  %4249 = vmatprep.subr.bf16.mxu0 0
  %4250 = vmatpush1.bf16.xpose.msra.mxu0 0
  %4251 = vmatprep.subr.bf16.mxu0 0
  %4252 = vmatpush1.bf16.xpose.msra.mxu0 0
  %4253 = vmatprep.subr.bf16.mxu0 0
  %4254 = vmatpush1.bf16.xpose.msra.mxu0 0
  %4255 = vmatprep.subr.bf16.mxu0 0
  %4256 = vmatpush1.bf16.xpose.msra.mxu0 0
  %4257 = vmatprep.subr.bf16.mxu0 0
  %4258 = vmatpush1.bf16.xpose.msra.mxu0 0
  %4259 = vmatprep.subr.bf16.mxu0 0
  %4260 = vmatpush1.bf16.xpose.msra.mxu0 0
  %4261 = vmatprep.subr.bf16.mxu0 0
  %4262 = vmatpush1.bf16.xpose.msra.mxu0 0
  %4263 = vmatprep.subr.bf16.mxu0 0
  %4264 = vmatpush1.bf16.xpose.msra.mxu0 %v4247
  %4265 = vmatprep.subr.bf16.mxu0 0
  %4266 = vmatpush2.bf16.xpose.msra.mxu0 0
  %4267 = vmatprep.subr.bf16.mxu0 0
  %4268 = vmatpush2.bf16.xpose.msra.mxu0 0
  %4269 = vmatprep.subr.bf16.mxu0 0
  %4270 = vmatpush2.bf16.xpose.msra.mxu0 0
  %4271 = vmatprep.subr.bf16.mxu0 0
  %4272 = vmatpush2.bf16.xpose.msra.mxu0 0
  %4273 = vmatprep.subr.bf16.mxu0 0
  %4274 = vmatpush2.bf16.xpose.msra.mxu0 0
  %4275 = vmatprep.subr.bf16.mxu0 0
  %4276 = vmatpush2.bf16.xpose.msra.mxu0 0
  %4277 = vmatprep.subr.bf16.mxu0 0
  %4278 = vmatpush2.bf16.xpose.msra.mxu0 0
  %4279 = vmatprep.subr.bf16.mxu0 0
  %4280 = vmatpush2.bf16.xpose.msra.mxu0 0
  %4281 = vmatprep.mubr.bf16.mxu0 0
  %4282 = vmatmul.mubr.bf16.gmra.mxu0 %v4244
  %v4283 = vpop.f32.mrf.mxu0
  %v4284 = vadd.f32 0.0, %v4283
  %v4285 = vpop.f32.mrf.mxu0
  %v4286 = vpop.f32.mrf.mxu0
  %v4287 = vpop.f32.mrf.mxu0
  %4288 = vdwg.mxu0
  %4289 = vrot.lane.b32.xlu0 %v3796, 96
  %v4290 = vpop.permute.xlu0 %4289
  %4291 = vrot.lane.b32.xlu0 %v3796, 32
  %v4292 = vpop.permute.xlu0 %4291
  %v4294 = vsel %vm370, %v4290, 0
  %v4297 = vsel %vm370, %v4292, 0
  %4299 = vmatprep.subr.bf16.mxu0 0
  %4300 = vmatpush1.bf16.xpose.msra.mxu0 0
  %4301 = vmatprep.subr.bf16.mxu0 0
  %4302 = vmatpush1.bf16.xpose.msra.mxu0 0
  %4303 = vmatprep.subr.bf16.mxu0 0
  %4304 = vmatpush1.bf16.xpose.msra.mxu0 0
  %4305 = vmatprep.subr.bf16.mxu0 0
  %4306 = vmatpush1.bf16.xpose.msra.mxu0 0
  %4307 = vmatprep.subr.bf16.mxu0 0
  %4308 = vmatpush1.bf16.xpose.msra.mxu0 0
  %4309 = vmatprep.subr.bf16.mxu0 0
  %4310 = vmatpush1.bf16.xpose.msra.mxu0 0
  %4311 = vmatprep.subr.bf16.mxu0 0
  %4312 = vmatpush1.bf16.xpose.msra.mxu0 0
  %4313 = vmatprep.subr.bf16.mxu0 0
  %4314 = vmatpush1.bf16.xpose.msra.mxu0 %v4297
  %4315 = vmatprep.subr.bf16.mxu0 0
  %4316 = vmatpush2.bf16.xpose.msra.mxu0 0
  %4317 = vmatprep.subr.bf16.mxu0 0
  %4318 = vmatpush2.bf16.xpose.msra.mxu0 0
  %4319 = vmatprep.subr.bf16.mxu0 0
  %4320 = vmatpush2.bf16.xpose.msra.mxu0 0
  %4321 = vmatprep.subr.bf16.mxu0 0
  %4322 = vmatpush2.bf16.xpose.msra.mxu0 0
  %4323 = vmatprep.subr.bf16.mxu0 0
  %4324 = vmatpush2.bf16.xpose.msra.mxu0 0
  %4325 = vmatprep.subr.bf16.mxu0 0
  %4326 = vmatpush2.bf16.xpose.msra.mxu0 0
  %4327 = vmatprep.subr.bf16.mxu0 0
  %4328 = vmatpush2.bf16.xpose.msra.mxu0 0
  %4329 = vmatprep.subr.bf16.mxu0 0
  %4330 = vmatpush2.bf16.xpose.msra.mxu0 0
  %4331 = vmatprep.mubr.bf16.mxu0 0
  %4332 = vmatmul.mubr.bf16.gmra.mxu0 %v4294
  %v4333 = vpop.f32.mrf.mxu0
  %v4334 = vadd.f32 0.0, %v4333
  %v4335 = vpop.f32.mrf.mxu0
  %v4336 = vpop.f32.mrf.mxu0
  %v4337 = vpop.f32.mrf.mxu0
  %4338 = vdwg.mxu0
  %v4339 = vmul.f32 %v4284, 0.25
  %v4340 = vmul.f32 %v4334, 0.25
  %v4341 = vsel %vm468, %v4339, -inf
  %4342 = vmax.xlane.f32.xlu0 %v4341
  %v4343 = vpop.xlane.xlu0 %4342
  %v4344 = vsel %vm468, %v4340, -inf
  %4345 = vmax.xlane.f32.xlu0 %v4344
  %v4346 = vpop.xlane.xlu0 %4345
  %v4347 = vsub.f32 %v4339, %v4343
  %v4348 = vsub.f32 %v4340, %v4346
  %v4349 = vmul.f32 %v4347, 1.442695
  %v4350 = vpow.pop %v4349
  %v4351 = vmul.f32 %v4348, 1.442695
  %v4352 = vpow.pop %v4351
  %v4353 = vsel %vm468, %v4350, 0.0
  %4354 = vadd.xlane.f32.xlu0 %v4353
  %v4355 = vpop.xlane.xlu0 %4354
  %v4356 = vsel %vm468, %v4352, 0.0
  %4357 = vadd.xlane.f32.xlu0 %v4356
  %v4358 = vpop.xlane.xlu0 %4357
  %v4359 = vrcp.pop %v4355
  %v4360 = vrcp.pop %v4358
  %v4361 = vmul.f32 %v4350, %v4359
  %v4362 = vmul.f32 %v4352, %v4360
  %v4363 = vpack.c.bf16 %v4361, %v4361
  %v4364 = vpack.c.bf16 %v4362, %v4362
  %4365 = vrot.lane.b32.xlu0 %v3921, 96
  %v4366 = vpop.permute.xlu0 %4365
  %v4368 = vsel %vm468, %v4363, 0
  %v4371 = vsel %vm498, %v4366, 0
  %4373 = vmatprep.subr.bf16.mxu0 0
  %4374 = vmatpush1.bf16.msra.mxu0 0
  %4375 = vmatprep.subr.bf16.mxu0 0
  %4376 = vmatpush1.bf16.msra.mxu0 0
  %4377 = vmatprep.subr.bf16.mxu0 0
  %4378 = vmatpush1.bf16.msra.mxu0 0
  %4379 = vmatprep.subr.bf16.mxu0 0
  %4380 = vmatpush1.bf16.msra.mxu0 0
  %4381 = vmatprep.subr.bf16.mxu0 0
  %4382 = vmatpush1.bf16.msra.mxu0 0
  %4383 = vmatprep.subr.bf16.mxu0 0
  %4384 = vmatpush1.bf16.msra.mxu0 0
  %4385 = vmatprep.subr.bf16.mxu0 0
  %4386 = vmatpush1.bf16.msra.mxu0 0
  %4387 = vmatprep.subr.bf16.mxu0 0
  %4388 = vmatpush1.bf16.msra.mxu0 %v4371
  %4389 = vmatprep.subr.bf16.mxu0 0
  %4390 = vmatpush2.bf16.msra.mxu0 0
  %4391 = vmatprep.subr.bf16.mxu0 0
  %4392 = vmatpush2.bf16.msra.mxu0 0
  %4393 = vmatprep.subr.bf16.mxu0 0
  %4394 = vmatpush2.bf16.msra.mxu0 0
  %4395 = vmatprep.subr.bf16.mxu0 0
  %4396 = vmatpush2.bf16.msra.mxu0 0
  %4397 = vmatprep.subr.bf16.mxu0 0
  %4398 = vmatpush2.bf16.msra.mxu0 0
  %4399 = vmatprep.subr.bf16.mxu0 0
  %4400 = vmatpush2.bf16.msra.mxu0 0
  %4401 = vmatprep.subr.bf16.mxu0 0
  %4402 = vmatpush2.bf16.msra.mxu0 0
  %4403 = vmatprep.subr.bf16.mxu0 0
  %4404 = vmatpush2.bf16.msra.mxu0 0
  %4405 = vmatprep.mubr.bf16.mxu0 0
  %4406 = vmatmul.mubr.bf16.gmra.mxu0 %v4368
  %v4407 = vpop.f32.mrf.mxu0
  %v4408 = vadd.f32 0.0, %v4407
  %v4409 = vpop.f32.mrf.mxu0
  %v4410 = vpop.f32.mrf.mxu0
  %v4411 = vpop.f32.mrf.mxu0
  %4412 = vdwg.mxu0
  %4413 = vrot.lane.b32.xlu0 %v3922, 96
  %v4414 = vpop.permute.xlu0 %4413
  %v4416 = vsel %vm468, %v4364, 0
  %v4419 = vsel %vm498, %v4414, 0
  %4421 = vmatprep.subr.bf16.mxu0 0
  %4422 = vmatpush1.bf16.msra.mxu0 0
  %4423 = vmatprep.subr.bf16.mxu0 0
  %4424 = vmatpush1.bf16.msra.mxu0 0
  %4425 = vmatprep.subr.bf16.mxu0 0
  %4426 = vmatpush1.bf16.msra.mxu0 0
  %4427 = vmatprep.subr.bf16.mxu0 0
  %4428 = vmatpush1.bf16.msra.mxu0 0
  %4429 = vmatprep.subr.bf16.mxu0 0
  %4430 = vmatpush1.bf16.msra.mxu0 0
  %4431 = vmatprep.subr.bf16.mxu0 0
  %4432 = vmatpush1.bf16.msra.mxu0 0
  %4433 = vmatprep.subr.bf16.mxu0 0
  %4434 = vmatpush1.bf16.msra.mxu0 0
  %4435 = vmatprep.subr.bf16.mxu0 0
  %4436 = vmatpush1.bf16.msra.mxu0 %v4419
  %4437 = vmatprep.subr.bf16.mxu0 0
  %4438 = vmatpush2.bf16.msra.mxu0 0
  %4439 = vmatprep.subr.bf16.mxu0 0
  %4440 = vmatpush2.bf16.msra.mxu0 0
  %4441 = vmatprep.subr.bf16.mxu0 0
  %4442 = vmatpush2.bf16.msra.mxu0 0
  %4443 = vmatprep.subr.bf16.mxu0 0
  %4444 = vmatpush2.bf16.msra.mxu0 0
  %4445 = vmatprep.subr.bf16.mxu0 0
  %4446 = vmatpush2.bf16.msra.mxu0 0
  %4447 = vmatprep.subr.bf16.mxu0 0
  %4448 = vmatpush2.bf16.msra.mxu0 0
  %4449 = vmatprep.subr.bf16.mxu0 0
  %4450 = vmatpush2.bf16.msra.mxu0 0
  %4451 = vmatprep.subr.bf16.mxu0 0
  %4452 = vmatpush2.bf16.msra.mxu0 0
  %4453 = vmatprep.mubr.bf16.mxu0 0
  %4454 = vmatmul.mubr.bf16.gmra.mxu0 %v4416
  %v4455 = vpop.f32.mrf.mxu0
  %v4456 = vadd.f32 0.0, %v4455
  %v4457 = vpop.f32.mrf.mxu0
  %v4458 = vpop.f32.mrf.mxu0
  %v4459 = vpop.f32.mrf.mxu0
  %4460 = vdwg.mxu0
  %4461 = vrot.lane.b32.xlu0 %v3795, 80
  %v4462 = vpop.permute.xlu0 %4461
  %4463 = vrot.lane.b32.xlu0 %v3795, 16
  %v4464 = vpop.permute.xlu0 %4463
  %v4466 = vsel %vm370, %v4462, 0
  %v4469 = vsel %vm370, %v4464, 0
  %4471 = vmatprep.subr.bf16.mxu0 0
  %4472 = vmatpush1.bf16.xpose.msra.mxu0 0
  %4473 = vmatprep.subr.bf16.mxu0 0
  %4474 = vmatpush1.bf16.xpose.msra.mxu0 0
  %4475 = vmatprep.subr.bf16.mxu0 0
  %4476 = vmatpush1.bf16.xpose.msra.mxu0 0
  %4477 = vmatprep.subr.bf16.mxu0 0
  %4478 = vmatpush1.bf16.xpose.msra.mxu0 0
  %4479 = vmatprep.subr.bf16.mxu0 0
  %4480 = vmatpush1.bf16.xpose.msra.mxu0 0
  %4481 = vmatprep.subr.bf16.mxu0 0
  %4482 = vmatpush1.bf16.xpose.msra.mxu0 0
  %4483 = vmatprep.subr.bf16.mxu0 0
  %4484 = vmatpush1.bf16.xpose.msra.mxu0 0
  %4485 = vmatprep.subr.bf16.mxu0 0
  %4486 = vmatpush1.bf16.xpose.msra.mxu0 %v4469
  %4487 = vmatprep.subr.bf16.mxu0 0
  %4488 = vmatpush2.bf16.xpose.msra.mxu0 0
  %4489 = vmatprep.subr.bf16.mxu0 0
  %4490 = vmatpush2.bf16.xpose.msra.mxu0 0
  %4491 = vmatprep.subr.bf16.mxu0 0
  %4492 = vmatpush2.bf16.xpose.msra.mxu0 0
  %4493 = vmatprep.subr.bf16.mxu0 0
  %4494 = vmatpush2.bf16.xpose.msra.mxu0 0
  %4495 = vmatprep.subr.bf16.mxu0 0
  %4496 = vmatpush2.bf16.xpose.msra.mxu0 0
  %4497 = vmatprep.subr.bf16.mxu0 0
  %4498 = vmatpush2.bf16.xpose.msra.mxu0 0
  %4499 = vmatprep.subr.bf16.mxu0 0
  %4500 = vmatpush2.bf16.xpose.msra.mxu0 0
  %4501 = vmatprep.subr.bf16.mxu0 0
  %4502 = vmatpush2.bf16.xpose.msra.mxu0 0
  %4503 = vmatprep.mubr.bf16.mxu0 0
  %4504 = vmatmul.mubr.bf16.gmra.mxu0 %v4466
  %v4505 = vpop.f32.mrf.mxu0
  %v4506 = vadd.f32 0.0, %v4505
  %v4507 = vpop.f32.mrf.mxu0
  %v4508 = vpop.f32.mrf.mxu0
  %v4509 = vpop.f32.mrf.mxu0
  %4510 = vdwg.mxu0
  %4511 = vrot.lane.b32.xlu0 %v3796, 80
  %v4512 = vpop.permute.xlu0 %4511
  %4513 = vrot.lane.b32.xlu0 %v3796, 16
  %v4514 = vpop.permute.xlu0 %4513
  %v4516 = vsel %vm370, %v4512, 0
  %v4519 = vsel %vm370, %v4514, 0
  %4521 = vmatprep.subr.bf16.mxu0 0
  %4522 = vmatpush1.bf16.xpose.msra.mxu0 0
  %4523 = vmatprep.subr.bf16.mxu0 0
  %4524 = vmatpush1.bf16.xpose.msra.mxu0 0
  %4525 = vmatprep.subr.bf16.mxu0 0
  %4526 = vmatpush1.bf16.xpose.msra.mxu0 0
  %4527 = vmatprep.subr.bf16.mxu0 0
  %4528 = vmatpush1.bf16.xpose.msra.mxu0 0
  %4529 = vmatprep.subr.bf16.mxu0 0
  %4530 = vmatpush1.bf16.xpose.msra.mxu0 0
  %4531 = vmatprep.subr.bf16.mxu0 0
  %4532 = vmatpush1.bf16.xpose.msra.mxu0 0
  %4533 = vmatprep.subr.bf16.mxu0 0
  %4534 = vmatpush1.bf16.xpose.msra.mxu0 0
  %4535 = vmatprep.subr.bf16.mxu0 0
  %4536 = vmatpush1.bf16.xpose.msra.mxu0 %v4519
  %4537 = vmatprep.subr.bf16.mxu0 0
  %4538 = vmatpush2.bf16.xpose.msra.mxu0 0
  %4539 = vmatprep.subr.bf16.mxu0 0
  %4540 = vmatpush2.bf16.xpose.msra.mxu0 0
  %4541 = vmatprep.subr.bf16.mxu0 0
  %4542 = vmatpush2.bf16.xpose.msra.mxu0 0
  %4543 = vmatprep.subr.bf16.mxu0 0
  %4544 = vmatpush2.bf16.xpose.msra.mxu0 0
  %4545 = vmatprep.subr.bf16.mxu0 0
  %4546 = vmatpush2.bf16.xpose.msra.mxu0 0
  %4547 = vmatprep.subr.bf16.mxu0 0
  %4548 = vmatpush2.bf16.xpose.msra.mxu0 0
  %4549 = vmatprep.subr.bf16.mxu0 0
  %4550 = vmatpush2.bf16.xpose.msra.mxu0 0
  %4551 = vmatprep.subr.bf16.mxu0 0
  %4552 = vmatpush2.bf16.xpose.msra.mxu0 0
  %4553 = vmatprep.mubr.bf16.mxu0 0
  %4554 = vmatmul.mubr.bf16.gmra.mxu0 %v4516
  %v4555 = vpop.f32.mrf.mxu0
  %v4556 = vadd.f32 0.0, %v4555
  %v4557 = vpop.f32.mrf.mxu0
  %v4558 = vpop.f32.mrf.mxu0
  %v4559 = vpop.f32.mrf.mxu0
  %4560 = vdwg.mxu0
  %v4561 = vmul.f32 %v4506, 0.25
  %v4562 = vmul.f32 %v4556, 0.25
  %v4563 = vsel %vm468, %v4561, -inf
  %4564 = vmax.xlane.f32.xlu0 %v4563
  %v4565 = vpop.xlane.xlu0 %4564
  %v4566 = vsel %vm468, %v4562, -inf
  %4567 = vmax.xlane.f32.xlu0 %v4566
  %v4568 = vpop.xlane.xlu0 %4567
  %v4569 = vsub.f32 %v4561, %v4565
  %v4570 = vsub.f32 %v4562, %v4568
  %v4571 = vmul.f32 %v4569, 1.442695
  %v4572 = vpow.pop %v4571
  %v4573 = vmul.f32 %v4570, 1.442695
  %v4574 = vpow.pop %v4573
  %v4575 = vsel %vm468, %v4572, 0.0
  %4576 = vadd.xlane.f32.xlu0 %v4575
  %v4577 = vpop.xlane.xlu0 %4576
  %v4578 = vsel %vm468, %v4574, 0.0
  %4579 = vadd.xlane.f32.xlu0 %v4578
  %v4580 = vpop.xlane.xlu0 %4579
  %v4581 = vrcp.pop %v4577
  %v4582 = vrcp.pop %v4580
  %v4583 = vmul.f32 %v4572, %v4581
  %v4584 = vmul.f32 %v4574, %v4582
  %v4585 = vpack.c.bf16 %v4583, %v4583
  %v4586 = vpack.c.bf16 %v4584, %v4584
  %4587 = vrot.lane.b32.xlu0 %v3921, 80
  %v4588 = vpop.permute.xlu0 %4587
  %v4590 = vsel %vm468, %v4585, 0
  %v4593 = vsel %vm498, %v4588, 0
  %4595 = vmatprep.subr.bf16.mxu0 0
  %4596 = vmatpush1.bf16.msra.mxu0 0
  %4597 = vmatprep.subr.bf16.mxu0 0
  %4598 = vmatpush1.bf16.msra.mxu0 0
  %4599 = vmatprep.subr.bf16.mxu0 0
  %4600 = vmatpush1.bf16.msra.mxu0 0
  %4601 = vmatprep.subr.bf16.mxu0 0
  %4602 = vmatpush1.bf16.msra.mxu0 0
  %4603 = vmatprep.subr.bf16.mxu0 0
  %4604 = vmatpush1.bf16.msra.mxu0 0
  %4605 = vmatprep.subr.bf16.mxu0 0
  %4606 = vmatpush1.bf16.msra.mxu0 0
  %4607 = vmatprep.subr.bf16.mxu0 0
  %4608 = vmatpush1.bf16.msra.mxu0 0
  %4609 = vmatprep.subr.bf16.mxu0 0
  %4610 = vmatpush1.bf16.msra.mxu0 %v4593
  %4611 = vmatprep.subr.bf16.mxu0 0
  %4612 = vmatpush2.bf16.msra.mxu0 0
  %4613 = vmatprep.subr.bf16.mxu0 0
  %4614 = vmatpush2.bf16.msra.mxu0 0
  %4615 = vmatprep.subr.bf16.mxu0 0
  %4616 = vmatpush2.bf16.msra.mxu0 0
  %4617 = vmatprep.subr.bf16.mxu0 0
  %4618 = vmatpush2.bf16.msra.mxu0 0
  %4619 = vmatprep.subr.bf16.mxu0 0
  %4620 = vmatpush2.bf16.msra.mxu0 0
  %4621 = vmatprep.subr.bf16.mxu0 0
  %4622 = vmatpush2.bf16.msra.mxu0 0
  %4623 = vmatprep.subr.bf16.mxu0 0
  %4624 = vmatpush2.bf16.msra.mxu0 0
  %4625 = vmatprep.subr.bf16.mxu0 0
  %4626 = vmatpush2.bf16.msra.mxu0 0
  %4627 = vmatprep.mubr.bf16.mxu0 0
  %4628 = vmatmul.mubr.bf16.gmra.mxu0 %v4590
  %v4629 = vpop.f32.mrf.mxu0
  %v4630 = vadd.f32 0.0, %v4629
  %v4631 = vpop.f32.mrf.mxu0
  %v4632 = vpop.f32.mrf.mxu0
  %v4633 = vpop.f32.mrf.mxu0
  %4634 = vdwg.mxu0
  %4635 = vrot.lane.b32.xlu0 %v3922, 80
  %v4636 = vpop.permute.xlu0 %4635
  %v4638 = vsel %vm468, %v4586, 0
  %v4641 = vsel %vm498, %v4636, 0
  %4643 = vmatprep.subr.bf16.mxu0 0
  %4644 = vmatpush1.bf16.msra.mxu0 0
  %4645 = vmatprep.subr.bf16.mxu0 0
  %4646 = vmatpush1.bf16.msra.mxu0 0
  %4647 = vmatprep.subr.bf16.mxu0 0
  %4648 = vmatpush1.bf16.msra.mxu0 0
  %4649 = vmatprep.subr.bf16.mxu0 0
  %4650 = vmatpush1.bf16.msra.mxu0 0
  %4651 = vmatprep.subr.bf16.mxu0 0
  %4652 = vmatpush1.bf16.msra.mxu0 0
  %4653 = vmatprep.subr.bf16.mxu0 0
  %4654 = vmatpush1.bf16.msra.mxu0 0
  %4655 = vmatprep.subr.bf16.mxu0 0
  %4656 = vmatpush1.bf16.msra.mxu0 0
  %4657 = vmatprep.subr.bf16.mxu0 0
  %4658 = vmatpush1.bf16.msra.mxu0 %v4641
  %4659 = vmatprep.subr.bf16.mxu0 0
  %4660 = vmatpush2.bf16.msra.mxu0 0
  %4661 = vmatprep.subr.bf16.mxu0 0
  %4662 = vmatpush2.bf16.msra.mxu0 0
  %4663 = vmatprep.subr.bf16.mxu0 0
  %4664 = vmatpush2.bf16.msra.mxu0 0
  %4665 = vmatprep.subr.bf16.mxu0 0
  %4666 = vmatpush2.bf16.msra.mxu0 0
  %4667 = vmatprep.subr.bf16.mxu0 0
  %4668 = vmatpush2.bf16.msra.mxu0 0
  %4669 = vmatprep.subr.bf16.mxu0 0
  %4670 = vmatpush2.bf16.msra.mxu0 0
  %4671 = vmatprep.subr.bf16.mxu0 0
  %4672 = vmatpush2.bf16.msra.mxu0 0
  %4673 = vmatprep.subr.bf16.mxu0 0
  %4674 = vmatpush2.bf16.msra.mxu0 0
  %4675 = vmatprep.mubr.bf16.mxu0 0
  %4676 = vmatmul.mubr.bf16.gmra.mxu0 %v4638
  %v4677 = vpop.f32.mrf.mxu0
  %v4678 = vadd.f32 0.0, %v4677
  %v4679 = vpop.f32.mrf.mxu0
  %v4680 = vpop.f32.mrf.mxu0
  %v4681 = vpop.f32.mrf.mxu0
  %4682 = vdwg.mxu0
  %4685 = vrot.lane.b32.xlu0 %v4185, 16
  %v4686 = vpop.permute.xlu0 %4685
  %4687 = vrot.lane.b32.xlu0 %v4234, 16
  %v4688 = vpop.permute.xlu0 %4687
  %4693 = vrot.lane.b32.xlu0 %v4408, 32
  %v4694 = vpop.permute.xlu0 %4693
  %4695 = vrot.lane.b32.xlu0 %v4456, 32
  %v4696 = vpop.permute.xlu0 %4695
  %4701 = vrot.lane.b32.xlu0 %v4630, 48
  %v4702 = vpop.permute.xlu0 %4701
  %4703 = vrot.lane.b32.xlu0 %v4678, 48
  %v4704 = vpop.permute.xlu0 %4703
  %v4707 = vsel %vm370, %v3964, %v4686
  %v4708 = vsel %vm370, %v4010, %v4688
  %v4709 = vsel %vm1282, %v4707, %v4694
  %v4710 = vsel %vm1282, %v4708, %v4696
  %v4711 = vsel %vm1285, %v4709, %v4702
  %v4712 = vsel %vm1285, %v4710, %v4704
  %v4713 = vpack.c.bf16 %v4712, %v4711
  %v4714 = vld [vmem:[%s39] sm:$0xf]
  %v4715 = vld [vmem:[%s39 + $0x4] sm:$0xf]
  %v4716 = vld [vmem:[%s39 + $0x8] sm:$0xf]
  %v4717 = vld [vmem:[%s39 + $0xc] sm:$0xf]
  %v4718 = vld [vmem:[%s39 + $0x10] sm:$0xf]
  %v4719 = vld [vmem:[%s39 + $0x14] sm:$0xf]
  %v4720 = vld [vmem:[%s39 + $0x18] sm:$0xf]
  %v4721 = vld [vmem:[%s39 + $0x1c] sm:$0xf]
  %v4722 = vld [vmem:[%s41] sm:$0x1]
  %v4724 = vlaneseq
  %v4725 = vshrl.u32 %v4724, 7
  %v4726 = vsub.s32 0, %v4725
  %v4727 = vrot.slane %v4722, %v4726
  %v4737 = vunpack.c.l.b16 %v4714
  %v4738 = vunpack.c.l.b16 %v4715
  %v4739 = vunpack.c.l.b16 %v4716
  %v4740 = vunpack.c.l.b16 %v4717
  %v4741 = vunpack.c.l.b16 %v4718
  %v4742 = vunpack.c.l.b16 %v4719
  %v4743 = vunpack.c.l.b16 %v4720
  %v4744 = vunpack.c.l.b16 %v4721
  %v4745 = vpack.c.b16 %v4738, %v4737
  %v4746 = vpack.c.b16 %v4740, %v4739
  %v4747 = vpack.c.b16 %v4742, %v4741
  %v4748 = vpack.c.b16 %v4744, %v4743
  %v4754 = vsel %vm213, %v4713, 0
  %4756 = vmatprep.subr.bf16.mxu0 0
  %4757 = vmatpush1.bf16.msra.mxu0 0
  %4758 = vmatprep.subr.bf16.mxu0 0
  %4759 = vmatpush1.bf16.msra.mxu0 0
  %4760 = vmatprep.subr.bf16.mxu0 0
  %4761 = vmatpush1.bf16.msra.mxu0 0
  %4762 = vmatprep.subr.bf16.mxu0 0
  %4763 = vmatpush1.bf16.msra.mxu0 0
  %4764 = vmatprep.subr.bf16.mxu0 0
  %4765 = vmatpush1.bf16.msra.mxu0 %v4748
  %4766 = vmatprep.subr.bf16.mxu0 0
  %4767 = vmatpush1.bf16.msra.mxu0 %v4747
  %4768 = vmatprep.subr.bf16.mxu0 0
  %4769 = vmatpush1.bf16.msra.mxu0 %v4746
  %4770 = vmatprep.subr.bf16.mxu0 0
  %4771 = vmatpush1.bf16.msra.mxu0 %v4745
  %4772 = vmatprep.subr.bf16.mxu0 0
  %4773 = vmatpush2.bf16.msra.mxu0 0
  %4774 = vmatprep.subr.bf16.mxu0 0
  %4775 = vmatpush2.bf16.msra.mxu0 0
  %4776 = vmatprep.subr.bf16.mxu0 0
  %4777 = vmatpush2.bf16.msra.mxu0 0
  %4778 = vmatprep.subr.bf16.mxu0 0
  %4779 = vmatpush2.bf16.msra.mxu0 0
  %4780 = vmatprep.subr.bf16.mxu0 0
  %4781 = vmatpush2.bf16.msra.mxu0 0
  %4782 = vmatprep.subr.bf16.mxu0 0
  %4783 = vmatpush2.bf16.msra.mxu0 0
  %4784 = vmatprep.subr.bf16.mxu0 0
  %4785 = vmatpush2.bf16.msra.mxu0 0
  %4786 = vmatprep.subr.bf16.mxu0 0
  %4787 = vmatpush2.bf16.msra.mxu0 0
  %4788 = vmatprep.mubr.bf16.mxu0 0
  %4789 = vmatmul.mubr.bf16.gmra.mxu0 %v4754
  %v4790 = vpop.f32.mrf.mxu0
  %v4791 = vadd.f32 %v4727, %v4790
  %v4792 = vpop.f32.mrf.mxu0
  %v4793 = vpop.f32.mrf.mxu0
  %v4794 = vadd.f32 %v4727, %v4793
  %v4795 = vpop.f32.mrf.mxu0
  %4796 = vdwg.mxu0
  %v4797 = vadd.f32 %v4791, %v3686
  %v4798 = vadd.f32 %v4794, %v3687
  %v4799 = vld [vmem:[%s43] sm:$0x1]
  %v4800 = vld [vmem:[%s45] sm:$0x1]
  %v4801 = vsel %vm213, %v4797, 0.0
  %4802 = vadd.xlane.f32.xlu0 %v4801
  %v4803 = vpop.xlane.xlu0 %4802
  %v4804 = vsel %vm213, %v4798, 0.0
  %4805 = vadd.xlane.f32.xlu0 %v4804
  %v4806 = vpop.xlane.xlu0 %4805
  %v4807 = vmul.f32 %v4803, %v1382
  %v4808 = vmul.f32 %v4806, %v1382
  %v4809 = vsub.f32 %v4797, %v4807
  %v4810 = vsub.f32 %v4798, %v4808
  %v4811 = vmul.f32 %v4809, %v4809
  %v4812 = vmul.f32 %v4810, %v4810
  %v4813 = vsel %vm213, %v4811, 0.0
  %4814 = vadd.xlane.f32.xlu0 %v4813
  %v4815 = vpop.xlane.xlu0 %4814
  %v4816 = vsel %vm213, %v4812, 0.0
  %4817 = vadd.xlane.f32.xlu0 %v4816
  %v4818 = vpop.xlane.xlu0 %4817
  %v4819 = vmul.f32 %v4815, %v1382
  %v4820 = vmul.f32 %v4818, %v1382
  %v4821 = vadd.f32 %v4819, 1e-05
  %v4822 = vadd.f32 %v4820, 1e-05
  %v4823 = vrsqrt.pop %v4821
  %v4824 = vrsqrt.pop %v4822
  %v4825 = vmul.f32 %v4809, %v4823
  %v4826 = vmul.f32 %v4810, %v4824
  %v4828 = vlaneseq
  %v4829 = vshrl.u32 %v4828, 7
  %v4830 = vsub.s32 0, %v4829
  %v4831 = vrot.slane %v4799, %v4830
  %v4833 = vmul.f32 %v4825, %v4831
  %v4834 = vmul.f32 %v4826, %v4831
  %v4836 = vlaneseq
  %v4837 = vshrl.u32 %v4836, 7
  %v4838 = vsub.s32 0, %v4837
  %v4839 = vrot.slane %v4800, %v4838
  %v4841 = vadd.f32 %v4833, %v4839
  %v4842 = vadd.f32 %v4834, %v4839
  %v4843 = vpack.c.bf16 %v4842, %v4841
  %v4844 = vld [vmem:[%s47] sm:$0xff]
  %v4845 = vld [vmem:[%s47 + $0x8] sm:$0xff]
  %v4846 = vld [vmem:[%s47 + $0x10] sm:$0xff]
  %v4847 = vld [vmem:[%s47 + $0x18] sm:$0xff]
  %v4848 = vld [vmem:[%s47 + $0x20] sm:$0xff]
  %v4849 = vld [vmem:[%s47 + $0x28] sm:$0xff]
  %v4850 = vld [vmem:[%s47 + $0x30] sm:$0xff]
  %v4851 = vld [vmem:[%s47 + $0x38] sm:$0xff]
  %v4852 = vld [vmem:[%s47 + $0x40] sm:$0xff]
  %v4853 = vld [vmem:[%s47 + $0x48] sm:$0xff]
  %v4854 = vld [vmem:[%s47 + $0x50] sm:$0xff]
  %v4855 = vld [vmem:[%s47 + $0x58] sm:$0xff]
  %v4856 = vld [vmem:[%s47 + $0x60] sm:$0xff]
  %v4857 = vld [vmem:[%s47 + $0x68] sm:$0xff]
  %v4858 = vld [vmem:[%s47 + $0x70] sm:$0xff]
  %v4859 = vld [vmem:[%s47 + $0x78] sm:$0xff]
  %v4860 = vld [vmem:[%s47 + $0x80] sm:$0xff]
  %v4861 = vld [vmem:[%s47 + $0x88] sm:$0xff]
  %v4862 = vld [vmem:[%s47 + $0x90] sm:$0xff]
  %v4863 = vld [vmem:[%s47 + $0x98] sm:$0xff]
  %v4864 = vld [vmem:[%s47 + $0xa0] sm:$0xff]
  %v4865 = vld [vmem:[%s47 + $0xa8] sm:$0xff]
  %v4866 = vld [vmem:[%s47 + $0xb0] sm:$0xff]
  %v4867 = vld [vmem:[%s47 + $0xb8] sm:$0xff]
  %v4868 = vld [vmem:[%s47 + $0xc0] sm:$0xff]
  %v4869 = vld [vmem:[%s47 + $0xc8] sm:$0xff]
  %v4870 = vld [vmem:[%s47 + $0xd0] sm:$0xff]
  %v4871 = vld [vmem:[%s47 + $0xd8] sm:$0xff]
  %v4872 = vld [vmem:[%s47 + $0xe0] sm:$0xff]
  %v4873 = vld [vmem:[%s47 + $0xe8] sm:$0xff]
  %v4874 = vld [vmem:[%s47 + $0xf0] sm:$0xff]
  %v4875 = vld [vmem:[%s47 + $0xf8] sm:$0xff]
  %v4876 = vld [vmem:[%s47 + $0x100] sm:$0xff]
  %v4877 = vld [vmem:[%s47 + $0x108] sm:$0xff]
  %v4878 = vld [vmem:[%s47 + $0x110] sm:$0xff]
  %v4879 = vld [vmem:[%s47 + $0x118] sm:$0xff]
  %v4880 = vld [vmem:[%s47 + $0x120] sm:$0xff]
  %v4881 = vld [vmem:[%s47 + $0x128] sm:$0xff]
  %v4882 = vld [vmem:[%s47 + $0x130] sm:$0xff]
  %v4883 = vld [vmem:[%s47 + $0x138] sm:$0xff]
  %v4884 = vld [vmem:[%s47 + $0x140] sm:$0xff]
  %v4885 = vld [vmem:[%s47 + $0x148] sm:$0xff]
  %v4886 = vld [vmem:[%s47 + $0x150] sm:$0xff]
  %v4887 = vld [vmem:[%s47 + $0x158] sm:$0xff]
  %v4888 = vld [vmem:[%s47 + $0x160] sm:$0xff]
  %v4889 = vld [vmem:[%s47 + $0x168] sm:$0xff]
  %v4890 = vld [vmem:[%s47 + $0x170] sm:$0xff]
  %v4891 = vld [vmem:[%s47 + $0x178] sm:$0xff]
  %v4892 = vld [vmem:[%s47 + $0x180] sm:$0xff]
  %v4893 = vld [vmem:[%s47 + $0x188] sm:$0xff]
  %v4894 = vld [vmem:[%s47 + $0x190] sm:$0xff]
  %v4895 = vld [vmem:[%s47 + $0x198] sm:$0xff]
  %v4896 = vld [vmem:[%s47 + $0x1a0] sm:$0xff]
  %v4897 = vld [vmem:[%s47 + $0x1a8] sm:$0xff]
  %v4898 = vld [vmem:[%s47 + $0x1b0] sm:$0xff]
  %v4899 = vld [vmem:[%s47 + $0x1b8] sm:$0xff]
  %v4900 = vld [vmem:[%s47 + $0x1c0] sm:$0xff]
  %v4901 = vld [vmem:[%s47 + $0x1c8] sm:$0xff]
  %v4902 = vld [vmem:[%s47 + $0x1d0] sm:$0xff]
  %v4903 = vld [vmem:[%s47 + $0x1d8] sm:$0xff]
  %v4904 = vld [vmem:[%s47 + $0x1e0] sm:$0xff]
  %v4905 = vld [vmem:[%s47 + $0x1e8] sm:$0xff]
  %v4906 = vld [vmem:[%s47 + $0x1f0] sm:$0xff]
  %v4907 = vld [vmem:[%s47 + $0x1f8] sm:$0xff]
  %v4908 = vld [vmem:[%s49] sm:$0xff]
  %v4909 = vld [vmem:[%s49 + $0x8] sm:$0xff]
  %v4912 = vlaneseq
  %v4913 = vshrl.u32 %v4912, 7
  %v4914 = vsub.s32 0, %v4913
  %v4915 = vrot.slane %v4908, %v4914
  %v4916 = vlaneseq
  %v4917 = vshrl.u32 %v4916, 7
  %v4918 = vsub.s32 1, %v4917
  %v4919 = vrot.slane %v4908, %v4918
  %v4920 = vlaneseq
  %v4921 = vshrl.u32 %v4920, 7
  %v4922 = vsub.s32 2, %v4921
  %v4923 = vrot.slane %v4908, %v4922
  %v4924 = vlaneseq
  %v4925 = vshrl.u32 %v4924, 7
  %v4926 = vsub.s32 3, %v4925
  %v4927 = vrot.slane %v4908, %v4926
  %v4928 = vlaneseq
  %v4929 = vshrl.u32 %v4928, 7
  %v4930 = vsub.s32 4, %v4929
  %v4931 = vrot.slane %v4908, %v4930
  %v4932 = vlaneseq
  %v4933 = vshrl.u32 %v4932, 7
  %v4934 = vsub.s32 5, %v4933
  %v4935 = vrot.slane %v4908, %v4934
  %v4936 = vlaneseq
  %v4937 = vshrl.u32 %v4936, 7
  %v4938 = vsub.s32 6, %v4937
  %v4939 = vrot.slane %v4908, %v4938
  %v4940 = vlaneseq
  %v4941 = vshrl.u32 %v4940, 7
  %v4942 = vsub.s32 7, %v4941
  %v4943 = vrot.slane %v4908, %v4942
  %v4944 = vlaneseq
  %v4945 = vshrl.u32 %v4944, 7
  %v4946 = vsub.s32 0, %v4945
  %v4947 = vrot.slane %v4909, %v4946
  %v4948 = vlaneseq
  %v4949 = vshrl.u32 %v4948, 7
  %v4950 = vsub.s32 1, %v4949
  %v4951 = vrot.slane %v4909, %v4950
  %v4952 = vlaneseq
  %v4953 = vshrl.u32 %v4952, 7
  %v4954 = vsub.s32 2, %v4953
  %v4955 = vrot.slane %v4909, %v4954
  %v4956 = vlaneseq
  %v4957 = vshrl.u32 %v4956, 7
  %v4958 = vsub.s32 3, %v4957
  %v4959 = vrot.slane %v4909, %v4958
  %v4960 = vlaneseq
  %v4961 = vshrl.u32 %v4960, 7
  %v4962 = vsub.s32 4, %v4961
  %v4963 = vrot.slane %v4909, %v4962
  %v4964 = vlaneseq
  %v4965 = vshrl.u32 %v4964, 7
  %v4966 = vsub.s32 5, %v4965
  %v4967 = vrot.slane %v4909, %v4966
  %v4968 = vlaneseq
  %v4969 = vshrl.u32 %v4968, 7
  %v4970 = vsub.s32 6, %v4969
  %v4971 = vrot.slane %v4909, %v4970
  %v4972 = vlaneseq
  %v4973 = vshrl.u32 %v4972, 7
  %v4974 = vsub.s32 7, %v4973
  %v4975 = vrot.slane %v4909, %v4974
  %v5056 = vunpack.c.l.b16 %v4844
  %v5057 = vunpack.c.h.b16 %v4844
  %v5058 = vunpack.c.l.b16 %v4845
  %v5059 = vunpack.c.h.b16 %v4845
  %v5060 = vunpack.c.l.b16 %v4846
  %v5061 = vunpack.c.h.b16 %v4846
  %v5062 = vunpack.c.l.b16 %v4847
  %v5063 = vunpack.c.h.b16 %v4847
  %v5064 = vunpack.c.l.b16 %v4848
  %v5065 = vunpack.c.h.b16 %v4848
  %v5066 = vunpack.c.l.b16 %v4849
  %v5067 = vunpack.c.h.b16 %v4849
  %v5068 = vunpack.c.l.b16 %v4850
  %v5069 = vunpack.c.h.b16 %v4850
  %v5070 = vunpack.c.l.b16 %v4851
  %v5071 = vunpack.c.h.b16 %v4851
  %v5072 = vunpack.c.l.b16 %v4852
  %v5073 = vunpack.c.h.b16 %v4852
  %v5074 = vunpack.c.l.b16 %v4853
  %v5075 = vunpack.c.h.b16 %v4853
  %v5076 = vunpack.c.l.b16 %v4854
  %v5077 = vunpack.c.h.b16 %v4854
  %v5078 = vunpack.c.l.b16 %v4855
  %v5079 = vunpack.c.h.b16 %v4855
  %v5080 = vunpack.c.l.b16 %v4856
  %v5081 = vunpack.c.h.b16 %v4856
  %v5082 = vunpack.c.l.b16 %v4857
  %v5083 = vunpack.c.h.b16 %v4857
  %v5084 = vunpack.c.l.b16 %v4858
  %v5085 = vunpack.c.h.b16 %v4858
  %v5086 = vunpack.c.l.b16 %v4859
  %v5087 = vunpack.c.h.b16 %v4859
  %v5088 = vunpack.c.l.b16 %v4860
  %v5089 = vunpack.c.h.b16 %v4860
  %v5090 = vunpack.c.l.b16 %v4861
  %v5091 = vunpack.c.h.b16 %v4861
  %v5092 = vunpack.c.l.b16 %v4862
  %v5093 = vunpack.c.h.b16 %v4862
  %v5094 = vunpack.c.l.b16 %v4863
  %v5095 = vunpack.c.h.b16 %v4863
  %v5096 = vunpack.c.l.b16 %v4864
  %v5097 = vunpack.c.h.b16 %v4864
  %v5098 = vunpack.c.l.b16 %v4865
  %v5099 = vunpack.c.h.b16 %v4865
  %v5100 = vunpack.c.l.b16 %v4866
  %v5101 = vunpack.c.h.b16 %v4866
  %v5102 = vunpack.c.l.b16 %v4867
  %v5103 = vunpack.c.h.b16 %v4867
  %v5104 = vunpack.c.l.b16 %v4868
  %v5105 = vunpack.c.h.b16 %v4868
  %v5106 = vunpack.c.l.b16 %v4869
  %v5107 = vunpack.c.h.b16 %v4869
  %v5108 = vunpack.c.l.b16 %v4870
  %v5109 = vunpack.c.h.b16 %v4870
  %v5110 = vunpack.c.l.b16 %v4871
  %v5111 = vunpack.c.h.b16 %v4871
  %v5112 = vunpack.c.l.b16 %v4872
  %v5113 = vunpack.c.h.b16 %v4872
  %v5114 = vunpack.c.l.b16 %v4873
  %v5115 = vunpack.c.h.b16 %v4873
  %v5116 = vunpack.c.l.b16 %v4874
  %v5117 = vunpack.c.h.b16 %v4874
  %v5118 = vunpack.c.l.b16 %v4875
  %v5119 = vunpack.c.h.b16 %v4875
  %v5120 = vunpack.c.l.b16 %v4876
  %v5121 = vunpack.c.h.b16 %v4876
  %v5122 = vunpack.c.l.b16 %v4877
  %v5123 = vunpack.c.h.b16 %v4877
  %v5124 = vunpack.c.l.b16 %v4878
  %v5125 = vunpack.c.h.b16 %v4878
  %v5126 = vunpack.c.l.b16 %v4879
  %v5127 = vunpack.c.h.b16 %v4879
  %v5128 = vunpack.c.l.b16 %v4880
  %v5129 = vunpack.c.h.b16 %v4880
  %v5130 = vunpack.c.l.b16 %v4881
  %v5131 = vunpack.c.h.b16 %v4881
  %v5132 = vunpack.c.l.b16 %v4882
  %v5133 = vunpack.c.h.b16 %v4882
  %v5134 = vunpack.c.l.b16 %v4883
  %v5135 = vunpack.c.h.b16 %v4883
  %v5136 = vunpack.c.l.b16 %v4884
  %v5137 = vunpack.c.h.b16 %v4884
  %v5138 = vunpack.c.l.b16 %v4885
  %v5139 = vunpack.c.h.b16 %v4885
  %v5140 = vunpack.c.l.b16 %v4886
  %v5141 = vunpack.c.h.b16 %v4886
  %v5142 = vunpack.c.l.b16 %v4887
  %v5143 = vunpack.c.h.b16 %v4887
  %v5144 = vunpack.c.l.b16 %v4888
  %v5145 = vunpack.c.h.b16 %v4888
  %v5146 = vunpack.c.l.b16 %v4889
  %v5147 = vunpack.c.h.b16 %v4889
  %v5148 = vunpack.c.l.b16 %v4890
  %v5149 = vunpack.c.h.b16 %v4890
  %v5150 = vunpack.c.l.b16 %v4891
  %v5151 = vunpack.c.h.b16 %v4891
  %v5152 = vunpack.c.l.b16 %v4892
  %v5153 = vunpack.c.h.b16 %v4892
  %v5154 = vunpack.c.l.b16 %v4893
  %v5155 = vunpack.c.h.b16 %v4893
  %v5156 = vunpack.c.l.b16 %v4894
  %v5157 = vunpack.c.h.b16 %v4894
  %v5158 = vunpack.c.l.b16 %v4895
  %v5159 = vunpack.c.h.b16 %v4895
  %v5160 = vunpack.c.l.b16 %v4896
  %v5161 = vunpack.c.h.b16 %v4896
  %v5162 = vunpack.c.l.b16 %v4897
  %v5163 = vunpack.c.h.b16 %v4897
  %v5164 = vunpack.c.l.b16 %v4898
  %v5165 = vunpack.c.h.b16 %v4898
  %v5166 = vunpack.c.l.b16 %v4899
  %v5167 = vunpack.c.h.b16 %v4899
  %v5168 = vunpack.c.l.b16 %v4900
  %v5169 = vunpack.c.h.b16 %v4900
  %v5170 = vunpack.c.l.b16 %v4901
  %v5171 = vunpack.c.h.b16 %v4901
  %v5172 = vunpack.c.l.b16 %v4902
  %v5173 = vunpack.c.h.b16 %v4902
  %v5174 = vunpack.c.l.b16 %v4903
  %v5175 = vunpack.c.h.b16 %v4903
  %v5176 = vunpack.c.l.b16 %v4904
  %v5177 = vunpack.c.h.b16 %v4904
  %v5178 = vunpack.c.l.b16 %v4905
  %v5179 = vunpack.c.h.b16 %v4905
  %v5180 = vunpack.c.l.b16 %v4906
  %v5181 = vunpack.c.h.b16 %v4906
  %v5182 = vunpack.c.l.b16 %v4907
  %v5183 = vunpack.c.h.b16 %v4907
  %v5184 = vpack.c.b16 %v5072, %v5056
  %v5185 = vpack.c.b16 %v5073, %v5057
  %v5186 = vpack.c.b16 %v5074, %v5058
  %v5187 = vpack.c.b16 %v5075, %v5059
  %v5188 = vpack.c.b16 %v5076, %v5060
  %v5189 = vpack.c.b16 %v5077, %v5061
  %v5190 = vpack.c.b16 %v5078, %v5062
  %v5191 = vpack.c.b16 %v5079, %v5063
  %v5192 = vpack.c.b16 %v5080, %v5064
  %v5193 = vpack.c.b16 %v5081, %v5065
  %v5194 = vpack.c.b16 %v5082, %v5066
  %v5195 = vpack.c.b16 %v5083, %v5067
  %v5196 = vpack.c.b16 %v5084, %v5068
  %v5197 = vpack.c.b16 %v5085, %v5069
  %v5198 = vpack.c.b16 %v5086, %v5070
  %v5199 = vpack.c.b16 %v5087, %v5071
  %v5200 = vpack.c.b16 %v5104, %v5088
  %v5201 = vpack.c.b16 %v5105, %v5089
  %v5202 = vpack.c.b16 %v5106, %v5090
  %v5203 = vpack.c.b16 %v5107, %v5091
  %v5204 = vpack.c.b16 %v5108, %v5092
  %v5205 = vpack.c.b16 %v5109, %v5093
  %v5206 = vpack.c.b16 %v5110, %v5094
  %v5207 = vpack.c.b16 %v5111, %v5095
  %v5208 = vpack.c.b16 %v5112, %v5096
  %v5209 = vpack.c.b16 %v5113, %v5097
  %v5210 = vpack.c.b16 %v5114, %v5098
  %v5211 = vpack.c.b16 %v5115, %v5099
  %v5212 = vpack.c.b16 %v5116, %v5100
  %v5213 = vpack.c.b16 %v5117, %v5101
  %v5214 = vpack.c.b16 %v5118, %v5102
  %v5215 = vpack.c.b16 %v5119, %v5103
  %v5216 = vpack.c.b16 %v5136, %v5120
  %v5217 = vpack.c.b16 %v5137, %v5121
  %v5218 = vpack.c.b16 %v5138, %v5122
  %v5219 = vpack.c.b16 %v5139, %v5123
  %v5220 = vpack.c.b16 %v5140, %v5124
  %v5221 = vpack.c.b16 %v5141, %v5125
  %v5222 = vpack.c.b16 %v5142, %v5126
  %v5223 = vpack.c.b16 %v5143, %v5127
  %v5224 = vpack.c.b16 %v5144, %v5128
  %v5225 = vpack.c.b16 %v5145, %v5129
  %v5226 = vpack.c.b16 %v5146, %v5130
  %v5227 = vpack.c.b16 %v5147, %v5131
  %v5228 = vpack.c.b16 %v5148, %v5132
  %v5229 = vpack.c.b16 %v5149, %v5133
  %v5230 = vpack.c.b16 %v5150, %v5134
  %v5231 = vpack.c.b16 %v5151, %v5135
  %v5232 = vpack.c.b16 %v5168, %v5152
  %v5233 = vpack.c.b16 %v5169, %v5153
  %v5234 = vpack.c.b16 %v5170, %v5154
  %v5235 = vpack.c.b16 %v5171, %v5155
  %v5236 = vpack.c.b16 %v5172, %v5156
  %v5237 = vpack.c.b16 %v5173, %v5157
  %v5238 = vpack.c.b16 %v5174, %v5158
  %v5239 = vpack.c.b16 %v5175, %v5159
  %v5240 = vpack.c.b16 %v5176, %v5160
  %v5241 = vpack.c.b16 %v5177, %v5161
  %v5242 = vpack.c.b16 %v5178, %v5162
  %v5243 = vpack.c.b16 %v5179, %v5163
  %v5244 = vpack.c.b16 %v5180, %v5164
  %v5245 = vpack.c.b16 %v5181, %v5165
  %v5246 = vpack.c.b16 %v5182, %v5166
  %v5247 = vpack.c.b16 %v5183, %v5167
  %v5313 = vsel %vm213, %v4843, 0
  %5315 = vmatprep.subr.bf16.mxu0 0
  %5316 = vmatpush1.bf16.msra.mxu0 0
  %5317 = vmatprep.subr.bf16.mxu0 0
  %5318 = vmatpush1.bf16.msra.mxu0 0
  %5319 = vmatprep.subr.bf16.mxu0 0
  %5320 = vmatpush1.bf16.msra.mxu0 0
  %5321 = vmatprep.subr.bf16.mxu0 0
  %5322 = vmatpush1.bf16.msra.mxu0 0
  %5323 = vmatprep.subr.bf16.mxu0 %v5233
  %5324 = vmatpush1.bf16.msra.mxu0 %v5232
  %5325 = vmatprep.subr.bf16.mxu0 %v5217
  %5326 = vmatpush1.bf16.msra.mxu0 %v5216
  %5327 = vmatprep.subr.bf16.mxu0 %v5201
  %5328 = vmatpush1.bf16.msra.mxu0 %v5200
  %5329 = vmatprep.subr.bf16.mxu0 %v5185
  %5330 = vmatpush1.bf16.msra.mxu0 %v5184
  %5331 = vmatprep.subr.bf16.mxu0 0
  %5332 = vmatpush2.bf16.msra.mxu0 0
  %5333 = vmatprep.subr.bf16.mxu0 0
  %5334 = vmatpush2.bf16.msra.mxu0 0
  %5335 = vmatprep.subr.bf16.mxu0 0
  %5336 = vmatpush2.bf16.msra.mxu0 0
  %5337 = vmatprep.subr.bf16.mxu0 0
  %5338 = vmatpush2.bf16.msra.mxu0 0
  %5339 = vmatprep.subr.bf16.mxu0 0
  %5340 = vmatpush2.bf16.msra.mxu0 0
  %5341 = vmatprep.subr.bf16.mxu0 0
  %5342 = vmatpush2.bf16.msra.mxu0 0
  %5343 = vmatprep.subr.bf16.mxu0 0
  %5344 = vmatpush2.bf16.msra.mxu0 0
  %5345 = vmatprep.subr.bf16.mxu0 0
  %5346 = vmatpush2.bf16.msra.mxu0 0
  %5347 = vmatprep.mubr.bf16.mxu0 0
  %5348 = vmatmul.mubr.bf16.gmra.mxu0 %v5313
  %v5349 = vpop.f32.mrf.mxu0
  %v5350 = vadd.f32 %v4915, %v5349
  %v5351 = vpop.f32.mrf.mxu0
  %v5352 = vadd.f32 %v4919, %v5351
  %v5353 = vpop.f32.mrf.mxu0
  %v5354 = vadd.f32 %v4915, %v5353
  %v5355 = vpop.f32.mrf.mxu0
  %v5356 = vadd.f32 %v4919, %v5355
  %5357 = vdwg.mxu0
  %5358 = vmatprep.subr.bf16.mxu0 0
  %5359 = vmatpush1.bf16.msra.mxu0 0
  %5360 = vmatprep.subr.bf16.mxu0 0
  %5361 = vmatpush1.bf16.msra.mxu0 0
  %5362 = vmatprep.subr.bf16.mxu0 0
  %5363 = vmatpush1.bf16.msra.mxu0 0
  %5364 = vmatprep.subr.bf16.mxu0 0
  %5365 = vmatpush1.bf16.msra.mxu0 0
  %5366 = vmatprep.subr.bf16.mxu0 %v5235
  %5367 = vmatpush1.bf16.msra.mxu0 %v5234
  %5368 = vmatprep.subr.bf16.mxu0 %v5219
  %5369 = vmatpush1.bf16.msra.mxu0 %v5218
  %5370 = vmatprep.subr.bf16.mxu0 %v5203
  %5371 = vmatpush1.bf16.msra.mxu0 %v5202
  %5372 = vmatprep.subr.bf16.mxu0 %v5187
  %5373 = vmatpush1.bf16.msra.mxu0 %v5186
  %5374 = vmatprep.subr.bf16.mxu0 0
  %5375 = vmatpush2.bf16.msra.mxu0 0
  %5376 = vmatprep.subr.bf16.mxu0 0
  %5377 = vmatpush2.bf16.msra.mxu0 0
  %5378 = vmatprep.subr.bf16.mxu0 0
  %5379 = vmatpush2.bf16.msra.mxu0 0
  %5380 = vmatprep.subr.bf16.mxu0 0
  %5381 = vmatpush2.bf16.msra.mxu0 0
  %5382 = vmatprep.subr.bf16.mxu0 0
  %5383 = vmatpush2.bf16.msra.mxu0 0
  %5384 = vmatprep.subr.bf16.mxu0 0
  %5385 = vmatpush2.bf16.msra.mxu0 0
  %5386 = vmatprep.subr.bf16.mxu0 0
  %5387 = vmatpush2.bf16.msra.mxu0 0
  %5388 = vmatprep.subr.bf16.mxu0 0
  %5389 = vmatpush2.bf16.msra.mxu0 0
  %5390 = vmatprep.mubr.bf16.mxu0 0
  %5391 = vmatmul.mubr.bf16.gmra.mxu0 %v5313
  %v5392 = vpop.f32.mrf.mxu0
  %v5393 = vadd.f32 %v4923, %v5392
  %v5394 = vpop.f32.mrf.mxu0
  %v5395 = vadd.f32 %v4927, %v5394
  %v5396 = vpop.f32.mrf.mxu0
  %v5397 = vadd.f32 %v4923, %v5396
  %v5398 = vpop.f32.mrf.mxu0
  %v5399 = vadd.f32 %v4927, %v5398
  %5400 = vdwg.mxu0
  %5401 = vmatprep.subr.bf16.mxu0 0
  %5402 = vmatpush1.bf16.msra.mxu0 0
  %5403 = vmatprep.subr.bf16.mxu0 0
  %5404 = vmatpush1.bf16.msra.mxu0 0
  %5405 = vmatprep.subr.bf16.mxu0 0
  %5406 = vmatpush1.bf16.msra.mxu0 0
  %5407 = vmatprep.subr.bf16.mxu0 0
  %5408 = vmatpush1.bf16.msra.mxu0 0
  %5409 = vmatprep.subr.bf16.mxu0 %v5237
  %5410 = vmatpush1.bf16.msra.mxu0 %v5236
  %5411 = vmatprep.subr.bf16.mxu0 %v5221
  %5412 = vmatpush1.bf16.msra.mxu0 %v5220
  %5413 = vmatprep.subr.bf16.mxu0 %v5205
  %5414 = vmatpush1.bf16.msra.mxu0 %v5204
  %5415 = vmatprep.subr.bf16.mxu0 %v5189
  %5416 = vmatpush1.bf16.msra.mxu0 %v5188
  %5417 = vmatprep.subr.bf16.mxu0 0
  %5418 = vmatpush2.bf16.msra.mxu0 0
  %5419 = vmatprep.subr.bf16.mxu0 0
  %5420 = vmatpush2.bf16.msra.mxu0 0
  %5421 = vmatprep.subr.bf16.mxu0 0
  %5422 = vmatpush2.bf16.msra.mxu0 0
  %5423 = vmatprep.subr.bf16.mxu0 0
  %5424 = vmatpush2.bf16.msra.mxu0 0
  %5425 = vmatprep.subr.bf16.mxu0 0
  %5426 = vmatpush2.bf16.msra.mxu0 0
  %5427 = vmatprep.subr.bf16.mxu0 0
  %5428 = vmatpush2.bf16.msra.mxu0 0
  %5429 = vmatprep.subr.bf16.mxu0 0
  %5430 = vmatpush2.bf16.msra.mxu0 0
  %5431 = vmatprep.subr.bf16.mxu0 0
  %5432 = vmatpush2.bf16.msra.mxu0 0
  %5433 = vmatprep.mubr.bf16.mxu0 0
  %5434 = vmatmul.mubr.bf16.gmra.mxu0 %v5313
  %v5435 = vpop.f32.mrf.mxu0
  %v5436 = vadd.f32 %v4931, %v5435
  %v5437 = vpop.f32.mrf.mxu0
  %v5438 = vadd.f32 %v4935, %v5437
  %v5439 = vpop.f32.mrf.mxu0
  %v5440 = vadd.f32 %v4931, %v5439
  %v5441 = vpop.f32.mrf.mxu0
  %v5442 = vadd.f32 %v4935, %v5441
  %5443 = vdwg.mxu0
  %5444 = vmatprep.subr.bf16.mxu0 0
  %5445 = vmatpush1.bf16.msra.mxu0 0
  %5446 = vmatprep.subr.bf16.mxu0 0
  %5447 = vmatpush1.bf16.msra.mxu0 0
  %5448 = vmatprep.subr.bf16.mxu0 0
  %5449 = vmatpush1.bf16.msra.mxu0 0
  %5450 = vmatprep.subr.bf16.mxu0 0
  %5451 = vmatpush1.bf16.msra.mxu0 0
  %5452 = vmatprep.subr.bf16.mxu0 %v5239
  %5453 = vmatpush1.bf16.msra.mxu0 %v5238
  %5454 = vmatprep.subr.bf16.mxu0 %v5223
  %5455 = vmatpush1.bf16.msra.mxu0 %v5222
  %5456 = vmatprep.subr.bf16.mxu0 %v5207
  %5457 = vmatpush1.bf16.msra.mxu0 %v5206
  %5458 = vmatprep.subr.bf16.mxu0 %v5191
  %5459 = vmatpush1.bf16.msra.mxu0 %v5190
  %5460 = vmatprep.subr.bf16.mxu0 0
  %5461 = vmatpush2.bf16.msra.mxu0 0
  %5462 = vmatprep.subr.bf16.mxu0 0
  %5463 = vmatpush2.bf16.msra.mxu0 0
  %5464 = vmatprep.subr.bf16.mxu0 0
  %5465 = vmatpush2.bf16.msra.mxu0 0
  %5466 = vmatprep.subr.bf16.mxu0 0
  %5467 = vmatpush2.bf16.msra.mxu0 0
  %5468 = vmatprep.subr.bf16.mxu0 0
  %5469 = vmatpush2.bf16.msra.mxu0 0
  %5470 = vmatprep.subr.bf16.mxu0 0
  %5471 = vmatpush2.bf16.msra.mxu0 0
  %5472 = vmatprep.subr.bf16.mxu0 0
  %5473 = vmatpush2.bf16.msra.mxu0 0
  %5474 = vmatprep.subr.bf16.mxu0 0
  %5475 = vmatpush2.bf16.msra.mxu0 0
  %5476 = vmatprep.mubr.bf16.mxu0 0
  %5477 = vmatmul.mubr.bf16.gmra.mxu0 %v5313
  %v5478 = vpop.f32.mrf.mxu0
  %v5479 = vadd.f32 %v4939, %v5478
  %v5480 = vpop.f32.mrf.mxu0
  %v5481 = vadd.f32 %v4943, %v5480
  %v5482 = vpop.f32.mrf.mxu0
  %v5483 = vadd.f32 %v4939, %v5482
  %v5484 = vpop.f32.mrf.mxu0
  %v5485 = vadd.f32 %v4943, %v5484
  %5486 = vdwg.mxu0
  %5487 = vmatprep.subr.bf16.mxu0 0
  %5488 = vmatpush1.bf16.msra.mxu0 0
  %5489 = vmatprep.subr.bf16.mxu0 0
  %5490 = vmatpush1.bf16.msra.mxu0 0
  %5491 = vmatprep.subr.bf16.mxu0 0
  %5492 = vmatpush1.bf16.msra.mxu0 0
  %5493 = vmatprep.subr.bf16.mxu0 0
  %5494 = vmatpush1.bf16.msra.mxu0 0
  %5495 = vmatprep.subr.bf16.mxu0 %v5241
  %5496 = vmatpush1.bf16.msra.mxu0 %v5240
  %5497 = vmatprep.subr.bf16.mxu0 %v5225
  %5498 = vmatpush1.bf16.msra.mxu0 %v5224
  %5499 = vmatprep.subr.bf16.mxu0 %v5209
  %5500 = vmatpush1.bf16.msra.mxu0 %v5208
  %5501 = vmatprep.subr.bf16.mxu0 %v5193
  %5502 = vmatpush1.bf16.msra.mxu0 %v5192
  %5503 = vmatprep.subr.bf16.mxu0 0
  %5504 = vmatpush2.bf16.msra.mxu0 0
  %5505 = vmatprep.subr.bf16.mxu0 0
  %5506 = vmatpush2.bf16.msra.mxu0 0
  %5507 = vmatprep.subr.bf16.mxu0 0
  %5508 = vmatpush2.bf16.msra.mxu0 0
  %5509 = vmatprep.subr.bf16.mxu0 0
  %5510 = vmatpush2.bf16.msra.mxu0 0
  %5511 = vmatprep.subr.bf16.mxu0 0
  %5512 = vmatpush2.bf16.msra.mxu0 0
  %5513 = vmatprep.subr.bf16.mxu0 0
  %5514 = vmatpush2.bf16.msra.mxu0 0
  %5515 = vmatprep.subr.bf16.mxu0 0
  %5516 = vmatpush2.bf16.msra.mxu0 0
  %5517 = vmatprep.subr.bf16.mxu0 0
  %5518 = vmatpush2.bf16.msra.mxu0 0
  %5519 = vmatprep.mubr.bf16.mxu0 0
  %5520 = vmatmul.mubr.bf16.gmra.mxu0 %v5313
  %v5521 = vpop.f32.mrf.mxu0
  %v5522 = vadd.f32 %v4947, %v5521
  %v5523 = vpop.f32.mrf.mxu0
  %v5524 = vadd.f32 %v4951, %v5523
  %v5525 = vpop.f32.mrf.mxu0
  %v5526 = vadd.f32 %v4947, %v5525
  %v5527 = vpop.f32.mrf.mxu0
  %v5528 = vadd.f32 %v4951, %v5527
  %5529 = vdwg.mxu0
  %5530 = vmatprep.subr.bf16.mxu0 0
  %5531 = vmatpush1.bf16.msra.mxu0 0
  %5532 = vmatprep.subr.bf16.mxu0 0
  %5533 = vmatpush1.bf16.msra.mxu0 0
  %5534 = vmatprep.subr.bf16.mxu0 0
  %5535 = vmatpush1.bf16.msra.mxu0 0
  %5536 = vmatprep.subr.bf16.mxu0 0
  %5537 = vmatpush1.bf16.msra.mxu0 0
  %5538 = vmatprep.subr.bf16.mxu0 %v5243
  %5539 = vmatpush1.bf16.msra.mxu0 %v5242
  %5540 = vmatprep.subr.bf16.mxu0 %v5227
  %5541 = vmatpush1.bf16.msra.mxu0 %v5226
  %5542 = vmatprep.subr.bf16.mxu0 %v5211
  %5543 = vmatpush1.bf16.msra.mxu0 %v5210
  %5544 = vmatprep.subr.bf16.mxu0 %v5195
  %5545 = vmatpush1.bf16.msra.mxu0 %v5194
  %5546 = vmatprep.subr.bf16.mxu0 0
  %5547 = vmatpush2.bf16.msra.mxu0 0
  %5548 = vmatprep.subr.bf16.mxu0 0
  %5549 = vmatpush2.bf16.msra.mxu0 0
  %5550 = vmatprep.subr.bf16.mxu0 0
  %5551 = vmatpush2.bf16.msra.mxu0 0
  %5552 = vmatprep.subr.bf16.mxu0 0
  %5553 = vmatpush2.bf16.msra.mxu0 0
  %5554 = vmatprep.subr.bf16.mxu0 0
  %5555 = vmatpush2.bf16.msra.mxu0 0
  %5556 = vmatprep.subr.bf16.mxu0 0
  %5557 = vmatpush2.bf16.msra.mxu0 0
  %5558 = vmatprep.subr.bf16.mxu0 0
  %5559 = vmatpush2.bf16.msra.mxu0 0
  %5560 = vmatprep.subr.bf16.mxu0 0
  %5561 = vmatpush2.bf16.msra.mxu0 0
  %5562 = vmatprep.mubr.bf16.mxu0 0
  %5563 = vmatmul.mubr.bf16.gmra.mxu0 %v5313
  %v5564 = vpop.f32.mrf.mxu0
  %v5565 = vadd.f32 %v4955, %v5564
  %v5566 = vpop.f32.mrf.mxu0
  %v5567 = vadd.f32 %v4959, %v5566
  %v5568 = vpop.f32.mrf.mxu0
  %v5569 = vadd.f32 %v4955, %v5568
  %v5570 = vpop.f32.mrf.mxu0
  %v5571 = vadd.f32 %v4959, %v5570
  %5572 = vdwg.mxu0
  %5573 = vmatprep.subr.bf16.mxu0 0
  %5574 = vmatpush1.bf16.msra.mxu0 0
  %5575 = vmatprep.subr.bf16.mxu0 0
  %5576 = vmatpush1.bf16.msra.mxu0 0
  %5577 = vmatprep.subr.bf16.mxu0 0
  %5578 = vmatpush1.bf16.msra.mxu0 0
  %5579 = vmatprep.subr.bf16.mxu0 0
  %5580 = vmatpush1.bf16.msra.mxu0 0
  %5581 = vmatprep.subr.bf16.mxu0 %v5245
  %5582 = vmatpush1.bf16.msra.mxu0 %v5244
  %5583 = vmatprep.subr.bf16.mxu0 %v5229
  %5584 = vmatpush1.bf16.msra.mxu0 %v5228
  %5585 = vmatprep.subr.bf16.mxu0 %v5213
  %5586 = vmatpush1.bf16.msra.mxu0 %v5212
  %5587 = vmatprep.subr.bf16.mxu0 %v5197
  %5588 = vmatpush1.bf16.msra.mxu0 %v5196
  %5589 = vmatprep.subr.bf16.mxu0 0
  %5590 = vmatpush2.bf16.msra.mxu0 0
  %5591 = vmatprep.subr.bf16.mxu0 0
  %5592 = vmatpush2.bf16.msra.mxu0 0
  %5593 = vmatprep.subr.bf16.mxu0 0
  %5594 = vmatpush2.bf16.msra.mxu0 0
  %5595 = vmatprep.subr.bf16.mxu0 0
  %5596 = vmatpush2.bf16.msra.mxu0 0
  %5597 = vmatprep.subr.bf16.mxu0 0
  %5598 = vmatpush2.bf16.msra.mxu0 0
  %5599 = vmatprep.subr.bf16.mxu0 0
  %5600 = vmatpush2.bf16.msra.mxu0 0
  %5601 = vmatprep.subr.bf16.mxu0 0
  %5602 = vmatpush2.bf16.msra.mxu0 0
  %5603 = vmatprep.subr.bf16.mxu0 0
  %5604 = vmatpush2.bf16.msra.mxu0 0
  %5605 = vmatprep.mubr.bf16.mxu0 0
  %5606 = vmatmul.mubr.bf16.gmra.mxu0 %v5313
  %v5607 = vpop.f32.mrf.mxu0
  %v5608 = vadd.f32 %v4963, %v5607
  %v5609 = vpop.f32.mrf.mxu0
  %v5610 = vadd.f32 %v4967, %v5609
  %v5611 = vpop.f32.mrf.mxu0
  %v5612 = vadd.f32 %v4963, %v5611
  %v5613 = vpop.f32.mrf.mxu0
  %v5614 = vadd.f32 %v4967, %v5613
  %5615 = vdwg.mxu0
  %5616 = vmatprep.subr.bf16.mxu0 0
  %5617 = vmatpush1.bf16.msra.mxu0 0
  %5618 = vmatprep.subr.bf16.mxu0 0
  %5619 = vmatpush1.bf16.msra.mxu0 0
  %5620 = vmatprep.subr.bf16.mxu0 0
  %5621 = vmatpush1.bf16.msra.mxu0 0
  %5622 = vmatprep.subr.bf16.mxu0 0
  %5623 = vmatpush1.bf16.msra.mxu0 0
  %5624 = vmatprep.subr.bf16.mxu0 %v5247
  %5625 = vmatpush1.bf16.msra.mxu0 %v5246
  %5626 = vmatprep.subr.bf16.mxu0 %v5231
  %5627 = vmatpush1.bf16.msra.mxu0 %v5230
  %5628 = vmatprep.subr.bf16.mxu0 %v5215
  %5629 = vmatpush1.bf16.msra.mxu0 %v5214
  %5630 = vmatprep.subr.bf16.mxu0 %v5199
  %5631 = vmatpush1.bf16.msra.mxu0 %v5198
  %5632 = vmatprep.subr.bf16.mxu0 0
  %5633 = vmatpush2.bf16.msra.mxu0 0
  %5634 = vmatprep.subr.bf16.mxu0 0
  %5635 = vmatpush2.bf16.msra.mxu0 0
  %5636 = vmatprep.subr.bf16.mxu0 0
  %5637 = vmatpush2.bf16.msra.mxu0 0
  %5638 = vmatprep.subr.bf16.mxu0 0
  %5639 = vmatpush2.bf16.msra.mxu0 0
  %5640 = vmatprep.subr.bf16.mxu0 0
  %5641 = vmatpush2.bf16.msra.mxu0 0
  %5642 = vmatprep.subr.bf16.mxu0 0
  %5643 = vmatpush2.bf16.msra.mxu0 0
  %5644 = vmatprep.subr.bf16.mxu0 0
  %5645 = vmatpush2.bf16.msra.mxu0 0
  %5646 = vmatprep.subr.bf16.mxu0 0
  %5647 = vmatpush2.bf16.msra.mxu0 0
  %5648 = vmatprep.mubr.bf16.mxu0 0
  %5649 = vmatmul.mubr.bf16.gmra.mxu0 %v5313
  %v5650 = vpop.f32.mrf.mxu0
  %v5651 = vadd.f32 %v4971, %v5650
  %v5652 = vpop.f32.mrf.mxu0
  %v5653 = vadd.f32 %v4975, %v5652
  %v5654 = vpop.f32.mrf.mxu0
  %v5655 = vadd.f32 %v4971, %v5654
  %v5656 = vpop.f32.mrf.mxu0
  %v5657 = vadd.f32 %v4975, %v5656
  %5658 = vdwg.mxu0
  %v5659 = vmax.f32 %v5350, 0.0
  %v5660 = vmax.f32 %v5352, 0.0
  %v5661 = vmax.f32 %v5393, 0.0
  %v5662 = vmax.f32 %v5395, 0.0
  %v5663 = vmax.f32 %v5436, 0.0
  %v5664 = vmax.f32 %v5438, 0.0
  %v5665 = vmax.f32 %v5479, 0.0
  %v5666 = vmax.f32 %v5481, 0.0
  %v5667 = vmax.f32 %v5522, 0.0
  %v5668 = vmax.f32 %v5524, 0.0
  %v5669 = vmax.f32 %v5565, 0.0
  %v5670 = vmax.f32 %v5567, 0.0
  %v5671 = vmax.f32 %v5608, 0.0
  %v5672 = vmax.f32 %v5610, 0.0
  %v5673 = vmax.f32 %v5651, 0.0
  %v5674 = vmax.f32 %v5653, 0.0
  %v5675 = vmax.f32 %v5354, 0.0
  %v5676 = vmax.f32 %v5356, 0.0
  %v5677 = vmax.f32 %v5397, 0.0
  %v5678 = vmax.f32 %v5399, 0.0
  %v5679 = vmax.f32 %v5440, 0.0
  %v5680 = vmax.f32 %v5442, 0.0
  %v5681 = vmax.f32 %v5483, 0.0
  %v5682 = vmax.f32 %v5485, 0.0
  %v5683 = vmax.f32 %v5526, 0.0
  %v5684 = vmax.f32 %v5528, 0.0
  %v5685 = vmax.f32 %v5569, 0.0
  %v5686 = vmax.f32 %v5571, 0.0
  %v5687 = vmax.f32 %v5612, 0.0
  %v5688 = vmax.f32 %v5614, 0.0
  %v5689 = vmax.f32 %v5655, 0.0
  %v5690 = vmax.f32 %v5657, 0.0
  %v5691 = vpack.c.bf16 %v5675, %v5659
  %v5692 = vpack.c.bf16 %v5676, %v5660
  %v5693 = vpack.c.bf16 %v5677, %v5661
  %v5694 = vpack.c.bf16 %v5678, %v5662
  %v5695 = vpack.c.bf16 %v5679, %v5663
  %v5696 = vpack.c.bf16 %v5680, %v5664
  %v5697 = vpack.c.bf16 %v5681, %v5665
  %v5698 = vpack.c.bf16 %v5682, %v5666
  %v5699 = vpack.c.bf16 %v5683, %v5667
  %v5700 = vpack.c.bf16 %v5684, %v5668
  %v5701 = vpack.c.bf16 %v5685, %v5669
  %v5702 = vpack.c.bf16 %v5686, %v5670
  %v5703 = vpack.c.bf16 %v5687, %v5671
  %v5704 = vpack.c.bf16 %v5688, %v5672
  %v5705 = vpack.c.bf16 %v5689, %v5673
  %v5706 = vpack.c.bf16 %v5690, %v5674
  %v5707 = vld [vmem:[%s51] sm:$0xf]
  %v5708 = vld [vmem:[%s51 + $0x4] sm:$0xf]
  %v5709 = vld [vmem:[%s51 + $0x8] sm:$0xf]
  %v5710 = vld [vmem:[%s51 + $0xc] sm:$0xf]
  %v5711 = vld [vmem:[%s51 + $0x10] sm:$0xf]
  %v5712 = vld [vmem:[%s51 + $0x14] sm:$0xf]
  %v5713 = vld [vmem:[%s51 + $0x18] sm:$0xf]
  %v5714 = vld [vmem:[%s51 + $0x1c] sm:$0xf]
  %v5715 = vld [vmem:[%s51 + $0x20] sm:$0xf]
  %v5716 = vld [vmem:[%s51 + $0x24] sm:$0xf]
  %v5717 = vld [vmem:[%s51 + $0x28] sm:$0xf]
  %v5718 = vld [vmem:[%s51 + $0x2c] sm:$0xf]
  %v5719 = vld [vmem:[%s51 + $0x30] sm:$0xf]
  %v5720 = vld [vmem:[%s51 + $0x34] sm:$0xf]
  %v5721 = vld [vmem:[%s51 + $0x38] sm:$0xf]
  %v5722 = vld [vmem:[%s51 + $0x3c] sm:$0xf]
  %v5723 = vld [vmem:[%s51 + $0x40] sm:$0xf]
  %v5724 = vld [vmem:[%s51 + $0x44] sm:$0xf]
  %v5725 = vld [vmem:[%s51 + $0x48] sm:$0xf]
  %v5726 = vld [vmem:[%s51 + $0x4c] sm:$0xf]
  %v5727 = vld [vmem:[%s51 + $0x50] sm:$0xf]
  %v5728 = vld [vmem:[%s51 + $0x54] sm:$0xf]
  %v5729 = vld [vmem:[%s51 + $0x58] sm:$0xf]
  %v5730 = vld [vmem:[%s51 + $0x5c] sm:$0xf]
  %v5731 = vld [vmem:[%s51 + $0x60] sm:$0xf]
  %v5732 = vld [vmem:[%s51 + $0x64] sm:$0xf]
  %v5733 = vld [vmem:[%s51 + $0x68] sm:$0xf]
  %v5734 = vld [vmem:[%s51 + $0x6c] sm:$0xf]
  %v5735 = vld [vmem:[%s51 + $0x70] sm:$0xf]
  %v5736 = vld [vmem:[%s51 + $0x74] sm:$0xf]
  %v5737 = vld [vmem:[%s51 + $0x78] sm:$0xf]
  %v5738 = vld [vmem:[%s51 + $0x7c] sm:$0xf]
  %v5739 = vld [vmem:[%s51 + $0x80] sm:$0xf]
  %v5740 = vld [vmem:[%s51 + $0x84] sm:$0xf]
  %v5741 = vld [vmem:[%s51 + $0x88] sm:$0xf]
  %v5742 = vld [vmem:[%s51 + $0x8c] sm:$0xf]
  %v5743 = vld [vmem:[%s51 + $0x90] sm:$0xf]
  %v5744 = vld [vmem:[%s51 + $0x94] sm:$0xf]
  %v5745 = vld [vmem:[%s51 + $0x98] sm:$0xf]
  %v5746 = vld [vmem:[%s51 + $0x9c] sm:$0xf]
  %v5747 = vld [vmem:[%s51 + $0xa0] sm:$0xf]
  %v5748 = vld [vmem:[%s51 + $0xa4] sm:$0xf]
  %v5749 = vld [vmem:[%s51 + $0xa8] sm:$0xf]
  %v5750 = vld [vmem:[%s51 + $0xac] sm:$0xf]
  %v5751 = vld [vmem:[%s51 + $0xb0] sm:$0xf]
  %v5752 = vld [vmem:[%s51 + $0xb4] sm:$0xf]
  %v5753 = vld [vmem:[%s51 + $0xb8] sm:$0xf]
  %v5754 = vld [vmem:[%s51 + $0xbc] sm:$0xf]
  %v5755 = vld [vmem:[%s51 + $0xc0] sm:$0xf]
  %v5756 = vld [vmem:[%s51 + $0xc4] sm:$0xf]
  %v5757 = vld [vmem:[%s51 + $0xc8] sm:$0xf]
  %v5758 = vld [vmem:[%s51 + $0xcc] sm:$0xf]
  %v5759 = vld [vmem:[%s51 + $0xd0] sm:$0xf]
  %v5760 = vld [vmem:[%s51 + $0xd4] sm:$0xf]
  %v5761 = vld [vmem:[%s51 + $0xd8] sm:$0xf]
  %v5762 = vld [vmem:[%s51 + $0xdc] sm:$0xf]
  %v5763 = vld [vmem:[%s51 + $0xe0] sm:$0xf]
  %v5764 = vld [vmem:[%s51 + $0xe4] sm:$0xf]
  %v5765 = vld [vmem:[%s51 + $0xe8] sm:$0xf]
  %v5766 = vld [vmem:[%s51 + $0xec] sm:$0xf]
  %v5767 = vld [vmem:[%s51 + $0xf0] sm:$0xf]
  %v5768 = vld [vmem:[%s51 + $0xf4] sm:$0xf]
  %v5769 = vld [vmem:[%s51 + $0xf8] sm:$0xf]
  %v5770 = vld [vmem:[%s51 + $0xfc] sm:$0xf]
  %v5771 = vld [vmem:[%s51 + $0x100] sm:$0xf]
  %v5772 = vld [vmem:[%s51 + $0x104] sm:$0xf]
  %v5773 = vld [vmem:[%s51 + $0x108] sm:$0xf]
  %v5774 = vld [vmem:[%s51 + $0x10c] sm:$0xf]
  %v5775 = vld [vmem:[%s51 + $0x110] sm:$0xf]
  %v5776 = vld [vmem:[%s51 + $0x114] sm:$0xf]
  %v5777 = vld [vmem:[%s51 + $0x118] sm:$0xf]
  %v5778 = vld [vmem:[%s51 + $0x11c] sm:$0xf]
  %v5779 = vld [vmem:[%s51 + $0x120] sm:$0xf]
  %v5780 = vld [vmem:[%s51 + $0x124] sm:$0xf]
  %v5781 = vld [vmem:[%s51 + $0x128] sm:$0xf]
  %v5782 = vld [vmem:[%s51 + $0x12c] sm:$0xf]
  %v5783 = vld [vmem:[%s51 + $0x130] sm:$0xf]
  %v5784 = vld [vmem:[%s51 + $0x134] sm:$0xf]
  %v5785 = vld [vmem:[%s51 + $0x138] sm:$0xf]
  %v5786 = vld [vmem:[%s51 + $0x13c] sm:$0xf]
  %v5787 = vld [vmem:[%s51 + $0x140] sm:$0xf]
  %v5788 = vld [vmem:[%s51 + $0x144] sm:$0xf]
  %v5789 = vld [vmem:[%s51 + $0x148] sm:$0xf]
  %v5790 = vld [vmem:[%s51 + $0x14c] sm:$0xf]
  %v5791 = vld [vmem:[%s51 + $0x150] sm:$0xf]
  %v5792 = vld [vmem:[%s51 + $0x154] sm:$0xf]
  %v5793 = vld [vmem:[%s51 + $0x158] sm:$0xf]
  %v5794 = vld [vmem:[%s51 + $0x15c] sm:$0xf]
  %v5795 = vld [vmem:[%s51 + $0x160] sm:$0xf]
  %v5796 = vld [vmem:[%s51 + $0x164] sm:$0xf]
  %v5797 = vld [vmem:[%s51 + $0x168] sm:$0xf]
  %v5798 = vld [vmem:[%s51 + $0x16c] sm:$0xf]
  %v5799 = vld [vmem:[%s51 + $0x170] sm:$0xf]
  %v5800 = vld [vmem:[%s51 + $0x174] sm:$0xf]
  %v5801 = vld [vmem:[%s51 + $0x178] sm:$0xf]
  %v5802 = vld [vmem:[%s51 + $0x17c] sm:$0xf]
  %v5803 = vld [vmem:[%s51 + $0x180] sm:$0xf]
  %v5804 = vld [vmem:[%s51 + $0x184] sm:$0xf]
  %v5805 = vld [vmem:[%s51 + $0x188] sm:$0xf]
  %v5806 = vld [vmem:[%s51 + $0x18c] sm:$0xf]
  %v5807 = vld [vmem:[%s51 + $0x190] sm:$0xf]
  %v5808 = vld [vmem:[%s51 + $0x194] sm:$0xf]
  %v5809 = vld [vmem:[%s51 + $0x198] sm:$0xf]
  %v5810 = vld [vmem:[%s51 + $0x19c] sm:$0xf]
  %v5811 = vld [vmem:[%s51 + $0x1a0] sm:$0xf]
  %v5812 = vld [vmem:[%s51 + $0x1a4] sm:$0xf]
  %v5813 = vld [vmem:[%s51 + $0x1a8] sm:$0xf]
  %v5814 = vld [vmem:[%s51 + $0x1ac] sm:$0xf]
  %v5815 = vld [vmem:[%s51 + $0x1b0] sm:$0xf]
  %v5816 = vld [vmem:[%s51 + $0x1b4] sm:$0xf]
  %v5817 = vld [vmem:[%s51 + $0x1b8] sm:$0xf]
  %v5818 = vld [vmem:[%s51 + $0x1bc] sm:$0xf]
  %v5819 = vld [vmem:[%s51 + $0x1c0] sm:$0xf]
  %v5820 = vld [vmem:[%s51 + $0x1c4] sm:$0xf]
  %v5821 = vld [vmem:[%s51 + $0x1c8] sm:$0xf]
  %v5822 = vld [vmem:[%s51 + $0x1cc] sm:$0xf]
  %v5823 = vld [vmem:[%s51 + $0x1d0] sm:$0xf]
  %v5824 = vld [vmem:[%s51 + $0x1d4] sm:$0xf]
  %v5825 = vld [vmem:[%s51 + $0x1d8] sm:$0xf]
  %v5826 = vld [vmem:[%s51 + $0x1dc] sm:$0xf]
  %v5827 = vld [vmem:[%s51 + $0x1e0] sm:$0xf]
  %v5828 = vld [vmem:[%s51 + $0x1e4] sm:$0xf]
  %v5829 = vld [vmem:[%s51 + $0x1e8] sm:$0xf]
  %v5830 = vld [vmem:[%s51 + $0x1ec] sm:$0xf]
  %v5831 = vld [vmem:[%s51 + $0x1f0] sm:$0xf]
  %v5832 = vld [vmem:[%s51 + $0x1f4] sm:$0xf]
  %v5833 = vld [vmem:[%s51 + $0x1f8] sm:$0xf]
  %v5834 = vld [vmem:[%s51 + $0x1fc] sm:$0xf]
  %v5835 = vld [vmem:[%s51 + $0x200] sm:$0xf]
  %v5836 = vld [vmem:[%s51 + $0x204] sm:$0xf]
  %v5837 = vld [vmem:[%s51 + $0x208] sm:$0xf]
  %v5838 = vld [vmem:[%s51 + $0x20c] sm:$0xf]
  %v5839 = vld [vmem:[%s51 + $0x210] sm:$0xf]
  %v5840 = vld [vmem:[%s51 + $0x214] sm:$0xf]
  %v5841 = vld [vmem:[%s51 + $0x218] sm:$0xf]
  %v5842 = vld [vmem:[%s51 + $0x21c] sm:$0xf]
  %v5843 = vld [vmem:[%s51 + $0x220] sm:$0xf]
  %v5844 = vld [vmem:[%s51 + $0x224] sm:$0xf]
  %v5845 = vld [vmem:[%s51 + $0x228] sm:$0xf]
  %v5846 = vld [vmem:[%s51 + $0x22c] sm:$0xf]
  %v5847 = vld [vmem:[%s51 + $0x230] sm:$0xf]
  %v5848 = vld [vmem:[%s51 + $0x234] sm:$0xf]
  %v5849 = vld [vmem:[%s51 + $0x238] sm:$0xf]
  %v5850 = vld [vmem:[%s51 + $0x23c] sm:$0xf]
  %v5851 = vld [vmem:[%s51 + $0x240] sm:$0xf]
  %v5852 = vld [vmem:[%s51 + $0x244] sm:$0xf]
  %v5853 = vld [vmem:[%s51 + $0x248] sm:$0xf]
  %v5854 = vld [vmem:[%s51 + $0x24c] sm:$0xf]
  %v5855 = vld [vmem:[%s51 + $0x250] sm:$0xf]
  %v5856 = vld [vmem:[%s51 + $0x254] sm:$0xf]
  %v5857 = vld [vmem:[%s51 + $0x258] sm:$0xf]
  %v5858 = vld [vmem:[%s51 + $0x25c] sm:$0xf]
  %v5859 = vld [vmem:[%s51 + $0x260] sm:$0xf]
  %v5860 = vld [vmem:[%s51 + $0x264] sm:$0xf]
  %v5861 = vld [vmem:[%s51 + $0x268] sm:$0xf]
  %v5862 = vld [vmem:[%s51 + $0x26c] sm:$0xf]
  %v5863 = vld [vmem:[%s51 + $0x270] sm:$0xf]
  %v5864 = vld [vmem:[%s51 + $0x274] sm:$0xf]
  %v5865 = vld [vmem:[%s51 + $0x278] sm:$0xf]
  %v5866 = vld [vmem:[%s51 + $0x27c] sm:$0xf]
  %v5867 = vld [vmem:[%s51 + $0x280] sm:$0xf]
  %v5868 = vld [vmem:[%s51 + $0x284] sm:$0xf]
  %v5869 = vld [vmem:[%s51 + $0x288] sm:$0xf]
  %v5870 = vld [vmem:[%s51 + $0x28c] sm:$0xf]
  %v5871 = vld [vmem:[%s51 + $0x290] sm:$0xf]
  %v5872 = vld [vmem:[%s51 + $0x294] sm:$0xf]
  %v5873 = vld [vmem:[%s51 + $0x298] sm:$0xf]
  %v5874 = vld [vmem:[%s51 + $0x29c] sm:$0xf]
  %v5875 = vld [vmem:[%s51 + $0x2a0] sm:$0xf]
  %v5876 = vld [vmem:[%s51 + $0x2a4] sm:$0xf]
  %v5877 = vld [vmem:[%s51 + $0x2a8] sm:$0xf]
  %v5878 = vld [vmem:[%s51 + $0x2ac] sm:$0xf]
  %v5879 = vld [vmem:[%s51 + $0x2b0] sm:$0xf]
  %v5880 = vld [vmem:[%s51 + $0x2b4] sm:$0xf]
  %v5881 = vld [vmem:[%s51 + $0x2b8] sm:$0xf]
  %v5882 = vld [vmem:[%s51 + $0x2bc] sm:$0xf]
  %v5883 = vld [vmem:[%s51 + $0x2c0] sm:$0xf]
  %v5884 = vld [vmem:[%s51 + $0x2c4] sm:$0xf]
  %v5885 = vld [vmem:[%s51 + $0x2c8] sm:$0xf]
  %v5886 = vld [vmem:[%s51 + $0x2cc] sm:$0xf]
  %v5887 = vld [vmem:[%s51 + $0x2d0] sm:$0xf]
  %v5888 = vld [vmem:[%s51 + $0x2d4] sm:$0xf]
  %v5889 = vld [vmem:[%s51 + $0x2d8] sm:$0xf]
  %v5890 = vld [vmem:[%s51 + $0x2dc] sm:$0xf]
  %v5891 = vld [vmem:[%s51 + $0x2e0] sm:$0xf]
  %v5892 = vld [vmem:[%s51 + $0x2e4] sm:$0xf]
  %v5893 = vld [vmem:[%s51 + $0x2e8] sm:$0xf]
  %v5894 = vld [vmem:[%s51 + $0x2ec] sm:$0xf]
  %v5895 = vld [vmem:[%s51 + $0x2f0] sm:$0xf]
  %v5896 = vld [vmem:[%s51 + $0x2f4] sm:$0xf]
  %v5897 = vld [vmem:[%s51 + $0x2f8] sm:$0xf]
  %v5898 = vld [vmem:[%s51 + $0x2fc] sm:$0xf]
  %v5899 = vld [vmem:[%s51 + $0x300] sm:$0xf]
  %v5900 = vld [vmem:[%s51 + $0x304] sm:$0xf]
  %v5901 = vld [vmem:[%s51 + $0x308] sm:$0xf]
  %v5902 = vld [vmem:[%s51 + $0x30c] sm:$0xf]
  %v5903 = vld [vmem:[%s51 + $0x310] sm:$0xf]
  %v5904 = vld [vmem:[%s51 + $0x314] sm:$0xf]
  %v5905 = vld [vmem:[%s51 + $0x318] sm:$0xf]
  %v5906 = vld [vmem:[%s51 + $0x31c] sm:$0xf]
  %v5907 = vld [vmem:[%s51 + $0x320] sm:$0xf]
  %v5908 = vld [vmem:[%s51 + $0x324] sm:$0xf]
  %v5909 = vld [vmem:[%s51 + $0x328] sm:$0xf]
  %v5910 = vld [vmem:[%s51 + $0x32c] sm:$0xf]
  %v5911 = vld [vmem:[%s51 + $0x330] sm:$0xf]
  %v5912 = vld [vmem:[%s51 + $0x334] sm:$0xf]
  %v5913 = vld [vmem:[%s51 + $0x338] sm:$0xf]
  %v5914 = vld [vmem:[%s51 + $0x33c] sm:$0xf]
  %v5915 = vld [vmem:[%s51 + $0x340] sm:$0xf]
  %v5916 = vld [vmem:[%s51 + $0x344] sm:$0xf]
  %v5917 = vld [vmem:[%s51 + $0x348] sm:$0xf]
  %v5918 = vld [vmem:[%s51 + $0x34c] sm:$0xf]
  %v5919 = vld [vmem:[%s51 + $0x350] sm:$0xf]
  %v5920 = vld [vmem:[%s51 + $0x354] sm:$0xf]
  %v5921 = vld [vmem:[%s51 + $0x358] sm:$0xf]
  %v5922 = vld [vmem:[%s51 + $0x35c] sm:$0xf]
  %v5923 = vld [vmem:[%s51 + $0x360] sm:$0xf]
  %v5924 = vld [vmem:[%s51 + $0x364] sm:$0xf]
  %v5925 = vld [vmem:[%s51 + $0x368] sm:$0xf]
  %v5926 = vld [vmem:[%s51 + $0x36c] sm:$0xf]
  %v5927 = vld [vmem:[%s51 + $0x370] sm:$0xf]
  %v5928 = vld [vmem:[%s51 + $0x374] sm:$0xf]
  %v5929 = vld [vmem:[%s51 + $0x378] sm:$0xf]
  %v5930 = vld [vmem:[%s51 + $0x37c] sm:$0xf]
  %v5931 = vld [vmem:[%s51 + $0x380] sm:$0xf]
  %v5932 = vld [vmem:[%s51 + $0x384] sm:$0xf]
  %v5933 = vld [vmem:[%s51 + $0x388] sm:$0xf]
  %v5934 = vld [vmem:[%s51 + $0x38c] sm:$0xf]
  %v5935 = vld [vmem:[%s51 + $0x390] sm:$0xf]
  %v5936 = vld [vmem:[%s51 + $0x394] sm:$0xf]
  %v5937 = vld [vmem:[%s51 + $0x398] sm:$0xf]
  %v5938 = vld [vmem:[%s51 + $0x39c] sm:$0xf]
  %v5939 = vld [vmem:[%s51 + $0x3a0] sm:$0xf]
  %v5940 = vld [vmem:[%s51 + $0x3a4] sm:$0xf]
  %v5941 = vld [vmem:[%s51 + $0x3a8] sm:$0xf]
  %v5942 = vld [vmem:[%s51 + $0x3ac] sm:$0xf]
  %v5943 = vld [vmem:[%s51 + $0x3b0] sm:$0xf]
  %v5944 = vld [vmem:[%s51 + $0x3b4] sm:$0xf]
  %v5945 = vld [vmem:[%s51 + $0x3b8] sm:$0xf]
  %v5946 = vld [vmem:[%s51 + $0x3bc] sm:$0xf]
  %v5947 = vld [vmem:[%s51 + $0x3c0] sm:$0xf]
  %v5948 = vld [vmem:[%s51 + $0x3c4] sm:$0xf]
  %v5949 = vld [vmem:[%s51 + $0x3c8] sm:$0xf]
  %v5950 = vld [vmem:[%s51 + $0x3cc] sm:$0xf]
  %v5951 = vld [vmem:[%s51 + $0x3d0] sm:$0xf]
  %v5952 = vld [vmem:[%s51 + $0x3d4] sm:$0xf]
  %v5953 = vld [vmem:[%s51 + $0x3d8] sm:$0xf]
  %v5954 = vld [vmem:[%s51 + $0x3dc] sm:$0xf]
  %v5955 = vld [vmem:[%s51 + $0x3e0] sm:$0xf]
  %v5956 = vld [vmem:[%s51 + $0x3e4] sm:$0xf]
  %v5957 = vld [vmem:[%s51 + $0x3e8] sm:$0xf]
  %v5958 = vld [vmem:[%s51 + $0x3ec] sm:$0xf]
  %v5959 = vld [vmem:[%s51 + $0x3f0] sm:$0xf]
  %v5960 = vld [vmem:[%s51 + $0x3f4] sm:$0xf]
  %v5961 = vld [vmem:[%s51 + $0x3f8] sm:$0xf]
  %v5962 = vld [vmem:[%s51 + $0x3fc] sm:$0xf]
  %v5963 = vld [vmem:[%s53] sm:$0x1]
  %v5965 = vlaneseq
  %v5966 = vshrl.u32 %v5965, 7
  %v5967 = vsub.s32 0, %v5966
  %v5968 = vrot.slane %v5963, %v5967
  %v6226 = vunpack.c.l.b16 %v5707
  %v6227 = vunpack.c.l.b16 %v5708
  %v6228 = vunpack.c.l.b16 %v5709
  %v6229 = vunpack.c.l.b16 %v5710
  %v6230 = vunpack.c.l.b16 %v5711
  %v6231 = vunpack.c.l.b16 %v5712
  %v6232 = vunpack.c.l.b16 %v5713
  %v6233 = vunpack.c.l.b16 %v5714
  %v6234 = vunpack.c.l.b16 %v5715
  %v6235 = vunpack.c.l.b16 %v5716
  %v6236 = vunpack.c.l.b16 %v5717
  %v6237 = vunpack.c.l.b16 %v5718
  %v6238 = vunpack.c.l.b16 %v5719
  %v6239 = vunpack.c.l.b16 %v5720
  %v6240 = vunpack.c.l.b16 %v5721
  %v6241 = vunpack.c.l.b16 %v5722
  %v6242 = vunpack.c.l.b16 %v5723
  %v6243 = vunpack.c.l.b16 %v5724
  %v6244 = vunpack.c.l.b16 %v5725
  %v6245 = vunpack.c.l.b16 %v5726
  %v6246 = vunpack.c.l.b16 %v5727
  %v6247 = vunpack.c.l.b16 %v5728
  %v6248 = vunpack.c.l.b16 %v5729
  %v6249 = vunpack.c.l.b16 %v5730
  %v6250 = vunpack.c.l.b16 %v5731
  %v6251 = vunpack.c.l.b16 %v5732
  %v6252 = vunpack.c.l.b16 %v5733
  %v6253 = vunpack.c.l.b16 %v5734
  %v6254 = vunpack.c.l.b16 %v5735
  %v6255 = vunpack.c.l.b16 %v5736
  %v6256 = vunpack.c.l.b16 %v5737
  %v6257 = vunpack.c.l.b16 %v5738
  %v6258 = vunpack.c.l.b16 %v5739
  %v6259 = vunpack.c.l.b16 %v5740
  %v6260 = vunpack.c.l.b16 %v5741
  %v6261 = vunpack.c.l.b16 %v5742
  %v6262 = vunpack.c.l.b16 %v5743
  %v6263 = vunpack.c.l.b16 %v5744
  %v6264 = vunpack.c.l.b16 %v5745
  %v6265 = vunpack.c.l.b16 %v5746
  %v6266 = vunpack.c.l.b16 %v5747
  %v6267 = vunpack.c.l.b16 %v5748
  %v6268 = vunpack.c.l.b16 %v5749
  %v6269 = vunpack.c.l.b16 %v5750
  %v6270 = vunpack.c.l.b16 %v5751
  %v6271 = vunpack.c.l.b16 %v5752
  %v6272 = vunpack.c.l.b16 %v5753
  %v6273 = vunpack.c.l.b16 %v5754
  %v6274 = vunpack.c.l.b16 %v5755
  %v6275 = vunpack.c.l.b16 %v5756
  %v6276 = vunpack.c.l.b16 %v5757
  %v6277 = vunpack.c.l.b16 %v5758
  %v6278 = vunpack.c.l.b16 %v5759
  %v6279 = vunpack.c.l.b16 %v5760
  %v6280 = vunpack.c.l.b16 %v5761
  %v6281 = vunpack.c.l.b16 %v5762
  %v6282 = vunpack.c.l.b16 %v5763
  %v6283 = vunpack.c.l.b16 %v5764
  %v6284 = vunpack.c.l.b16 %v5765
  %v6285 = vunpack.c.l.b16 %v5766
  %v6286 = vunpack.c.l.b16 %v5767
  %v6287 = vunpack.c.l.b16 %v5768
  %v6288 = vunpack.c.l.b16 %v5769
  %v6289 = vunpack.c.l.b16 %v5770
  %v6290 = vunpack.c.l.b16 %v5771
  %v6291 = vunpack.c.l.b16 %v5772
  %v6292 = vunpack.c.l.b16 %v5773
  %v6293 = vunpack.c.l.b16 %v5774
  %v6294 = vunpack.c.l.b16 %v5775
  %v6295 = vunpack.c.l.b16 %v5776
  %v6296 = vunpack.c.l.b16 %v5777
  %v6297 = vunpack.c.l.b16 %v5778
  %v6298 = vunpack.c.l.b16 %v5779
  %v6299 = vunpack.c.l.b16 %v5780
  %v6300 = vunpack.c.l.b16 %v5781
  %v6301 = vunpack.c.l.b16 %v5782
  %v6302 = vunpack.c.l.b16 %v5783
  %v6303 = vunpack.c.l.b16 %v5784
  %v6304 = vunpack.c.l.b16 %v5785
  %v6305 = vunpack.c.l.b16 %v5786
  %v6306 = vunpack.c.l.b16 %v5787
  %v6307 = vunpack.c.l.b16 %v5788
  %v6308 = vunpack.c.l.b16 %v5789
  %v6309 = vunpack.c.l.b16 %v5790
  %v6310 = vunpack.c.l.b16 %v5791
  %v6311 = vunpack.c.l.b16 %v5792
  %v6312 = vunpack.c.l.b16 %v5793
  %v6313 = vunpack.c.l.b16 %v5794
  %v6314 = vunpack.c.l.b16 %v5795
  %v6315 = vunpack.c.l.b16 %v5796
  %v6316 = vunpack.c.l.b16 %v5797
  %v6317 = vunpack.c.l.b16 %v5798
  %v6318 = vunpack.c.l.b16 %v5799
  %v6319 = vunpack.c.l.b16 %v5800
  %v6320 = vunpack.c.l.b16 %v5801
  %v6321 = vunpack.c.l.b16 %v5802
  %v6322 = vunpack.c.l.b16 %v5803
  %v6323 = vunpack.c.l.b16 %v5804
  %v6324 = vunpack.c.l.b16 %v5805
  %v6325 = vunpack.c.l.b16 %v5806
  %v6326 = vunpack.c.l.b16 %v5807
  %v6327 = vunpack.c.l.b16 %v5808
  %v6328 = vunpack.c.l.b16 %v5809
  %v6329 = vunpack.c.l.b16 %v5810
  %v6330 = vunpack.c.l.b16 %v5811
  %v6331 = vunpack.c.l.b16 %v5812
  %v6332 = vunpack.c.l.b16 %v5813
  %v6333 = vunpack.c.l.b16 %v5814
  %v6334 = vunpack.c.l.b16 %v5815
  %v6335 = vunpack.c.l.b16 %v5816
  %v6336 = vunpack.c.l.b16 %v5817
  %v6337 = vunpack.c.l.b16 %v5818
  %v6338 = vunpack.c.l.b16 %v5819
  %v6339 = vunpack.c.l.b16 %v5820
  %v6340 = vunpack.c.l.b16 %v5821
  %v6341 = vunpack.c.l.b16 %v5822
  %v6342 = vunpack.c.l.b16 %v5823
  %v6343 = vunpack.c.l.b16 %v5824
  %v6344 = vunpack.c.l.b16 %v5825
  %v6345 = vunpack.c.l.b16 %v5826
  %v6346 = vunpack.c.l.b16 %v5827
  %v6347 = vunpack.c.l.b16 %v5828
  %v6348 = vunpack.c.l.b16 %v5829
  %v6349 = vunpack.c.l.b16 %v5830
  %v6350 = vunpack.c.l.b16 %v5831
  %v6351 = vunpack.c.l.b16 %v5832
  %v6352 = vunpack.c.l.b16 %v5833
  %v6353 = vunpack.c.l.b16 %v5834
  %v6354 = vunpack.c.l.b16 %v5835
  %v6355 = vunpack.c.l.b16 %v5836
  %v6356 = vunpack.c.l.b16 %v5837
  %v6357 = vunpack.c.l.b16 %v5838
  %v6358 = vunpack.c.l.b16 %v5839
  %v6359 = vunpack.c.l.b16 %v5840
  %v6360 = vunpack.c.l.b16 %v5841
  %v6361 = vunpack.c.l.b16 %v5842
  %v6362 = vunpack.c.l.b16 %v5843
  %v6363 = vunpack.c.l.b16 %v5844
  %v6364 = vunpack.c.l.b16 %v5845
  %v6365 = vunpack.c.l.b16 %v5846
  %v6366 = vunpack.c.l.b16 %v5847
  %v6367 = vunpack.c.l.b16 %v5848
  %v6368 = vunpack.c.l.b16 %v5849
  %v6369 = vunpack.c.l.b16 %v5850
  %v6370 = vunpack.c.l.b16 %v5851
  %v6371 = vunpack.c.l.b16 %v5852
  %v6372 = vunpack.c.l.b16 %v5853
  %v6373 = vunpack.c.l.b16 %v5854
  %v6374 = vunpack.c.l.b16 %v5855
  %v6375 = vunpack.c.l.b16 %v5856
  %v6376 = vunpack.c.l.b16 %v5857
  %v6377 = vunpack.c.l.b16 %v5858
  %v6378 = vunpack.c.l.b16 %v5859
  %v6379 = vunpack.c.l.b16 %v5860
  %v6380 = vunpack.c.l.b16 %v5861
  %v6381 = vunpack.c.l.b16 %v5862
  %v6382 = vunpack.c.l.b16 %v5863
  %v6383 = vunpack.c.l.b16 %v5864
  %v6384 = vunpack.c.l.b16 %v5865
  %v6385 = vunpack.c.l.b16 %v5866
  %v6386 = vunpack.c.l.b16 %v5867
  %v6387 = vunpack.c.l.b16 %v5868
  %v6388 = vunpack.c.l.b16 %v5869
  %v6389 = vunpack.c.l.b16 %v5870
  %v6390 = vunpack.c.l.b16 %v5871
  %v6391 = vunpack.c.l.b16 %v5872
  %v6392 = vunpack.c.l.b16 %v5873
  %v6393 = vunpack.c.l.b16 %v5874
  %v6394 = vunpack.c.l.b16 %v5875
  %v6395 = vunpack.c.l.b16 %v5876
  %v6396 = vunpack.c.l.b16 %v5877
  %v6397 = vunpack.c.l.b16 %v5878
  %v6398 = vunpack.c.l.b16 %v5879
  %v6399 = vunpack.c.l.b16 %v5880
  %v6400 = vunpack.c.l.b16 %v5881
  %v6401 = vunpack.c.l.b16 %v5882
  %v6402 = vunpack.c.l.b16 %v5883
  %v6403 = vunpack.c.l.b16 %v5884
  %v6404 = vunpack.c.l.b16 %v5885
  %v6405 = vunpack.c.l.b16 %v5886
  %v6406 = vunpack.c.l.b16 %v5887
  %v6407 = vunpack.c.l.b16 %v5888
  %v6408 = vunpack.c.l.b16 %v5889
  %v6409 = vunpack.c.l.b16 %v5890
  %v6410 = vunpack.c.l.b16 %v5891
  %v6411 = vunpack.c.l.b16 %v5892
  %v6412 = vunpack.c.l.b16 %v5893
  %v6413 = vunpack.c.l.b16 %v5894
  %v6414 = vunpack.c.l.b16 %v5895
  %v6415 = vunpack.c.l.b16 %v5896
  %v6416 = vunpack.c.l.b16 %v5897
  %v6417 = vunpack.c.l.b16 %v5898
  %v6418 = vunpack.c.l.b16 %v5899
  %v6419 = vunpack.c.l.b16 %v5900
  %v6420 = vunpack.c.l.b16 %v5901
  %v6421 = vunpack.c.l.b16 %v5902
  %v6422 = vunpack.c.l.b16 %v5903
  %v6423 = vunpack.c.l.b16 %v5904
  %v6424 = vunpack.c.l.b16 %v5905
  %v6425 = vunpack.c.l.b16 %v5906
  %v6426 = vunpack.c.l.b16 %v5907
  %v6427 = vunpack.c.l.b16 %v5908
  %v6428 = vunpack.c.l.b16 %v5909
  %v6429 = vunpack.c.l.b16 %v5910
  %v6430 = vunpack.c.l.b16 %v5911
  %v6431 = vunpack.c.l.b16 %v5912
  %v6432 = vunpack.c.l.b16 %v5913
  %v6433 = vunpack.c.l.b16 %v5914
  %v6434 = vunpack.c.l.b16 %v5915
  %v6435 = vunpack.c.l.b16 %v5916
  %v6436 = vunpack.c.l.b16 %v5917
  %v6437 = vunpack.c.l.b16 %v5918
  %v6438 = vunpack.c.l.b16 %v5919
  %v6439 = vunpack.c.l.b16 %v5920
  %v6440 = vunpack.c.l.b16 %v5921
  %v6441 = vunpack.c.l.b16 %v5922
  %v6442 = vunpack.c.l.b16 %v5923
  %v6443 = vunpack.c.l.b16 %v5924
  %v6444 = vunpack.c.l.b16 %v5925
  %v6445 = vunpack.c.l.b16 %v5926
  %v6446 = vunpack.c.l.b16 %v5927
  %v6447 = vunpack.c.l.b16 %v5928
  %v6448 = vunpack.c.l.b16 %v5929
  %v6449 = vunpack.c.l.b16 %v5930
  %v6450 = vunpack.c.l.b16 %v5931
  %v6451 = vunpack.c.l.b16 %v5932
  %v6452 = vunpack.c.l.b16 %v5933
  %v6453 = vunpack.c.l.b16 %v5934
  %v6454 = vunpack.c.l.b16 %v5935
  %v6455 = vunpack.c.l.b16 %v5936
  %v6456 = vunpack.c.l.b16 %v5937
  %v6457 = vunpack.c.l.b16 %v5938
  %v6458 = vunpack.c.l.b16 %v5939
  %v6459 = vunpack.c.l.b16 %v5940
  %v6460 = vunpack.c.l.b16 %v5941
  %v6461 = vunpack.c.l.b16 %v5942
  %v6462 = vunpack.c.l.b16 %v5943
  %v6463 = vunpack.c.l.b16 %v5944
  %v6464 = vunpack.c.l.b16 %v5945
  %v6465 = vunpack.c.l.b16 %v5946
  %v6466 = vunpack.c.l.b16 %v5947
  %v6467 = vunpack.c.l.b16 %v5948
  %v6468 = vunpack.c.l.b16 %v5949
  %v6469 = vunpack.c.l.b16 %v5950
  %v6470 = vunpack.c.l.b16 %v5951
  %v6471 = vunpack.c.l.b16 %v5952
  %v6472 = vunpack.c.l.b16 %v5953
  %v6473 = vunpack.c.l.b16 %v5954
  %v6474 = vunpack.c.l.b16 %v5955
  %v6475 = vunpack.c.l.b16 %v5956
  %v6476 = vunpack.c.l.b16 %v5957
  %v6477 = vunpack.c.l.b16 %v5958
  %v6478 = vunpack.c.l.b16 %v5959
  %v6479 = vunpack.c.l.b16 %v5960
  %v6480 = vunpack.c.l.b16 %v5961
  %v6481 = vunpack.c.l.b16 %v5962
  %v6482 = vpack.c.b16 %v6227, %v6226
  %v6483 = vpack.c.b16 %v6229, %v6228
  %v6484 = vpack.c.b16 %v6231, %v6230
  %v6485 = vpack.c.b16 %v6233, %v6232
  %v6486 = vpack.c.b16 %v6235, %v6234
  %v6487 = vpack.c.b16 %v6237, %v6236
  %v6488 = vpack.c.b16 %v6239, %v6238
  %v6489 = vpack.c.b16 %v6241, %v6240
  %v6490 = vpack.c.b16 %v6243, %v6242
  %v6491 = vpack.c.b16 %v6245, %v6244
  %v6492 = vpack.c.b16 %v6247, %v6246
  %v6493 = vpack.c.b16 %v6249, %v6248
  %v6494 = vpack.c.b16 %v6251, %v6250
  %v6495 = vpack.c.b16 %v6253, %v6252
  %v6496 = vpack.c.b16 %v6255, %v6254
  %v6497 = vpack.c.b16 %v6257, %v6256
  %v6498 = vpack.c.b16 %v6259, %v6258
  %v6499 = vpack.c.b16 %v6261, %v6260
  %v6500 = vpack.c.b16 %v6263, %v6262
  %v6501 = vpack.c.b16 %v6265, %v6264
  %v6502 = vpack.c.b16 %v6267, %v6266
  %v6503 = vpack.c.b16 %v6269, %v6268
  %v6504 = vpack.c.b16 %v6271, %v6270
  %v6505 = vpack.c.b16 %v6273, %v6272
  %v6506 = vpack.c.b16 %v6275, %v6274
  %v6507 = vpack.c.b16 %v6277, %v6276
  %v6508 = vpack.c.b16 %v6279, %v6278
  %v6509 = vpack.c.b16 %v6281, %v6280
  %v6510 = vpack.c.b16 %v6283, %v6282
  %v6511 = vpack.c.b16 %v6285, %v6284
  %v6512 = vpack.c.b16 %v6287, %v6286
  %v6513 = vpack.c.b16 %v6289, %v6288
  %v6514 = vpack.c.b16 %v6291, %v6290
  %v6515 = vpack.c.b16 %v6293, %v6292
  %v6516 = vpack.c.b16 %v6295, %v6294
  %v6517 = vpack.c.b16 %v6297, %v6296
  %v6518 = vpack.c.b16 %v6299, %v6298
  %v6519 = vpack.c.b16 %v6301, %v6300
  %v6520 = vpack.c.b16 %v6303, %v6302
  %v6521 = vpack.c.b16 %v6305, %v6304
  %v6522 = vpack.c.b16 %v6307, %v6306
  %v6523 = vpack.c.b16 %v6309, %v6308
  %v6524 = vpack.c.b16 %v6311, %v6310
  %v6525 = vpack.c.b16 %v6313, %v6312
  %v6526 = vpack.c.b16 %v6315, %v6314
  %v6527 = vpack.c.b16 %v6317, %v6316
  %v6528 = vpack.c.b16 %v6319, %v6318
  %v6529 = vpack.c.b16 %v6321, %v6320
  %v6530 = vpack.c.b16 %v6323, %v6322
  %v6531 = vpack.c.b16 %v6325, %v6324
  %v6532 = vpack.c.b16 %v6327, %v6326
  %v6533 = vpack.c.b16 %v6329, %v6328
  %v6534 = vpack.c.b16 %v6331, %v6330
  %v6535 = vpack.c.b16 %v6333, %v6332
  %v6536 = vpack.c.b16 %v6335, %v6334
  %v6537 = vpack.c.b16 %v6337, %v6336
  %v6538 = vpack.c.b16 %v6339, %v6338
  %v6539 = vpack.c.b16 %v6341, %v6340
  %v6540 = vpack.c.b16 %v6343, %v6342
  %v6541 = vpack.c.b16 %v6345, %v6344
  %v6542 = vpack.c.b16 %v6347, %v6346
  %v6543 = vpack.c.b16 %v6349, %v6348
  %v6544 = vpack.c.b16 %v6351, %v6350
  %v6545 = vpack.c.b16 %v6353, %v6352
  %v6546 = vpack.c.b16 %v6355, %v6354
  %v6547 = vpack.c.b16 %v6357, %v6356
  %v6548 = vpack.c.b16 %v6359, %v6358
  %v6549 = vpack.c.b16 %v6361, %v6360
  %v6550 = vpack.c.b16 %v6363, %v6362
  %v6551 = vpack.c.b16 %v6365, %v6364
  %v6552 = vpack.c.b16 %v6367, %v6366
  %v6553 = vpack.c.b16 %v6369, %v6368
  %v6554 = vpack.c.b16 %v6371, %v6370
  %v6555 = vpack.c.b16 %v6373, %v6372
  %v6556 = vpack.c.b16 %v6375, %v6374
  %v6557 = vpack.c.b16 %v6377, %v6376
  %v6558 = vpack.c.b16 %v6379, %v6378
  %v6559 = vpack.c.b16 %v6381, %v6380
  %v6560 = vpack.c.b16 %v6383, %v6382
  %v6561 = vpack.c.b16 %v6385, %v6384
  %v6562 = vpack.c.b16 %v6387, %v6386
  %v6563 = vpack.c.b16 %v6389, %v6388
  %v6564 = vpack.c.b16 %v6391, %v6390
  %v6565 = vpack.c.b16 %v6393, %v6392
  %v6566 = vpack.c.b16 %v6395, %v6394
  %v6567 = vpack.c.b16 %v6397, %v6396
  %v6568 = vpack.c.b16 %v6399, %v6398
  %v6569 = vpack.c.b16 %v6401, %v6400
  %v6570 = vpack.c.b16 %v6403, %v6402
  %v6571 = vpack.c.b16 %v6405, %v6404
  %v6572 = vpack.c.b16 %v6407, %v6406
  %v6573 = vpack.c.b16 %v6409, %v6408
  %v6574 = vpack.c.b16 %v6411, %v6410
  %v6575 = vpack.c.b16 %v6413, %v6412
  %v6576 = vpack.c.b16 %v6415, %v6414
  %v6577 = vpack.c.b16 %v6417, %v6416
  %v6578 = vpack.c.b16 %v6419, %v6418
  %v6579 = vpack.c.b16 %v6421, %v6420
  %v6580 = vpack.c.b16 %v6423, %v6422
  %v6581 = vpack.c.b16 %v6425, %v6424
  %v6582 = vpack.c.b16 %v6427, %v6426
  %v6583 = vpack.c.b16 %v6429, %v6428
  %v6584 = vpack.c.b16 %v6431, %v6430
  %v6585 = vpack.c.b16 %v6433, %v6432
  %v6586 = vpack.c.b16 %v6435, %v6434
  %v6587 = vpack.c.b16 %v6437, %v6436
  %v6588 = vpack.c.b16 %v6439, %v6438
  %v6589 = vpack.c.b16 %v6441, %v6440
  %v6590 = vpack.c.b16 %v6443, %v6442
  %v6591 = vpack.c.b16 %v6445, %v6444
  %v6592 = vpack.c.b16 %v6447, %v6446
  %v6593 = vpack.c.b16 %v6449, %v6448
  %v6594 = vpack.c.b16 %v6451, %v6450
  %v6595 = vpack.c.b16 %v6453, %v6452
  %v6596 = vpack.c.b16 %v6455, %v6454
  %v6597 = vpack.c.b16 %v6457, %v6456
  %v6598 = vpack.c.b16 %v6459, %v6458
  %v6599 = vpack.c.b16 %v6461, %v6460
  %v6600 = vpack.c.b16 %v6463, %v6462
  %v6601 = vpack.c.b16 %v6465, %v6464
  %v6602 = vpack.c.b16 %v6467, %v6466
  %v6603 = vpack.c.b16 %v6469, %v6468
  %v6604 = vpack.c.b16 %v6471, %v6470
  %v6605 = vpack.c.b16 %v6473, %v6472
  %v6606 = vpack.c.b16 %v6475, %v6474
  %v6607 = vpack.c.b16 %v6477, %v6476
  %v6608 = vpack.c.b16 %v6479, %v6478
  %v6609 = vpack.c.b16 %v6481, %v6480
  %6738 = vmatprep.subr.bf16.mxu0 0
  %6739 = vmatpush1.bf16.msra.mxu0 %v6489
  %6740 = vmatprep.subr.bf16.mxu0 0
  %6741 = vmatpush1.bf16.msra.mxu0 %v6488
  %6742 = vmatprep.subr.bf16.mxu0 0
  %6743 = vmatpush1.bf16.msra.mxu0 %v6487
  %6744 = vmatprep.subr.bf16.mxu0 0
  %6745 = vmatpush1.bf16.msra.mxu0 %v6486
  %6746 = vmatprep.subr.bf16.mxu0 0
  %6747 = vmatpush1.bf16.msra.mxu0 %v6485
  %6748 = vmatprep.subr.bf16.mxu0 0
  %6749 = vmatpush1.bf16.msra.mxu0 %v6484
  %6750 = vmatprep.subr.bf16.mxu0 0
  %6751 = vmatpush1.bf16.msra.mxu0 %v6483
  %6752 = vmatprep.subr.bf16.mxu0 0
  %6753 = vmatpush1.bf16.msra.mxu0 %v6482
  %6754 = vmatprep.subr.bf16.mxu0 0
  %6755 = vmatpush2.bf16.msra.mxu0 %v6497
  %6756 = vmatprep.subr.bf16.mxu0 0
  %6757 = vmatpush2.bf16.msra.mxu0 %v6496
  %6758 = vmatprep.subr.bf16.mxu0 0
  %6759 = vmatpush2.bf16.msra.mxu0 %v6495
  %6760 = vmatprep.subr.bf16.mxu0 0
  %6761 = vmatpush2.bf16.msra.mxu0 %v6494
  %6762 = vmatprep.subr.bf16.mxu0 0
  %6763 = vmatpush2.bf16.msra.mxu0 %v6493
  %6764 = vmatprep.subr.bf16.mxu0 0
  %6765 = vmatpush2.bf16.msra.mxu0 %v6492
  %6766 = vmatprep.subr.bf16.mxu0 0
  %6767 = vmatpush2.bf16.msra.mxu0 %v6491
  %6768 = vmatprep.subr.bf16.mxu0 0
  %6769 = vmatpush2.bf16.msra.mxu0 %v6490
  %6770 = vmatprep.mubr.bf16.mxu0 %v5692
  %6771 = vmatmul.mubr.bf16.gmra.mxu0 %v5691
  %v6772 = vpop.f32.mrf.mxu0
  %v6773 = vadd.f32 %v5968, %v6772
  %v6774 = vpop.f32.mrf.mxu0
  %v6775 = vpop.f32.mrf.mxu0
  %v6776 = vadd.f32 %v5968, %v6775
  %v6777 = vpop.f32.mrf.mxu0
  %6778 = vdwg.mxu0
  %6779 = vmatprep.subr.bf16.mxu0 0
  %6780 = vmatpush1.bf16.msra.mxu0 %v6505
  %6781 = vmatprep.subr.bf16.mxu0 0
  %6782 = vmatpush1.bf16.msra.mxu0 %v6504
  %6783 = vmatprep.subr.bf16.mxu0 0
  %6784 = vmatpush1.bf16.msra.mxu0 %v6503
  %6785 = vmatprep.subr.bf16.mxu0 0
  %6786 = vmatpush1.bf16.msra.mxu0 %v6502
  %6787 = vmatprep.subr.bf16.mxu0 0
  %6788 = vmatpush1.bf16.msra.mxu0 %v6501
  %6789 = vmatprep.subr.bf16.mxu0 0
  %6790 = vmatpush1.bf16.msra.mxu0 %v6500
  %6791 = vmatprep.subr.bf16.mxu0 0
  %6792 = vmatpush1.bf16.msra.mxu0 %v6499
  %6793 = vmatprep.subr.bf16.mxu0 0
  %6794 = vmatpush1.bf16.msra.mxu0 %v6498
  %6795 = vmatprep.subr.bf16.mxu0 0
  %6796 = vmatpush2.bf16.msra.mxu0 %v6513
  %6797 = vmatprep.subr.bf16.mxu0 0
  %6798 = vmatpush2.bf16.msra.mxu0 %v6512
  %6799 = vmatprep.subr.bf16.mxu0 0
  %6800 = vmatpush2.bf16.msra.mxu0 %v6511
  %6801 = vmatprep.subr.bf16.mxu0 0
  %6802 = vmatpush2.bf16.msra.mxu0 %v6510
  %6803 = vmatprep.subr.bf16.mxu0 0
  %6804 = vmatpush2.bf16.msra.mxu0 %v6509
  %6805 = vmatprep.subr.bf16.mxu0 0
  %6806 = vmatpush2.bf16.msra.mxu0 %v6508
  %6807 = vmatprep.subr.bf16.mxu0 0
  %6808 = vmatpush2.bf16.msra.mxu0 %v6507
  %6809 = vmatprep.subr.bf16.mxu0 0
  %6810 = vmatpush2.bf16.msra.mxu0 %v6506
  %6811 = vmatprep.mubr.bf16.mxu0 %v5694
  %6812 = vmatmul.mubr.bf16.gmra.mxu0 %v5693
  %v6813 = vpop.f32.mrf.mxu0
  %v6814 = vadd.f32 %v6773, %v6813
  %v6815 = vpop.f32.mrf.mxu0
  %v6816 = vpop.f32.mrf.mxu0
  %v6817 = vadd.f32 %v6776, %v6816
  %v6818 = vpop.f32.mrf.mxu0
  %6819 = vdwg.mxu0
  %6820 = vmatprep.subr.bf16.mxu0 0
  %6821 = vmatpush1.bf16.msra.mxu0 %v6521
  %6822 = vmatprep.subr.bf16.mxu0 0
  %6823 = vmatpush1.bf16.msra.mxu0 %v6520
  %6824 = vmatprep.subr.bf16.mxu0 0
  %6825 = vmatpush1.bf16.msra.mxu0 %v6519
  %6826 = vmatprep.subr.bf16.mxu0 0
  %6827 = vmatpush1.bf16.msra.mxu0 %v6518
  %6828 = vmatprep.subr.bf16.mxu0 0
  %6829 = vmatpush1.bf16.msra.mxu0 %v6517
  %6830 = vmatprep.subr.bf16.mxu0 0
  %6831 = vmatpush1.bf16.msra.mxu0 %v6516
  %6832 = vmatprep.subr.bf16.mxu0 0
  %6833 = vmatpush1.bf16.msra.mxu0 %v6515
  %6834 = vmatprep.subr.bf16.mxu0 0
  %6835 = vmatpush1.bf16.msra.mxu0 %v6514
  %6836 = vmatprep.subr.bf16.mxu0 0
  %6837 = vmatpush2.bf16.msra.mxu0 %v6529
  %6838 = vmatprep.subr.bf16.mxu0 0
  %6839 = vmatpush2.bf16.msra.mxu0 %v6528
  %6840 = vmatprep.subr.bf16.mxu0 0
  %6841 = vmatpush2.bf16.msra.mxu0 %v6527
  %6842 = vmatprep.subr.bf16.mxu0 0
  %6843 = vmatpush2.bf16.msra.mxu0 %v6526
  %6844 = vmatprep.subr.bf16.mxu0 0
  %6845 = vmatpush2.bf16.msra.mxu0 %v6525
  %6846 = vmatprep.subr.bf16.mxu0 0
  %6847 = vmatpush2.bf16.msra.mxu0 %v6524
  %6848 = vmatprep.subr.bf16.mxu0 0
  %6849 = vmatpush2.bf16.msra.mxu0 %v6523
  %6850 = vmatprep.subr.bf16.mxu0 0
  %6851 = vmatpush2.bf16.msra.mxu0 %v6522
  %6852 = vmatprep.mubr.bf16.mxu0 %v5696
  %6853 = vmatmul.mubr.bf16.gmra.mxu0 %v5695
  %v6854 = vpop.f32.mrf.mxu0
  %v6855 = vadd.f32 %v6814, %v6854
  %v6856 = vpop.f32.mrf.mxu0
  %v6857 = vpop.f32.mrf.mxu0
  %v6858 = vadd.f32 %v6817, %v6857
  %v6859 = vpop.f32.mrf.mxu0
  %6860 = vdwg.mxu0
  %6861 = vmatprep.subr.bf16.mxu0 0
  %6862 = vmatpush1.bf16.msra.mxu0 %v6537
  %6863 = vmatprep.subr.bf16.mxu0 0
  %6864 = vmatpush1.bf16.msra.mxu0 %v6536
  %6865 = vmatprep.subr.bf16.mxu0 0
  %6866 = vmatpush1.bf16.msra.mxu0 %v6535
  %6867 = vmatprep.subr.bf16.mxu0 0
  %6868 = vmatpush1.bf16.msra.mxu0 %v6534
  %6869 = vmatprep.subr.bf16.mxu0 0
  %6870 = vmatpush1.bf16.msra.mxu0 %v6533
  %6871 = vmatprep.subr.bf16.mxu0 0
  %6872 = vmatpush1.bf16.msra.mxu0 %v6532
  %6873 = vmatprep.subr.bf16.mxu0 0
  %6874 = vmatpush1.bf16.msra.mxu0 %v6531
  %6875 = vmatprep.subr.bf16.mxu0 0
  %6876 = vmatpush1.bf16.msra.mxu0 %v6530
  %6877 = vmatprep.subr.bf16.mxu0 0
  %6878 = vmatpush2.bf16.msra.mxu0 %v6545
  %6879 = vmatprep.subr.bf16.mxu0 0
  %6880 = vmatpush2.bf16.msra.mxu0 %v6544
  %6881 = vmatprep.subr.bf16.mxu0 0
  %6882 = vmatpush2.bf16.msra.mxu0 %v6543
  %6883 = vmatprep.subr.bf16.mxu0 0
  %6884 = vmatpush2.bf16.msra.mxu0 %v6542
  %6885 = vmatprep.subr.bf16.mxu0 0
  %6886 = vmatpush2.bf16.msra.mxu0 %v6541
  %6887 = vmatprep.subr.bf16.mxu0 0
  %6888 = vmatpush2.bf16.msra.mxu0 %v6540
  %6889 = vmatprep.subr.bf16.mxu0 0
  %6890 = vmatpush2.bf16.msra.mxu0 %v6539
  %6891 = vmatprep.subr.bf16.mxu0 0
  %6892 = vmatpush2.bf16.msra.mxu0 %v6538
  %6893 = vmatprep.mubr.bf16.mxu0 %v5698
  %6894 = vmatmul.mubr.bf16.gmra.mxu0 %v5697
  %v6895 = vpop.f32.mrf.mxu0
  %v6896 = vadd.f32 %v6855, %v6895
  %v6897 = vpop.f32.mrf.mxu0
  %v6898 = vpop.f32.mrf.mxu0
  %v6899 = vadd.f32 %v6858, %v6898
  %v6900 = vpop.f32.mrf.mxu0
  %6901 = vdwg.mxu0
  %6902 = vmatprep.subr.bf16.mxu0 0
  %6903 = vmatpush1.bf16.msra.mxu0 %v6553
  %6904 = vmatprep.subr.bf16.mxu0 0
  %6905 = vmatpush1.bf16.msra.mxu0 %v6552
  %6906 = vmatprep.subr.bf16.mxu0 0
  %6907 = vmatpush1.bf16.msra.mxu0 %v6551
  %6908 = vmatprep.subr.bf16.mxu0 0
  %6909 = vmatpush1.bf16.msra.mxu0 %v6550
  %6910 = vmatprep.subr.bf16.mxu0 0
  %6911 = vmatpush1.bf16.msra.mxu0 %v6549
  %6912 = vmatprep.subr.bf16.mxu0 0
  %6913 = vmatpush1.bf16.msra.mxu0 %v6548
  %6914 = vmatprep.subr.bf16.mxu0 0
  %6915 = vmatpush1.bf16.msra.mxu0 %v6547
  %6916 = vmatprep.subr.bf16.mxu0 0
  %6917 = vmatpush1.bf16.msra.mxu0 %v6546
  %6918 = vmatprep.subr.bf16.mxu0 0
  %6919 = vmatpush2.bf16.msra.mxu0 %v6561
  %6920 = vmatprep.subr.bf16.mxu0 0
  %6921 = vmatpush2.bf16.msra.mxu0 %v6560
  %6922 = vmatprep.subr.bf16.mxu0 0
  %6923 = vmatpush2.bf16.msra.mxu0 %v6559
  %6924 = vmatprep.subr.bf16.mxu0 0
  %6925 = vmatpush2.bf16.msra.mxu0 %v6558
  %6926 = vmatprep.subr.bf16.mxu0 0
  %6927 = vmatpush2.bf16.msra.mxu0 %v6557
  %6928 = vmatprep.subr.bf16.mxu0 0
  %6929 = vmatpush2.bf16.msra.mxu0 %v6556
  %6930 = vmatprep.subr.bf16.mxu0 0
  %6931 = vmatpush2.bf16.msra.mxu0 %v6555
  %6932 = vmatprep.subr.bf16.mxu0 0
  %6933 = vmatpush2.bf16.msra.mxu0 %v6554
  %6934 = vmatprep.mubr.bf16.mxu0 %v5700
  %6935 = vmatmul.mubr.bf16.gmra.mxu0 %v5699
  %v6936 = vpop.f32.mrf.mxu0
  %v6937 = vadd.f32 %v6896, %v6936
  %v6938 = vpop.f32.mrf.mxu0
  %v6939 = vpop.f32.mrf.mxu0
  %v6940 = vadd.f32 %v6899, %v6939
  %v6941 = vpop.f32.mrf.mxu0
  %6942 = vdwg.mxu0
  %6943 = vmatprep.subr.bf16.mxu0 0
  %6944 = vmatpush1.bf16.msra.mxu0 %v6569
  %6945 = vmatprep.subr.bf16.mxu0 0
  %6946 = vmatpush1.bf16.msra.mxu0 %v6568
  %6947 = vmatprep.subr.bf16.mxu0 0
  %6948 = vmatpush1.bf16.msra.mxu0 %v6567
  %6949 = vmatprep.subr.bf16.mxu0 0
  %6950 = vmatpush1.bf16.msra.mxu0 %v6566
  %6951 = vmatprep.subr.bf16.mxu0 0
  %6952 = vmatpush1.bf16.msra.mxu0 %v6565
  %6953 = vmatprep.subr.bf16.mxu0 0
  %6954 = vmatpush1.bf16.msra.mxu0 %v6564
  %6955 = vmatprep.subr.bf16.mxu0 0
  %6956 = vmatpush1.bf16.msra.mxu0 %v6563
  %6957 = vmatprep.subr.bf16.mxu0 0
  %6958 = vmatpush1.bf16.msra.mxu0 %v6562
  %6959 = vmatprep.subr.bf16.mxu0 0
  %6960 = vmatpush2.bf16.msra.mxu0 %v6577
  %6961 = vmatprep.subr.bf16.mxu0 0
  %6962 = vmatpush2.bf16.msra.mxu0 %v6576
  %6963 = vmatprep.subr.bf16.mxu0 0
  %6964 = vmatpush2.bf16.msra.mxu0 %v6575
  %6965 = vmatprep.subr.bf16.mxu0 0
  %6966 = vmatpush2.bf16.msra.mxu0 %v6574
  %6967 = vmatprep.subr.bf16.mxu0 0
  %6968 = vmatpush2.bf16.msra.mxu0 %v6573
  %6969 = vmatprep.subr.bf16.mxu0 0
  %6970 = vmatpush2.bf16.msra.mxu0 %v6572
  %6971 = vmatprep.subr.bf16.mxu0 0
  %6972 = vmatpush2.bf16.msra.mxu0 %v6571
  %6973 = vmatprep.subr.bf16.mxu0 0
  %6974 = vmatpush2.bf16.msra.mxu0 %v6570
  %6975 = vmatprep.mubr.bf16.mxu0 %v5702
  %6976 = vmatmul.mubr.bf16.gmra.mxu0 %v5701
  %v6977 = vpop.f32.mrf.mxu0
  %v6978 = vadd.f32 %v6937, %v6977
  %v6979 = vpop.f32.mrf.mxu0
  %v6980 = vpop.f32.mrf.mxu0
  %v6981 = vadd.f32 %v6940, %v6980
  %v6982 = vpop.f32.mrf.mxu0
  %6983 = vdwg.mxu0
  %6984 = vmatprep.subr.bf16.mxu0 0
  %6985 = vmatpush1.bf16.msra.mxu0 %v6585
  %6986 = vmatprep.subr.bf16.mxu0 0
  %6987 = vmatpush1.bf16.msra.mxu0 %v6584
  %6988 = vmatprep.subr.bf16.mxu0 0
  %6989 = vmatpush1.bf16.msra.mxu0 %v6583
  %6990 = vmatprep.subr.bf16.mxu0 0
  %6991 = vmatpush1.bf16.msra.mxu0 %v6582
  %6992 = vmatprep.subr.bf16.mxu0 0
  %6993 = vmatpush1.bf16.msra.mxu0 %v6581
  %6994 = vmatprep.subr.bf16.mxu0 0
  %6995 = vmatpush1.bf16.msra.mxu0 %v6580
  %6996 = vmatprep.subr.bf16.mxu0 0
  %6997 = vmatpush1.bf16.msra.mxu0 %v6579
  %6998 = vmatprep.subr.bf16.mxu0 0
  %6999 = vmatpush1.bf16.msra.mxu0 %v6578
  %7000 = vmatprep.subr.bf16.mxu0 0
  %7001 = vmatpush2.bf16.msra.mxu0 %v6593
  %7002 = vmatprep.subr.bf16.mxu0 0
  %7003 = vmatpush2.bf16.msra.mxu0 %v6592
  %7004 = vmatprep.subr.bf16.mxu0 0
  %7005 = vmatpush2.bf16.msra.mxu0 %v6591
  %7006 = vmatprep.subr.bf16.mxu0 0
  %7007 = vmatpush2.bf16.msra.mxu0 %v6590
  %7008 = vmatprep.subr.bf16.mxu0 0
  %7009 = vmatpush2.bf16.msra.mxu0 %v6589
  %7010 = vmatprep.subr.bf16.mxu0 0
  %7011 = vmatpush2.bf16.msra.mxu0 %v6588
  %7012 = vmatprep.subr.bf16.mxu0 0
  %7013 = vmatpush2.bf16.msra.mxu0 %v6587
  %7014 = vmatprep.subr.bf16.mxu0 0
  %7015 = vmatpush2.bf16.msra.mxu0 %v6586
  %7016 = vmatprep.mubr.bf16.mxu0 %v5704
  %7017 = vmatmul.mubr.bf16.gmra.mxu0 %v5703
  %v7018 = vpop.f32.mrf.mxu0
  %v7019 = vadd.f32 %v6978, %v7018
  %v7020 = vpop.f32.mrf.mxu0
  %v7021 = vpop.f32.mrf.mxu0
  %v7022 = vadd.f32 %v6981, %v7021
  %v7023 = vpop.f32.mrf.mxu0
  %7024 = vdwg.mxu0
  %7025 = vmatprep.subr.bf16.mxu0 0
  %7026 = vmatpush1.bf16.msra.mxu0 %v6601
  %7027 = vmatprep.subr.bf16.mxu0 0
  %7028 = vmatpush1.bf16.msra.mxu0 %v6600
  %7029 = vmatprep.subr.bf16.mxu0 0
  %7030 = vmatpush1.bf16.msra.mxu0 %v6599
  %7031 = vmatprep.subr.bf16.mxu0 0
  %7032 = vmatpush1.bf16.msra.mxu0 %v6598
  %7033 = vmatprep.subr.bf16.mxu0 0
  %7034 = vmatpush1.bf16.msra.mxu0 %v6597
  %7035 = vmatprep.subr.bf16.mxu0 0
  %7036 = vmatpush1.bf16.msra.mxu0 %v6596
  %7037 = vmatprep.subr.bf16.mxu0 0
  %7038 = vmatpush1.bf16.msra.mxu0 %v6595
  %7039 = vmatprep.subr.bf16.mxu0 0
  %7040 = vmatpush1.bf16.msra.mxu0 %v6594
  %7041 = vmatprep.subr.bf16.mxu0 0
  %7042 = vmatpush2.bf16.msra.mxu0 %v6609
  %7043 = vmatprep.subr.bf16.mxu0 0
  %7044 = vmatpush2.bf16.msra.mxu0 %v6608
  %7045 = vmatprep.subr.bf16.mxu0 0
  %7046 = vmatpush2.bf16.msra.mxu0 %v6607
  %7047 = vmatprep.subr.bf16.mxu0 0
  %7048 = vmatpush2.bf16.msra.mxu0 %v6606
  %7049 = vmatprep.subr.bf16.mxu0 0
  %7050 = vmatpush2.bf16.msra.mxu0 %v6605
  %7051 = vmatprep.subr.bf16.mxu0 0
  %7052 = vmatpush2.bf16.msra.mxu0 %v6604
  %7053 = vmatprep.subr.bf16.mxu0 0
  %7054 = vmatpush2.bf16.msra.mxu0 %v6603
  %7055 = vmatprep.subr.bf16.mxu0 0
  %7056 = vmatpush2.bf16.msra.mxu0 %v6602
  %7057 = vmatprep.mubr.bf16.mxu0 %v5706
  %7058 = vmatmul.mubr.bf16.gmra.mxu0 %v5705
  %v7059 = vpop.f32.mrf.mxu0
  %v7060 = vadd.f32 %v7019, %v7059
  %v7061 = vpop.f32.mrf.mxu0
  %v7062 = vpop.f32.mrf.mxu0
  %v7063 = vadd.f32 %v7022, %v7062
  %v7064 = vpop.f32.mrf.mxu0
  %7065 = vdwg.mxu0
  %v7066 = vadd.f32 %v7060, %v4841
  %v7067 = vadd.f32 %v7063, %v4842
  %v7068 = vld [vmem:[%s55] sm:$0x1]
  %v7069 = vld [vmem:[%s57] sm:$0x1]
  %v7070 = vsel %vm213, %v7066, 0.0
  %7071 = vadd.xlane.f32.xlu0 %v7070
  %v7072 = vpop.xlane.xlu0 %7071
  %v7073 = vsel %vm213, %v7067, 0.0
  %7074 = vadd.xlane.f32.xlu0 %v7073
  %v7075 = vpop.xlane.xlu0 %7074
  %v7076 = vmul.f32 %v7072, %v1382
  %v7077 = vmul.f32 %v7075, %v1382
  %v7078 = vsub.f32 %v7066, %v7076
  %v7079 = vsub.f32 %v7067, %v7077
  %v7080 = vmul.f32 %v7078, %v7078
  %v7081 = vmul.f32 %v7079, %v7079
  %v7082 = vsel %vm213, %v7080, 0.0
  %7083 = vadd.xlane.f32.xlu0 %v7082
  %v7084 = vpop.xlane.xlu0 %7083
  %v7085 = vsel %vm213, %v7081, 0.0
  %7086 = vadd.xlane.f32.xlu0 %v7085
  %v7087 = vpop.xlane.xlu0 %7086
  %v7088 = vmul.f32 %v7084, %v1382
  %v7089 = vmul.f32 %v7087, %v1382
  %v7090 = vadd.f32 %v7088, 1e-05
  %v7091 = vadd.f32 %v7089, 1e-05
  %v7092 = vrsqrt.pop %v7090
  %v7093 = vrsqrt.pop %v7091
  %v7094 = vmul.f32 %v7078, %v7092
  %v7095 = vmul.f32 %v7079, %v7093
  %v7097 = vlaneseq
  %v7098 = vshrl.u32 %v7097, 7
  %v7099 = vsub.s32 0, %v7098
  %v7100 = vrot.slane %v7068, %v7099
  %v7102 = vmul.f32 %v7094, %v7100
  %v7103 = vmul.f32 %v7095, %v7100
  %v7105 = vlaneseq
  %v7106 = vshrl.u32 %v7105, 7
  %v7107 = vsub.s32 0, %v7106
  %v7108 = vrot.slane %v7069, %v7107
  %v7110 = vadd.f32 %v7102, %v7108
  %v7111 = vadd.f32 %v7103, %v7108
  %v7112 = vpack.c.bf16 %v7111, %v7110
  %v7113 = vld [vmem:[%s59] sm:$0xff]
  %v7114 = vld [vmem:[%s59 + $0x8] sm:$0xff]
  %v7115 = vld [vmem:[%s59 + $0x10] sm:$0xff]
  %v7116 = vld [vmem:[%s59 + $0x18] sm:$0xff]
  %v7117 = vld [vmem:[%s59 + $0x20] sm:$0xff]
  %v7118 = vld [vmem:[%s59 + $0x28] sm:$0xff]
  %v7119 = vld [vmem:[%s59 + $0x30] sm:$0xff]
  %v7120 = vld [vmem:[%s59 + $0x38] sm:$0xff]
  %v7121 = vld [vmem:[%s61] sm:$0x3]
  %v7123 = vlaneseq
  %v7124 = vshrl.u32 %v7123, 7
  %v7125 = vsub.s32 0, %v7124
  %v7126 = vrot.slane %v7121, %v7125
  %v7127 = vlaneseq
  %v7128 = vshrl.u32 %v7127, 7
  %v7129 = vsub.s32 1, %v7128
  %v7130 = vrot.slane %v7121, %v7129
  %v7141 = vunpack.c.l.b16 %v7113
  %v7142 = vunpack.c.h.b16 %v7113
  %v7143 = vunpack.c.l.b16 %v7114
  %v7144 = vunpack.c.h.b16 %v7114
  %v7145 = vunpack.c.l.b16 %v7115
  %v7146 = vunpack.c.h.b16 %v7115
  %v7147 = vunpack.c.l.b16 %v7116
  %v7148 = vunpack.c.h.b16 %v7116
  %v7149 = vunpack.c.l.b16 %v7117
  %v7150 = vunpack.c.h.b16 %v7117
  %v7151 = vunpack.c.l.b16 %v7118
  %v7152 = vunpack.c.h.b16 %v7118
  %v7153 = vunpack.c.l.b16 %v7119
  %v7154 = vunpack.c.h.b16 %v7119
  %v7155 = vunpack.c.l.b16 %v7120
  %v7156 = vunpack.c.h.b16 %v7120
  %v7157 = vpack.c.b16 %v7143, %v7141
  %v7158 = vpack.c.b16 %v7144, %v7142
  %v7159 = vpack.c.b16 %v7147, %v7145
  %v7160 = vpack.c.b16 %v7148, %v7146
  %v7161 = vpack.c.b16 %v7151, %v7149
  %v7162 = vpack.c.b16 %v7152, %v7150
  %v7163 = vpack.c.b16 %v7155, %v7153
  %v7164 = vpack.c.b16 %v7156, %v7154
  %v7174 = vsel %vm213, %v7112, 0
  %7176 = vmatprep.subr.bf16.mxu0 0
  %7177 = vmatpush1.bf16.msra.mxu0 0
  %7178 = vmatprep.subr.bf16.mxu0 0
  %7179 = vmatpush1.bf16.msra.mxu0 0
  %7180 = vmatprep.subr.bf16.mxu0 0
  %7181 = vmatpush1.bf16.msra.mxu0 0
  %7182 = vmatprep.subr.bf16.mxu0 0
  %7183 = vmatpush1.bf16.msra.mxu0 0
  %7184 = vmatprep.subr.bf16.mxu0 %v7164
  %7185 = vmatpush1.bf16.msra.mxu0 %v7163
  %7186 = vmatprep.subr.bf16.mxu0 %v7162
  %7187 = vmatpush1.bf16.msra.mxu0 %v7161
  %7188 = vmatprep.subr.bf16.mxu0 %v7160
  %7189 = vmatpush1.bf16.msra.mxu0 %v7159
  %7190 = vmatprep.subr.bf16.mxu0 %v7158
  %7191 = vmatpush1.bf16.msra.mxu0 %v7157
  %7192 = vmatprep.subr.bf16.mxu0 0
  %7193 = vmatpush2.bf16.msra.mxu0 0
  %7194 = vmatprep.subr.bf16.mxu0 0
  %7195 = vmatpush2.bf16.msra.mxu0 0
  %7196 = vmatprep.subr.bf16.mxu0 0
  %7197 = vmatpush2.bf16.msra.mxu0 0
  %7198 = vmatprep.subr.bf16.mxu0 0
  %7199 = vmatpush2.bf16.msra.mxu0 0
  %7200 = vmatprep.subr.bf16.mxu0 0
  %7201 = vmatpush2.bf16.msra.mxu0 0
  %7202 = vmatprep.subr.bf16.mxu0 0
  %7203 = vmatpush2.bf16.msra.mxu0 0
  %7204 = vmatprep.subr.bf16.mxu0 0
  %7205 = vmatpush2.bf16.msra.mxu0 0
  %7206 = vmatprep.subr.bf16.mxu0 0
  %7207 = vmatpush2.bf16.msra.mxu0 0
  %7208 = vmatprep.mubr.bf16.mxu0 0
  %7209 = vmatmul.mubr.bf16.gmra.mxu0 %v7174
  %v7210 = vpop.f32.mrf.mxu0
  %v7211 = vadd.f32 %v7126, %v7210
  %v7212 = vpop.f32.mrf.mxu0
  %v7213 = vadd.f32 %v7130, %v7212
  %v7214 = vpop.f32.mrf.mxu0
  %v7215 = vadd.f32 %v7126, %v7214
  %v7216 = vpop.f32.mrf.mxu0
  %v7217 = vadd.f32 %v7130, %v7216
  %7218 = vdwg.mxu0
  %v7219 = vpack.c.bf16 %v7211, %v7211
  %v7220 = vpack.c.bf16 %v7215, %v7215
  %7222 = vrot.lane.b32.xlu0 %v7219, 64
  %v7223 = vpop.permute.xlu0 %7222
  %v7225 = vsel %vm370, %v7219, 0
  %v7228 = vsel %vm370, %v7223, 0
  %7230 = vmatprep.subr.bf16.mxu0 0
  %7231 = vmatpush1.bf16.xpose.msra.mxu0 0
  %7232 = vmatprep.subr.bf16.mxu0 0
  %7233 = vmatpush1.bf16.xpose.msra.mxu0 0
  %7234 = vmatprep.subr.bf16.mxu0 0
  %7235 = vmatpush1.bf16.xpose.msra.mxu0 0
  %7236 = vmatprep.subr.bf16.mxu0 0
  %7237 = vmatpush1.bf16.xpose.msra.mxu0 0
  %7238 = vmatprep.subr.bf16.mxu0 0
  %7239 = vmatpush1.bf16.xpose.msra.mxu0 0
  %7240 = vmatprep.subr.bf16.mxu0 0
  %7241 = vmatpush1.bf16.xpose.msra.mxu0 0
  %7242 = vmatprep.subr.bf16.mxu0 0
  %7243 = vmatpush1.bf16.xpose.msra.mxu0 0
  %7244 = vmatprep.subr.bf16.mxu0 0
  %7245 = vmatpush1.bf16.xpose.msra.mxu0 %v7228
  %7246 = vmatprep.subr.bf16.mxu0 0
  %7247 = vmatpush2.bf16.xpose.msra.mxu0 0
  %7248 = vmatprep.subr.bf16.mxu0 0
  %7249 = vmatpush2.bf16.xpose.msra.mxu0 0
  %7250 = vmatprep.subr.bf16.mxu0 0
  %7251 = vmatpush2.bf16.xpose.msra.mxu0 0
  %7252 = vmatprep.subr.bf16.mxu0 0
  %7253 = vmatpush2.bf16.xpose.msra.mxu0 0
  %7254 = vmatprep.subr.bf16.mxu0 0
  %7255 = vmatpush2.bf16.xpose.msra.mxu0 0
  %7256 = vmatprep.subr.bf16.mxu0 0
  %7257 = vmatpush2.bf16.xpose.msra.mxu0 0
  %7258 = vmatprep.subr.bf16.mxu0 0
  %7259 = vmatpush2.bf16.xpose.msra.mxu0 0
  %7260 = vmatprep.subr.bf16.mxu0 0
  %7261 = vmatpush2.bf16.xpose.msra.mxu0 0
  %7262 = vmatprep.mubr.bf16.mxu0 0
  %7263 = vmatmul.mubr.bf16.gmra.mxu0 %v7225
  %v7264 = vpop.f32.mrf.mxu0
  %v7265 = vadd.f32 0.0, %v7264
  %v7266 = vpop.f32.mrf.mxu0
  %v7267 = vpop.f32.mrf.mxu0
  %v7268 = vpop.f32.mrf.mxu0
  %7269 = vdwg.mxu0
  %7271 = vrot.lane.b32.xlu0 %v7220, 64
  %v7272 = vpop.permute.xlu0 %7271
  %v7274 = vsel %vm370, %v7220, 0
  %v7277 = vsel %vm370, %v7272, 0
  %7279 = vmatprep.subr.bf16.mxu0 0
  %7280 = vmatpush1.bf16.xpose.msra.mxu0 0
  %7281 = vmatprep.subr.bf16.mxu0 0
  %7282 = vmatpush1.bf16.xpose.msra.mxu0 0
  %7283 = vmatprep.subr.bf16.mxu0 0
  %7284 = vmatpush1.bf16.xpose.msra.mxu0 0
  %7285 = vmatprep.subr.bf16.mxu0 0
  %7286 = vmatpush1.bf16.xpose.msra.mxu0 0
  %7287 = vmatprep.subr.bf16.mxu0 0
  %7288 = vmatpush1.bf16.xpose.msra.mxu0 0
  %7289 = vmatprep.subr.bf16.mxu0 0
  %7290 = vmatpush1.bf16.xpose.msra.mxu0 0
  %7291 = vmatprep.subr.bf16.mxu0 0
  %7292 = vmatpush1.bf16.xpose.msra.mxu0 0
  %7293 = vmatprep.subr.bf16.mxu0 0
  %7294 = vmatpush1.bf16.xpose.msra.mxu0 %v7277
  %7295 = vmatprep.subr.bf16.mxu0 0
  %7296 = vmatpush2.bf16.xpose.msra.mxu0 0
  %7297 = vmatprep.subr.bf16.mxu0 0
  %7298 = vmatpush2.bf16.xpose.msra.mxu0 0
  %7299 = vmatprep.subr.bf16.mxu0 0
  %7300 = vmatpush2.bf16.xpose.msra.mxu0 0
  %7301 = vmatprep.subr.bf16.mxu0 0
  %7302 = vmatpush2.bf16.xpose.msra.mxu0 0
  %7303 = vmatprep.subr.bf16.mxu0 0
  %7304 = vmatpush2.bf16.xpose.msra.mxu0 0
  %7305 = vmatprep.subr.bf16.mxu0 0
  %7306 = vmatpush2.bf16.xpose.msra.mxu0 0
  %7307 = vmatprep.subr.bf16.mxu0 0
  %7308 = vmatpush2.bf16.xpose.msra.mxu0 0
  %7309 = vmatprep.subr.bf16.mxu0 0
  %7310 = vmatpush2.bf16.xpose.msra.mxu0 0
  %7311 = vmatprep.mubr.bf16.mxu0 0
  %7312 = vmatmul.mubr.bf16.gmra.mxu0 %v7274
  %v7313 = vpop.f32.mrf.mxu0
  %v7314 = vadd.f32 0.0, %v7313
  %v7315 = vpop.f32.mrf.mxu0
  %v7316 = vpop.f32.mrf.mxu0
  %v7317 = vpop.f32.mrf.mxu0
  %7318 = vdwg.mxu0
  %v7319 = vmul.f32 %v7265, 0.25
  %v7320 = vmul.f32 %v7314, 0.25
  %v7321 = vsel %vm468, %v7319, -inf
  %7322 = vmax.xlane.f32.xlu0 %v7321
  %v7323 = vpop.xlane.xlu0 %7322
  %v7324 = vsel %vm468, %v7320, -inf
  %7325 = vmax.xlane.f32.xlu0 %v7324
  %v7326 = vpop.xlane.xlu0 %7325
  %v7327 = vsub.f32 %v7319, %v7323
  %v7328 = vsub.f32 %v7320, %v7326
  %v7329 = vmul.f32 %v7327, 1.442695
  %v7330 = vpow.pop %v7329
  %v7331 = vmul.f32 %v7328, 1.442695
  %v7332 = vpow.pop %v7331
  %v7333 = vsel %vm468, %v7330, 0.0
  %7334 = vadd.xlane.f32.xlu0 %v7333
  %v7335 = vpop.xlane.xlu0 %7334
  %v7336 = vsel %vm468, %v7332, 0.0
  %7337 = vadd.xlane.f32.xlu0 %v7336
  %v7338 = vpop.xlane.xlu0 %7337
  %v7339 = vrcp.pop %v7335
  %v7340 = vrcp.pop %v7338
  %v7341 = vmul.f32 %v7330, %v7339
  %v7342 = vmul.f32 %v7332, %v7340
  %v7343 = vpack.c.bf16 %v7341, %v7341
  %v7344 = vpack.c.bf16 %v7342, %v7342
  %v7345 = vpack.c.bf16 %v7213, %v7213
  %v7346 = vpack.c.bf16 %v7217, %v7217
  %v7348 = vsel %vm468, %v7343, 0
  %v7351 = vsel %vm498, %v7345, 0
  %7353 = vmatprep.subr.bf16.mxu0 0
  %7354 = vmatpush1.bf16.msra.mxu0 0
  %7355 = vmatprep.subr.bf16.mxu0 0
  %7356 = vmatpush1.bf16.msra.mxu0 0
  %7357 = vmatprep.subr.bf16.mxu0 0
  %7358 = vmatpush1.bf16.msra.mxu0 0
  %7359 = vmatprep.subr.bf16.mxu0 0
  %7360 = vmatpush1.bf16.msra.mxu0 0
  %7361 = vmatprep.subr.bf16.mxu0 0
  %7362 = vmatpush1.bf16.msra.mxu0 0
  %7363 = vmatprep.subr.bf16.mxu0 0
  %7364 = vmatpush1.bf16.msra.mxu0 0
  %7365 = vmatprep.subr.bf16.mxu0 0
  %7366 = vmatpush1.bf16.msra.mxu0 0
  %7367 = vmatprep.subr.bf16.mxu0 0
  %7368 = vmatpush1.bf16.msra.mxu0 %v7351
  %7369 = vmatprep.subr.bf16.mxu0 0
  %7370 = vmatpush2.bf16.msra.mxu0 0
  %7371 = vmatprep.subr.bf16.mxu0 0
  %7372 = vmatpush2.bf16.msra.mxu0 0
  %7373 = vmatprep.subr.bf16.mxu0 0
  %7374 = vmatpush2.bf16.msra.mxu0 0
  %7375 = vmatprep.subr.bf16.mxu0 0
  %7376 = vmatpush2.bf16.msra.mxu0 0
  %7377 = vmatprep.subr.bf16.mxu0 0
  %7378 = vmatpush2.bf16.msra.mxu0 0
  %7379 = vmatprep.subr.bf16.mxu0 0
  %7380 = vmatpush2.bf16.msra.mxu0 0
  %7381 = vmatprep.subr.bf16.mxu0 0
  %7382 = vmatpush2.bf16.msra.mxu0 0
  %7383 = vmatprep.subr.bf16.mxu0 0
  %7384 = vmatpush2.bf16.msra.mxu0 0
  %7385 = vmatprep.mubr.bf16.mxu0 0
  %7386 = vmatmul.mubr.bf16.gmra.mxu0 %v7348
  %v7387 = vpop.f32.mrf.mxu0
  %v7388 = vadd.f32 0.0, %v7387
  %v7389 = vpop.f32.mrf.mxu0
  %v7390 = vpop.f32.mrf.mxu0
  %v7391 = vpop.f32.mrf.mxu0
  %7392 = vdwg.mxu0
  %v7394 = vsel %vm468, %v7344, 0
  %v7397 = vsel %vm498, %v7346, 0
  %7399 = vmatprep.subr.bf16.mxu0 0
  %7400 = vmatpush1.bf16.msra.mxu0 0
  %7401 = vmatprep.subr.bf16.mxu0 0
  %7402 = vmatpush1.bf16.msra.mxu0 0
  %7403 = vmatprep.subr.bf16.mxu0 0
  %7404 = vmatpush1.bf16.msra.mxu0 0
  %7405 = vmatprep.subr.bf16.mxu0 0
  %7406 = vmatpush1.bf16.msra.mxu0 0
  %7407 = vmatprep.subr.bf16.mxu0 0
  %7408 = vmatpush1.bf16.msra.mxu0 0
  %7409 = vmatprep.subr.bf16.mxu0 0
  %7410 = vmatpush1.bf16.msra.mxu0 0
  %7411 = vmatprep.subr.bf16.mxu0 0
  %7412 = vmatpush1.bf16.msra.mxu0 0
  %7413 = vmatprep.subr.bf16.mxu0 0
  %7414 = vmatpush1.bf16.msra.mxu0 %v7397
  %7415 = vmatprep.subr.bf16.mxu0 0
  %7416 = vmatpush2.bf16.msra.mxu0 0
  %7417 = vmatprep.subr.bf16.mxu0 0
  %7418 = vmatpush2.bf16.msra.mxu0 0
  %7419 = vmatprep.subr.bf16.mxu0 0
  %7420 = vmatpush2.bf16.msra.mxu0 0
  %7421 = vmatprep.subr.bf16.mxu0 0
  %7422 = vmatpush2.bf16.msra.mxu0 0
  %7423 = vmatprep.subr.bf16.mxu0 0
  %7424 = vmatpush2.bf16.msra.mxu0 0
  %7425 = vmatprep.subr.bf16.mxu0 0
  %7426 = vmatpush2.bf16.msra.mxu0 0
  %7427 = vmatprep.subr.bf16.mxu0 0
  %7428 = vmatpush2.bf16.msra.mxu0 0
  %7429 = vmatprep.subr.bf16.mxu0 0
  %7430 = vmatpush2.bf16.msra.mxu0 0
  %7431 = vmatprep.mubr.bf16.mxu0 0
  %7432 = vmatmul.mubr.bf16.gmra.mxu0 %v7394
  %v7433 = vpop.f32.mrf.mxu0
  %v7434 = vadd.f32 0.0, %v7433
  %v7435 = vpop.f32.mrf.mxu0
  %v7436 = vpop.f32.mrf.mxu0
  %v7437 = vpop.f32.mrf.mxu0
  %7438 = vdwg.mxu0
  %7439 = vrot.lane.b32.xlu0 %v7219, 112
  %v7440 = vpop.permute.xlu0 %7439
  %7441 = vrot.lane.b32.xlu0 %v7219, 48
  %v7442 = vpop.permute.xlu0 %7441
  %v7444 = vsel %vm370, %v7440, 0
  %v7447 = vsel %vm370, %v7442, 0
  %7449 = vmatprep.subr.bf16.mxu0 0
  %7450 = vmatpush1.bf16.xpose.msra.mxu0 0
  %7451 = vmatprep.subr.bf16.mxu0 0
  %7452 = vmatpush1.bf16.xpose.msra.mxu0 0
  %7453 = vmatprep.subr.bf16.mxu0 0
  %7454 = vmatpush1.bf16.xpose.msra.mxu0 0
  %7455 = vmatprep.subr.bf16.mxu0 0
  %7456 = vmatpush1.bf16.xpose.msra.mxu0 0
  %7457 = vmatprep.subr.bf16.mxu0 0
  %7458 = vmatpush1.bf16.xpose.msra.mxu0 0
  %7459 = vmatprep.subr.bf16.mxu0 0
  %7460 = vmatpush1.bf16.xpose.msra.mxu0 0
  %7461 = vmatprep.subr.bf16.mxu0 0
  %7462 = vmatpush1.bf16.xpose.msra.mxu0 0
  %7463 = vmatprep.subr.bf16.mxu0 0
  %7464 = vmatpush1.bf16.xpose.msra.mxu0 %v7447
  %7465 = vmatprep.subr.bf16.mxu0 0
  %7466 = vmatpush2.bf16.xpose.msra.mxu0 0
  %7467 = vmatprep.subr.bf16.mxu0 0
  %7468 = vmatpush2.bf16.xpose.msra.mxu0 0
  %7469 = vmatprep.subr.bf16.mxu0 0
  %7470 = vmatpush2.bf16.xpose.msra.mxu0 0
  %7471 = vmatprep.subr.bf16.mxu0 0
  %7472 = vmatpush2.bf16.xpose.msra.mxu0 0
  %7473 = vmatprep.subr.bf16.mxu0 0
  %7474 = vmatpush2.bf16.xpose.msra.mxu0 0
  %7475 = vmatprep.subr.bf16.mxu0 0
  %7476 = vmatpush2.bf16.xpose.msra.mxu0 0
  %7477 = vmatprep.subr.bf16.mxu0 0
  %7478 = vmatpush2.bf16.xpose.msra.mxu0 0
  %7479 = vmatprep.subr.bf16.mxu0 0
  %7480 = vmatpush2.bf16.xpose.msra.mxu0 0
  %7481 = vmatprep.mubr.bf16.mxu0 0
  %7482 = vmatmul.mubr.bf16.gmra.mxu0 %v7444
  %v7483 = vpop.f32.mrf.mxu0
  %v7484 = vadd.f32 0.0, %v7483
  %v7485 = vpop.f32.mrf.mxu0
  %v7486 = vpop.f32.mrf.mxu0
  %v7487 = vpop.f32.mrf.mxu0
  %7488 = vdwg.mxu0
  %7489 = vrot.lane.b32.xlu0 %v7220, 112
  %v7490 = vpop.permute.xlu0 %7489
  %7491 = vrot.lane.b32.xlu0 %v7220, 48
  %v7492 = vpop.permute.xlu0 %7491
  %v7494 = vsel %vm370, %v7490, 0
  %v7497 = vsel %vm370, %v7492, 0
  %7499 = vmatprep.subr.bf16.mxu0 0
  %7500 = vmatpush1.bf16.xpose.msra.mxu0 0
  %7501 = vmatprep.subr.bf16.mxu0 0
  %7502 = vmatpush1.bf16.xpose.msra.mxu0 0
  %7503 = vmatprep.subr.bf16.mxu0 0
  %7504 = vmatpush1.bf16.xpose.msra.mxu0 0
  %7505 = vmatprep.subr.bf16.mxu0 0
  %7506 = vmatpush1.bf16.xpose.msra.mxu0 0
  %7507 = vmatprep.subr.bf16.mxu0 0
  %7508 = vmatpush1.bf16.xpose.msra.mxu0 0
  %7509 = vmatprep.subr.bf16.mxu0 0
  %7510 = vmatpush1.bf16.xpose.msra.mxu0 0
  %7511 = vmatprep.subr.bf16.mxu0 0
  %7512 = vmatpush1.bf16.xpose.msra.mxu0 0
  %7513 = vmatprep.subr.bf16.mxu0 0
  %7514 = vmatpush1.bf16.xpose.msra.mxu0 %v7497
  %7515 = vmatprep.subr.bf16.mxu0 0
  %7516 = vmatpush2.bf16.xpose.msra.mxu0 0
  %7517 = vmatprep.subr.bf16.mxu0 0
  %7518 = vmatpush2.bf16.xpose.msra.mxu0 0
  %7519 = vmatprep.subr.bf16.mxu0 0
  %7520 = vmatpush2.bf16.xpose.msra.mxu0 0
  %7521 = vmatprep.subr.bf16.mxu0 0
  %7522 = vmatpush2.bf16.xpose.msra.mxu0 0
  %7523 = vmatprep.subr.bf16.mxu0 0
  %7524 = vmatpush2.bf16.xpose.msra.mxu0 0
  %7525 = vmatprep.subr.bf16.mxu0 0
  %7526 = vmatpush2.bf16.xpose.msra.mxu0 0
  %7527 = vmatprep.subr.bf16.mxu0 0
  %7528 = vmatpush2.bf16.xpose.msra.mxu0 0
  %7529 = vmatprep.subr.bf16.mxu0 0
  %7530 = vmatpush2.bf16.xpose.msra.mxu0 0
  %7531 = vmatprep.mubr.bf16.mxu0 0
  %7532 = vmatmul.mubr.bf16.gmra.mxu0 %v7494
  %v7533 = vpop.f32.mrf.mxu0
  %v7534 = vadd.f32 0.0, %v7533
  %v7535 = vpop.f32.mrf.mxu0
  %v7536 = vpop.f32.mrf.mxu0
  %v7537 = vpop.f32.mrf.mxu0
  %7538 = vdwg.mxu0
  %v7539 = vmul.f32 %v7484, 0.25
  %v7540 = vmul.f32 %v7534, 0.25
  %v7541 = vsel %vm468, %v7539, -inf
  %7542 = vmax.xlane.f32.xlu0 %v7541
  %v7543 = vpop.xlane.xlu0 %7542
  %v7544 = vsel %vm468, %v7540, -inf
  %7545 = vmax.xlane.f32.xlu0 %v7544
  %v7546 = vpop.xlane.xlu0 %7545
  %v7547 = vsub.f32 %v7539, %v7543
  %v7548 = vsub.f32 %v7540, %v7546
  %v7549 = vmul.f32 %v7547, 1.442695
  %v7550 = vpow.pop %v7549
  %v7551 = vmul.f32 %v7548, 1.442695
  %v7552 = vpow.pop %v7551
  %v7553 = vsel %vm468, %v7550, 0.0
  %7554 = vadd.xlane.f32.xlu0 %v7553
  %v7555 = vpop.xlane.xlu0 %7554
  %v7556 = vsel %vm468, %v7552, 0.0
  %7557 = vadd.xlane.f32.xlu0 %v7556
  %v7558 = vpop.xlane.xlu0 %7557
  %v7559 = vrcp.pop %v7555
  %v7560 = vrcp.pop %v7558
  %v7561 = vmul.f32 %v7550, %v7559
  %v7562 = vmul.f32 %v7552, %v7560
  %v7563 = vpack.c.bf16 %v7561, %v7561
  %v7564 = vpack.c.bf16 %v7562, %v7562
  %7566 = vrot.lane.b32.xlu0 %v7345, 112
  %v7567 = vpop.permute.xlu0 %7566
  %v7569 = vsel %vm468, %v7563, 0
  %v7572 = vsel %vm498, %v7567, 0
  %7574 = vmatprep.subr.bf16.mxu0 0
  %7575 = vmatpush1.bf16.msra.mxu0 0
  %7576 = vmatprep.subr.bf16.mxu0 0
  %7577 = vmatpush1.bf16.msra.mxu0 0
  %7578 = vmatprep.subr.bf16.mxu0 0
  %7579 = vmatpush1.bf16.msra.mxu0 0
  %7580 = vmatprep.subr.bf16.mxu0 0
  %7581 = vmatpush1.bf16.msra.mxu0 0
  %7582 = vmatprep.subr.bf16.mxu0 0
  %7583 = vmatpush1.bf16.msra.mxu0 0
  %7584 = vmatprep.subr.bf16.mxu0 0
  %7585 = vmatpush1.bf16.msra.mxu0 0
  %7586 = vmatprep.subr.bf16.mxu0 0
  %7587 = vmatpush1.bf16.msra.mxu0 0
  %7588 = vmatprep.subr.bf16.mxu0 0
  %7589 = vmatpush1.bf16.msra.mxu0 %v7572
  %7590 = vmatprep.subr.bf16.mxu0 0
  %7591 = vmatpush2.bf16.msra.mxu0 0
  %7592 = vmatprep.subr.bf16.mxu0 0
  %7593 = vmatpush2.bf16.msra.mxu0 0
  %7594 = vmatprep.subr.bf16.mxu0 0
  %7595 = vmatpush2.bf16.msra.mxu0 0
  %7596 = vmatprep.subr.bf16.mxu0 0
  %7597 = vmatpush2.bf16.msra.mxu0 0
  %7598 = vmatprep.subr.bf16.mxu0 0
  %7599 = vmatpush2.bf16.msra.mxu0 0
  %7600 = vmatprep.subr.bf16.mxu0 0
  %7601 = vmatpush2.bf16.msra.mxu0 0
  %7602 = vmatprep.subr.bf16.mxu0 0
  %7603 = vmatpush2.bf16.msra.mxu0 0
  %7604 = vmatprep.subr.bf16.mxu0 0
  %7605 = vmatpush2.bf16.msra.mxu0 0
  %7606 = vmatprep.mubr.bf16.mxu0 0
  %7607 = vmatmul.mubr.bf16.gmra.mxu0 %v7569
  %v7608 = vpop.f32.mrf.mxu0
  %v7609 = vadd.f32 0.0, %v7608
  %v7610 = vpop.f32.mrf.mxu0
  %v7611 = vpop.f32.mrf.mxu0
  %v7612 = vpop.f32.mrf.mxu0
  %7613 = vdwg.mxu0
  %7615 = vrot.lane.b32.xlu0 %v7346, 112
  %v7616 = vpop.permute.xlu0 %7615
  %v7618 = vsel %vm468, %v7564, 0
  %v7621 = vsel %vm498, %v7616, 0
  %7623 = vmatprep.subr.bf16.mxu0 0
  %7624 = vmatpush1.bf16.msra.mxu0 0
  %7625 = vmatprep.subr.bf16.mxu0 0
  %7626 = vmatpush1.bf16.msra.mxu0 0
  %7627 = vmatprep.subr.bf16.mxu0 0
  %7628 = vmatpush1.bf16.msra.mxu0 0
  %7629 = vmatprep.subr.bf16.mxu0 0
  %7630 = vmatpush1.bf16.msra.mxu0 0
  %7631 = vmatprep.subr.bf16.mxu0 0
  %7632 = vmatpush1.bf16.msra.mxu0 0
  %7633 = vmatprep.subr.bf16.mxu0 0
  %7634 = vmatpush1.bf16.msra.mxu0 0
  %7635 = vmatprep.subr.bf16.mxu0 0
  %7636 = vmatpush1.bf16.msra.mxu0 0
  %7637 = vmatprep.subr.bf16.mxu0 0
  %7638 = vmatpush1.bf16.msra.mxu0 %v7621
  %7639 = vmatprep.subr.bf16.mxu0 0
  %7640 = vmatpush2.bf16.msra.mxu0 0
  %7641 = vmatprep.subr.bf16.mxu0 0
  %7642 = vmatpush2.bf16.msra.mxu0 0
  %7643 = vmatprep.subr.bf16.mxu0 0
  %7644 = vmatpush2.bf16.msra.mxu0 0
  %7645 = vmatprep.subr.bf16.mxu0 0
  %7646 = vmatpush2.bf16.msra.mxu0 0
  %7647 = vmatprep.subr.bf16.mxu0 0
  %7648 = vmatpush2.bf16.msra.mxu0 0
  %7649 = vmatprep.subr.bf16.mxu0 0
  %7650 = vmatpush2.bf16.msra.mxu0 0
  %7651 = vmatprep.subr.bf16.mxu0 0
  %7652 = vmatpush2.bf16.msra.mxu0 0
  %7653 = vmatprep.subr.bf16.mxu0 0
  %7654 = vmatpush2.bf16.msra.mxu0 0
  %7655 = vmatprep.mubr.bf16.mxu0 0
  %7656 = vmatmul.mubr.bf16.gmra.mxu0 %v7618
  %v7657 = vpop.f32.mrf.mxu0
  %v7658 = vadd.f32 0.0, %v7657
  %v7659 = vpop.f32.mrf.mxu0
  %v7660 = vpop.f32.mrf.mxu0
  %v7661 = vpop.f32.mrf.mxu0
  %7662 = vdwg.mxu0
  %7663 = vrot.lane.b32.xlu0 %v7219, 96
  %v7664 = vpop.permute.xlu0 %7663
  %7665 = vrot.lane.b32.xlu0 %v7219, 32
  %v7666 = vpop.permute.xlu0 %7665
  %v7668 = vsel %vm370, %v7664, 0
  %v7671 = vsel %vm370, %v7666, 0
  %7673 = vmatprep.subr.bf16.mxu0 0
  %7674 = vmatpush1.bf16.xpose.msra.mxu0 0
  %7675 = vmatprep.subr.bf16.mxu0 0
  %7676 = vmatpush1.bf16.xpose.msra.mxu0 0
  %7677 = vmatprep.subr.bf16.mxu0 0
  %7678 = vmatpush1.bf16.xpose.msra.mxu0 0
  %7679 = vmatprep.subr.bf16.mxu0 0
  %7680 = vmatpush1.bf16.xpose.msra.mxu0 0
  %7681 = vmatprep.subr.bf16.mxu0 0
  %7682 = vmatpush1.bf16.xpose.msra.mxu0 0
  %7683 = vmatprep.subr.bf16.mxu0 0
  %7684 = vmatpush1.bf16.xpose.msra.mxu0 0
  %7685 = vmatprep.subr.bf16.mxu0 0
  %7686 = vmatpush1.bf16.xpose.msra.mxu0 0
  %7687 = vmatprep.subr.bf16.mxu0 0
  %7688 = vmatpush1.bf16.xpose.msra.mxu0 %v7671
  %7689 = vmatprep.subr.bf16.mxu0 0
  %7690 = vmatpush2.bf16.xpose.msra.mxu0 0
  %7691 = vmatprep.subr.bf16.mxu0 0
  %7692 = vmatpush2.bf16.xpose.msra.mxu0 0
  %7693 = vmatprep.subr.bf16.mxu0 0
  %7694 = vmatpush2.bf16.xpose.msra.mxu0 0
  %7695 = vmatprep.subr.bf16.mxu0 0
  %7696 = vmatpush2.bf16.xpose.msra.mxu0 0
  %7697 = vmatprep.subr.bf16.mxu0 0
  %7698 = vmatpush2.bf16.xpose.msra.mxu0 0
  %7699 = vmatprep.subr.bf16.mxu0 0
  %7700 = vmatpush2.bf16.xpose.msra.mxu0 0
  %7701 = vmatprep.subr.bf16.mxu0 0
  %7702 = vmatpush2.bf16.xpose.msra.mxu0 0
  %7703 = vmatprep.subr.bf16.mxu0 0
  %7704 = vmatpush2.bf16.xpose.msra.mxu0 0
  %7705 = vmatprep.mubr.bf16.mxu0 0
  %7706 = vmatmul.mubr.bf16.gmra.mxu0 %v7668
  %v7707 = vpop.f32.mrf.mxu0
  %v7708 = vadd.f32 0.0, %v7707
  %v7709 = vpop.f32.mrf.mxu0
  %v7710 = vpop.f32.mrf.mxu0
  %v7711 = vpop.f32.mrf.mxu0
  %7712 = vdwg.mxu0
  %7713 = vrot.lane.b32.xlu0 %v7220, 96
  %v7714 = vpop.permute.xlu0 %7713
  %7715 = vrot.lane.b32.xlu0 %v7220, 32
  %v7716 = vpop.permute.xlu0 %7715
  %v7718 = vsel %vm370, %v7714, 0
  %v7721 = vsel %vm370, %v7716, 0
  %7723 = vmatprep.subr.bf16.mxu0 0
  %7724 = vmatpush1.bf16.xpose.msra.mxu0 0
  %7725 = vmatprep.subr.bf16.mxu0 0
  %7726 = vmatpush1.bf16.xpose.msra.mxu0 0
  %7727 = vmatprep.subr.bf16.mxu0 0
  %7728 = vmatpush1.bf16.xpose.msra.mxu0 0
  %7729 = vmatprep.subr.bf16.mxu0 0
  %7730 = vmatpush1.bf16.xpose.msra.mxu0 0
  %7731 = vmatprep.subr.bf16.mxu0 0
  %7732 = vmatpush1.bf16.xpose.msra.mxu0 0
  %7733 = vmatprep.subr.bf16.mxu0 0
  %7734 = vmatpush1.bf16.xpose.msra.mxu0 0
  %7735 = vmatprep.subr.bf16.mxu0 0
  %7736 = vmatpush1.bf16.xpose.msra.mxu0 0
  %7737 = vmatprep.subr.bf16.mxu0 0
  %7738 = vmatpush1.bf16.xpose.msra.mxu0 %v7721
  %7739 = vmatprep.subr.bf16.mxu0 0
  %7740 = vmatpush2.bf16.xpose.msra.mxu0 0
  %7741 = vmatprep.subr.bf16.mxu0 0
  %7742 = vmatpush2.bf16.xpose.msra.mxu0 0
  %7743 = vmatprep.subr.bf16.mxu0 0
  %7744 = vmatpush2.bf16.xpose.msra.mxu0 0
  %7745 = vmatprep.subr.bf16.mxu0 0
  %7746 = vmatpush2.bf16.xpose.msra.mxu0 0
  %7747 = vmatprep.subr.bf16.mxu0 0
  %7748 = vmatpush2.bf16.xpose.msra.mxu0 0
  %7749 = vmatprep.subr.bf16.mxu0 0
  %7750 = vmatpush2.bf16.xpose.msra.mxu0 0
  %7751 = vmatprep.subr.bf16.mxu0 0
  %7752 = vmatpush2.bf16.xpose.msra.mxu0 0
  %7753 = vmatprep.subr.bf16.mxu0 0
  %7754 = vmatpush2.bf16.xpose.msra.mxu0 0
  %7755 = vmatprep.mubr.bf16.mxu0 0
  %7756 = vmatmul.mubr.bf16.gmra.mxu0 %v7718
  %v7757 = vpop.f32.mrf.mxu0
  %v7758 = vadd.f32 0.0, %v7757
  %v7759 = vpop.f32.mrf.mxu0
  %v7760 = vpop.f32.mrf.mxu0
  %v7761 = vpop.f32.mrf.mxu0
  %7762 = vdwg.mxu0
  %v7763 = vmul.f32 %v7708, 0.25
  %v7764 = vmul.f32 %v7758, 0.25
  %v7765 = vsel %vm468, %v7763, -inf
  %7766 = vmax.xlane.f32.xlu0 %v7765
  %v7767 = vpop.xlane.xlu0 %7766
  %v7768 = vsel %vm468, %v7764, -inf
  %7769 = vmax.xlane.f32.xlu0 %v7768
  %v7770 = vpop.xlane.xlu0 %7769
  %v7771 = vsub.f32 %v7763, %v7767
  %v7772 = vsub.f32 %v7764, %v7770
  %v7773 = vmul.f32 %v7771, 1.442695
  %v7774 = vpow.pop %v7773
  %v7775 = vmul.f32 %v7772, 1.442695
  %v7776 = vpow.pop %v7775
  %v7777 = vsel %vm468, %v7774, 0.0
  %7778 = vadd.xlane.f32.xlu0 %v7777
  %v7779 = vpop.xlane.xlu0 %7778
  %v7780 = vsel %vm468, %v7776, 0.0
  %7781 = vadd.xlane.f32.xlu0 %v7780
  %v7782 = vpop.xlane.xlu0 %7781
  %v7783 = vrcp.pop %v7779
  %v7784 = vrcp.pop %v7782
  %v7785 = vmul.f32 %v7774, %v7783
  %v7786 = vmul.f32 %v7776, %v7784
  %v7787 = vpack.c.bf16 %v7785, %v7785
  %v7788 = vpack.c.bf16 %v7786, %v7786
  %7789 = vrot.lane.b32.xlu0 %v7345, 96
  %v7790 = vpop.permute.xlu0 %7789
  %v7792 = vsel %vm468, %v7787, 0
  %v7795 = vsel %vm498, %v7790, 0
  %7797 = vmatprep.subr.bf16.mxu0 0
  %7798 = vmatpush1.bf16.msra.mxu0 0
  %7799 = vmatprep.subr.bf16.mxu0 0
  %7800 = vmatpush1.bf16.msra.mxu0 0
  %7801 = vmatprep.subr.bf16.mxu0 0
  %7802 = vmatpush1.bf16.msra.mxu0 0
  %7803 = vmatprep.subr.bf16.mxu0 0
  %7804 = vmatpush1.bf16.msra.mxu0 0
  %7805 = vmatprep.subr.bf16.mxu0 0
  %7806 = vmatpush1.bf16.msra.mxu0 0
  %7807 = vmatprep.subr.bf16.mxu0 0
  %7808 = vmatpush1.bf16.msra.mxu0 0
  %7809 = vmatprep.subr.bf16.mxu0 0
  %7810 = vmatpush1.bf16.msra.mxu0 0
  %7811 = vmatprep.subr.bf16.mxu0 0
  %7812 = vmatpush1.bf16.msra.mxu0 %v7795
  %7813 = vmatprep.subr.bf16.mxu0 0
  %7814 = vmatpush2.bf16.msra.mxu0 0
  %7815 = vmatprep.subr.bf16.mxu0 0
  %7816 = vmatpush2.bf16.msra.mxu0 0
  %7817 = vmatprep.subr.bf16.mxu0 0
  %7818 = vmatpush2.bf16.msra.mxu0 0
  %7819 = vmatprep.subr.bf16.mxu0 0
  %7820 = vmatpush2.bf16.msra.mxu0 0
  %7821 = vmatprep.subr.bf16.mxu0 0
  %7822 = vmatpush2.bf16.msra.mxu0 0
  %7823 = vmatprep.subr.bf16.mxu0 0
  %7824 = vmatpush2.bf16.msra.mxu0 0
  %7825 = vmatprep.subr.bf16.mxu0 0
  %7826 = vmatpush2.bf16.msra.mxu0 0
  %7827 = vmatprep.subr.bf16.mxu0 0
  %7828 = vmatpush2.bf16.msra.mxu0 0
  %7829 = vmatprep.mubr.bf16.mxu0 0
  %7830 = vmatmul.mubr.bf16.gmra.mxu0 %v7792
  %v7831 = vpop.f32.mrf.mxu0
  %v7832 = vadd.f32 0.0, %v7831
  %v7833 = vpop.f32.mrf.mxu0
  %v7834 = vpop.f32.mrf.mxu0
  %v7835 = vpop.f32.mrf.mxu0
  %7836 = vdwg.mxu0
  %7837 = vrot.lane.b32.xlu0 %v7346, 96
  %v7838 = vpop.permute.xlu0 %7837
  %v7840 = vsel %vm468, %v7788, 0
  %v7843 = vsel %vm498, %v7838, 0
  %7845 = vmatprep.subr.bf16.mxu0 0
  %7846 = vmatpush1.bf16.msra.mxu0 0
  %7847 = vmatprep.subr.bf16.mxu0 0
  %7848 = vmatpush1.bf16.msra.mxu0 0
  %7849 = vmatprep.subr.bf16.mxu0 0
  %7850 = vmatpush1.bf16.msra.mxu0 0
  %7851 = vmatprep.subr.bf16.mxu0 0
  %7852 = vmatpush1.bf16.msra.mxu0 0
  %7853 = vmatprep.subr.bf16.mxu0 0
  %7854 = vmatpush1.bf16.msra.mxu0 0
  %7855 = vmatprep.subr.bf16.mxu0 0
  %7856 = vmatpush1.bf16.msra.mxu0 0
  %7857 = vmatprep.subr.bf16.mxu0 0
  %7858 = vmatpush1.bf16.msra.mxu0 0
  %7859 = vmatprep.subr.bf16.mxu0 0
  %7860 = vmatpush1.bf16.msra.mxu0 %v7843
  %7861 = vmatprep.subr.bf16.mxu0 0
  %7862 = vmatpush2.bf16.msra.mxu0 0
  %7863 = vmatprep.subr.bf16.mxu0 0
  %7864 = vmatpush2.bf16.msra.mxu0 0
  %7865 = vmatprep.subr.bf16.mxu0 0
  %7866 = vmatpush2.bf16.msra.mxu0 0
  %7867 = vmatprep.subr.bf16.mxu0 0
  %7868 = vmatpush2.bf16.msra.mxu0 0
  %7869 = vmatprep.subr.bf16.mxu0 0
  %7870 = vmatpush2.bf16.msra.mxu0 0
  %7871 = vmatprep.subr.bf16.mxu0 0
  %7872 = vmatpush2.bf16.msra.mxu0 0
  %7873 = vmatprep.subr.bf16.mxu0 0
  %7874 = vmatpush2.bf16.msra.mxu0 0
  %7875 = vmatprep.subr.bf16.mxu0 0
  %7876 = vmatpush2.bf16.msra.mxu0 0
  %7877 = vmatprep.mubr.bf16.mxu0 0
  %7878 = vmatmul.mubr.bf16.gmra.mxu0 %v7840
  %v7879 = vpop.f32.mrf.mxu0
  %v7880 = vadd.f32 0.0, %v7879
  %v7881 = vpop.f32.mrf.mxu0
  %v7882 = vpop.f32.mrf.mxu0
  %v7883 = vpop.f32.mrf.mxu0
  %7884 = vdwg.mxu0
  %7885 = vrot.lane.b32.xlu0 %v7219, 80
  %v7886 = vpop.permute.xlu0 %7885
  %7887 = vrot.lane.b32.xlu0 %v7219, 16
  %v7888 = vpop.permute.xlu0 %7887
  %v7890 = vsel %vm370, %v7886, 0
  %v7893 = vsel %vm370, %v7888, 0
  %7895 = vmatprep.subr.bf16.mxu0 0
  %7896 = vmatpush1.bf16.xpose.msra.mxu0 0
  %7897 = vmatprep.subr.bf16.mxu0 0
  %7898 = vmatpush1.bf16.xpose.msra.mxu0 0
  %7899 = vmatprep.subr.bf16.mxu0 0
  %7900 = vmatpush1.bf16.xpose.msra.mxu0 0
  %7901 = vmatprep.subr.bf16.mxu0 0
  %7902 = vmatpush1.bf16.xpose.msra.mxu0 0
  %7903 = vmatprep.subr.bf16.mxu0 0
  %7904 = vmatpush1.bf16.xpose.msra.mxu0 0
  %7905 = vmatprep.subr.bf16.mxu0 0
  %7906 = vmatpush1.bf16.xpose.msra.mxu0 0
  %7907 = vmatprep.subr.bf16.mxu0 0
  %7908 = vmatpush1.bf16.xpose.msra.mxu0 0
  %7909 = vmatprep.subr.bf16.mxu0 0
  %7910 = vmatpush1.bf16.xpose.msra.mxu0 %v7893
  %7911 = vmatprep.subr.bf16.mxu0 0
  %7912 = vmatpush2.bf16.xpose.msra.mxu0 0
  %7913 = vmatprep.subr.bf16.mxu0 0
  %7914 = vmatpush2.bf16.xpose.msra.mxu0 0
  %7915 = vmatprep.subr.bf16.mxu0 0
  %7916 = vmatpush2.bf16.xpose.msra.mxu0 0
  %7917 = vmatprep.subr.bf16.mxu0 0
  %7918 = vmatpush2.bf16.xpose.msra.mxu0 0
  %7919 = vmatprep.subr.bf16.mxu0 0
  %7920 = vmatpush2.bf16.xpose.msra.mxu0 0
  %7921 = vmatprep.subr.bf16.mxu0 0
  %7922 = vmatpush2.bf16.xpose.msra.mxu0 0
  %7923 = vmatprep.subr.bf16.mxu0 0
  %7924 = vmatpush2.bf16.xpose.msra.mxu0 0
  %7925 = vmatprep.subr.bf16.mxu0 0
  %7926 = vmatpush2.bf16.xpose.msra.mxu0 0
  %7927 = vmatprep.mubr.bf16.mxu0 0
  %7928 = vmatmul.mubr.bf16.gmra.mxu0 %v7890
  %v7929 = vpop.f32.mrf.mxu0
  %v7930 = vadd.f32 0.0, %v7929
  %v7931 = vpop.f32.mrf.mxu0
  %v7932 = vpop.f32.mrf.mxu0
  %v7933 = vpop.f32.mrf.mxu0
  %7934 = vdwg.mxu0
  %7935 = vrot.lane.b32.xlu0 %v7220, 80
  %v7936 = vpop.permute.xlu0 %7935
  %7937 = vrot.lane.b32.xlu0 %v7220, 16
  %v7938 = vpop.permute.xlu0 %7937
  %v7940 = vsel %vm370, %v7936, 0
  %v7943 = vsel %vm370, %v7938, 0
  %7945 = vmatprep.subr.bf16.mxu0 0
  %7946 = vmatpush1.bf16.xpose.msra.mxu0 0
  %7947 = vmatprep.subr.bf16.mxu0 0
  %7948 = vmatpush1.bf16.xpose.msra.mxu0 0
  %7949 = vmatprep.subr.bf16.mxu0 0
  %7950 = vmatpush1.bf16.xpose.msra.mxu0 0
  %7951 = vmatprep.subr.bf16.mxu0 0
  %7952 = vmatpush1.bf16.xpose.msra.mxu0 0
  %7953 = vmatprep.subr.bf16.mxu0 0
  %7954 = vmatpush1.bf16.xpose.msra.mxu0 0
  %7955 = vmatprep.subr.bf16.mxu0 0
  %7956 = vmatpush1.bf16.xpose.msra.mxu0 0
  %7957 = vmatprep.subr.bf16.mxu0 0
  %7958 = vmatpush1.bf16.xpose.msra.mxu0 0
  %7959 = vmatprep.subr.bf16.mxu0 0
  %7960 = vmatpush1.bf16.xpose.msra.mxu0 %v7943
  %7961 = vmatprep.subr.bf16.mxu0 0
  %7962 = vmatpush2.bf16.xpose.msra.mxu0 0
  %7963 = vmatprep.subr.bf16.mxu0 0
  %7964 = vmatpush2.bf16.xpose.msra.mxu0 0
  %7965 = vmatprep.subr.bf16.mxu0 0
  %7966 = vmatpush2.bf16.xpose.msra.mxu0 0
  %7967 = vmatprep.subr.bf16.mxu0 0
  %7968 = vmatpush2.bf16.xpose.msra.mxu0 0
  %7969 = vmatprep.subr.bf16.mxu0 0
  %7970 = vmatpush2.bf16.xpose.msra.mxu0 0
  %7971 = vmatprep.subr.bf16.mxu0 0
  %7972 = vmatpush2.bf16.xpose.msra.mxu0 0
  %7973 = vmatprep.subr.bf16.mxu0 0
  %7974 = vmatpush2.bf16.xpose.msra.mxu0 0
  %7975 = vmatprep.subr.bf16.mxu0 0
  %7976 = vmatpush2.bf16.xpose.msra.mxu0 0
  %7977 = vmatprep.mubr.bf16.mxu0 0
  %7978 = vmatmul.mubr.bf16.gmra.mxu0 %v7940
  %v7979 = vpop.f32.mrf.mxu0
  %v7980 = vadd.f32 0.0, %v7979
  %v7981 = vpop.f32.mrf.mxu0
  %v7982 = vpop.f32.mrf.mxu0
  %v7983 = vpop.f32.mrf.mxu0
  %7984 = vdwg.mxu0
  %v7985 = vmul.f32 %v7930, 0.25
  %v7986 = vmul.f32 %v7980, 0.25
  %v7987 = vsel %vm468, %v7985, -inf
  %7988 = vmax.xlane.f32.xlu0 %v7987
  %v7989 = vpop.xlane.xlu0 %7988
  %v7990 = vsel %vm468, %v7986, -inf
  %7991 = vmax.xlane.f32.xlu0 %v7990
  %v7992 = vpop.xlane.xlu0 %7991
  %v7993 = vsub.f32 %v7985, %v7989
  %v7994 = vsub.f32 %v7986, %v7992
  %v7995 = vmul.f32 %v7993, 1.442695
  %v7996 = vpow.pop %v7995
  %v7997 = vmul.f32 %v7994, 1.442695
  %v7998 = vpow.pop %v7997
  %v7999 = vsel %vm468, %v7996, 0.0
  %8000 = vadd.xlane.f32.xlu0 %v7999
  %v8001 = vpop.xlane.xlu0 %8000
  %v8002 = vsel %vm468, %v7998, 0.0
  %8003 = vadd.xlane.f32.xlu0 %v8002
  %v8004 = vpop.xlane.xlu0 %8003
  %v8005 = vrcp.pop %v8001
  %v8006 = vrcp.pop %v8004
  %v8007 = vmul.f32 %v7996, %v8005
  %v8008 = vmul.f32 %v7998, %v8006
  %v8009 = vpack.c.bf16 %v8007, %v8007
  %v8010 = vpack.c.bf16 %v8008, %v8008
  %8011 = vrot.lane.b32.xlu0 %v7345, 80
  %v8012 = vpop.permute.xlu0 %8011
  %v8014 = vsel %vm468, %v8009, 0
  %v8017 = vsel %vm498, %v8012, 0
  %8019 = vmatprep.subr.bf16.mxu0 0
  %8020 = vmatpush1.bf16.msra.mxu0 0
  %8021 = vmatprep.subr.bf16.mxu0 0
  %8022 = vmatpush1.bf16.msra.mxu0 0
  %8023 = vmatprep.subr.bf16.mxu0 0
  %8024 = vmatpush1.bf16.msra.mxu0 0
  %8025 = vmatprep.subr.bf16.mxu0 0
  %8026 = vmatpush1.bf16.msra.mxu0 0
  %8027 = vmatprep.subr.bf16.mxu0 0
  %8028 = vmatpush1.bf16.msra.mxu0 0
  %8029 = vmatprep.subr.bf16.mxu0 0
  %8030 = vmatpush1.bf16.msra.mxu0 0
  %8031 = vmatprep.subr.bf16.mxu0 0
  %8032 = vmatpush1.bf16.msra.mxu0 0
  %8033 = vmatprep.subr.bf16.mxu0 0
  %8034 = vmatpush1.bf16.msra.mxu0 %v8017
  %8035 = vmatprep.subr.bf16.mxu0 0
  %8036 = vmatpush2.bf16.msra.mxu0 0
  %8037 = vmatprep.subr.bf16.mxu0 0
  %8038 = vmatpush2.bf16.msra.mxu0 0
  %8039 = vmatprep.subr.bf16.mxu0 0
  %8040 = vmatpush2.bf16.msra.mxu0 0
  %8041 = vmatprep.subr.bf16.mxu0 0
  %8042 = vmatpush2.bf16.msra.mxu0 0
  %8043 = vmatprep.subr.bf16.mxu0 0
  %8044 = vmatpush2.bf16.msra.mxu0 0
  %8045 = vmatprep.subr.bf16.mxu0 0
  %8046 = vmatpush2.bf16.msra.mxu0 0
  %8047 = vmatprep.subr.bf16.mxu0 0
  %8048 = vmatpush2.bf16.msra.mxu0 0
  %8049 = vmatprep.subr.bf16.mxu0 0
  %8050 = vmatpush2.bf16.msra.mxu0 0
  %8051 = vmatprep.mubr.bf16.mxu0 0
  %8052 = vmatmul.mubr.bf16.gmra.mxu0 %v8014
  %v8053 = vpop.f32.mrf.mxu0
  %v8054 = vadd.f32 0.0, %v8053
  %v8055 = vpop.f32.mrf.mxu0
  %v8056 = vpop.f32.mrf.mxu0
  %v8057 = vpop.f32.mrf.mxu0
  %8058 = vdwg.mxu0
  %8059 = vrot.lane.b32.xlu0 %v7346, 80
  %v8060 = vpop.permute.xlu0 %8059
  %v8062 = vsel %vm468, %v8010, 0
  %v8065 = vsel %vm498, %v8060, 0
  %8067 = vmatprep.subr.bf16.mxu0 0
  %8068 = vmatpush1.bf16.msra.mxu0 0
  %8069 = vmatprep.subr.bf16.mxu0 0
  %8070 = vmatpush1.bf16.msra.mxu0 0
  %8071 = vmatprep.subr.bf16.mxu0 0
  %8072 = vmatpush1.bf16.msra.mxu0 0
  %8073 = vmatprep.subr.bf16.mxu0 0
  %8074 = vmatpush1.bf16.msra.mxu0 0
  %8075 = vmatprep.subr.bf16.mxu0 0
  %8076 = vmatpush1.bf16.msra.mxu0 0
  %8077 = vmatprep.subr.bf16.mxu0 0
  %8078 = vmatpush1.bf16.msra.mxu0 0
  %8079 = vmatprep.subr.bf16.mxu0 0
  %8080 = vmatpush1.bf16.msra.mxu0 0
  %8081 = vmatprep.subr.bf16.mxu0 0
  %8082 = vmatpush1.bf16.msra.mxu0 %v8065
  %8083 = vmatprep.subr.bf16.mxu0 0
  %8084 = vmatpush2.bf16.msra.mxu0 0
  %8085 = vmatprep.subr.bf16.mxu0 0
  %8086 = vmatpush2.bf16.msra.mxu0 0
  %8087 = vmatprep.subr.bf16.mxu0 0
  %8088 = vmatpush2.bf16.msra.mxu0 0
  %8089 = vmatprep.subr.bf16.mxu0 0
  %8090 = vmatpush2.bf16.msra.mxu0 0
  %8091 = vmatprep.subr.bf16.mxu0 0
  %8092 = vmatpush2.bf16.msra.mxu0 0
  %8093 = vmatprep.subr.bf16.mxu0 0
  %8094 = vmatpush2.bf16.msra.mxu0 0
  %8095 = vmatprep.subr.bf16.mxu0 0
  %8096 = vmatpush2.bf16.msra.mxu0 0
  %8097 = vmatprep.subr.bf16.mxu0 0
  %8098 = vmatpush2.bf16.msra.mxu0 0
  %8099 = vmatprep.mubr.bf16.mxu0 0
  %8100 = vmatmul.mubr.bf16.gmra.mxu0 %v8062
  %v8101 = vpop.f32.mrf.mxu0
  %v8102 = vadd.f32 0.0, %v8101
  %v8103 = vpop.f32.mrf.mxu0
  %v8104 = vpop.f32.mrf.mxu0
  %v8105 = vpop.f32.mrf.mxu0
  %8106 = vdwg.mxu0
  %8109 = vrot.lane.b32.xlu0 %v7609, 16
  %v8110 = vpop.permute.xlu0 %8109
  %8111 = vrot.lane.b32.xlu0 %v7658, 16
  %v8112 = vpop.permute.xlu0 %8111
  %8117 = vrot.lane.b32.xlu0 %v7832, 32
  %v8118 = vpop.permute.xlu0 %8117
  %8119 = vrot.lane.b32.xlu0 %v7880, 32
  %v8120 = vpop.permute.xlu0 %8119
  %8125 = vrot.lane.b32.xlu0 %v8054, 48
  %v8126 = vpop.permute.xlu0 %8125
  %8127 = vrot.lane.b32.xlu0 %v8102, 48
  %v8128 = vpop.permute.xlu0 %8127
  %v8131 = vsel %vm370, %v7388, %v8110
  %v8132 = vsel %vm370, %v7434, %v8112
  %v8133 = vsel %vm1282, %v8131, %v8118
  %v8134 = vsel %vm1282, %v8132, %v8120
  %v8135 = vsel %vm1285, %v8133, %v8126
  %v8136 = vsel %vm1285, %v8134, %v8128
  %v8137 = vpack.c.bf16 %v8136, %v8135
  %v8138 = vld [vmem:[%s63] sm:$0xf]
  %v8139 = vld [vmem:[%s63 + $0x4] sm:$0xf]
  %v8140 = vld [vmem:[%s63 + $0x8] sm:$0xf]
  %v8141 = vld [vmem:[%s63 + $0xc] sm:$0xf]
  %v8142 = vld [vmem:[%s63 + $0x10] sm:$0xf]
  %v8143 = vld [vmem:[%s63 + $0x14] sm:$0xf]
  %v8144 = vld [vmem:[%s63 + $0x18] sm:$0xf]
  %v8145 = vld [vmem:[%s63 + $0x1c] sm:$0xf]
  %v8146 = vld [vmem:[%s65] sm:$0x1]
  %v8148 = vlaneseq
  %v8149 = vshrl.u32 %v8148, 7
  %v8150 = vsub.s32 0, %v8149
  %v8151 = vrot.slane %v8146, %v8150
  %v8161 = vunpack.c.l.b16 %v8138
  %v8162 = vunpack.c.l.b16 %v8139
  %v8163 = vunpack.c.l.b16 %v8140
  %v8164 = vunpack.c.l.b16 %v8141
  %v8165 = vunpack.c.l.b16 %v8142
  %v8166 = vunpack.c.l.b16 %v8143
  %v8167 = vunpack.c.l.b16 %v8144
  %v8168 = vunpack.c.l.b16 %v8145
  %v8169 = vpack.c.b16 %v8162, %v8161
  %v8170 = vpack.c.b16 %v8164, %v8163
  %v8171 = vpack.c.b16 %v8166, %v8165
  %v8172 = vpack.c.b16 %v8168, %v8167
  %v8178 = vsel %vm213, %v8137, 0
  %8180 = vmatprep.subr.bf16.mxu0 0
  %8181 = vmatpush1.bf16.msra.mxu0 0
  %8182 = vmatprep.subr.bf16.mxu0 0
  %8183 = vmatpush1.bf16.msra.mxu0 0
  %8184 = vmatprep.subr.bf16.mxu0 0
  %8185 = vmatpush1.bf16.msra.mxu0 0
  %8186 = vmatprep.subr.bf16.mxu0 0
  %8187 = vmatpush1.bf16.msra.mxu0 0
  %8188 = vmatprep.subr.bf16.mxu0 0
  %8189 = vmatpush1.bf16.msra.mxu0 %v8172
  %8190 = vmatprep.subr.bf16.mxu0 0
  %8191 = vmatpush1.bf16.msra.mxu0 %v8171
  %8192 = vmatprep.subr.bf16.mxu0 0
  %8193 = vmatpush1.bf16.msra.mxu0 %v8170
  %8194 = vmatprep.subr.bf16.mxu0 0
  %8195 = vmatpush1.bf16.msra.mxu0 %v8169
  %8196 = vmatprep.subr.bf16.mxu0 0
  %8197 = vmatpush2.bf16.msra.mxu0 0
  %8198 = vmatprep.subr.bf16.mxu0 0
  %8199 = vmatpush2.bf16.msra.mxu0 0
  %8200 = vmatprep.subr.bf16.mxu0 0
  %8201 = vmatpush2.bf16.msra.mxu0 0
  %8202 = vmatprep.subr.bf16.mxu0 0
  %8203 = vmatpush2.bf16.msra.mxu0 0
  %8204 = vmatprep.subr.bf16.mxu0 0
  %8205 = vmatpush2.bf16.msra.mxu0 0
  %8206 = vmatprep.subr.bf16.mxu0 0
  %8207 = vmatpush2.bf16.msra.mxu0 0
  %8208 = vmatprep.subr.bf16.mxu0 0
  %8209 = vmatpush2.bf16.msra.mxu0 0
  %8210 = vmatprep.subr.bf16.mxu0 0
  %8211 = vmatpush2.bf16.msra.mxu0 0
  %8212 = vmatprep.mubr.bf16.mxu0 0
  %8213 = vmatmul.mubr.bf16.gmra.mxu0 %v8178
  %v8214 = vpop.f32.mrf.mxu0
  %v8215 = vadd.f32 %v8151, %v8214
  %v8216 = vpop.f32.mrf.mxu0
  %v8217 = vpop.f32.mrf.mxu0
  %v8218 = vadd.f32 %v8151, %v8217
  %v8219 = vpop.f32.mrf.mxu0
  %8220 = vdwg.mxu0
  %v8221 = vadd.f32 %v8215, %v7110
  %v8222 = vadd.f32 %v8218, %v7111
  %v8223 = vld [vmem:[%s67] sm:$0x1]
  %v8224 = vld [vmem:[%s69] sm:$0x1]
  %v8225 = vsel %vm213, %v8221, 0.0
  %8226 = vadd.xlane.f32.xlu0 %v8225
  %v8227 = vpop.xlane.xlu0 %8226
  %v8228 = vsel %vm213, %v8222, 0.0
  %8229 = vadd.xlane.f32.xlu0 %v8228
  %v8230 = vpop.xlane.xlu0 %8229
  %v8231 = vmul.f32 %v8227, %v1382
  %v8232 = vmul.f32 %v8230, %v1382
  %v8233 = vsub.f32 %v8221, %v8231
  %v8234 = vsub.f32 %v8222, %v8232
  %v8235 = vmul.f32 %v8233, %v8233
  %v8236 = vmul.f32 %v8234, %v8234
  %v8237 = vsel %vm213, %v8235, 0.0
  %8238 = vadd.xlane.f32.xlu0 %v8237
  %v8239 = vpop.xlane.xlu0 %8238
  %v8240 = vsel %vm213, %v8236, 0.0
  %8241 = vadd.xlane.f32.xlu0 %v8240
  %v8242 = vpop.xlane.xlu0 %8241
  %v8243 = vmul.f32 %v8239, %v1382
  %v8244 = vmul.f32 %v8242, %v1382
  %v8245 = vadd.f32 %v8243, 1e-05
  %v8246 = vadd.f32 %v8244, 1e-05
  %v8247 = vrsqrt.pop %v8245
  %v8248 = vrsqrt.pop %v8246
  %v8249 = vmul.f32 %v8233, %v8247
  %v8250 = vmul.f32 %v8234, %v8248
  %v8252 = vlaneseq
  %v8253 = vshrl.u32 %v8252, 7
  %v8254 = vsub.s32 0, %v8253
  %v8255 = vrot.slane %v8223, %v8254
  %v8257 = vmul.f32 %v8249, %v8255
  %v8258 = vmul.f32 %v8250, %v8255
  %v8260 = vlaneseq
  %v8261 = vshrl.u32 %v8260, 7
  %v8262 = vsub.s32 0, %v8261
  %v8263 = vrot.slane %v8224, %v8262
  %v8265 = vadd.f32 %v8257, %v8263
  %v8266 = vadd.f32 %v8258, %v8263
  %v8267 = vpack.c.bf16 %v8266, %v8265
  %v8268 = vld [vmem:[%s71] sm:$0xff]
  %v8269 = vld [vmem:[%s71 + $0x8] sm:$0xff]
  %v8270 = vld [vmem:[%s71 + $0x10] sm:$0xff]
  %v8271 = vld [vmem:[%s71 + $0x18] sm:$0xff]
  %v8272 = vld [vmem:[%s71 + $0x20] sm:$0xff]
  %v8273 = vld [vmem:[%s71 + $0x28] sm:$0xff]
  %v8274 = vld [vmem:[%s71 + $0x30] sm:$0xff]
  %v8275 = vld [vmem:[%s71 + $0x38] sm:$0xff]
  %v8276 = vld [vmem:[%s71 + $0x40] sm:$0xff]
  %v8277 = vld [vmem:[%s71 + $0x48] sm:$0xff]
  %v8278 = vld [vmem:[%s71 + $0x50] sm:$0xff]
  %v8279 = vld [vmem:[%s71 + $0x58] sm:$0xff]
  %v8280 = vld [vmem:[%s71 + $0x60] sm:$0xff]
  %v8281 = vld [vmem:[%s71 + $0x68] sm:$0xff]
  %v8282 = vld [vmem:[%s71 + $0x70] sm:$0xff]
  %v8283 = vld [vmem:[%s71 + $0x78] sm:$0xff]
  %v8284 = vld [vmem:[%s71 + $0x80] sm:$0xff]
  %v8285 = vld [vmem:[%s71 + $0x88] sm:$0xff]
  %v8286 = vld [vmem:[%s71 + $0x90] sm:$0xff]
  %v8287 = vld [vmem:[%s71 + $0x98] sm:$0xff]
  %v8288 = vld [vmem:[%s71 + $0xa0] sm:$0xff]
  %v8289 = vld [vmem:[%s71 + $0xa8] sm:$0xff]
  %v8290 = vld [vmem:[%s71 + $0xb0] sm:$0xff]
  %v8291 = vld [vmem:[%s71 + $0xb8] sm:$0xff]
  %v8292 = vld [vmem:[%s71 + $0xc0] sm:$0xff]
  %v8293 = vld [vmem:[%s71 + $0xc8] sm:$0xff]
  %v8294 = vld [vmem:[%s71 + $0xd0] sm:$0xff]
  %v8295 = vld [vmem:[%s71 + $0xd8] sm:$0xff]
  %v8296 = vld [vmem:[%s71 + $0xe0] sm:$0xff]
  %v8297 = vld [vmem:[%s71 + $0xe8] sm:$0xff]
  %v8298 = vld [vmem:[%s71 + $0xf0] sm:$0xff]
  %v8299 = vld [vmem:[%s71 + $0xf8] sm:$0xff]
  %v8300 = vld [vmem:[%s71 + $0x100] sm:$0xff]
  %v8301 = vld [vmem:[%s71 + $0x108] sm:$0xff]
  %v8302 = vld [vmem:[%s71 + $0x110] sm:$0xff]
  %v8303 = vld [vmem:[%s71 + $0x118] sm:$0xff]
  %v8304 = vld [vmem:[%s71 + $0x120] sm:$0xff]
  %v8305 = vld [vmem:[%s71 + $0x128] sm:$0xff]
  %v8306 = vld [vmem:[%s71 + $0x130] sm:$0xff]
  %v8307 = vld [vmem:[%s71 + $0x138] sm:$0xff]
  %v8308 = vld [vmem:[%s71 + $0x140] sm:$0xff]
  %v8309 = vld [vmem:[%s71 + $0x148] sm:$0xff]
  %v8310 = vld [vmem:[%s71 + $0x150] sm:$0xff]
  %v8311 = vld [vmem:[%s71 + $0x158] sm:$0xff]
  %v8312 = vld [vmem:[%s71 + $0x160] sm:$0xff]
  %v8313 = vld [vmem:[%s71 + $0x168] sm:$0xff]
  %v8314 = vld [vmem:[%s71 + $0x170] sm:$0xff]
  %v8315 = vld [vmem:[%s71 + $0x178] sm:$0xff]
  %v8316 = vld [vmem:[%s71 + $0x180] sm:$0xff]
  %v8317 = vld [vmem:[%s71 + $0x188] sm:$0xff]
  %v8318 = vld [vmem:[%s71 + $0x190] sm:$0xff]
  %v8319 = vld [vmem:[%s71 + $0x198] sm:$0xff]
  %v8320 = vld [vmem:[%s71 + $0x1a0] sm:$0xff]
  %v8321 = vld [vmem:[%s71 + $0x1a8] sm:$0xff]
  %v8322 = vld [vmem:[%s71 + $0x1b0] sm:$0xff]
  %v8323 = vld [vmem:[%s71 + $0x1b8] sm:$0xff]
  %v8324 = vld [vmem:[%s71 + $0x1c0] sm:$0xff]
  %v8325 = vld [vmem:[%s71 + $0x1c8] sm:$0xff]
  %v8326 = vld [vmem:[%s71 + $0x1d0] sm:$0xff]
  %v8327 = vld [vmem:[%s71 + $0x1d8] sm:$0xff]
  %v8328 = vld [vmem:[%s71 + $0x1e0] sm:$0xff]
  %v8329 = vld [vmem:[%s71 + $0x1e8] sm:$0xff]
  %v8330 = vld [vmem:[%s71 + $0x1f0] sm:$0xff]
  %v8331 = vld [vmem:[%s71 + $0x1f8] sm:$0xff]
  %v8332 = vld [vmem:[%s73] sm:$0xff]
  %v8333 = vld [vmem:[%s73 + $0x8] sm:$0xff]
  %v8336 = vlaneseq
  %v8337 = vshrl.u32 %v8336, 7
  %v8338 = vsub.s32 0, %v8337
  %v8339 = vrot.slane %v8332, %v8338
  %v8340 = vlaneseq
  %v8341 = vshrl.u32 %v8340, 7
  %v8342 = vsub.s32 1, %v8341
  %v8343 = vrot.slane %v8332, %v8342
  %v8344 = vlaneseq
  %v8345 = vshrl.u32 %v8344, 7
  %v8346 = vsub.s32 2, %v8345
  %v8347 = vrot.slane %v8332, %v8346
  %v8348 = vlaneseq
  %v8349 = vshrl.u32 %v8348, 7
  %v8350 = vsub.s32 3, %v8349
  %v8351 = vrot.slane %v8332, %v8350
  %v8352 = vlaneseq
  %v8353 = vshrl.u32 %v8352, 7
  %v8354 = vsub.s32 4, %v8353
  %v8355 = vrot.slane %v8332, %v8354
  %v8356 = vlaneseq
  %v8357 = vshrl.u32 %v8356, 7
  %v8358 = vsub.s32 5, %v8357
  %v8359 = vrot.slane %v8332, %v8358
  %v8360 = vlaneseq
  %v8361 = vshrl.u32 %v8360, 7
  %v8362 = vsub.s32 6, %v8361
  %v8363 = vrot.slane %v8332, %v8362
  %v8364 = vlaneseq
  %v8365 = vshrl.u32 %v8364, 7
  %v8366 = vsub.s32 7, %v8365
  %v8367 = vrot.slane %v8332, %v8366
  %v8368 = vlaneseq
  %v8369 = vshrl.u32 %v8368, 7
  %v8370 = vsub.s32 0, %v8369
  %v8371 = vrot.slane %v8333, %v8370
  %v8372 = vlaneseq
  %v8373 = vshrl.u32 %v8372, 7
  %v8374 = vsub.s32 1, %v8373
  %v8375 = vrot.slane %v8333, %v8374
  %v8376 = vlaneseq
  %v8377 = vshrl.u32 %v8376, 7
  %v8378 = vsub.s32 2, %v8377
  %v8379 = vrot.slane %v8333, %v8378
  %v8380 = vlaneseq
  %v8381 = vshrl.u32 %v8380, 7
  %v8382 = vsub.s32 3, %v8381
  %v8383 = vrot.slane %v8333, %v8382
  %v8384 = vlaneseq
  %v8385 = vshrl.u32 %v8384, 7
  %v8386 = vsub.s32 4, %v8385
  %v8387 = vrot.slane %v8333, %v8386
  %v8388 = vlaneseq
  %v8389 = vshrl.u32 %v8388, 7
  %v8390 = vsub.s32 5, %v8389
  %v8391 = vrot.slane %v8333, %v8390
  %v8392 = vlaneseq
  %v8393 = vshrl.u32 %v8392, 7
  %v8394 = vsub.s32 6, %v8393
  %v8395 = vrot.slane %v8333, %v8394
  %v8396 = vlaneseq
  %v8397 = vshrl.u32 %v8396, 7
  %v8398 = vsub.s32 7, %v8397
  %v8399 = vrot.slane %v8333, %v8398
  %v8480 = vunpack.c.l.b16 %v8268
  %v8481 = vunpack.c.h.b16 %v8268
  %v8482 = vunpack.c.l.b16 %v8269
  %v8483 = vunpack.c.h.b16 %v8269
  %v8484 = vunpack.c.l.b16 %v8270
  %v8485 = vunpack.c.h.b16 %v8270
  %v8486 = vunpack.c.l.b16 %v8271
  %v8487 = vunpack.c.h.b16 %v8271
  %v8488 = vunpack.c.l.b16 %v8272
  %v8489 = vunpack.c.h.b16 %v8272
  %v8490 = vunpack.c.l.b16 %v8273
  %v8491 = vunpack.c.h.b16 %v8273
  %v8492 = vunpack.c.l.b16 %v8274
  %v8493 = vunpack.c.h.b16 %v8274
  %v8494 = vunpack.c.l.b16 %v8275
  %v8495 = vunpack.c.h.b16 %v8275
  %v8496 = vunpack.c.l.b16 %v8276
  %v8497 = vunpack.c.h.b16 %v8276
  %v8498 = vunpack.c.l.b16 %v8277
  %v8499 = vunpack.c.h.b16 %v8277
  %v8500 = vunpack.c.l.b16 %v8278
  %v8501 = vunpack.c.h.b16 %v8278
  %v8502 = vunpack.c.l.b16 %v8279
  %v8503 = vunpack.c.h.b16 %v8279
  %v8504 = vunpack.c.l.b16 %v8280
  %v8505 = vunpack.c.h.b16 %v8280
  %v8506 = vunpack.c.l.b16 %v8281
  %v8507 = vunpack.c.h.b16 %v8281
  %v8508 = vunpack.c.l.b16 %v8282
  %v8509 = vunpack.c.h.b16 %v8282
  %v8510 = vunpack.c.l.b16 %v8283
  %v8511 = vunpack.c.h.b16 %v8283
  %v8512 = vunpack.c.l.b16 %v8284
  %v8513 = vunpack.c.h.b16 %v8284
  %v8514 = vunpack.c.l.b16 %v8285
  %v8515 = vunpack.c.h.b16 %v8285
  %v8516 = vunpack.c.l.b16 %v8286
  %v8517 = vunpack.c.h.b16 %v8286
  %v8518 = vunpack.c.l.b16 %v8287
  %v8519 = vunpack.c.h.b16 %v8287
  %v8520 = vunpack.c.l.b16 %v8288
  %v8521 = vunpack.c.h.b16 %v8288
  %v8522 = vunpack.c.l.b16 %v8289
  %v8523 = vunpack.c.h.b16 %v8289
  %v8524 = vunpack.c.l.b16 %v8290
  %v8525 = vunpack.c.h.b16 %v8290
  %v8526 = vunpack.c.l.b16 %v8291
  %v8527 = vunpack.c.h.b16 %v8291
  %v8528 = vunpack.c.l.b16 %v8292
  %v8529 = vunpack.c.h.b16 %v8292
  %v8530 = vunpack.c.l.b16 %v8293
  %v8531 = vunpack.c.h.b16 %v8293
  %v8532 = vunpack.c.l.b16 %v8294
  %v8533 = vunpack.c.h.b16 %v8294
  %v8534 = vunpack.c.l.b16 %v8295
  %v8535 = vunpack.c.h.b16 %v8295
  %v8536 = vunpack.c.l.b16 %v8296
  %v8537 = vunpack.c.h.b16 %v8296
  %v8538 = vunpack.c.l.b16 %v8297
  %v8539 = vunpack.c.h.b16 %v8297
  %v8540 = vunpack.c.l.b16 %v8298
  %v8541 = vunpack.c.h.b16 %v8298
  %v8542 = vunpack.c.l.b16 %v8299
  %v8543 = vunpack.c.h.b16 %v8299
  %v8544 = vunpack.c.l.b16 %v8300
  %v8545 = vunpack.c.h.b16 %v8300
  %v8546 = vunpack.c.l.b16 %v8301
  %v8547 = vunpack.c.h.b16 %v8301
  %v8548 = vunpack.c.l.b16 %v8302
  %v8549 = vunpack.c.h.b16 %v8302
  %v8550 = vunpack.c.l.b16 %v8303
  %v8551 = vunpack.c.h.b16 %v8303
  %v8552 = vunpack.c.l.b16 %v8304
  %v8553 = vunpack.c.h.b16 %v8304
  %v8554 = vunpack.c.l.b16 %v8305
  %v8555 = vunpack.c.h.b16 %v8305
  %v8556 = vunpack.c.l.b16 %v8306
  %v8557 = vunpack.c.h.b16 %v8306
  %v8558 = vunpack.c.l.b16 %v8307
  %v8559 = vunpack.c.h.b16 %v8307
  %v8560 = vunpack.c.l.b16 %v8308
  %v8561 = vunpack.c.h.b16 %v8308
  %v8562 = vunpack.c.l.b16 %v8309
  %v8563 = vunpack.c.h.b16 %v8309
  %v8564 = vunpack.c.l.b16 %v8310
  %v8565 = vunpack.c.h.b16 %v8310
  %v8566 = vunpack.c.l.b16 %v8311
  %v8567 = vunpack.c.h.b16 %v8311
  %v8568 = vunpack.c.l.b16 %v8312
  %v8569 = vunpack.c.h.b16 %v8312
  %v8570 = vunpack.c.l.b16 %v8313
  %v8571 = vunpack.c.h.b16 %v8313
  %v8572 = vunpack.c.l.b16 %v8314
  %v8573 = vunpack.c.h.b16 %v8314
  %v8574 = vunpack.c.l.b16 %v8315
  %v8575 = vunpack.c.h.b16 %v8315
  %v8576 = vunpack.c.l.b16 %v8316
  %v8577 = vunpack.c.h.b16 %v8316
  %v8578 = vunpack.c.l.b16 %v8317
  %v8579 = vunpack.c.h.b16 %v8317
  %v8580 = vunpack.c.l.b16 %v8318
  %v8581 = vunpack.c.h.b16 %v8318
  %v8582 = vunpack.c.l.b16 %v8319
  %v8583 = vunpack.c.h.b16 %v8319
  %v8584 = vunpack.c.l.b16 %v8320
  %v8585 = vunpack.c.h.b16 %v8320
  %v8586 = vunpack.c.l.b16 %v8321
  %v8587 = vunpack.c.h.b16 %v8321
  %v8588 = vunpack.c.l.b16 %v8322
  %v8589 = vunpack.c.h.b16 %v8322
  %v8590 = vunpack.c.l.b16 %v8323
  %v8591 = vunpack.c.h.b16 %v8323
  %v8592 = vunpack.c.l.b16 %v8324
  %v8593 = vunpack.c.h.b16 %v8324
  %v8594 = vunpack.c.l.b16 %v8325
  %v8595 = vunpack.c.h.b16 %v8325
  %v8596 = vunpack.c.l.b16 %v8326
  %v8597 = vunpack.c.h.b16 %v8326
  %v8598 = vunpack.c.l.b16 %v8327
  %v8599 = vunpack.c.h.b16 %v8327
  %v8600 = vunpack.c.l.b16 %v8328
  %v8601 = vunpack.c.h.b16 %v8328
  %v8602 = vunpack.c.l.b16 %v8329
  %v8603 = vunpack.c.h.b16 %v8329
  %v8604 = vunpack.c.l.b16 %v8330
  %v8605 = vunpack.c.h.b16 %v8330
  %v8606 = vunpack.c.l.b16 %v8331
  %v8607 = vunpack.c.h.b16 %v8331
  %v8608 = vpack.c.b16 %v8496, %v8480
  %v8609 = vpack.c.b16 %v8497, %v8481
  %v8610 = vpack.c.b16 %v8498, %v8482
  %v8611 = vpack.c.b16 %v8499, %v8483
  %v8612 = vpack.c.b16 %v8500, %v8484
  %v8613 = vpack.c.b16 %v8501, %v8485
  %v8614 = vpack.c.b16 %v8502, %v8486
  %v8615 = vpack.c.b16 %v8503, %v8487
  %v8616 = vpack.c.b16 %v8504, %v8488
  %v8617 = vpack.c.b16 %v8505, %v8489
  %v8618 = vpack.c.b16 %v8506, %v8490
  %v8619 = vpack.c.b16 %v8507, %v8491
  %v8620 = vpack.c.b16 %v8508, %v8492
  %v8621 = vpack.c.b16 %v8509, %v8493
  %v8622 = vpack.c.b16 %v8510, %v8494
  %v8623 = vpack.c.b16 %v8511, %v8495
  %v8624 = vpack.c.b16 %v8528, %v8512
  %v8625 = vpack.c.b16 %v8529, %v8513
  %v8626 = vpack.c.b16 %v8530, %v8514
  %v8627 = vpack.c.b16 %v8531, %v8515
  %v8628 = vpack.c.b16 %v8532, %v8516
  %v8629 = vpack.c.b16 %v8533, %v8517
  %v8630 = vpack.c.b16 %v8534, %v8518
  %v8631 = vpack.c.b16 %v8535, %v8519
  %v8632 = vpack.c.b16 %v8536, %v8520
  %v8633 = vpack.c.b16 %v8537, %v8521
  %v8634 = vpack.c.b16 %v8538, %v8522
  %v8635 = vpack.c.b16 %v8539, %v8523
  %v8636 = vpack.c.b16 %v8540, %v8524
  %v8637 = vpack.c.b16 %v8541, %v8525
  %v8638 = vpack.c.b16 %v8542, %v8526
  %v8639 = vpack.c.b16 %v8543, %v8527
  %v8640 = vpack.c.b16 %v8560, %v8544
  %v8641 = vpack.c.b16 %v8561, %v8545
  %v8642 = vpack.c.b16 %v8562, %v8546
  %v8643 = vpack.c.b16 %v8563, %v8547
  %v8644 = vpack.c.b16 %v8564, %v8548
  %v8645 = vpack.c.b16 %v8565, %v8549
  %v8646 = vpack.c.b16 %v8566, %v8550
  %v8647 = vpack.c.b16 %v8567, %v8551
  %v8648 = vpack.c.b16 %v8568, %v8552
  %v8649 = vpack.c.b16 %v8569, %v8553
  %v8650 = vpack.c.b16 %v8570, %v8554
  %v8651 = vpack.c.b16 %v8571, %v8555
  %v8652 = vpack.c.b16 %v8572, %v8556
  %v8653 = vpack.c.b16 %v8573, %v8557
  %v8654 = vpack.c.b16 %v8574, %v8558
  %v8655 = vpack.c.b16 %v8575, %v8559
  %v8656 = vpack.c.b16 %v8592, %v8576
  %v8657 = vpack.c.b16 %v8593, %v8577
  %v8658 = vpack.c.b16 %v8594, %v8578
  %v8659 = vpack.c.b16 %v8595, %v8579
  %v8660 = vpack.c.b16 %v8596, %v8580
  %v8661 = vpack.c.b16 %v8597, %v8581
  %v8662 = vpack.c.b16 %v8598, %v8582
  %v8663 = vpack.c.b16 %v8599, %v8583
  %v8664 = vpack.c.b16 %v8600, %v8584
  %v8665 = vpack.c.b16 %v8601, %v8585
  %v8666 = vpack.c.b16 %v8602, %v8586
  %v8667 = vpack.c.b16 %v8603, %v8587
  %v8668 = vpack.c.b16 %v8604, %v8588
  %v8669 = vpack.c.b16 %v8605, %v8589
  %v8670 = vpack.c.b16 %v8606, %v8590
  %v8671 = vpack.c.b16 %v8607, %v8591
  %v8737 = vsel %vm213, %v8267, 0
  %8739 = vmatprep.subr.bf16.mxu0 0
  %8740 = vmatpush1.bf16.msra.mxu0 0
  %8741 = vmatprep.subr.bf16.mxu0 0
  %8742 = vmatpush1.bf16.msra.mxu0 0
  %8743 = vmatprep.subr.bf16.mxu0 0
  %8744 = vmatpush1.bf16.msra.mxu0 0
  %8745 = vmatprep.subr.bf16.mxu0 0
  %8746 = vmatpush1.bf16.msra.mxu0 0
  %8747 = vmatprep.subr.bf16.mxu0 %v8657
  %8748 = vmatpush1.bf16.msra.mxu0 %v8656
  %8749 = vmatprep.subr.bf16.mxu0 %v8641
  %8750 = vmatpush1.bf16.msra.mxu0 %v8640
  %8751 = vmatprep.subr.bf16.mxu0 %v8625
  %8752 = vmatpush1.bf16.msra.mxu0 %v8624
  %8753 = vmatprep.subr.bf16.mxu0 %v8609
  %8754 = vmatpush1.bf16.msra.mxu0 %v8608
  %8755 = vmatprep.subr.bf16.mxu0 0
  %8756 = vmatpush2.bf16.msra.mxu0 0
  %8757 = vmatprep.subr.bf16.mxu0 0
  %8758 = vmatpush2.bf16.msra.mxu0 0
  %8759 = vmatprep.subr.bf16.mxu0 0
  %8760 = vmatpush2.bf16.msra.mxu0 0
  %8761 = vmatprep.subr.bf16.mxu0 0
  %8762 = vmatpush2.bf16.msra.mxu0 0
  %8763 = vmatprep.subr.bf16.mxu0 0
  %8764 = vmatpush2.bf16.msra.mxu0 0
  %8765 = vmatprep.subr.bf16.mxu0 0
  %8766 = vmatpush2.bf16.msra.mxu0 0
  %8767 = vmatprep.subr.bf16.mxu0 0
  %8768 = vmatpush2.bf16.msra.mxu0 0
  %8769 = vmatprep.subr.bf16.mxu0 0
  %8770 = vmatpush2.bf16.msra.mxu0 0
  %8771 = vmatprep.mubr.bf16.mxu0 0
  %8772 = vmatmul.mubr.bf16.gmra.mxu0 %v8737
  %v8773 = vpop.f32.mrf.mxu0
  %v8774 = vadd.f32 %v8339, %v8773
  %v8775 = vpop.f32.mrf.mxu0
  %v8776 = vadd.f32 %v8343, %v8775
  %v8777 = vpop.f32.mrf.mxu0
  %v8778 = vadd.f32 %v8339, %v8777
  %v8779 = vpop.f32.mrf.mxu0
  %v8780 = vadd.f32 %v8343, %v8779
  %8781 = vdwg.mxu0
  %8782 = vmatprep.subr.bf16.mxu0 0
  %8783 = vmatpush1.bf16.msra.mxu0 0
  %8784 = vmatprep.subr.bf16.mxu0 0
  %8785 = vmatpush1.bf16.msra.mxu0 0
  %8786 = vmatprep.subr.bf16.mxu0 0
  %8787 = vmatpush1.bf16.msra.mxu0 0
  %8788 = vmatprep.subr.bf16.mxu0 0
  %8789 = vmatpush1.bf16.msra.mxu0 0
  %8790 = vmatprep.subr.bf16.mxu0 %v8659
  %8791 = vmatpush1.bf16.msra.mxu0 %v8658
  %8792 = vmatprep.subr.bf16.mxu0 %v8643
  %8793 = vmatpush1.bf16.msra.mxu0 %v8642
  %8794 = vmatprep.subr.bf16.mxu0 %v8627
  %8795 = vmatpush1.bf16.msra.mxu0 %v8626
  %8796 = vmatprep.subr.bf16.mxu0 %v8611
  %8797 = vmatpush1.bf16.msra.mxu0 %v8610
  %8798 = vmatprep.subr.bf16.mxu0 0
  %8799 = vmatpush2.bf16.msra.mxu0 0
  %8800 = vmatprep.subr.bf16.mxu0 0
  %8801 = vmatpush2.bf16.msra.mxu0 0
  %8802 = vmatprep.subr.bf16.mxu0 0
  %8803 = vmatpush2.bf16.msra.mxu0 0
  %8804 = vmatprep.subr.bf16.mxu0 0
  %8805 = vmatpush2.bf16.msra.mxu0 0
  %8806 = vmatprep.subr.bf16.mxu0 0
  %8807 = vmatpush2.bf16.msra.mxu0 0
  %8808 = vmatprep.subr.bf16.mxu0 0
  %8809 = vmatpush2.bf16.msra.mxu0 0
  %8810 = vmatprep.subr.bf16.mxu0 0
  %8811 = vmatpush2.bf16.msra.mxu0 0
  %8812 = vmatprep.subr.bf16.mxu0 0
  %8813 = vmatpush2.bf16.msra.mxu0 0
  %8814 = vmatprep.mubr.bf16.mxu0 0
  %8815 = vmatmul.mubr.bf16.gmra.mxu0 %v8737
  %v8816 = vpop.f32.mrf.mxu0
  %v8817 = vadd.f32 %v8347, %v8816
  %v8818 = vpop.f32.mrf.mxu0
  %v8819 = vadd.f32 %v8351, %v8818
  %v8820 = vpop.f32.mrf.mxu0
  %v8821 = vadd.f32 %v8347, %v8820
  %v8822 = vpop.f32.mrf.mxu0
  %v8823 = vadd.f32 %v8351, %v8822
  %8824 = vdwg.mxu0
  %8825 = vmatprep.subr.bf16.mxu0 0
  %8826 = vmatpush1.bf16.msra.mxu0 0
  %8827 = vmatprep.subr.bf16.mxu0 0
  %8828 = vmatpush1.bf16.msra.mxu0 0
  %8829 = vmatprep.subr.bf16.mxu0 0
  %8830 = vmatpush1.bf16.msra.mxu0 0
  %8831 = vmatprep.subr.bf16.mxu0 0
  %8832 = vmatpush1.bf16.msra.mxu0 0
  %8833 = vmatprep.subr.bf16.mxu0 %v8661
  %8834 = vmatpush1.bf16.msra.mxu0 %v8660
  %8835 = vmatprep.subr.bf16.mxu0 %v8645
  %8836 = vmatpush1.bf16.msra.mxu0 %v8644
  %8837 = vmatprep.subr.bf16.mxu0 %v8629
  %8838 = vmatpush1.bf16.msra.mxu0 %v8628
  %8839 = vmatprep.subr.bf16.mxu0 %v8613
  %8840 = vmatpush1.bf16.msra.mxu0 %v8612
  %8841 = vmatprep.subr.bf16.mxu0 0
  %8842 = vmatpush2.bf16.msra.mxu0 0
  %8843 = vmatprep.subr.bf16.mxu0 0
  %8844 = vmatpush2.bf16.msra.mxu0 0
  %8845 = vmatprep.subr.bf16.mxu0 0
  %8846 = vmatpush2.bf16.msra.mxu0 0
  %8847 = vmatprep.subr.bf16.mxu0 0
  %8848 = vmatpush2.bf16.msra.mxu0 0
  %8849 = vmatprep.subr.bf16.mxu0 0
  %8850 = vmatpush2.bf16.msra.mxu0 0
  %8851 = vmatprep.subr.bf16.mxu0 0
  %8852 = vmatpush2.bf16.msra.mxu0 0
  %8853 = vmatprep.subr.bf16.mxu0 0
  %8854 = vmatpush2.bf16.msra.mxu0 0
  %8855 = vmatprep.subr.bf16.mxu0 0
  %8856 = vmatpush2.bf16.msra.mxu0 0
  %8857 = vmatprep.mubr.bf16.mxu0 0
  %8858 = vmatmul.mubr.bf16.gmra.mxu0 %v8737
  %v8859 = vpop.f32.mrf.mxu0
  %v8860 = vadd.f32 %v8355, %v8859
  %v8861 = vpop.f32.mrf.mxu0
  %v8862 = vadd.f32 %v8359, %v8861
  %v8863 = vpop.f32.mrf.mxu0
  %v8864 = vadd.f32 %v8355, %v8863
  %v8865 = vpop.f32.mrf.mxu0
  %v8866 = vadd.f32 %v8359, %v8865
  %8867 = vdwg.mxu0
  %8868 = vmatprep.subr.bf16.mxu0 0
  %8869 = vmatpush1.bf16.msra.mxu0 0
  %8870 = vmatprep.subr.bf16.mxu0 0
  %8871 = vmatpush1.bf16.msra.mxu0 0
  %8872 = vmatprep.subr.bf16.mxu0 0
  %8873 = vmatpush1.bf16.msra.mxu0 0
  %8874 = vmatprep.subr.bf16.mxu0 0
  %8875 = vmatpush1.bf16.msra.mxu0 0
  %8876 = vmatprep.subr.bf16.mxu0 %v8663
  %8877 = vmatpush1.bf16.msra.mxu0 %v8662
  %8878 = vmatprep.subr.bf16.mxu0 %v8647
  %8879 = vmatpush1.bf16.msra.mxu0 %v8646
  %8880 = vmatprep.subr.bf16.mxu0 %v8631
  %8881 = vmatpush1.bf16.msra.mxu0 %v8630
  %8882 = vmatprep.subr.bf16.mxu0 %v8615
  %8883 = vmatpush1.bf16.msra.mxu0 %v8614
  %8884 = vmatprep.subr.bf16.mxu0 0
  %8885 = vmatpush2.bf16.msra.mxu0 0
  %8886 = vmatprep.subr.bf16.mxu0 0
  %8887 = vmatpush2.bf16.msra.mxu0 0
  %8888 = vmatprep.subr.bf16.mxu0 0
  %8889 = vmatpush2.bf16.msra.mxu0 0
  %8890 = vmatprep.subr.bf16.mxu0 0
  %8891 = vmatpush2.bf16.msra.mxu0 0
  %8892 = vmatprep.subr.bf16.mxu0 0
  %8893 = vmatpush2.bf16.msra.mxu0 0
  %8894 = vmatprep.subr.bf16.mxu0 0
  %8895 = vmatpush2.bf16.msra.mxu0 0
  %8896 = vmatprep.subr.bf16.mxu0 0
  %8897 = vmatpush2.bf16.msra.mxu0 0
  %8898 = vmatprep.subr.bf16.mxu0 0
  %8899 = vmatpush2.bf16.msra.mxu0 0
  %8900 = vmatprep.mubr.bf16.mxu0 0
  %8901 = vmatmul.mubr.bf16.gmra.mxu0 %v8737
  %v8902 = vpop.f32.mrf.mxu0
  %v8903 = vadd.f32 %v8363, %v8902
  %v8904 = vpop.f32.mrf.mxu0
  %v8905 = vadd.f32 %v8367, %v8904
  %v8906 = vpop.f32.mrf.mxu0
  %v8907 = vadd.f32 %v8363, %v8906
  %v8908 = vpop.f32.mrf.mxu0
  %v8909 = vadd.f32 %v8367, %v8908
  %8910 = vdwg.mxu0
  %8911 = vmatprep.subr.bf16.mxu0 0
  %8912 = vmatpush1.bf16.msra.mxu0 0
  %8913 = vmatprep.subr.bf16.mxu0 0
  %8914 = vmatpush1.bf16.msra.mxu0 0
  %8915 = vmatprep.subr.bf16.mxu0 0
  %8916 = vmatpush1.bf16.msra.mxu0 0
  %8917 = vmatprep.subr.bf16.mxu0 0
  %8918 = vmatpush1.bf16.msra.mxu0 0
  %8919 = vmatprep.subr.bf16.mxu0 %v8665
  %8920 = vmatpush1.bf16.msra.mxu0 %v8664
  %8921 = vmatprep.subr.bf16.mxu0 %v8649
  %8922 = vmatpush1.bf16.msra.mxu0 %v8648
  %8923 = vmatprep.subr.bf16.mxu0 %v8633
  %8924 = vmatpush1.bf16.msra.mxu0 %v8632
  %8925 = vmatprep.subr.bf16.mxu0 %v8617
  %8926 = vmatpush1.bf16.msra.mxu0 %v8616
  %8927 = vmatprep.subr.bf16.mxu0 0
  %8928 = vmatpush2.bf16.msra.mxu0 0
  %8929 = vmatprep.subr.bf16.mxu0 0
  %8930 = vmatpush2.bf16.msra.mxu0 0
  %8931 = vmatprep.subr.bf16.mxu0 0
  %8932 = vmatpush2.bf16.msra.mxu0 0
  %8933 = vmatprep.subr.bf16.mxu0 0
  %8934 = vmatpush2.bf16.msra.mxu0 0
  %8935 = vmatprep.subr.bf16.mxu0 0
  %8936 = vmatpush2.bf16.msra.mxu0 0
  %8937 = vmatprep.subr.bf16.mxu0 0
  %8938 = vmatpush2.bf16.msra.mxu0 0
  %8939 = vmatprep.subr.bf16.mxu0 0
  %8940 = vmatpush2.bf16.msra.mxu0 0
  %8941 = vmatprep.subr.bf16.mxu0 0
  %8942 = vmatpush2.bf16.msra.mxu0 0
  %8943 = vmatprep.mubr.bf16.mxu0 0
  %8944 = vmatmul.mubr.bf16.gmra.mxu0 %v8737
  %v8945 = vpop.f32.mrf.mxu0
  %v8946 = vadd.f32 %v8371, %v8945
  %v8947 = vpop.f32.mrf.mxu0
  %v8948 = vadd.f32 %v8375, %v8947
  %v8949 = vpop.f32.mrf.mxu0
  %v8950 = vadd.f32 %v8371, %v8949
  %v8951 = vpop.f32.mrf.mxu0
  %v8952 = vadd.f32 %v8375, %v8951
  %8953 = vdwg.mxu0
  %8954 = vmatprep.subr.bf16.mxu0 0
  %8955 = vmatpush1.bf16.msra.mxu0 0
  %8956 = vmatprep.subr.bf16.mxu0 0
  %8957 = vmatpush1.bf16.msra.mxu0 0
  %8958 = vmatprep.subr.bf16.mxu0 0
  %8959 = vmatpush1.bf16.msra.mxu0 0
  %8960 = vmatprep.subr.bf16.mxu0 0
  %8961 = vmatpush1.bf16.msra.mxu0 0
  %8962 = vmatprep.subr.bf16.mxu0 %v8667
  %8963 = vmatpush1.bf16.msra.mxu0 %v8666
  %8964 = vmatprep.subr.bf16.mxu0 %v8651
  %8965 = vmatpush1.bf16.msra.mxu0 %v8650
  %8966 = vmatprep.subr.bf16.mxu0 %v8635
  %8967 = vmatpush1.bf16.msra.mxu0 %v8634
  %8968 = vmatprep.subr.bf16.mxu0 %v8619
  %8969 = vmatpush1.bf16.msra.mxu0 %v8618
  %8970 = vmatprep.subr.bf16.mxu0 0
  %8971 = vmatpush2.bf16.msra.mxu0 0
  %8972 = vmatprep.subr.bf16.mxu0 0
  %8973 = vmatpush2.bf16.msra.mxu0 0
  %8974 = vmatprep.subr.bf16.mxu0 0
  %8975 = vmatpush2.bf16.msra.mxu0 0
  %8976 = vmatprep.subr.bf16.mxu0 0
  %8977 = vmatpush2.bf16.msra.mxu0 0
  %8978 = vmatprep.subr.bf16.mxu0 0
  %8979 = vmatpush2.bf16.msra.mxu0 0
  %8980 = vmatprep.subr.bf16.mxu0 0
  %8981 = vmatpush2.bf16.msra.mxu0 0
  %8982 = vmatprep.subr.bf16.mxu0 0
  %8983 = vmatpush2.bf16.msra.mxu0 0
  %8984 = vmatprep.subr.bf16.mxu0 0
  %8985 = vmatpush2.bf16.msra.mxu0 0
  %8986 = vmatprep.mubr.bf16.mxu0 0
  %8987 = vmatmul.mubr.bf16.gmra.mxu0 %v8737
  %v8988 = vpop.f32.mrf.mxu0
  %v8989 = vadd.f32 %v8379, %v8988
  %v8990 = vpop.f32.mrf.mxu0
  %v8991 = vadd.f32 %v8383, %v8990
  %v8992 = vpop.f32.mrf.mxu0
  %v8993 = vadd.f32 %v8379, %v8992
  %v8994 = vpop.f32.mrf.mxu0
  %v8995 = vadd.f32 %v8383, %v8994
  %8996 = vdwg.mxu0
  %8997 = vmatprep.subr.bf16.mxu0 0
  %8998 = vmatpush1.bf16.msra.mxu0 0
  %8999 = vmatprep.subr.bf16.mxu0 0
  %9000 = vmatpush1.bf16.msra.mxu0 0
  %9001 = vmatprep.subr.bf16.mxu0 0
  %9002 = vmatpush1.bf16.msra.mxu0 0
  %9003 = vmatprep.subr.bf16.mxu0 0
  %9004 = vmatpush1.bf16.msra.mxu0 0
  %9005 = vmatprep.subr.bf16.mxu0 %v8669
  %9006 = vmatpush1.bf16.msra.mxu0 %v8668
  %9007 = vmatprep.subr.bf16.mxu0 %v8653
  %9008 = vmatpush1.bf16.msra.mxu0 %v8652
  %9009 = vmatprep.subr.bf16.mxu0 %v8637
  %9010 = vmatpush1.bf16.msra.mxu0 %v8636
  %9011 = vmatprep.subr.bf16.mxu0 %v8621
  %9012 = vmatpush1.bf16.msra.mxu0 %v8620
  %9013 = vmatprep.subr.bf16.mxu0 0
  %9014 = vmatpush2.bf16.msra.mxu0 0
  %9015 = vmatprep.subr.bf16.mxu0 0
  %9016 = vmatpush2.bf16.msra.mxu0 0
  %9017 = vmatprep.subr.bf16.mxu0 0
  %9018 = vmatpush2.bf16.msra.mxu0 0
  %9019 = vmatprep.subr.bf16.mxu0 0
  %9020 = vmatpush2.bf16.msra.mxu0 0
  %9021 = vmatprep.subr.bf16.mxu0 0
  %9022 = vmatpush2.bf16.msra.mxu0 0
  %9023 = vmatprep.subr.bf16.mxu0 0
  %9024 = vmatpush2.bf16.msra.mxu0 0
  %9025 = vmatprep.subr.bf16.mxu0 0
  %9026 = vmatpush2.bf16.msra.mxu0 0
  %9027 = vmatprep.subr.bf16.mxu0 0
  %9028 = vmatpush2.bf16.msra.mxu0 0
  %9029 = vmatprep.mubr.bf16.mxu0 0
  %9030 = vmatmul.mubr.bf16.gmra.mxu0 %v8737
  %v9031 = vpop.f32.mrf.mxu0
  %v9032 = vadd.f32 %v8387, %v9031
  %v9033 = vpop.f32.mrf.mxu0
  %v9034 = vadd.f32 %v8391, %v9033
  %v9035 = vpop.f32.mrf.mxu0
  %v9036 = vadd.f32 %v8387, %v9035
  %v9037 = vpop.f32.mrf.mxu0
  %v9038 = vadd.f32 %v8391, %v9037
  %9039 = vdwg.mxu0
  %9040 = vmatprep.subr.bf16.mxu0 0
  %9041 = vmatpush1.bf16.msra.mxu0 0
  %9042 = vmatprep.subr.bf16.mxu0 0
  %9043 = vmatpush1.bf16.msra.mxu0 0
  %9044 = vmatprep.subr.bf16.mxu0 0
  %9045 = vmatpush1.bf16.msra.mxu0 0
  %9046 = vmatprep.subr.bf16.mxu0 0
  %9047 = vmatpush1.bf16.msra.mxu0 0
  %9048 = vmatprep.subr.bf16.mxu0 %v8671
  %9049 = vmatpush1.bf16.msra.mxu0 %v8670
  %9050 = vmatprep.subr.bf16.mxu0 %v8655
  %9051 = vmatpush1.bf16.msra.mxu0 %v8654
  %9052 = vmatprep.subr.bf16.mxu0 %v8639
  %9053 = vmatpush1.bf16.msra.mxu0 %v8638
  %9054 = vmatprep.subr.bf16.mxu0 %v8623
  %9055 = vmatpush1.bf16.msra.mxu0 %v8622
  %9056 = vmatprep.subr.bf16.mxu0 0
  %9057 = vmatpush2.bf16.msra.mxu0 0
  %9058 = vmatprep.subr.bf16.mxu0 0
  %9059 = vmatpush2.bf16.msra.mxu0 0
  %9060 = vmatprep.subr.bf16.mxu0 0
  %9061 = vmatpush2.bf16.msra.mxu0 0
  %9062 = vmatprep.subr.bf16.mxu0 0
  %9063 = vmatpush2.bf16.msra.mxu0 0
  %9064 = vmatprep.subr.bf16.mxu0 0
  %9065 = vmatpush2.bf16.msra.mxu0 0
  %9066 = vmatprep.subr.bf16.mxu0 0
  %9067 = vmatpush2.bf16.msra.mxu0 0
  %9068 = vmatprep.subr.bf16.mxu0 0
  %9069 = vmatpush2.bf16.msra.mxu0 0
  %9070 = vmatprep.subr.bf16.mxu0 0
  %9071 = vmatpush2.bf16.msra.mxu0 0
  %9072 = vmatprep.mubr.bf16.mxu0 0
  %9073 = vmatmul.mubr.bf16.gmra.mxu0 %v8737
  %v9074 = vpop.f32.mrf.mxu0
  %v9075 = vadd.f32 %v8395, %v9074
  %v9076 = vpop.f32.mrf.mxu0
  %v9077 = vadd.f32 %v8399, %v9076
  %v9078 = vpop.f32.mrf.mxu0
  %v9079 = vadd.f32 %v8395, %v9078
  %v9080 = vpop.f32.mrf.mxu0
  %v9081 = vadd.f32 %v8399, %v9080
  %9082 = vdwg.mxu0
  %v9083 = vmax.f32 %v8774, 0.0
  %v9084 = vmax.f32 %v8776, 0.0
  %v9085 = vmax.f32 %v8817, 0.0
  %v9086 = vmax.f32 %v8819, 0.0
  %v9087 = vmax.f32 %v8860, 0.0
  %v9088 = vmax.f32 %v8862, 0.0
  %v9089 = vmax.f32 %v8903, 0.0
  %v9090 = vmax.f32 %v8905, 0.0
  %v9091 = vmax.f32 %v8946, 0.0
  %v9092 = vmax.f32 %v8948, 0.0
  %v9093 = vmax.f32 %v8989, 0.0
  %v9094 = vmax.f32 %v8991, 0.0
  %v9095 = vmax.f32 %v9032, 0.0
  %v9096 = vmax.f32 %v9034, 0.0
  %v9097 = vmax.f32 %v9075, 0.0
  %v9098 = vmax.f32 %v9077, 0.0
  %v9099 = vmax.f32 %v8778, 0.0
  %v9100 = vmax.f32 %v8780, 0.0
  %v9101 = vmax.f32 %v8821, 0.0
  %v9102 = vmax.f32 %v8823, 0.0
  %v9103 = vmax.f32 %v8864, 0.0
  %v9104 = vmax.f32 %v8866, 0.0
  %v9105 = vmax.f32 %v8907, 0.0
  %v9106 = vmax.f32 %v8909, 0.0
  %v9107 = vmax.f32 %v8950, 0.0
  %v9108 = vmax.f32 %v8952, 0.0
  %v9109 = vmax.f32 %v8993, 0.0
  %v9110 = vmax.f32 %v8995, 0.0
  %v9111 = vmax.f32 %v9036, 0.0
  %v9112 = vmax.f32 %v9038, 0.0
  %v9113 = vmax.f32 %v9079, 0.0
  %v9114 = vmax.f32 %v9081, 0.0
  %v9115 = vpack.c.bf16 %v9099, %v9083
  %v9116 = vpack.c.bf16 %v9100, %v9084
  %v9117 = vpack.c.bf16 %v9101, %v9085
  %v9118 = vpack.c.bf16 %v9102, %v9086
  %v9119 = vpack.c.bf16 %v9103, %v9087
  %v9120 = vpack.c.bf16 %v9104, %v9088
  %v9121 = vpack.c.bf16 %v9105, %v9089
  %v9122 = vpack.c.bf16 %v9106, %v9090
  %v9123 = vpack.c.bf16 %v9107, %v9091
  %v9124 = vpack.c.bf16 %v9108, %v9092
  %v9125 = vpack.c.bf16 %v9109, %v9093
  %v9126 = vpack.c.bf16 %v9110, %v9094
  %v9127 = vpack.c.bf16 %v9111, %v9095
  %v9128 = vpack.c.bf16 %v9112, %v9096
  %v9129 = vpack.c.bf16 %v9113, %v9097
  %v9130 = vpack.c.bf16 %v9114, %v9098
  %v9131 = vld [vmem:[%s75] sm:$0xf]
  %v9132 = vld [vmem:[%s75 + $0x4] sm:$0xf]
  %v9133 = vld [vmem:[%s75 + $0x8] sm:$0xf]
  %v9134 = vld [vmem:[%s75 + $0xc] sm:$0xf]
  %v9135 = vld [vmem:[%s75 + $0x10] sm:$0xf]
  %v9136 = vld [vmem:[%s75 + $0x14] sm:$0xf]
  %v9137 = vld [vmem:[%s75 + $0x18] sm:$0xf]
  %v9138 = vld [vmem:[%s75 + $0x1c] sm:$0xf]
  %v9139 = vld [vmem:[%s75 + $0x20] sm:$0xf]
  %v9140 = vld [vmem:[%s75 + $0x24] sm:$0xf]
  %v9141 = vld [vmem:[%s75 + $0x28] sm:$0xf]
  %v9142 = vld [vmem:[%s75 + $0x2c] sm:$0xf]
  %v9143 = vld [vmem:[%s75 + $0x30] sm:$0xf]
  %v9144 = vld [vmem:[%s75 + $0x34] sm:$0xf]
  %v9145 = vld [vmem:[%s75 + $0x38] sm:$0xf]
  %v9146 = vld [vmem:[%s75 + $0x3c] sm:$0xf]
  %v9147 = vld [vmem:[%s75 + $0x40] sm:$0xf]
  %v9148 = vld [vmem:[%s75 + $0x44] sm:$0xf]
  %v9149 = vld [vmem:[%s75 + $0x48] sm:$0xf]
  %v9150 = vld [vmem:[%s75 + $0x4c] sm:$0xf]
  %v9151 = vld [vmem:[%s75 + $0x50] sm:$0xf]
  %v9152 = vld [vmem:[%s75 + $0x54] sm:$0xf]
  %v9153 = vld [vmem:[%s75 + $0x58] sm:$0xf]
  %v9154 = vld [vmem:[%s75 + $0x5c] sm:$0xf]
  %v9155 = vld [vmem:[%s75 + $0x60] sm:$0xf]
  %v9156 = vld [vmem:[%s75 + $0x64] sm:$0xf]
  %v9157 = vld [vmem:[%s75 + $0x68] sm:$0xf]
  %v9158 = vld [vmem:[%s75 + $0x6c] sm:$0xf]
  %v9159 = vld [vmem:[%s75 + $0x70] sm:$0xf]
  %v9160 = vld [vmem:[%s75 + $0x74] sm:$0xf]
  %v9161 = vld [vmem:[%s75 + $0x78] sm:$0xf]
  %v9162 = vld [vmem:[%s75 + $0x7c] sm:$0xf]
  %v9163 = vld [vmem:[%s75 + $0x80] sm:$0xf]
  %v9164 = vld [vmem:[%s75 + $0x84] sm:$0xf]
  %v9165 = vld [vmem:[%s75 + $0x88] sm:$0xf]
  %v9166 = vld [vmem:[%s75 + $0x8c] sm:$0xf]
  %v9167 = vld [vmem:[%s75 + $0x90] sm:$0xf]
  %v9168 = vld [vmem:[%s75 + $0x94] sm:$0xf]
  %v9169 = vld [vmem:[%s75 + $0x98] sm:$0xf]
  %v9170 = vld [vmem:[%s75 + $0x9c] sm:$0xf]
  %v9171 = vld [vmem:[%s75 + $0xa0] sm:$0xf]
  %v9172 = vld [vmem:[%s75 + $0xa4] sm:$0xf]
  %v9173 = vld [vmem:[%s75 + $0xa8] sm:$0xf]
  %v9174 = vld [vmem:[%s75 + $0xac] sm:$0xf]
  %v9175 = vld [vmem:[%s75 + $0xb0] sm:$0xf]
  %v9176 = vld [vmem:[%s75 + $0xb4] sm:$0xf]
  %v9177 = vld [vmem:[%s75 + $0xb8] sm:$0xf]
  %v9178 = vld [vmem:[%s75 + $0xbc] sm:$0xf]
  %v9179 = vld [vmem:[%s75 + $0xc0] sm:$0xf]
  %v9180 = vld [vmem:[%s75 + $0xc4] sm:$0xf]
  %v9181 = vld [vmem:[%s75 + $0xc8] sm:$0xf]
  %v9182 = vld [vmem:[%s75 + $0xcc] sm:$0xf]
  %v9183 = vld [vmem:[%s75 + $0xd0] sm:$0xf]
  %v9184 = vld [vmem:[%s75 + $0xd4] sm:$0xf]
  %v9185 = vld [vmem:[%s75 + $0xd8] sm:$0xf]
  %v9186 = vld [vmem:[%s75 + $0xdc] sm:$0xf]
  %v9187 = vld [vmem:[%s75 + $0xe0] sm:$0xf]
  %v9188 = vld [vmem:[%s75 + $0xe4] sm:$0xf]
  %v9189 = vld [vmem:[%s75 + $0xe8] sm:$0xf]
  %v9190 = vld [vmem:[%s75 + $0xec] sm:$0xf]
  %v9191 = vld [vmem:[%s75 + $0xf0] sm:$0xf]
  %v9192 = vld [vmem:[%s75 + $0xf4] sm:$0xf]
  %v9193 = vld [vmem:[%s75 + $0xf8] sm:$0xf]
  %v9194 = vld [vmem:[%s75 + $0xfc] sm:$0xf]
  %v9195 = vld [vmem:[%s75 + $0x100] sm:$0xf]
  %v9196 = vld [vmem:[%s75 + $0x104] sm:$0xf]
  %v9197 = vld [vmem:[%s75 + $0x108] sm:$0xf]
  %v9198 = vld [vmem:[%s75 + $0x10c] sm:$0xf]
  %v9199 = vld [vmem:[%s75 + $0x110] sm:$0xf]
  %v9200 = vld [vmem:[%s75 + $0x114] sm:$0xf]
  %v9201 = vld [vmem:[%s75 + $0x118] sm:$0xf]
  %v9202 = vld [vmem:[%s75 + $0x11c] sm:$0xf]
  %v9203 = vld [vmem:[%s75 + $0x120] sm:$0xf]
  %v9204 = vld [vmem:[%s75 + $0x124] sm:$0xf]
  %v9205 = vld [vmem:[%s75 + $0x128] sm:$0xf]
  %v9206 = vld [vmem:[%s75 + $0x12c] sm:$0xf]
  %v9207 = vld [vmem:[%s75 + $0x130] sm:$0xf]
  %v9208 = vld [vmem:[%s75 + $0x134] sm:$0xf]
  %v9209 = vld [vmem:[%s75 + $0x138] sm:$0xf]
  %v9210 = vld [vmem:[%s75 + $0x13c] sm:$0xf]
  %v9211 = vld [vmem:[%s75 + $0x140] sm:$0xf]
  %v9212 = vld [vmem:[%s75 + $0x144] sm:$0xf]
  %v9213 = vld [vmem:[%s75 + $0x148] sm:$0xf]
  %v9214 = vld [vmem:[%s75 + $0x14c] sm:$0xf]
  %v9215 = vld [vmem:[%s75 + $0x150] sm:$0xf]
  %v9216 = vld [vmem:[%s75 + $0x154] sm:$0xf]
  %v9217 = vld [vmem:[%s75 + $0x158] sm:$0xf]
  %v9218 = vld [vmem:[%s75 + $0x15c] sm:$0xf]
  %v9219 = vld [vmem:[%s75 + $0x160] sm:$0xf]
  %v9220 = vld [vmem:[%s75 + $0x164] sm:$0xf]
  %v9221 = vld [vmem:[%s75 + $0x168] sm:$0xf]
  %v9222 = vld [vmem:[%s75 + $0x16c] sm:$0xf]
  %v9223 = vld [vmem:[%s75 + $0x170] sm:$0xf]
  %v9224 = vld [vmem:[%s75 + $0x174] sm:$0xf]
  %v9225 = vld [vmem:[%s75 + $0x178] sm:$0xf]
  %v9226 = vld [vmem:[%s75 + $0x17c] sm:$0xf]
  %v9227 = vld [vmem:[%s75 + $0x180] sm:$0xf]
  %v9228 = vld [vmem:[%s75 + $0x184] sm:$0xf]
  %v9229 = vld [vmem:[%s75 + $0x188] sm:$0xf]
  %v9230 = vld [vmem:[%s75 + $0x18c] sm:$0xf]
  %v9231 = vld [vmem:[%s75 + $0x190] sm:$0xf]
  %v9232 = vld [vmem:[%s75 + $0x194] sm:$0xf]
  %v9233 = vld [vmem:[%s75 + $0x198] sm:$0xf]
  %v9234 = vld [vmem:[%s75 + $0x19c] sm:$0xf]
  %v9235 = vld [vmem:[%s75 + $0x1a0] sm:$0xf]
  %v9236 = vld [vmem:[%s75 + $0x1a4] sm:$0xf]
  %v9237 = vld [vmem:[%s75 + $0x1a8] sm:$0xf]
  %v9238 = vld [vmem:[%s75 + $0x1ac] sm:$0xf]
  %v9239 = vld [vmem:[%s75 + $0x1b0] sm:$0xf]
  %v9240 = vld [vmem:[%s75 + $0x1b4] sm:$0xf]
  %v9241 = vld [vmem:[%s75 + $0x1b8] sm:$0xf]
  %v9242 = vld [vmem:[%s75 + $0x1bc] sm:$0xf]
  %v9243 = vld [vmem:[%s75 + $0x1c0] sm:$0xf]
  %v9244 = vld [vmem:[%s75 + $0x1c4] sm:$0xf]
  %v9245 = vld [vmem:[%s75 + $0x1c8] sm:$0xf]
  %v9246 = vld [vmem:[%s75 + $0x1cc] sm:$0xf]
  %v9247 = vld [vmem:[%s75 + $0x1d0] sm:$0xf]
  %v9248 = vld [vmem:[%s75 + $0x1d4] sm:$0xf]
  %v9249 = vld [vmem:[%s75 + $0x1d8] sm:$0xf]
  %v9250 = vld [vmem:[%s75 + $0x1dc] sm:$0xf]
  %v9251 = vld [vmem:[%s75 + $0x1e0] sm:$0xf]
  %v9252 = vld [vmem:[%s75 + $0x1e4] sm:$0xf]
  %v9253 = vld [vmem:[%s75 + $0x1e8] sm:$0xf]
  %v9254 = vld [vmem:[%s75 + $0x1ec] sm:$0xf]
  %v9255 = vld [vmem:[%s75 + $0x1f0] sm:$0xf]
  %v9256 = vld [vmem:[%s75 + $0x1f4] sm:$0xf]
  %v9257 = vld [vmem:[%s75 + $0x1f8] sm:$0xf]
  %v9258 = vld [vmem:[%s75 + $0x1fc] sm:$0xf]
  %v9259 = vld [vmem:[%s75 + $0x200] sm:$0xf]
  %v9260 = vld [vmem:[%s75 + $0x204] sm:$0xf]
  %v9261 = vld [vmem:[%s75 + $0x208] sm:$0xf]
  %v9262 = vld [vmem:[%s75 + $0x20c] sm:$0xf]
  %v9263 = vld [vmem:[%s75 + $0x210] sm:$0xf]
  %v9264 = vld [vmem:[%s75 + $0x214] sm:$0xf]
  %v9265 = vld [vmem:[%s75 + $0x218] sm:$0xf]
  %v9266 = vld [vmem:[%s75 + $0x21c] sm:$0xf]
  %v9267 = vld [vmem:[%s75 + $0x220] sm:$0xf]
  %v9268 = vld [vmem:[%s75 + $0x224] sm:$0xf]
  %v9269 = vld [vmem:[%s75 + $0x228] sm:$0xf]
  %v9270 = vld [vmem:[%s75 + $0x22c] sm:$0xf]
  %v9271 = vld [vmem:[%s75 + $0x230] sm:$0xf]
  %v9272 = vld [vmem:[%s75 + $0x234] sm:$0xf]
  %v9273 = vld [vmem:[%s75 + $0x238] sm:$0xf]
  %v9274 = vld [vmem:[%s75 + $0x23c] sm:$0xf]
  %v9275 = vld [vmem:[%s75 + $0x240] sm:$0xf]
  %v9276 = vld [vmem:[%s75 + $0x244] sm:$0xf]
  %v9277 = vld [vmem:[%s75 + $0x248] sm:$0xf]
  %v9278 = vld [vmem:[%s75 + $0x24c] sm:$0xf]
  %v9279 = vld [vmem:[%s75 + $0x250] sm:$0xf]
  %v9280 = vld [vmem:[%s75 + $0x254] sm:$0xf]
  %v9281 = vld [vmem:[%s75 + $0x258] sm:$0xf]
  %v9282 = vld [vmem:[%s75 + $0x25c] sm:$0xf]
  %v9283 = vld [vmem:[%s75 + $0x260] sm:$0xf]
  %v9284 = vld [vmem:[%s75 + $0x264] sm:$0xf]
  %v9285 = vld [vmem:[%s75 + $0x268] sm:$0xf]
  %v9286 = vld [vmem:[%s75 + $0x26c] sm:$0xf]
  %v9287 = vld [vmem:[%s75 + $0x270] sm:$0xf]
  %v9288 = vld [vmem:[%s75 + $0x274] sm:$0xf]
  %v9289 = vld [vmem:[%s75 + $0x278] sm:$0xf]
  %v9290 = vld [vmem:[%s75 + $0x27c] sm:$0xf]
  %v9291 = vld [vmem:[%s75 + $0x280] sm:$0xf]
  %v9292 = vld [vmem:[%s75 + $0x284] sm:$0xf]
  %v9293 = vld [vmem:[%s75 + $0x288] sm:$0xf]
  %v9294 = vld [vmem:[%s75 + $0x28c] sm:$0xf]
  %v9295 = vld [vmem:[%s75 + $0x290] sm:$0xf]
  %v9296 = vld [vmem:[%s75 + $0x294] sm:$0xf]
  %v9297 = vld [vmem:[%s75 + $0x298] sm:$0xf]
  %v9298 = vld [vmem:[%s75 + $0x29c] sm:$0xf]
  %v9299 = vld [vmem:[%s75 + $0x2a0] sm:$0xf]
  %v9300 = vld [vmem:[%s75 + $0x2a4] sm:$0xf]
  %v9301 = vld [vmem:[%s75 + $0x2a8] sm:$0xf]
  %v9302 = vld [vmem:[%s75 + $0x2ac] sm:$0xf]
  %v9303 = vld [vmem:[%s75 + $0x2b0] sm:$0xf]
  %v9304 = vld [vmem:[%s75 + $0x2b4] sm:$0xf]
  %v9305 = vld [vmem:[%s75 + $0x2b8] sm:$0xf]
  %v9306 = vld [vmem:[%s75 + $0x2bc] sm:$0xf]
  %v9307 = vld [vmem:[%s75 + $0x2c0] sm:$0xf]
  %v9308 = vld [vmem:[%s75 + $0x2c4] sm:$0xf]
  %v9309 = vld [vmem:[%s75 + $0x2c8] sm:$0xf]
  %v9310 = vld [vmem:[%s75 + $0x2cc] sm:$0xf]
  %v9311 = vld [vmem:[%s75 + $0x2d0] sm:$0xf]
  %v9312 = vld [vmem:[%s75 + $0x2d4] sm:$0xf]
  %v9313 = vld [vmem:[%s75 + $0x2d8] sm:$0xf]
  %v9314 = vld [vmem:[%s75 + $0x2dc] sm:$0xf]
  %v9315 = vld [vmem:[%s75 + $0x2e0] sm:$0xf]
  %v9316 = vld [vmem:[%s75 + $0x2e4] sm:$0xf]
  %v9317 = vld [vmem:[%s75 + $0x2e8] sm:$0xf]
  %v9318 = vld [vmem:[%s75 + $0x2ec] sm:$0xf]
  %v9319 = vld [vmem:[%s75 + $0x2f0] sm:$0xf]
  %v9320 = vld [vmem:[%s75 + $0x2f4] sm:$0xf]
  %v9321 = vld [vmem:[%s75 + $0x2f8] sm:$0xf]
  %v9322 = vld [vmem:[%s75 + $0x2fc] sm:$0xf]
  %v9323 = vld [vmem:[%s75 + $0x300] sm:$0xf]
  %v9324 = vld [vmem:[%s75 + $0x304] sm:$0xf]
  %v9325 = vld [vmem:[%s75 + $0x308] sm:$0xf]
  %v9326 = vld [vmem:[%s75 + $0x30c] sm:$0xf]
  %v9327 = vld [vmem:[%s75 + $0x310] sm:$0xf]
  %v9328 = vld [vmem:[%s75 + $0x314] sm:$0xf]
  %v9329 = vld [vmem:[%s75 + $0x318] sm:$0xf]
  %v9330 = vld [vmem:[%s75 + $0x31c] sm:$0xf]
  %v9331 = vld [vmem:[%s75 + $0x320] sm:$0xf]
  %v9332 = vld [vmem:[%s75 + $0x324] sm:$0xf]
  %v9333 = vld [vmem:[%s75 + $0x328] sm:$0xf]
  %v9334 = vld [vmem:[%s75 + $0x32c] sm:$0xf]
  %v9335 = vld [vmem:[%s75 + $0x330] sm:$0xf]
  %v9336 = vld [vmem:[%s75 + $0x334] sm:$0xf]
  %v9337 = vld [vmem:[%s75 + $0x338] sm:$0xf]
  %v9338 = vld [vmem:[%s75 + $0x33c] sm:$0xf]
  %v9339 = vld [vmem:[%s75 + $0x340] sm:$0xf]
  %v9340 = vld [vmem:[%s75 + $0x344] sm:$0xf]
  %v9341 = vld [vmem:[%s75 + $0x348] sm:$0xf]
  %v9342 = vld [vmem:[%s75 + $0x34c] sm:$0xf]
  %v9343 = vld [vmem:[%s75 + $0x350] sm:$0xf]
  %v9344 = vld [vmem:[%s75 + $0x354] sm:$0xf]
  %v9345 = vld [vmem:[%s75 + $0x358] sm:$0xf]
  %v9346 = vld [vmem:[%s75 + $0x35c] sm:$0xf]
  %v9347 = vld [vmem:[%s75 + $0x360] sm:$0xf]
  %v9348 = vld [vmem:[%s75 + $0x364] sm:$0xf]
  %v9349 = vld [vmem:[%s75 + $0x368] sm:$0xf]
  %v9350 = vld [vmem:[%s75 + $0x36c] sm:$0xf]
  %v9351 = vld [vmem:[%s75 + $0x370] sm:$0xf]
  %v9352 = vld [vmem:[%s75 + $0x374] sm:$0xf]
  %v9353 = vld [vmem:[%s75 + $0x378] sm:$0xf]
  %v9354 = vld [vmem:[%s75 + $0x37c] sm:$0xf]
  %v9355 = vld [vmem:[%s75 + $0x380] sm:$0xf]
  %v9356 = vld [vmem:[%s75 + $0x384] sm:$0xf]
  %v9357 = vld [vmem:[%s75 + $0x388] sm:$0xf]
  %v9358 = vld [vmem:[%s75 + $0x38c] sm:$0xf]
  %v9359 = vld [vmem:[%s75 + $0x390] sm:$0xf]
  %v9360 = vld [vmem:[%s75 + $0x394] sm:$0xf]
  %v9361 = vld [vmem:[%s75 + $0x398] sm:$0xf]
  %v9362 = vld [vmem:[%s75 + $0x39c] sm:$0xf]
  %v9363 = vld [vmem:[%s75 + $0x3a0] sm:$0xf]
  %v9364 = vld [vmem:[%s75 + $0x3a4] sm:$0xf]
  %v9365 = vld [vmem:[%s75 + $0x3a8] sm:$0xf]
  %v9366 = vld [vmem:[%s75 + $0x3ac] sm:$0xf]
  %v9367 = vld [vmem:[%s75 + $0x3b0] sm:$0xf]
  %v9368 = vld [vmem:[%s75 + $0x3b4] sm:$0xf]
  %v9369 = vld [vmem:[%s75 + $0x3b8] sm:$0xf]
  %v9370 = vld [vmem:[%s75 + $0x3bc] sm:$0xf]
  %v9371 = vld [vmem:[%s75 + $0x3c0] sm:$0xf]
  %v9372 = vld [vmem:[%s75 + $0x3c4] sm:$0xf]
  %v9373 = vld [vmem:[%s75 + $0x3c8] sm:$0xf]
  %v9374 = vld [vmem:[%s75 + $0x3cc] sm:$0xf]
  %v9375 = vld [vmem:[%s75 + $0x3d0] sm:$0xf]
  %v9376 = vld [vmem:[%s75 + $0x3d4] sm:$0xf]
  %v9377 = vld [vmem:[%s75 + $0x3d8] sm:$0xf]
  %v9378 = vld [vmem:[%s75 + $0x3dc] sm:$0xf]
  %v9379 = vld [vmem:[%s75 + $0x3e0] sm:$0xf]
  %v9380 = vld [vmem:[%s75 + $0x3e4] sm:$0xf]
  %v9381 = vld [vmem:[%s75 + $0x3e8] sm:$0xf]
  %v9382 = vld [vmem:[%s75 + $0x3ec] sm:$0xf]
  %v9383 = vld [vmem:[%s75 + $0x3f0] sm:$0xf]
  %v9384 = vld [vmem:[%s75 + $0x3f4] sm:$0xf]
  %v9385 = vld [vmem:[%s75 + $0x3f8] sm:$0xf]
  %v9386 = vld [vmem:[%s75 + $0x3fc] sm:$0xf]
  %v9387 = vld [vmem:[%s77] sm:$0x1]
  %v9389 = vlaneseq
  %v9390 = vshrl.u32 %v9389, 7
  %v9391 = vsub.s32 0, %v9390
  %v9392 = vrot.slane %v9387, %v9391
  %v9650 = vunpack.c.l.b16 %v9131
  %v9651 = vunpack.c.l.b16 %v9132
  %v9652 = vunpack.c.l.b16 %v9133
  %v9653 = vunpack.c.l.b16 %v9134
  %v9654 = vunpack.c.l.b16 %v9135
  %v9655 = vunpack.c.l.b16 %v9136
  %v9656 = vunpack.c.l.b16 %v9137
  %v9657 = vunpack.c.l.b16 %v9138
  %v9658 = vunpack.c.l.b16 %v9139
  %v9659 = vunpack.c.l.b16 %v9140
  %v9660 = vunpack.c.l.b16 %v9141
  %v9661 = vunpack.c.l.b16 %v9142
  %v9662 = vunpack.c.l.b16 %v9143
  %v9663 = vunpack.c.l.b16 %v9144
  %v9664 = vunpack.c.l.b16 %v9145
  %v9665 = vunpack.c.l.b16 %v9146
  %v9666 = vunpack.c.l.b16 %v9147
  %v9667 = vunpack.c.l.b16 %v9148
  %v9668 = vunpack.c.l.b16 %v9149
  %v9669 = vunpack.c.l.b16 %v9150
  %v9670 = vunpack.c.l.b16 %v9151
  %v9671 = vunpack.c.l.b16 %v9152
  %v9672 = vunpack.c.l.b16 %v9153
  %v9673 = vunpack.c.l.b16 %v9154
  %v9674 = vunpack.c.l.b16 %v9155
  %v9675 = vunpack.c.l.b16 %v9156
  %v9676 = vunpack.c.l.b16 %v9157
  %v9677 = vunpack.c.l.b16 %v9158
  %v9678 = vunpack.c.l.b16 %v9159
  %v9679 = vunpack.c.l.b16 %v9160
  %v9680 = vunpack.c.l.b16 %v9161
  %v9681 = vunpack.c.l.b16 %v9162
  %v9682 = vunpack.c.l.b16 %v9163
  %v9683 = vunpack.c.l.b16 %v9164
  %v9684 = vunpack.c.l.b16 %v9165
  %v9685 = vunpack.c.l.b16 %v9166
  %v9686 = vunpack.c.l.b16 %v9167
  %v9687 = vunpack.c.l.b16 %v9168
  %v9688 = vunpack.c.l.b16 %v9169
  %v9689 = vunpack.c.l.b16 %v9170
  %v9690 = vunpack.c.l.b16 %v9171
  %v9691 = vunpack.c.l.b16 %v9172
  %v9692 = vunpack.c.l.b16 %v9173
  %v9693 = vunpack.c.l.b16 %v9174
  %v9694 = vunpack.c.l.b16 %v9175
  %v9695 = vunpack.c.l.b16 %v9176
  %v9696 = vunpack.c.l.b16 %v9177
  %v9697 = vunpack.c.l.b16 %v9178
  %v9698 = vunpack.c.l.b16 %v9179
  %v9699 = vunpack.c.l.b16 %v9180
  %v9700 = vunpack.c.l.b16 %v9181
  %v9701 = vunpack.c.l.b16 %v9182
  %v9702 = vunpack.c.l.b16 %v9183
  %v9703 = vunpack.c.l.b16 %v9184
  %v9704 = vunpack.c.l.b16 %v9185
  %v9705 = vunpack.c.l.b16 %v9186
  %v9706 = vunpack.c.l.b16 %v9187
  %v9707 = vunpack.c.l.b16 %v9188
  %v9708 = vunpack.c.l.b16 %v9189
  %v9709 = vunpack.c.l.b16 %v9190
  %v9710 = vunpack.c.l.b16 %v9191
  %v9711 = vunpack.c.l.b16 %v9192
  %v9712 = vunpack.c.l.b16 %v9193
  %v9713 = vunpack.c.l.b16 %v9194
  %v9714 = vunpack.c.l.b16 %v9195
  %v9715 = vunpack.c.l.b16 %v9196
  %v9716 = vunpack.c.l.b16 %v9197
  %v9717 = vunpack.c.l.b16 %v9198
  %v9718 = vunpack.c.l.b16 %v9199
  %v9719 = vunpack.c.l.b16 %v9200
  %v9720 = vunpack.c.l.b16 %v9201
  %v9721 = vunpack.c.l.b16 %v9202
  %v9722 = vunpack.c.l.b16 %v9203
  %v9723 = vunpack.c.l.b16 %v9204
  %v9724 = vunpack.c.l.b16 %v9205
  %v9725 = vunpack.c.l.b16 %v9206
  %v9726 = vunpack.c.l.b16 %v9207
  %v9727 = vunpack.c.l.b16 %v9208
  %v9728 = vunpack.c.l.b16 %v9209
  %v9729 = vunpack.c.l.b16 %v9210
  %v9730 = vunpack.c.l.b16 %v9211
  %v9731 = vunpack.c.l.b16 %v9212
  %v9732 = vunpack.c.l.b16 %v9213
  %v9733 = vunpack.c.l.b16 %v9214
  %v9734 = vunpack.c.l.b16 %v9215
  %v9735 = vunpack.c.l.b16 %v9216
  %v9736 = vunpack.c.l.b16 %v9217
  %v9737 = vunpack.c.l.b16 %v9218
  %v9738 = vunpack.c.l.b16 %v9219
  %v9739 = vunpack.c.l.b16 %v9220
  %v9740 = vunpack.c.l.b16 %v9221
  %v9741 = vunpack.c.l.b16 %v9222
  %v9742 = vunpack.c.l.b16 %v9223
  %v9743 = vunpack.c.l.b16 %v9224
  %v9744 = vunpack.c.l.b16 %v9225
  %v9745 = vunpack.c.l.b16 %v9226
  %v9746 = vunpack.c.l.b16 %v9227
  %v9747 = vunpack.c.l.b16 %v9228
  %v9748 = vunpack.c.l.b16 %v9229
  %v9749 = vunpack.c.l.b16 %v9230
  %v9750 = vunpack.c.l.b16 %v9231
  %v9751 = vunpack.c.l.b16 %v9232
  %v9752 = vunpack.c.l.b16 %v9233
  %v9753 = vunpack.c.l.b16 %v9234
  %v9754 = vunpack.c.l.b16 %v9235
  %v9755 = vunpack.c.l.b16 %v9236
  %v9756 = vunpack.c.l.b16 %v9237
  %v9757 = vunpack.c.l.b16 %v9238
  %v9758 = vunpack.c.l.b16 %v9239
  %v9759 = vunpack.c.l.b16 %v9240
  %v9760 = vunpack.c.l.b16 %v9241
  %v9761 = vunpack.c.l.b16 %v9242
  %v9762 = vunpack.c.l.b16 %v9243
  %v9763 = vunpack.c.l.b16 %v9244
  %v9764 = vunpack.c.l.b16 %v9245
  %v9765 = vunpack.c.l.b16 %v9246
  %v9766 = vunpack.c.l.b16 %v9247
  %v9767 = vunpack.c.l.b16 %v9248
  %v9768 = vunpack.c.l.b16 %v9249
  %v9769 = vunpack.c.l.b16 %v9250
  %v9770 = vunpack.c.l.b16 %v9251
  %v9771 = vunpack.c.l.b16 %v9252
  %v9772 = vunpack.c.l.b16 %v9253
  %v9773 = vunpack.c.l.b16 %v9254
  %v9774 = vunpack.c.l.b16 %v9255
  %v9775 = vunpack.c.l.b16 %v9256
  %v9776 = vunpack.c.l.b16 %v9257
  %v9777 = vunpack.c.l.b16 %v9258
  %v9778 = vunpack.c.l.b16 %v9259
  %v9779 = vunpack.c.l.b16 %v9260
  %v9780 = vunpack.c.l.b16 %v9261
  %v9781 = vunpack.c.l.b16 %v9262
  %v9782 = vunpack.c.l.b16 %v9263
  %v9783 = vunpack.c.l.b16 %v9264
  %v9784 = vunpack.c.l.b16 %v9265
  %v9785 = vunpack.c.l.b16 %v9266
  %v9786 = vunpack.c.l.b16 %v9267
  %v9787 = vunpack.c.l.b16 %v9268
  %v9788 = vunpack.c.l.b16 %v9269
  %v9789 = vunpack.c.l.b16 %v9270
  %v9790 = vunpack.c.l.b16 %v9271
  %v9791 = vunpack.c.l.b16 %v9272
  %v9792 = vunpack.c.l.b16 %v9273
  %v9793 = vunpack.c.l.b16 %v9274
  %v9794 = vunpack.c.l.b16 %v9275
  %v9795 = vunpack.c.l.b16 %v9276
  %v9796 = vunpack.c.l.b16 %v9277
  %v9797 = vunpack.c.l.b16 %v9278
  %v9798 = vunpack.c.l.b16 %v9279
  %v9799 = vunpack.c.l.b16 %v9280
  %v9800 = vunpack.c.l.b16 %v9281
  %v9801 = vunpack.c.l.b16 %v9282
  %v9802 = vunpack.c.l.b16 %v9283
  %v9803 = vunpack.c.l.b16 %v9284
  %v9804 = vunpack.c.l.b16 %v9285
  %v9805 = vunpack.c.l.b16 %v9286
  %v9806 = vunpack.c.l.b16 %v9287
  %v9807 = vunpack.c.l.b16 %v9288
  %v9808 = vunpack.c.l.b16 %v9289
  %v9809 = vunpack.c.l.b16 %v9290
  %v9810 = vunpack.c.l.b16 %v9291
  %v9811 = vunpack.c.l.b16 %v9292
  %v9812 = vunpack.c.l.b16 %v9293
  %v9813 = vunpack.c.l.b16 %v9294
  %v9814 = vunpack.c.l.b16 %v9295
  %v9815 = vunpack.c.l.b16 %v9296
  %v9816 = vunpack.c.l.b16 %v9297
  %v9817 = vunpack.c.l.b16 %v9298
  %v9818 = vunpack.c.l.b16 %v9299
  %v9819 = vunpack.c.l.b16 %v9300
  %v9820 = vunpack.c.l.b16 %v9301
  %v9821 = vunpack.c.l.b16 %v9302
  %v9822 = vunpack.c.l.b16 %v9303
  %v9823 = vunpack.c.l.b16 %v9304
  %v9824 = vunpack.c.l.b16 %v9305
  %v9825 = vunpack.c.l.b16 %v9306
  %v9826 = vunpack.c.l.b16 %v9307
  %v9827 = vunpack.c.l.b16 %v9308
  %v9828 = vunpack.c.l.b16 %v9309
  %v9829 = vunpack.c.l.b16 %v9310
  %v9830 = vunpack.c.l.b16 %v9311
  %v9831 = vunpack.c.l.b16 %v9312
  %v9832 = vunpack.c.l.b16 %v9313
  %v9833 = vunpack.c.l.b16 %v9314
  %v9834 = vunpack.c.l.b16 %v9315
  %v9835 = vunpack.c.l.b16 %v9316
  %v9836 = vunpack.c.l.b16 %v9317
  %v9837 = vunpack.c.l.b16 %v9318
  %v9838 = vunpack.c.l.b16 %v9319
  %v9839 = vunpack.c.l.b16 %v9320
  %v9840 = vunpack.c.l.b16 %v9321
  %v9841 = vunpack.c.l.b16 %v9322
  %v9842 = vunpack.c.l.b16 %v9323
  %v9843 = vunpack.c.l.b16 %v9324
  %v9844 = vunpack.c.l.b16 %v9325
  %v9845 = vunpack.c.l.b16 %v9326
  %v9846 = vunpack.c.l.b16 %v9327
  %v9847 = vunpack.c.l.b16 %v9328
  %v9848 = vunpack.c.l.b16 %v9329
  %v9849 = vunpack.c.l.b16 %v9330
  %v9850 = vunpack.c.l.b16 %v9331
  %v9851 = vunpack.c.l.b16 %v9332
  %v9852 = vunpack.c.l.b16 %v9333
  %v9853 = vunpack.c.l.b16 %v9334
  %v9854 = vunpack.c.l.b16 %v9335
  %v9855 = vunpack.c.l.b16 %v9336
  %v9856 = vunpack.c.l.b16 %v9337
  %v9857 = vunpack.c.l.b16 %v9338
  %v9858 = vunpack.c.l.b16 %v9339
  %v9859 = vunpack.c.l.b16 %v9340
  %v9860 = vunpack.c.l.b16 %v9341
  %v9861 = vunpack.c.l.b16 %v9342
  %v9862 = vunpack.c.l.b16 %v9343
  %v9863 = vunpack.c.l.b16 %v9344
  %v9864 = vunpack.c.l.b16 %v9345
  %v9865 = vunpack.c.l.b16 %v9346
  %v9866 = vunpack.c.l.b16 %v9347
  %v9867 = vunpack.c.l.b16 %v9348
  %v9868 = vunpack.c.l.b16 %v9349
  %v9869 = vunpack.c.l.b16 %v9350
  %v9870 = vunpack.c.l.b16 %v9351
  %v9871 = vunpack.c.l.b16 %v9352
  %v9872 = vunpack.c.l.b16 %v9353
  %v9873 = vunpack.c.l.b16 %v9354
  %v9874 = vunpack.c.l.b16 %v9355
  %v9875 = vunpack.c.l.b16 %v9356
  %v9876 = vunpack.c.l.b16 %v9357
  %v9877 = vunpack.c.l.b16 %v9358
  %v9878 = vunpack.c.l.b16 %v9359
  %v9879 = vunpack.c.l.b16 %v9360
  %v9880 = vunpack.c.l.b16 %v9361
  %v9881 = vunpack.c.l.b16 %v9362
  %v9882 = vunpack.c.l.b16 %v9363
  %v9883 = vunpack.c.l.b16 %v9364
  %v9884 = vunpack.c.l.b16 %v9365
  %v9885 = vunpack.c.l.b16 %v9366
  %v9886 = vunpack.c.l.b16 %v9367
  %v9887 = vunpack.c.l.b16 %v9368
  %v9888 = vunpack.c.l.b16 %v9369
  %v9889 = vunpack.c.l.b16 %v9370
  %v9890 = vunpack.c.l.b16 %v9371
  %v9891 = vunpack.c.l.b16 %v9372
  %v9892 = vunpack.c.l.b16 %v9373
  %v9893 = vunpack.c.l.b16 %v9374
  %v9894 = vunpack.c.l.b16 %v9375
  %v9895 = vunpack.c.l.b16 %v9376
  %v9896 = vunpack.c.l.b16 %v9377
  %v9897 = vunpack.c.l.b16 %v9378
  %v9898 = vunpack.c.l.b16 %v9379
  %v9899 = vunpack.c.l.b16 %v9380
  %v9900 = vunpack.c.l.b16 %v9381
  %v9901 = vunpack.c.l.b16 %v9382
  %v9902 = vunpack.c.l.b16 %v9383
  %v9903 = vunpack.c.l.b16 %v9384
  %v9904 = vunpack.c.l.b16 %v9385
  %v9905 = vunpack.c.l.b16 %v9386
  %v9906 = vpack.c.b16 %v9651, %v9650
  %v9907 = vpack.c.b16 %v9653, %v9652
  %v9908 = vpack.c.b16 %v9655, %v9654
  %v9909 = vpack.c.b16 %v9657, %v9656
  %v9910 = vpack.c.b16 %v9659, %v9658
  %v9911 = vpack.c.b16 %v9661, %v9660
  %v9912 = vpack.c.b16 %v9663, %v9662
  %v9913 = vpack.c.b16 %v9665, %v9664
  %v9914 = vpack.c.b16 %v9667, %v9666
  %v9915 = vpack.c.b16 %v9669, %v9668
  %v9916 = vpack.c.b16 %v9671, %v9670
  %v9917 = vpack.c.b16 %v9673, %v9672
  %v9918 = vpack.c.b16 %v9675, %v9674
  %v9919 = vpack.c.b16 %v9677, %v9676
  %v9920 = vpack.c.b16 %v9679, %v9678
  %v9921 = vpack.c.b16 %v9681, %v9680
  %v9922 = vpack.c.b16 %v9683, %v9682
  %v9923 = vpack.c.b16 %v9685, %v9684
  %v9924 = vpack.c.b16 %v9687, %v9686
  %v9925 = vpack.c.b16 %v9689, %v9688
  %v9926 = vpack.c.b16 %v9691, %v9690
  %v9927 = vpack.c.b16 %v9693, %v9692
  %v9928 = vpack.c.b16 %v9695, %v9694
  %v9929 = vpack.c.b16 %v9697, %v9696
  %v9930 = vpack.c.b16 %v9699, %v9698
  %v9931 = vpack.c.b16 %v9701, %v9700
  %v9932 = vpack.c.b16 %v9703, %v9702
  %v9933 = vpack.c.b16 %v9705, %v9704
  %v9934 = vpack.c.b16 %v9707, %v9706
  %v9935 = vpack.c.b16 %v9709, %v9708
  %v9936 = vpack.c.b16 %v9711, %v9710
  %v9937 = vpack.c.b16 %v9713, %v9712
  %v9938 = vpack.c.b16 %v9715, %v9714
  %v9939 = vpack.c.b16 %v9717, %v9716
  %v9940 = vpack.c.b16 %v9719, %v9718
  %v9941 = vpack.c.b16 %v9721, %v9720
  %v9942 = vpack.c.b16 %v9723, %v9722
  %v9943 = vpack.c.b16 %v9725, %v9724
  %v9944 = vpack.c.b16 %v9727, %v9726
  %v9945 = vpack.c.b16 %v9729, %v9728
  %v9946 = vpack.c.b16 %v9731, %v9730
  %v9947 = vpack.c.b16 %v9733, %v9732
  %v9948 = vpack.c.b16 %v9735, %v9734
  %v9949 = vpack.c.b16 %v9737, %v9736
  %v9950 = vpack.c.b16 %v9739, %v9738
  %v9951 = vpack.c.b16 %v9741, %v9740
  %v9952 = vpack.c.b16 %v9743, %v9742
  %v9953 = vpack.c.b16 %v9745, %v9744
  %v9954 = vpack.c.b16 %v9747, %v9746
  %v9955 = vpack.c.b16 %v9749, %v9748
  %v9956 = vpack.c.b16 %v9751, %v9750
  %v9957 = vpack.c.b16 %v9753, %v9752
  %v9958 = vpack.c.b16 %v9755, %v9754
  %v9959 = vpack.c.b16 %v9757, %v9756
  %v9960 = vpack.c.b16 %v9759, %v9758
  %v9961 = vpack.c.b16 %v9761, %v9760
  %v9962 = vpack.c.b16 %v9763, %v9762
  %v9963 = vpack.c.b16 %v9765, %v9764
  %v9964 = vpack.c.b16 %v9767, %v9766
  %v9965 = vpack.c.b16 %v9769, %v9768
  %v9966 = vpack.c.b16 %v9771, %v9770
  %v9967 = vpack.c.b16 %v9773, %v9772
  %v9968 = vpack.c.b16 %v9775, %v9774
  %v9969 = vpack.c.b16 %v9777, %v9776
  %v9970 = vpack.c.b16 %v9779, %v9778
  %v9971 = vpack.c.b16 %v9781, %v9780
  %v9972 = vpack.c.b16 %v9783, %v9782
  %v9973 = vpack.c.b16 %v9785, %v9784
  %v9974 = vpack.c.b16 %v9787, %v9786
  %v9975 = vpack.c.b16 %v9789, %v9788
  %v9976 = vpack.c.b16 %v9791, %v9790
  %v9977 = vpack.c.b16 %v9793, %v9792
  %v9978 = vpack.c.b16 %v9795, %v9794
  %v9979 = vpack.c.b16 %v9797, %v9796
  %v9980 = vpack.c.b16 %v9799, %v9798
  %v9981 = vpack.c.b16 %v9801, %v9800
  %v9982 = vpack.c.b16 %v9803, %v9802
  %v9983 = vpack.c.b16 %v9805, %v9804
  %v9984 = vpack.c.b16 %v9807, %v9806
  %v9985 = vpack.c.b16 %v9809, %v9808
  %v9986 = vpack.c.b16 %v9811, %v9810
  %v9987 = vpack.c.b16 %v9813, %v9812
  %v9988 = vpack.c.b16 %v9815, %v9814
  %v9989 = vpack.c.b16 %v9817, %v9816
  %v9990 = vpack.c.b16 %v9819, %v9818
  %v9991 = vpack.c.b16 %v9821, %v9820
  %v9992 = vpack.c.b16 %v9823, %v9822
  %v9993 = vpack.c.b16 %v9825, %v9824
  %v9994 = vpack.c.b16 %v9827, %v9826
  %v9995 = vpack.c.b16 %v9829, %v9828
  %v9996 = vpack.c.b16 %v9831, %v9830
  %v9997 = vpack.c.b16 %v9833, %v9832
  %v9998 = vpack.c.b16 %v9835, %v9834
  %v9999 = vpack.c.b16 %v9837, %v9836
  %v10000 = vpack.c.b16 %v9839, %v9838
  %v10001 = vpack.c.b16 %v9841, %v9840
  %v10002 = vpack.c.b16 %v9843, %v9842
  %v10003 = vpack.c.b16 %v9845, %v9844
  %v10004 = vpack.c.b16 %v9847, %v9846
  %v10005 = vpack.c.b16 %v9849, %v9848
  %v10006 = vpack.c.b16 %v9851, %v9850
  %v10007 = vpack.c.b16 %v9853, %v9852
  %v10008 = vpack.c.b16 %v9855, %v9854
  %v10009 = vpack.c.b16 %v9857, %v9856
  %v10010 = vpack.c.b16 %v9859, %v9858
  %v10011 = vpack.c.b16 %v9861, %v9860
  %v10012 = vpack.c.b16 %v9863, %v9862
  %v10013 = vpack.c.b16 %v9865, %v9864
  %v10014 = vpack.c.b16 %v9867, %v9866
  %v10015 = vpack.c.b16 %v9869, %v9868
  %v10016 = vpack.c.b16 %v9871, %v9870
  %v10017 = vpack.c.b16 %v9873, %v9872
  %v10018 = vpack.c.b16 %v9875, %v9874
  %v10019 = vpack.c.b16 %v9877, %v9876
  %v10020 = vpack.c.b16 %v9879, %v9878
  %v10021 = vpack.c.b16 %v9881, %v9880
  %v10022 = vpack.c.b16 %v9883, %v9882
  %v10023 = vpack.c.b16 %v9885, %v9884
  %v10024 = vpack.c.b16 %v9887, %v9886
  %v10025 = vpack.c.b16 %v9889, %v9888
  %v10026 = vpack.c.b16 %v9891, %v9890
  %v10027 = vpack.c.b16 %v9893, %v9892
  %v10028 = vpack.c.b16 %v9895, %v9894
  %v10029 = vpack.c.b16 %v9897, %v9896
  %v10030 = vpack.c.b16 %v9899, %v9898
  %v10031 = vpack.c.b16 %v9901, %v9900
  %v10032 = vpack.c.b16 %v9903, %v9902
  %v10033 = vpack.c.b16 %v9905, %v9904
  %10162 = vmatprep.subr.bf16.mxu0 0
  %10163 = vmatpush1.bf16.msra.mxu0 %v9913
  %10164 = vmatprep.subr.bf16.mxu0 0
  %10165 = vmatpush1.bf16.msra.mxu0 %v9912
  %10166 = vmatprep.subr.bf16.mxu0 0
  %10167 = vmatpush1.bf16.msra.mxu0 %v9911
  %10168 = vmatprep.subr.bf16.mxu0 0
  %10169 = vmatpush1.bf16.msra.mxu0 %v9910
  %10170 = vmatprep.subr.bf16.mxu0 0
  %10171 = vmatpush1.bf16.msra.mxu0 %v9909
  %10172 = vmatprep.subr.bf16.mxu0 0
  %10173 = vmatpush1.bf16.msra.mxu0 %v9908
  %10174 = vmatprep.subr.bf16.mxu0 0
  %10175 = vmatpush1.bf16.msra.mxu0 %v9907
  %10176 = vmatprep.subr.bf16.mxu0 0
  %10177 = vmatpush1.bf16.msra.mxu0 %v9906
  %10178 = vmatprep.subr.bf16.mxu0 0
  %10179 = vmatpush2.bf16.msra.mxu0 %v9921
  %10180 = vmatprep.subr.bf16.mxu0 0
  %10181 = vmatpush2.bf16.msra.mxu0 %v9920
  %10182 = vmatprep.subr.bf16.mxu0 0
  %10183 = vmatpush2.bf16.msra.mxu0 %v9919
  %10184 = vmatprep.subr.bf16.mxu0 0
  %10185 = vmatpush2.bf16.msra.mxu0 %v9918
  %10186 = vmatprep.subr.bf16.mxu0 0
  %10187 = vmatpush2.bf16.msra.mxu0 %v9917
  %10188 = vmatprep.subr.bf16.mxu0 0
  %10189 = vmatpush2.bf16.msra.mxu0 %v9916
  %10190 = vmatprep.subr.bf16.mxu0 0
  %10191 = vmatpush2.bf16.msra.mxu0 %v9915
  %10192 = vmatprep.subr.bf16.mxu0 0
  %10193 = vmatpush2.bf16.msra.mxu0 %v9914
  %10194 = vmatprep.mubr.bf16.mxu0 %v9116
  %10195 = vmatmul.mubr.bf16.gmra.mxu0 %v9115
  %v10196 = vpop.f32.mrf.mxu0
  %v10197 = vadd.f32 %v9392, %v10196
  %v10198 = vpop.f32.mrf.mxu0
  %v10199 = vpop.f32.mrf.mxu0
  %v10200 = vadd.f32 %v9392, %v10199
  %v10201 = vpop.f32.mrf.mxu0
  %10202 = vdwg.mxu0
  %10203 = vmatprep.subr.bf16.mxu0 0
  %10204 = vmatpush1.bf16.msra.mxu0 %v9929
  %10205 = vmatprep.subr.bf16.mxu0 0
  %10206 = vmatpush1.bf16.msra.mxu0 %v9928
  %10207 = vmatprep.subr.bf16.mxu0 0
  %10208 = vmatpush1.bf16.msra.mxu0 %v9927
  %10209 = vmatprep.subr.bf16.mxu0 0
  %10210 = vmatpush1.bf16.msra.mxu0 %v9926
  %10211 = vmatprep.subr.bf16.mxu0 0
  %10212 = vmatpush1.bf16.msra.mxu0 %v9925
  %10213 = vmatprep.subr.bf16.mxu0 0
  %10214 = vmatpush1.bf16.msra.mxu0 %v9924
  %10215 = vmatprep.subr.bf16.mxu0 0
  %10216 = vmatpush1.bf16.msra.mxu0 %v9923
  %10217 = vmatprep.subr.bf16.mxu0 0
  %10218 = vmatpush1.bf16.msra.mxu0 %v9922
  %10219 = vmatprep.subr.bf16.mxu0 0
  %10220 = vmatpush2.bf16.msra.mxu0 %v9937
  %10221 = vmatprep.subr.bf16.mxu0 0
  %10222 = vmatpush2.bf16.msra.mxu0 %v9936
  %10223 = vmatprep.subr.bf16.mxu0 0
  %10224 = vmatpush2.bf16.msra.mxu0 %v9935
  %10225 = vmatprep.subr.bf16.mxu0 0
  %10226 = vmatpush2.bf16.msra.mxu0 %v9934
  %10227 = vmatprep.subr.bf16.mxu0 0
  %10228 = vmatpush2.bf16.msra.mxu0 %v9933
  %10229 = vmatprep.subr.bf16.mxu0 0
  %10230 = vmatpush2.bf16.msra.mxu0 %v9932
  %10231 = vmatprep.subr.bf16.mxu0 0
  %10232 = vmatpush2.bf16.msra.mxu0 %v9931
  %10233 = vmatprep.subr.bf16.mxu0 0
  %10234 = vmatpush2.bf16.msra.mxu0 %v9930
  %10235 = vmatprep.mubr.bf16.mxu0 %v9118
  %10236 = vmatmul.mubr.bf16.gmra.mxu0 %v9117
  %v10237 = vpop.f32.mrf.mxu0
  %v10238 = vadd.f32 %v10197, %v10237
  %v10239 = vpop.f32.mrf.mxu0
  %v10240 = vpop.f32.mrf.mxu0
  %v10241 = vadd.f32 %v10200, %v10240
  %v10242 = vpop.f32.mrf.mxu0
  %10243 = vdwg.mxu0
  %10244 = vmatprep.subr.bf16.mxu0 0
  %10245 = vmatpush1.bf16.msra.mxu0 %v9945
  %10246 = vmatprep.subr.bf16.mxu0 0
  %10247 = vmatpush1.bf16.msra.mxu0 %v9944
  %10248 = vmatprep.subr.bf16.mxu0 0
  %10249 = vmatpush1.bf16.msra.mxu0 %v9943
  %10250 = vmatprep.subr.bf16.mxu0 0
  %10251 = vmatpush1.bf16.msra.mxu0 %v9942
  %10252 = vmatprep.subr.bf16.mxu0 0
  %10253 = vmatpush1.bf16.msra.mxu0 %v9941
  %10254 = vmatprep.subr.bf16.mxu0 0
  %10255 = vmatpush1.bf16.msra.mxu0 %v9940
  %10256 = vmatprep.subr.bf16.mxu0 0
  %10257 = vmatpush1.bf16.msra.mxu0 %v9939
  %10258 = vmatprep.subr.bf16.mxu0 0
  %10259 = vmatpush1.bf16.msra.mxu0 %v9938
  %10260 = vmatprep.subr.bf16.mxu0 0
  %10261 = vmatpush2.bf16.msra.mxu0 %v9953
  %10262 = vmatprep.subr.bf16.mxu0 0
  %10263 = vmatpush2.bf16.msra.mxu0 %v9952
  %10264 = vmatprep.subr.bf16.mxu0 0
  %10265 = vmatpush2.bf16.msra.mxu0 %v9951
  %10266 = vmatprep.subr.bf16.mxu0 0
  %10267 = vmatpush2.bf16.msra.mxu0 %v9950
  %10268 = vmatprep.subr.bf16.mxu0 0
  %10269 = vmatpush2.bf16.msra.mxu0 %v9949
  %10270 = vmatprep.subr.bf16.mxu0 0
  %10271 = vmatpush2.bf16.msra.mxu0 %v9948
  %10272 = vmatprep.subr.bf16.mxu0 0
  %10273 = vmatpush2.bf16.msra.mxu0 %v9947
  %10274 = vmatprep.subr.bf16.mxu0 0
  %10275 = vmatpush2.bf16.msra.mxu0 %v9946
  %10276 = vmatprep.mubr.bf16.mxu0 %v9120
  %10277 = vmatmul.mubr.bf16.gmra.mxu0 %v9119
  %v10278 = vpop.f32.mrf.mxu0
  %v10279 = vadd.f32 %v10238, %v10278
  %v10280 = vpop.f32.mrf.mxu0
  %v10281 = vpop.f32.mrf.mxu0
  %v10282 = vadd.f32 %v10241, %v10281
  %v10283 = vpop.f32.mrf.mxu0
  %10284 = vdwg.mxu0
  %10285 = vmatprep.subr.bf16.mxu0 0
  %10286 = vmatpush1.bf16.msra.mxu0 %v9961
  %10287 = vmatprep.subr.bf16.mxu0 0
  %10288 = vmatpush1.bf16.msra.mxu0 %v9960
  %10289 = vmatprep.subr.bf16.mxu0 0
  %10290 = vmatpush1.bf16.msra.mxu0 %v9959
  %10291 = vmatprep.subr.bf16.mxu0 0
  %10292 = vmatpush1.bf16.msra.mxu0 %v9958
  %10293 = vmatprep.subr.bf16.mxu0 0
  %10294 = vmatpush1.bf16.msra.mxu0 %v9957
  %10295 = vmatprep.subr.bf16.mxu0 0
  %10296 = vmatpush1.bf16.msra.mxu0 %v9956
  %10297 = vmatprep.subr.bf16.mxu0 0
  %10298 = vmatpush1.bf16.msra.mxu0 %v9955
  %10299 = vmatprep.subr.bf16.mxu0 0
  %10300 = vmatpush1.bf16.msra.mxu0 %v9954
  %10301 = vmatprep.subr.bf16.mxu0 0
  %10302 = vmatpush2.bf16.msra.mxu0 %v9969
  %10303 = vmatprep.subr.bf16.mxu0 0
  %10304 = vmatpush2.bf16.msra.mxu0 %v9968
  %10305 = vmatprep.subr.bf16.mxu0 0
  %10306 = vmatpush2.bf16.msra.mxu0 %v9967
  %10307 = vmatprep.subr.bf16.mxu0 0
  %10308 = vmatpush2.bf16.msra.mxu0 %v9966
  %10309 = vmatprep.subr.bf16.mxu0 0
  %10310 = vmatpush2.bf16.msra.mxu0 %v9965
  %10311 = vmatprep.subr.bf16.mxu0 0
  %10312 = vmatpush2.bf16.msra.mxu0 %v9964
  %10313 = vmatprep.subr.bf16.mxu0 0
  %10314 = vmatpush2.bf16.msra.mxu0 %v9963
  %10315 = vmatprep.subr.bf16.mxu0 0
  %10316 = vmatpush2.bf16.msra.mxu0 %v9962
  %10317 = vmatprep.mubr.bf16.mxu0 %v9122
  %10318 = vmatmul.mubr.bf16.gmra.mxu0 %v9121
  %v10319 = vpop.f32.mrf.mxu0
  %v10320 = vadd.f32 %v10279, %v10319
  %v10321 = vpop.f32.mrf.mxu0
  %v10322 = vpop.f32.mrf.mxu0
  %v10323 = vadd.f32 %v10282, %v10322
  %v10324 = vpop.f32.mrf.mxu0
  %10325 = vdwg.mxu0
  %10326 = vmatprep.subr.bf16.mxu0 0
  %10327 = vmatpush1.bf16.msra.mxu0 %v9977
  %10328 = vmatprep.subr.bf16.mxu0 0
  %10329 = vmatpush1.bf16.msra.mxu0 %v9976
  %10330 = vmatprep.subr.bf16.mxu0 0
  %10331 = vmatpush1.bf16.msra.mxu0 %v9975
  %10332 = vmatprep.subr.bf16.mxu0 0
  %10333 = vmatpush1.bf16.msra.mxu0 %v9974
  %10334 = vmatprep.subr.bf16.mxu0 0
  %10335 = vmatpush1.bf16.msra.mxu0 %v9973
  %10336 = vmatprep.subr.bf16.mxu0 0
  %10337 = vmatpush1.bf16.msra.mxu0 %v9972
  %10338 = vmatprep.subr.bf16.mxu0 0
  %10339 = vmatpush1.bf16.msra.mxu0 %v9971
  %10340 = vmatprep.subr.bf16.mxu0 0
  %10341 = vmatpush1.bf16.msra.mxu0 %v9970
  %10342 = vmatprep.subr.bf16.mxu0 0
  %10343 = vmatpush2.bf16.msra.mxu0 %v9985
  %10344 = vmatprep.subr.bf16.mxu0 0
  %10345 = vmatpush2.bf16.msra.mxu0 %v9984
  %10346 = vmatprep.subr.bf16.mxu0 0
  %10347 = vmatpush2.bf16.msra.mxu0 %v9983
  %10348 = vmatprep.subr.bf16.mxu0 0
  %10349 = vmatpush2.bf16.msra.mxu0 %v9982
  %10350 = vmatprep.subr.bf16.mxu0 0
  %10351 = vmatpush2.bf16.msra.mxu0 %v9981
  %10352 = vmatprep.subr.bf16.mxu0 0
  %10353 = vmatpush2.bf16.msra.mxu0 %v9980
  %10354 = vmatprep.subr.bf16.mxu0 0
  %10355 = vmatpush2.bf16.msra.mxu0 %v9979
  %10356 = vmatprep.subr.bf16.mxu0 0
  %10357 = vmatpush2.bf16.msra.mxu0 %v9978
  %10358 = vmatprep.mubr.bf16.mxu0 %v9124
  %10359 = vmatmul.mubr.bf16.gmra.mxu0 %v9123
  %v10360 = vpop.f32.mrf.mxu0
  %v10361 = vadd.f32 %v10320, %v10360
  %v10362 = vpop.f32.mrf.mxu0
  %v10363 = vpop.f32.mrf.mxu0
  %v10364 = vadd.f32 %v10323, %v10363
  %v10365 = vpop.f32.mrf.mxu0
  %10366 = vdwg.mxu0
  %10367 = vmatprep.subr.bf16.mxu0 0
  %10368 = vmatpush1.bf16.msra.mxu0 %v9993
  %10369 = vmatprep.subr.bf16.mxu0 0
  %10370 = vmatpush1.bf16.msra.mxu0 %v9992
  %10371 = vmatprep.subr.bf16.mxu0 0
  %10372 = vmatpush1.bf16.msra.mxu0 %v9991
  %10373 = vmatprep.subr.bf16.mxu0 0
  %10374 = vmatpush1.bf16.msra.mxu0 %v9990
  %10375 = vmatprep.subr.bf16.mxu0 0
  %10376 = vmatpush1.bf16.msra.mxu0 %v9989
  %10377 = vmatprep.subr.bf16.mxu0 0
  %10378 = vmatpush1.bf16.msra.mxu0 %v9988
  %10379 = vmatprep.subr.bf16.mxu0 0
  %10380 = vmatpush1.bf16.msra.mxu0 %v9987
  %10381 = vmatprep.subr.bf16.mxu0 0
  %10382 = vmatpush1.bf16.msra.mxu0 %v9986
  %10383 = vmatprep.subr.bf16.mxu0 0
  %10384 = vmatpush2.bf16.msra.mxu0 %v10001
  %10385 = vmatprep.subr.bf16.mxu0 0
  %10386 = vmatpush2.bf16.msra.mxu0 %v10000
  %10387 = vmatprep.subr.bf16.mxu0 0
  %10388 = vmatpush2.bf16.msra.mxu0 %v9999
  %10389 = vmatprep.subr.bf16.mxu0 0
  %10390 = vmatpush2.bf16.msra.mxu0 %v9998
  %10391 = vmatprep.subr.bf16.mxu0 0
  %10392 = vmatpush2.bf16.msra.mxu0 %v9997
  %10393 = vmatprep.subr.bf16.mxu0 0
  %10394 = vmatpush2.bf16.msra.mxu0 %v9996
  %10395 = vmatprep.subr.bf16.mxu0 0
  %10396 = vmatpush2.bf16.msra.mxu0 %v9995
  %10397 = vmatprep.subr.bf16.mxu0 0
  %10398 = vmatpush2.bf16.msra.mxu0 %v9994
  %10399 = vmatprep.mubr.bf16.mxu0 %v9126
  %10400 = vmatmul.mubr.bf16.gmra.mxu0 %v9125
  %v10401 = vpop.f32.mrf.mxu0
  %v10402 = vadd.f32 %v10361, %v10401
  %v10403 = vpop.f32.mrf.mxu0
  %v10404 = vpop.f32.mrf.mxu0
  %v10405 = vadd.f32 %v10364, %v10404
  %v10406 = vpop.f32.mrf.mxu0
  %10407 = vdwg.mxu0
  %10408 = vmatprep.subr.bf16.mxu0 0
  %10409 = vmatpush1.bf16.msra.mxu0 %v10009
  %10410 = vmatprep.subr.bf16.mxu0 0
  %10411 = vmatpush1.bf16.msra.mxu0 %v10008
  %10412 = vmatprep.subr.bf16.mxu0 0
  %10413 = vmatpush1.bf16.msra.mxu0 %v10007
  %10414 = vmatprep.subr.bf16.mxu0 0
  %10415 = vmatpush1.bf16.msra.mxu0 %v10006
  %10416 = vmatprep.subr.bf16.mxu0 0
  %10417 = vmatpush1.bf16.msra.mxu0 %v10005
  %10418 = vmatprep.subr.bf16.mxu0 0
  %10419 = vmatpush1.bf16.msra.mxu0 %v10004
  %10420 = vmatprep.subr.bf16.mxu0 0
  %10421 = vmatpush1.bf16.msra.mxu0 %v10003
  %10422 = vmatprep.subr.bf16.mxu0 0
  %10423 = vmatpush1.bf16.msra.mxu0 %v10002
  %10424 = vmatprep.subr.bf16.mxu0 0
  %10425 = vmatpush2.bf16.msra.mxu0 %v10017
  %10426 = vmatprep.subr.bf16.mxu0 0
  %10427 = vmatpush2.bf16.msra.mxu0 %v10016
  %10428 = vmatprep.subr.bf16.mxu0 0
  %10429 = vmatpush2.bf16.msra.mxu0 %v10015
  %10430 = vmatprep.subr.bf16.mxu0 0
  %10431 = vmatpush2.bf16.msra.mxu0 %v10014
  %10432 = vmatprep.subr.bf16.mxu0 0
  %10433 = vmatpush2.bf16.msra.mxu0 %v10013
  %10434 = vmatprep.subr.bf16.mxu0 0
  %10435 = vmatpush2.bf16.msra.mxu0 %v10012
  %10436 = vmatprep.subr.bf16.mxu0 0
  %10437 = vmatpush2.bf16.msra.mxu0 %v10011
  %10438 = vmatprep.subr.bf16.mxu0 0
  %10439 = vmatpush2.bf16.msra.mxu0 %v10010
  %10440 = vmatprep.mubr.bf16.mxu0 %v9128
  %10441 = vmatmul.mubr.bf16.gmra.mxu0 %v9127
  %v10442 = vpop.f32.mrf.mxu0
  %v10443 = vadd.f32 %v10402, %v10442
  %v10444 = vpop.f32.mrf.mxu0
  %v10445 = vpop.f32.mrf.mxu0
  %v10446 = vadd.f32 %v10405, %v10445
  %v10447 = vpop.f32.mrf.mxu0
  %10448 = vdwg.mxu0
  %10449 = vmatprep.subr.bf16.mxu0 0
  %10450 = vmatpush1.bf16.msra.mxu0 %v10025
  %10451 = vmatprep.subr.bf16.mxu0 0
  %10452 = vmatpush1.bf16.msra.mxu0 %v10024
  %10453 = vmatprep.subr.bf16.mxu0 0
  %10454 = vmatpush1.bf16.msra.mxu0 %v10023
  %10455 = vmatprep.subr.bf16.mxu0 0
  %10456 = vmatpush1.bf16.msra.mxu0 %v10022
  %10457 = vmatprep.subr.bf16.mxu0 0
  %10458 = vmatpush1.bf16.msra.mxu0 %v10021
  %10459 = vmatprep.subr.bf16.mxu0 0
  %10460 = vmatpush1.bf16.msra.mxu0 %v10020
  %10461 = vmatprep.subr.bf16.mxu0 0
  %10462 = vmatpush1.bf16.msra.mxu0 %v10019
  %10463 = vmatprep.subr.bf16.mxu0 0
  %10464 = vmatpush1.bf16.msra.mxu0 %v10018
  %10465 = vmatprep.subr.bf16.mxu0 0
  %10466 = vmatpush2.bf16.msra.mxu0 %v10033
  %10467 = vmatprep.subr.bf16.mxu0 0
  %10468 = vmatpush2.bf16.msra.mxu0 %v10032
  %10469 = vmatprep.subr.bf16.mxu0 0
  %10470 = vmatpush2.bf16.msra.mxu0 %v10031
  %10471 = vmatprep.subr.bf16.mxu0 0
  %10472 = vmatpush2.bf16.msra.mxu0 %v10030
  %10473 = vmatprep.subr.bf16.mxu0 0
  %10474 = vmatpush2.bf16.msra.mxu0 %v10029
  %10475 = vmatprep.subr.bf16.mxu0 0
  %10476 = vmatpush2.bf16.msra.mxu0 %v10028
  %10477 = vmatprep.subr.bf16.mxu0 0
  %10478 = vmatpush2.bf16.msra.mxu0 %v10027
  %10479 = vmatprep.subr.bf16.mxu0 0
  %10480 = vmatpush2.bf16.msra.mxu0 %v10026
  %10481 = vmatprep.mubr.bf16.mxu0 %v9130
  %10482 = vmatmul.mubr.bf16.gmra.mxu0 %v9129
  %v10483 = vpop.f32.mrf.mxu0
  %v10484 = vadd.f32 %v10443, %v10483
  %v10485 = vpop.f32.mrf.mxu0
  %v10486 = vpop.f32.mrf.mxu0
  %v10487 = vadd.f32 %v10446, %v10486
  %v10488 = vpop.f32.mrf.mxu0
  %10489 = vdwg.mxu0
  %v10490 = vadd.f32 %v10484, %v8265
  %v10491 = vadd.f32 %v10487, %v8266
  %v10492 = vld [vmem:[%s79] sm:$0x1]
  %v10493 = vld [vmem:[%s81] sm:$0x1]
  %v10494 = vsel %vm213, %v10490, 0.0
  %10495 = vadd.xlane.f32.xlu0 %v10494
  %v10496 = vpop.xlane.xlu0 %10495
  %v10497 = vsel %vm213, %v10491, 0.0
  %10498 = vadd.xlane.f32.xlu0 %v10497
  %v10499 = vpop.xlane.xlu0 %10498
  %v10500 = vmul.f32 %v10496, %v1382
  %v10501 = vmul.f32 %v10499, %v1382
  %v10502 = vsub.f32 %v10490, %v10500
  %v10503 = vsub.f32 %v10491, %v10501
  %v10504 = vmul.f32 %v10502, %v10502
  %v10505 = vmul.f32 %v10503, %v10503
  %v10506 = vsel %vm213, %v10504, 0.0
  %10507 = vadd.xlane.f32.xlu0 %v10506
  %v10508 = vpop.xlane.xlu0 %10507
  %v10509 = vsel %vm213, %v10505, 0.0
  %10510 = vadd.xlane.f32.xlu0 %v10509
  %v10511 = vpop.xlane.xlu0 %10510
  %v10512 = vmul.f32 %v10508, %v1382
  %v10513 = vmul.f32 %v10511, %v1382
  %v10514 = vadd.f32 %v10512, 1e-05
  %v10515 = vadd.f32 %v10513, 1e-05
  %v10516 = vrsqrt.pop %v10514
  %v10517 = vrsqrt.pop %v10515
  %v10518 = vmul.f32 %v10502, %v10516
  %v10519 = vmul.f32 %v10503, %v10517
  %v10521 = vlaneseq
  %v10522 = vshrl.u32 %v10521, 7
  %v10523 = vsub.s32 0, %v10522
  %v10524 = vrot.slane %v10492, %v10523
  %v10526 = vmul.f32 %v10518, %v10524
  %v10527 = vmul.f32 %v10519, %v10524
  %v10529 = vlaneseq
  %v10530 = vshrl.u32 %v10529, 7
  %v10531 = vsub.s32 0, %v10530
  %v10532 = vrot.slane %v10493, %v10531
  %v10534 = vadd.f32 %v10526, %v10532
  %v10535 = vadd.f32 %v10527, %v10532
  %v10536 = vpack.c.bf16 %v10534, %v10534
  %v10537 = vpack.c.bf16 %v10535, %v10535
  %v10538 = vld [vmem:[%s7] sm:$0xf]
  %v10539 = vld [vmem:[%s7 + $0x4] sm:$0xf]
  %v10540 = vld [vmem:[%s7 + $0x8] sm:$0xf]
  %v10541 = vld [vmem:[%s7 + $0xc] sm:$0xf]
  %v10542 = vld [vmem:[%s7 + $0x10] sm:$0xf]
  %v10543 = vld [vmem:[%s7 + $0x14] sm:$0xf]
  %v10544 = vld [vmem:[%s7 + $0x18] sm:$0xf]
  %v10545 = vld [vmem:[%s7 + $0x1c] sm:$0xf]
  %v10546 = vld [vmem:[%s9] sm:$0x1]
  %v10548 = vlaneseq
  %v10549 = vshrl.u32 %v10548, 7
  %v10550 = vsub.s32 0, %v10549
  %v10551 = vrot.slane %v10546, %v10550
  %v10555 = vunpack.c.l.b16 %v10536
  %v10556 = vunpack.c.l.b16 %v10537
  %v10557 = vrot.slane %v10555, 7
  %v10558 = vrot.slane %v10556, 6
  %vm10559 = vcmask 1041409
  %v10560 = vsel %vm10559, %v10558, %v10557
  %v10561 = vpack.c.b16 %v10560, %v10560
  %v10570 = vunpack.c.l.b16 %v10538
  %v10571 = vunpack.c.l.b16 %v10539
  %v10572 = vunpack.c.l.b16 %v10540
  %v10573 = vunpack.c.l.b16 %v10541
  %v10574 = vunpack.c.l.b16 %v10542
  %v10575 = vunpack.c.l.b16 %v10543
  %v10576 = vunpack.c.l.b16 %v10544
  %v10577 = vunpack.c.l.b16 %v10545
  %v10578 = vpack.c.b16 %v10571, %v10570
  %v10579 = vpack.c.b16 %v10573, %v10572
  %v10580 = vpack.c.b16 %v10575, %v10574
  %v10581 = vpack.c.b16 %v10577, %v10576
  %v10587 = vsel %vm213, %v10561, 0
  %10589 = vmatprep.subr.bf16.mxu0 0
  %10590 = vmatpush1.bf16.msra.mxu0 0
  %10591 = vmatprep.subr.bf16.mxu0 0
  %10592 = vmatpush1.bf16.msra.mxu0 0
  %10593 = vmatprep.subr.bf16.mxu0 0
  %10594 = vmatpush1.bf16.msra.mxu0 0
  %10595 = vmatprep.subr.bf16.mxu0 0
  %10596 = vmatpush1.bf16.msra.mxu0 0
  %10597 = vmatprep.subr.bf16.mxu0 0
  %10598 = vmatpush1.bf16.msra.mxu0 %v10581
  %10599 = vmatprep.subr.bf16.mxu0 0
  %10600 = vmatpush1.bf16.msra.mxu0 %v10580
  %10601 = vmatprep.subr.bf16.mxu0 0
  %10602 = vmatpush1.bf16.msra.mxu0 %v10579
  %10603 = vmatprep.subr.bf16.mxu0 0
  %10604 = vmatpush1.bf16.msra.mxu0 %v10578
  %10605 = vmatprep.subr.bf16.mxu0 0
  %10606 = vmatpush2.bf16.msra.mxu0 0
  %10607 = vmatprep.subr.bf16.mxu0 0
  %10608 = vmatpush2.bf16.msra.mxu0 0
  %10609 = vmatprep.subr.bf16.mxu0 0
  %10610 = vmatpush2.bf16.msra.mxu0 0
  %10611 = vmatprep.subr.bf16.mxu0 0
  %10612 = vmatpush2.bf16.msra.mxu0 0
  %10613 = vmatprep.subr.bf16.mxu0 0
  %10614 = vmatpush2.bf16.msra.mxu0 0
  %10615 = vmatprep.subr.bf16.mxu0 0
  %10616 = vmatpush2.bf16.msra.mxu0 0
  %10617 = vmatprep.subr.bf16.mxu0 0
  %10618 = vmatpush2.bf16.msra.mxu0 0
  %10619 = vmatprep.subr.bf16.mxu0 0
  %10620 = vmatpush2.bf16.msra.mxu0 0
  %10621 = vmatprep.mubr.bf16.mxu0 0
  %10622 = vmatmul.mubr.bf16.gmra.mxu0 %v10587
  %v10623 = vpop.f32.mrf.mxu0
  %v10624 = vadd.f32 %v10551, %v10623
  %v10625 = vpop.f32.mrf.mxu0
  %v10626 = vpop.f32.mrf.mxu0
  %v10627 = vpop.f32.mrf.mxu0
  %10628 = vdwg.mxu0
  %vm10629 = vcmask 386048
  %10630 = vst.msk [vmem:[%s83] sm:$0x3] %vm10629, %v10624
  // Predicated region
  $region166: #{patchtst_forward.1} parent=0 // pred_check
    _
  $region167: #{patchtst_forward.1} parent=0 // pred_check_branch
    %10632 = sbr.rel (0) target = $region169
  $region168: #{patchtst_forward.1} parent=0 // pred_region
    _
  $region169: #{patchtst_forward.1} parent=0 // pred_fallthru
    _
  // Predicated region
  $region170: #{patchtst_forward.1} parent=0 // pred_check
    _
  $region171: #{patchtst_forward.1} parent=0 // pred_check_branch
    %10634 = sbr.rel (0) target = $region173
  $region172: #{patchtst_forward.1} parent=0 // pred_region
    _
  $region173: #{patchtst_forward.1} parent=0 // pred_fallthru
    _

</llo_original>
